<compile_context>
chip_gen: v6e
topology: v6e:2x2x1
jax: 0.10.0
libtpu: 0.0.40
codegen_flags: <defaults>
</compile_context>

<pallas_src>
import functools

import jax
import jax.numpy as jnp
from jax import lax
from jax.experimental import pallas as pl
from jax.experimental.pallas import tpu as pltpu

NEG_SLOPE = 0.01  # nn.LeakyReLU() default negative_slope


def _round_up(x, m):
    return ((x + m - 1) // m) * m


def _residual_block_kernel(xa_ref, xb_ref, w1_ref, b1_ref, w2_ref, b2_ref,
                           o_ref, *, H, W, TH, C, res_scale):
    # xa_ref : (1, TH, W+4, C)  main rows of the 2-pixel-halo padded input (f32)
    # xb_ref : (1, 4,  W+4, C)  4-row bottom halo (rows just below the tile)
    # w1_ref : (9C, C)          conv1 weights, (dy, dx, cin)-major along K, bf16
    # b1_ref : (1, C)           conv1 bias, f32
    # w2_ref : (9C, C)          conv2 weights, bf16
    # b2_ref : (1, C)           conv2 bias, f32
    # o_ref  : (1, TH, W, C)    out = x + res_scale * conv2(lrelu(conv1(x)))
    r = pl.program_id(1)        # row-tile index
    E1 = TH + 2                 # conv1 extended grid rows (tile + 1-act-row halo)
    W1 = W + 2                  # conv1 extended grid cols

    # Contiguous (TH+4, W+4, C) input window: f32 copy for the residual path,
    # one bf16 cast for all MXU operands (cast once, not per tap).
    xs = jnp.concatenate([xa_ref[0], xb_ref[0]], axis=0)      # (TH+4, W+4, C) f32
    xb = xs.astype(jnp.bfloat16)

    # ---- conv1 as ONE im2col matmul (K = 9C) on the extended grid ----------
    p1 = jnp.concatenate(
        [xb[dy:dy + E1, dx:dx + W1, :] for dy in range(3) for dx in range(3)],
        axis=-1)                                               # (E1, W1, 9C) bf16
    y = jnp.dot(p1.reshape(E1 * W1, 9 * C), w1_ref[...],
                preferred_element_type=jnp.float32)            # (E1*W1, C) f32
    y = y.reshape(E1, W1, C) + b1_ref[...].reshape(1, 1, C)
    y = jnp.where(y >= 0, y, NEG_SLOPE * y)                    # LeakyReLU (VPU)

    # In-kernel interior mask (replaces the old HBM mask input): zero every
    # extended-grid position that lies outside the true HxW image, so `ya`
    # equals the zero-padded activation conv2 expects (also kills padded rows
    # introduced by row-tiling the image height).
    g_row = lax.broadcasted_iota(jnp.int32, (E1, W1, 1), 0) + (r * TH - 1)
    g_col = lax.broadcasted_iota(jnp.int32, (E1, W1, 1), 1) - 1
    valid = (g_row >= 0) & (g_row < H) & (g_col >= 0) & (g_col < W)
    ya = jnp.where(valid, y, 0.0).astype(jnp.bfloat16)         # (E1, W1, C) bf16

    # ---- conv2 as ONE im2col matmul (K = 9C) on the valid THxW grid --------
    p2 = jnp.concatenate(
        [ya[dy:dy + TH, dx:dx + W, :] for dy in range(3) for dx in range(3)],
        axis=-1)                                               # (TH, W, 9C) bf16
    out = jnp.dot(p2.reshape(TH * W, 9 * C), w2_ref[...],
                  preferred_element_type=jnp.float32)          # (TH*W, C) f32
    out = out.reshape(TH, W, C) + b2_ref[...].reshape(1, 1, C)

    # ---- fused residual: identity + res_scale * out -------------------------
    if res_scale != 1.0:                                       # elided when == 1
        out = out * res_scale
    identity = xs[2:TH + 2, 2:W + 2, :]                        # f32 identity
    o_ref[...] = (identity + out)[None].astype(o_ref.dtype)


def residual_block_nobn(x_nhwc, w1, b1, w2, b2, *, res_scale=1.0,
                        row_tile=None):
    """ResidualBlockNoBN forward on NHWC input, fused into one Pallas kernel."""
    N, H, W, C = x_nhwc.shape
    assert w1.shape == (3, 3, C, C) and w2.shape == (3, 3, C, C)

    # Generation-dependent sizing: bigger tiles / VMEM limit on v5e/v6e
    # (128 MiB VMEM), smaller on v7x (64 MiB).
    try:
        vmem_cap = int(pltpu.get_tpu_info().vmem_capacity_bytes)
    except Exception:  # interpret mode / older runtimes
        vmem_cap = 64 * 1024 * 1024
    if row_tile is None:
        target = 64 if vmem_cap >= 96 * 1024 * 1024 else 32
        row_tile = min(_round_up(H, 4), target)
    TH = int(row_tile)
    assert TH % 4 == 0, "row tile must be a multiple of 4 (halo block indexing)"
    Hp = _round_up(H, TH)          # tiled/padded row count (== H when TH | H)
    R = Hp // TH                   # number of row tiles

    # Single 2-pixel halo pad of the input (plus bottom pad to a multiple of
    # TH).  conv1 is evaluated on a per-tile (TH+2, W+2) extended grid straight
    # from this halo; the padded intermediate activation never touches HBM.
    xpad = jnp.pad(x_nhwc, ((0, 0), (2, 2 + Hp - H), (2, 2), (0, 0)))

    # Weights reshaped so the 9 taps live on the K axis of one matmul.
    w1r = w1.reshape(9 * C, C).astype(jnp.bfloat16)
    w2r = w2.reshape(9 * C, C).astype(jnp.bfloat16)
    b1r = b1.reshape(1, C).astype(jnp.float32)
    b2r = b2.reshape(1, C).astype(jnp.float32)

    kernel = functools.partial(_residual_block_kernel, H=H, W=W, TH=TH, C=C,
                               res_scale=float(res_scale))

    cost = pl.CostEstimate(
        flops=2 * 9 * C * C * N * (R * (TH + 2) * (W + 2) + Hp * W),
        transcendentals=0,
        bytes_accessed=(N * R * (TH + 4) * (W + 4) * C * 4     # input (+halo)
                        + N * Hp * W * C * 4                   # output
                        + N * R * (2 * 9 * C * C * 2           # bf16 weights
                                   + 2 * C * 4)),              # biases
    )

    out = pl.pallas_call(
        kernel,
        out_shape=jax.ShapeDtypeStruct((N, Hp, W, C), x_nhwc.dtype),
        grid_spec=pltpu.PrefetchScalarGridSpec(
            num_scalar_prefetch=0,
            grid=(N, R),
            in_specs=[
                # main TH input rows of the row tile
                pl.BlockSpec((1, TH, W + 4, C), lambda n, r: (n, r, 0, 0)),
                # 4-row bottom halo: rows [(r+1)*TH, (r+1)*TH+4) of xpad
                pl.BlockSpec((1, 4, W + 4, C),
                             lambda n, r: (n, (r + 1) * (TH // 4), 0, 0)),
                pl.BlockSpec((9 * C, C), lambda n, r: (0, 0)),
                pl.BlockSpec((1, C), lambda n, r: (0, 0)),
                pl.BlockSpec((9 * C, C), lambda n, r: (0, 0)),
                pl.BlockSpec((1, C), lambda n, r: (0, 0)),
            ],
            out_specs=pl.BlockSpec((1, TH, W, C), lambda n, r: (n, r, 0, 0)),
        ),
        compiler_params=pltpu.CompilerParams(
            dimension_semantics=("parallel", "parallel"),
            vmem_limit_bytes=int(min(100 * 1024 * 1024, (vmem_cap * 3) // 4)),
        ),
        cost_estimate=cost,
    )(xpad, xpad, w1r, b1r, w2r, b2r)

    return out if Hp == H else out[:, :H]


def residual_block_nobn_nchw(x_nchw, w1, b1, w2, b2, *, res_scale=1.0,
                             row_tile=None):
    """PyTorch-convention wrapper: NCHW in / NCHW out."""
    x = jnp.transpose(x_nchw, (0, 2, 3, 1))     # NCHW -> NHWC
    out = residual_block_nobn(x, w1, b1, w2, b2, res_scale=res_scale,
                              row_tile=row_tile)
    return jnp.transpose(out, (0, 3, 1, 2))     # NHWC -> NCHW


# ----- pure-JAX (f32) reference for the correctness sanity check -----------
def _conv3x3_ref(x_nhwc, w, b):
    y = lax.conv_general_dilated(
        x_nhwc, w, window_strides=(1, 1), padding=((1, 1), (1, 1)),
        dimension_numbers=("NHWC", "HWIO", "NHWC"))
    return y + b.reshape(1, 1, 1, -1)


def _residual_block_ref(x_nchw, w1, b1, w2, b2, res_scale):
    x = jnp.transpose(x_nchw, (0, 2, 3, 1))
    y = _conv3x3_ref(x, w1, b1)
    y = jnp.where(y >= 0, y, NEG_SLOPE * y)
    out = _conv3x3_ref(y, w2, b2)
    out = x + res_scale * out
    return jnp.transpose(out, (0, 3, 1, 2))


if __name__ == "__main__":
    nf = 64            # module default channel count
    res_scale = 1.0    # module default
    N, H, W = 2, 16, 16

    key = jax.random.PRNGKey(0)
    kx, kw1, kb1, kw2, kb2 = jax.random.split(key, 5)
    x = jax.random.normal(kx, (N, nf, H, W), jnp.float32)            # NCHW
    w1 = jax.random.normal(kw1, (3, 3, nf, nf), jnp.float32) * 0.05  # HWIO
    b1 = jax.random.normal(kb1, (1, nf), jnp.float32) * 0.05
    w2 = jax.random.normal(kw2, (3, 3, nf, nf), jnp.float32) * 0.05
    b2 = jax.random.normal(kb2, (1, nf), jnp.float32) * 0.05

    ref = _residual_block_ref(x, w1, b1, w2, b2, res_scale)
    jax.block_until_ready(ref)

    # Default path (single row tile at this small size).
    out = residual_block_nobn_nchw(x, w1, b1, w2, b2, res_scale=res_scale)
    jax.block_until_ready(out)
    assert out.shape == x.shape
    # bf16 MXU operands / bf16 inter-conv activation with f32 accumulation;
    # tolerance covers the quantization relative to the pure-f32 reference.
    assert jnp.allclose(out, ref, rtol=5e-2, atol=5e-2), "mismatch vs reference"

    # Explicitly exercise the row-tiled path (2 row tiles, 4-row halo blocks).
    out_tiled = residual_block_nobn_nchw(x, w1, b1, w2, b2,
                                         res_scale=res_scale, row_tile=8)
    jax.block_until_ready(out_tiled)
    assert jnp.allclose(out_tiled, ref, rtol=5e-2, atol=5e-2), \
        "row-tiled path mismatch vs reference"

    print("KERNEL_OK")
</pallas_src>

<mosaic_0001>
module attributes {stable_mosaic.version = 11 : i64} {
  func.func @_residual_block_kernel(%arg0: i32, %arg1: i32, %arg2: memref<1x16x20x64xf32, #tpu.memory_space<vmem>>, %arg3: memref<1x4x20x64xf32, #tpu.memory_space<vmem>>, %arg4: memref<576x64xbf16, #tpu.memory_space<vmem>>, %arg5: memref<1x64xf32, #tpu.memory_space<vmem>>, %arg6: memref<576x64xbf16, #tpu.memory_space<vmem>>, %arg7: memref<1x64xf32, #tpu.memory_space<vmem>>, %arg8: memref<1x16x16x64xf32, #tpu.memory_space<vmem>>) attributes {dimension_semantics = [#tpu.dimension_semantics<parallel>, #tpu.dimension_semantics<parallel>], iteration_bounds = array<i64: 2, 1>, scalar_prefetch = 0 : i64, scratch_operands = 0 : i64, tpu.core_type = #tpu.core_type<tc>, window_params = [{transform_indices = @transform_0, window_bounds = array<i64: 1, 16, 20, 64>}, {transform_indices = @transform_1, window_bounds = array<i64: 1, 4, 20, 64>}, {pipeline_mode = #tpu.pipeline_mode<synchronous>, transform_indices = @transform_2, window_bounds = array<i64: 576, 64>}, {pipeline_mode = #tpu.pipeline_mode<synchronous>, transform_indices = @transform_3, window_bounds = array<i64: 1, 64>}, {pipeline_mode = #tpu.pipeline_mode<synchronous>, transform_indices = @transform_4, window_bounds = array<i64: 576, 64>}, {pipeline_mode = #tpu.pipeline_mode<synchronous>, transform_indices = @transform_5, window_bounds = array<i64: 1, 64>}, {transform_indices = @transform_6, window_bounds = array<i64: 1, 16, 16, 64>}]} {
    %c0 = arith.constant 0 : index
    %c0_0 = arith.constant 0 : index
    %c0_1 = arith.constant 0 : index
    %c0_2 = arith.constant 0 : index
    %0 = vector.load %arg2[%c0, %c0_0, %c0_1, %c0_2] : memref<1x16x20x64xf32, #tpu.memory_space<vmem>>, vector<1x16x20x64xf32>
    %1 = vector.shape_cast %0 : vector<1x16x20x64xf32> to vector<16x20x64xf32>
    %c0_3 = arith.constant 0 : index
    %c0_4 = arith.constant 0 : index
    %c0_5 = arith.constant 0 : index
    %c0_6 = arith.constant 0 : index
    %2 = vector.load %arg3[%c0_3, %c0_4, %c0_5, %c0_6] : memref<1x4x20x64xf32, #tpu.memory_space<vmem>>, vector<1x4x20x64xf32>
    %3 = vector.shape_cast %2 : vector<1x4x20x64xf32> to vector<4x20x64xf32>
    %4 = tpu.concatenate %1, %3 in 0 : vector<16x20x64xf32>, vector<4x20x64xf32> -> vector<20x20x64xf32>
    %5 = arith.truncf %4 : vector<20x20x64xf32> to vector<20x20x64xbf16>
    %6 = vector.extract_strided_slice %5 {offsets = [0, 0, 0], sizes = [18, 18, 64], strides = [1, 1, 1]} : vector<20x20x64xbf16> to vector<18x18x64xbf16>
    %7 = vector.extract_strided_slice %5 {offsets = [0, 1, 0], sizes = [18, 18, 64], strides = [1, 1, 1]} : vector<20x20x64xbf16> to vector<18x18x64xbf16>
    %8 = vector.extract_strided_slice %5 {offsets = [0, 2, 0], sizes = [18, 18, 64], strides = [1, 1, 1]} : vector<20x20x64xbf16> to vector<18x18x64xbf16>
    %9 = vector.extract_strided_slice %5 {offsets = [1, 0, 0], sizes = [18, 18, 64], strides = [1, 1, 1]} : vector<20x20x64xbf16> to vector<18x18x64xbf16>
    %10 = vector.extract_strided_slice %5 {offsets = [1, 1, 0], sizes = [18, 18, 64], strides = [1, 1, 1]} : vector<20x20x64xbf16> to vector<18x18x64xbf16>
    %11 = vector.extract_strided_slice %5 {offsets = [1, 2, 0], sizes = [18, 18, 64], strides = [1, 1, 1]} : vector<20x20x64xbf16> to vector<18x18x64xbf16>
    %12 = vector.extract_strided_slice %5 {offsets = [2, 0, 0], sizes = [18, 18, 64], strides = [1, 1, 1]} : vector<20x20x64xbf16> to vector<18x18x64xbf16>
    %13 = vector.extract_strided_slice %5 {offsets = [2, 1, 0], sizes = [18, 18, 64], strides = [1, 1, 1]} : vector<20x20x64xbf16> to vector<18x18x64xbf16>
    %14 = vector.extract_strided_slice %5 {offsets = [2, 2, 0], sizes = [18, 18, 64], strides = [1, 1, 1]} : vector<20x20x64xbf16> to vector<18x18x64xbf16>
    %15 = tpu.concatenate %6, %7, %8, %9, %10, %11, %12, %13, %14 in 2 : vector<18x18x64xbf16>, vector<18x18x64xbf16>, vector<18x18x64xbf16>, vector<18x18x64xbf16>, vector<18x18x64xbf16>, vector<18x18x64xbf16>, vector<18x18x64xbf16>, vector<18x18x64xbf16>, vector<18x18x64xbf16> -> vector<18x18x576xbf16>
    %16 = vector.shape_cast %15 : vector<18x18x576xbf16> to vector<324x576xbf16>
    %c0_7 = arith.constant 0 : index
    %c0_8 = arith.constant 0 : index
    %17 = vector.load %arg4[%c0_7, %c0_8] : memref<576x64xbf16, #tpu.memory_space<vmem>>, vector<576x64xbf16>
    %cst = arith.constant dense<0.000000e+00> : vector<324x64xf32>
    %18 = tpu.matmul %16, %17, %cst {dimension_numbers = #tpu.dot_dimension_numbers<[1], [0], [0], [1], [0, 0, 1, 1], [], []>} : vector<324x576xbf16>, vector<576x64xbf16>, vector<324x64xf32> -> vector<324x64xf32>
    %19 = vector.shape_cast %18 : vector<324x64xf32> to vector<18x18x64xf32>
    %c0_9 = arith.constant 0 : index
    %c0_10 = arith.constant 0 : index
    %20 = vector.load %arg5[%c0_9, %c0_10] : memref<1x64xf32, #tpu.memory_space<vmem>>, vector<1x64xf32>
    %21 = vector.shape_cast %20 : vector<1x64xf32> to vector<1x1x64xf32>
    %22 = vector.broadcast %21 : vector<1x1x64xf32> to vector<18x18x64xf32>
    %23 = arith.addf %19, %22 : vector<18x18x64xf32>
    %cst_11 = arith.constant 0.000000e+00 : f32
    %24 = vector.broadcast %cst_11 : f32 to vector<18x18x64xf32>
    %25 = arith.cmpf oge, %23, %24 : vector<18x18x64xf32>
    %cst_12 = arith.constant 0.00999999977 : f32
    %26 = vector.broadcast %cst_12 : f32 to vector<18x18x64xf32>
    %27 = arith.mulf %26, %23 : vector<18x18x64xf32>
    %28 = arith.select %25, %23, %27 : vector<18x18x64xi1>, vector<18x18x64xf32>
    %29 = tpu.iota {dimensions = array<i32: 0>} : vector<18x18x1xi32>
    %c16_i32 = arith.constant 16 : i32
    %30 = arith.muli %arg1, %c16_i32 : i32
    %c1_i32 = arith.constant 1 : i32
    %31 = arith.subi %30, %c1_i32 : i32
    %32 = vector.broadcast %31 : i32 to vector<18x18x1xi32>
    %33 = arith.addi %29, %32 : vector<18x18x1xi32>
    %34 = tpu.iota {dimensions = array<i32: 1>} : vector<18x18x1xi32>
    %c1_i32_13 = arith.constant 1 : i32
    %35 = vector.broadcast %c1_i32_13 : i32 to vector<18x18x1xi32>
    %36 = arith.subi %34, %35 : vector<18x18x1xi32>
    %c0_i32 = arith.constant 0 : i32
    %37 = vector.broadcast %c0_i32 : i32 to vector<18x18x1xi32>
    %38 = arith.cmpi sge, %33, %37 : vector<18x18x1xi32>
    %c16_i32_14 = arith.constant 16 : i32
    %39 = vector.broadcast %c16_i32_14 : i32 to vector<18x18x1xi32>
    %40 = arith.cmpi slt, %33, %39 : vector<18x18x1xi32>
    %41 = arith.andi %38, %40 : vector<18x18x1xi1>
    %c0_i32_15 = arith.constant 0 : i32
    %42 = vector.broadcast %c0_i32_15 : i32 to vector<18x18x1xi32>
    %43 = arith.cmpi sge, %36, %42 : vector<18x18x1xi32>
    %44 = arith.andi %41, %43 : vector<18x18x1xi1>
    %c16_i32_16 = arith.constant 16 : i32
    %45 = vector.broadcast %c16_i32_16 : i32 to vector<18x18x1xi32>
    %46 = arith.cmpi slt, %36, %45 : vector<18x18x1xi32>
    %47 = arith.andi %44, %46 : vector<18x18x1xi1>
    %cst_17 = arith.constant 0.000000e+00 : f32
    %48 = vector.shape_cast %47 : vector<18x18x1xi1> to vector<18x18x1xi1>
    %49 = vector.broadcast %48 : vector<18x18x1xi1> to vector<18x18x64xi1>
    %50 = vector.broadcast %cst_17 : f32 to vector<18x18x64xf32>
    %51 = arith.select %49, %28, %50 : vector<18x18x64xi1>, vector<18x18x64xf32>
    %52 = arith.truncf %51 : vector<18x18x64xf32> to vector<18x18x64xbf16>
    %53 = vector.extract_strided_slice %52 {offsets = [0, 0, 0], sizes = [16, 16, 64], strides = [1, 1, 1]} : vector<18x18x64xbf16> to vector<16x16x64xbf16>
    %54 = vector.extract_strided_slice %52 {offsets = [0, 1, 0], sizes = [16, 16, 64], strides = [1, 1, 1]} : vector<18x18x64xbf16> to vector<16x16x64xbf16>
    %55 = vector.extract_strided_slice %52 {offsets = [0, 2, 0], sizes = [16, 16, 64], strides = [1, 1, 1]} : vector<18x18x64xbf16> to vector<16x16x64xbf16>
    %56 = vector.extract_strided_slice %52 {offsets = [1, 0, 0], sizes = [16, 16, 64], strides = [1, 1, 1]} : vector<18x18x64xbf16> to vector<16x16x64xbf16>
    %57 = vector.extract_strided_slice %52 {offsets = [1, 1, 0], sizes = [16, 16, 64], strides = [1, 1, 1]} : vector<18x18x64xbf16> to vector<16x16x64xbf16>
    %58 = vector.extract_strided_slice %52 {offsets = [1, 2, 0], sizes = [16, 16, 64], strides = [1, 1, 1]} : vector<18x18x64xbf16> to vector<16x16x64xbf16>
    %59 = vector.extract_strided_slice %52 {offsets = [2, 0, 0], sizes = [16, 16, 64], strides = [1, 1, 1]} : vector<18x18x64xbf16> to vector<16x16x64xbf16>
    %60 = vector.extract_strided_slice %52 {offsets = [2, 1, 0], sizes = [16, 16, 64], strides = [1, 1, 1]} : vector<18x18x64xbf16> to vector<16x16x64xbf16>
    %61 = vector.extract_strided_slice %52 {offsets = [2, 2, 0], sizes = [16, 16, 64], strides = [1, 1, 1]} : vector<18x18x64xbf16> to vector<16x16x64xbf16>
    %62 = tpu.concatenate %53, %54, %55, %56, %57, %58, %59, %60, %61 in 2 : vector<16x16x64xbf16>, vector<16x16x64xbf16>, vector<16x16x64xbf16>, vector<16x16x64xbf16>, vector<16x16x64xbf16>, vector<16x16x64xbf16>, vector<16x16x64xbf16>, vector<16x16x64xbf16>, vector<16x16x64xbf16> -> vector<16x16x576xbf16>
    %63 = vector.shape_cast %62 : vector<16x16x576xbf16> to vector<256x576xbf16>
    %c0_18 = arith.constant 0 : index
    %c0_19 = arith.constant 0 : index
    %64 = vector.load %arg6[%c0_18, %c0_19] : memref<576x64xbf16, #tpu.memory_space<vmem>>, vector<576x64xbf16>
    %cst_20 = arith.constant dense<0.000000e+00> : vector<256x64xf32>
    %65 = tpu.matmul %63, %64, %cst_20 {dimension_numbers = #tpu.dot_dimension_numbers<[1], [0], [0], [1], [0, 0, 1, 1], [], []>} : vector<256x576xbf16>, vector<576x64xbf16>, vector<256x64xf32> -> vector<256x64xf32>
    %66 = vector.shape_cast %65 : vector<256x64xf32> to vector<16x16x64xf32>
    %c0_21 = arith.constant 0 : index
    %c0_22 = arith.constant 0 : index
    %67 = vector.load %arg7[%c0_21, %c0_22] : memref<1x64xf32, #tpu.memory_space<vmem>>, vector<1x64xf32>
    %68 = vector.shape_cast %67 : vector<1x64xf32> to vector<1x1x64xf32>
    %69 = vector.broadcast %68 : vector<1x1x64xf32> to vector<16x16x64xf32>
    %70 = arith.addf %66, %69 : vector<16x16x64xf32>
    %71 = vector.extract_strided_slice %4 {offsets = [2, 2, 0], sizes = [16, 16, 64], strides = [1, 1, 1]} : vector<20x20x64xf32> to vector<16x16x64xf32>
    %72 = arith.addf %71, %70 : vector<16x16x64xf32>
    %73 = vector.shape_cast %72 : vector<16x16x64xf32> to vector<1x16x16x64xf32>
    %c0_23 = arith.constant 0 : index
    %c0_24 = arith.constant 0 : index
    %c0_25 = arith.constant 0 : index
    %c0_26 = arith.constant 0 : index
    %74 = vector.load %arg8[%c0_23, %c0_24, %c0_25, %c0_26] : memref<1x16x16x64xf32, #tpu.memory_space<vmem>>, vector<1x16x16x64xf32>
    tpu.vector_store %arg8[%c0_23, %c0_24, %c0_25, %c0_26], %73 {strides = array<i32>} : memref<1x16x16x64xf32, #tpu.memory_space<vmem>>, vector<1x16x16x64xf32>,
    return
  }
  func.func @transform_0(%arg0: i32, %arg1: i32) -> (i32, i32, i32, i32) {
    %c0_i32 = arith.constant 0 : i32
    %c0_i32_0 = arith.constant 0 : i32
    %c0_i32_1 = arith.constant 0 : i32
    return %arg0, %arg1, %c0_i32, %c0_i32_0 : i32, i32, i32, i32
  }
  func.func @transform_1(%arg0: i32, %arg1: i32) -> (i32, i32, i32, i32) {
    %c1_i32 = arith.constant 1 : i32
    %0 = arith.addi %arg1, %c1_i32 : i32
    %c4_i32 = arith.constant 4 : i32
    %1 = arith.muli %0, %c4_i32 : i32
    %c0_i32 = arith.constant 0 : i32
    %c0_i32_0 = arith.constant 0 : i32
    %c0_i32_1 = arith.constant 0 : i32
    return %arg0, %1, %c0_i32, %c0_i32_0 : i32, i32, i32, i32
  }
  func.func @transform_2(%arg0: i32, %arg1: i32) -> (i32, i32) {
    %c0_i32 = arith.constant 0 : i32
    %c0_i32_0 = arith.constant 0 : i32
    %c0_i32_1 = arith.constant 0 : i32
    return %c0_i32, %c0_i32_0 : i32, i32
  }
  func.func @transform_3(%arg0: i32, %arg1: i32) -> (i32, i32) {
    %c0_i32 = arith.constant 0 : i32
    %c0_i32_0 = arith.constant 0 : i32
    %c0_i32_1 = arith.constant 0 : i32
    return %c0_i32, %c0_i32_0 : i32, i32
  }
  func.func @transform_4(%arg0: i32, %arg1: i32) -> (i32, i32) {
    %c0_i32 = arith.constant 0 : i32
    %c0_i32_0 = arith.constant 0 : i32
    %c0_i32_1 = arith.constant 0 : i32
    return %c0_i32, %c0_i32_0 : i32, i32
  }
  func.func @transform_5(%arg0: i32, %arg1: i32) -> (i32, i32) {
    %c0_i32 = arith.constant 0 : i32
    %c0_i32_0 = arith.constant 0 : i32
    %c0_i32_1 = arith.constant 0 : i32
    return %c0_i32, %c0_i32_0 : i32, i32
  }
  func.func @transform_6(%arg0: i32, %arg1: i32) -> (i32, i32, i32, i32) {
    %c0_i32 = arith.constant 0 : i32
    %c0_i32_0 = arith.constant 0 : i32
    %c0_i32_1 = arith.constant 0 : i32
    return %arg0, %arg1, %c0_i32, %c0_i32_0 : i32, i32, i32, i32
  }
}

</mosaic_0001>

<llo_original>
// kernel: tpu_custom_call.1
$region0: #{tpu_custom_call.1}
  #allocation0 [shape = 'u32[]', space=smem, size = 0x4, offset = 0x4, fixed_abs, tag = 'smem constant byte address 0x4 - core index']
  #allocation1 [shape = 'u32[144,128]{1,0:T(1,128)}', space=vmem, size = 0x12000, scoped, tag = 'internal scratch']
  %s0 = inlined_call_operand.vmem [shape: f32[2,20,20,64], index: 0, kind: input, shape index: {}]
  %s1 = inlined_call_operand.vmem [shape: f32[2,20,20,64], index: 1, kind: input, shape index: {}]
  %s2 = inlined_call_operand.vmem [shape: bf16[576,64], index: 2, kind: input, shape index: {}]
  %s3 = inlined_call_operand.vmem [shape: f32[1,64], index: 3, kind: input, shape index: {}]
  %s4 = inlined_call_operand.vmem [shape: bf16[576,64], index: 4, kind: input, shape index: {}]
  %s5 = inlined_call_operand.vmem [shape: f32[1,64], index: 5, kind: input, shape index: {}]
  %s6 = inlined_call_operand.hbm [shape: f32[2,16,16,64], index: 6, kind: output, shape index: {}]
  %s7 = sld [smem:[#allocation0]]
  $region57: #{tpu_custom_call.1} parent=0
    _
  %s9 = ssub.s32 1, %s7
  %s10 = scalar_select 0, %s9, %s7
  $region1: #{tpu_custom_call.1} parent=0
    #allocation2 [shape = 'u8[262144]{0}', space=vmem, size = 0x40000, scoped, tag = 'output window, operand 0']
    #allocation3 [shape = 's32[2]{0}', space=sflag, size = 0x8, scoped, tag = 'scoped memory for tpu_custom_call.1']
    %11 = vsyncpa [#allocation3], 0
    %s12 = scalar_lea.sflag [#allocation3], 1
    %13 = vsyncpa %s12, 0
    loop: start=0, step=1, limit=4
    $region2: #{tpu_custom_call.1} parent=1 // loop_pre_header
      _
    $region3: #{tpu_custom_call.1} parent=1 // loop_header
      %s15 = sphi 0, %s19
      %p16 = scmp.ge.s32.totalorder %s15, 4
      %s22 = sphi 0, %s34
      %s23 = sphi 0, %s30
      %s24 = sphi 0, %s22
      %s25 = sphi 0, %s23
      %s26 = sphi 0, %s24
      %s27 = sphi 0, %s25
      %s39 = sphi 0, %s41
      %s42 = sphi 0, %s39
      %s43 = sphi 0, %s42
      %s59 = sphi 0, %s43
      %s71 = sphi 0, %s73
      %s74 = sphi 0, %s71
      %s75 = sphi 0, %s74
      %s91 = sphi 0, %s75
      %s95 = sphi 0, %s95
      %s97 = sphi 0, %s95
      %s98 = sphi 0, %s97
      %s112 = sphi 0, %s98
      %s116 = sphi 0, %s116
      %s118 = sphi 0, %s116
      %s119 = sphi 0, %s118
      %s133 = sphi 0, %s119
      %s137 = sphi 0, %s137
      %s139 = sphi 0, %s137
      %s140 = sphi 0, %s139
      %s154 = sphi 0, %s140
      %s158 = sphi 0, %s158
      %s160 = sphi 0, %s158
      %s161 = sphi 0, %s160
      %s175 = sphi 0, %s161
      %s183 = sphi 0, %s185
      %s186 = sphi 0, %s183
      %s187 = sphi 0, %s186
      %s203 = sphi 0, %s187
    $region4: #{tpu_custom_call.1} parent=1 // loop_header_branch
      %18 = sbr.rel (%p16) target = $region8
    $region5: #{tpu_custom_call.1} parent=1 // loop_body
      %s20 = ssub.s32 %s15, 1
      %s21 = ssub.s32 %s15, 2
      %s28 = sadd.s32 1, %s23
      %p29 = scmp.ge.s32.totalorder %s28, 1
      %s30 = scalar_select %p29, 0, %s28
      %s31 = sadd.s32 1, %s22
      %s32 = scalar_select %p29, %s31, %s22
      %p33 = scmp.ge.s32.totalorder %s32, 2
      %s34 = scalar_select %p33, 0, %s32
      %s35 = ssub.s32 %s22, %s34
      %s36 = ssub.s32 %s23, %s30
      %s37 = sor.u32 %s35, %s36
      %p38 = scmp.eq.s32.totalorder %s37, 0
      %s40 = sadd.s32 %s39, 1
      %s41 = scalar_select %p38, %s39, %s40
      %p44 = pneg %p38
      %p45 = scmp.eq.s32.totalorder %s15, 1
      %p46 = por %p44, %p45
      %p47 = scmp.ne.s32.totalorder %s39, %s42
      %p48 = scmp.eq.s32.totalorder %s15, 0
      %p49 = por %p47, %p48
      %p50 = scmp.ne.s32.totalorder %s39, %s42
      %p51 = scmp.eq.s32.totalorder %s20, 1
      %p52 = por %p50, %p51
      %p53 = scmp.ne.s32.totalorder %s42, %s43
      %p54 = scmp.eq.s32.totalorder %s20, 0
      %p55 = por %p53, %p54
      %p56 = scmp.ne.s32.totalorder %s42, %s43
      %p57 = scmp.eq.s32.totalorder %s21, 1
      %p58 = por %p56, %p57
      %p60 = scmp.ne.s32.totalorder %s43, %s59
      %p61 = scmp.eq.s32.totalorder %s21, 0
      %p62 = por %p60, %p61
      %s63 = sadd.s32 %s23, 1
      %s64 = smul.u32 %s63, 4
      %s65 = sadd.s32 %s30, 1
      %s66 = smul.u32 %s65, 4
      %s67 = ssub.s32 %s22, %s34
      %s68 = ssub.s32 %s64, %s66
      %s69 = sor.u32 %s67, %s68
      %p70 = scmp.eq.s32.totalorder %s69, 0
      %s72 = sadd.s32 %s71, 1
      %s73 = scalar_select %p70, %s71, %s72
      %p76 = pneg %p70
      %p77 = scmp.eq.s32.totalorder %s15, 1
      %p78 = por %p76, %p77
      %p79 = scmp.ne.s32.totalorder %s71, %s74
      %p80 = scmp.eq.s32.totalorder %s15, 0
      %p81 = por %p79, %p80
      %p82 = scmp.ne.s32.totalorder %s71, %s74
      %p83 = scmp.eq.s32.totalorder %s20, 1
      %p84 = por %p82, %p83
      %p85 = scmp.ne.s32.totalorder %s74, %s75
      %p86 = scmp.eq.s32.totalorder %s20, 0
      %p87 = por %p85, %p86
      %p88 = scmp.ne.s32.totalorder %s74, %s75
      %p89 = scmp.eq.s32.totalorder %s21, 1
      %p90 = por %p88, %p89
      %p92 = scmp.ne.s32.totalorder %s75, %s91
      %p93 = scmp.eq.s32.totalorder %s21, 0
      %p94 = por %p92, %p93
      %s96 = sadd.s32 %s95, 1
      %p99 = scmp.eq.s32.totalorder %s15, 1
      %p100 = scmp.ne.s32.totalorder %s95, %s97
      %p101 = scmp.eq.s32.totalorder %s15, 0
      %p102 = por %p100, %p101
      %p103 = scmp.ne.s32.totalorder %s95, %s97
      %p104 = scmp.eq.s32.totalorder %s20, 1
      %p105 = por %p103, %p104
      %p106 = scmp.ne.s32.totalorder %s97, %s98
      %p107 = scmp.eq.s32.totalorder %s20, 0
      %p108 = por %p106, %p107
      %p109 = scmp.ne.s32.totalorder %s97, %s98
      %p110 = scmp.eq.s32.totalorder %s21, 1
      %p111 = por %p109, %p110
      %p113 = scmp.ne.s32.totalorder %s98, %s112
      %p114 = scmp.eq.s32.totalorder %s21, 0
      %p115 = por %p113, %p114
      %s117 = sadd.s32 %s116, 1
      %p120 = scmp.eq.s32.totalorder %s15, 1
      %p121 = scmp.ne.s32.totalorder %s116, %s118
      %p122 = scmp.eq.s32.totalorder %s15, 0
      %p123 = por %p121, %p122
      %p124 = scmp.ne.s32.totalorder %s116, %s118
      %p125 = scmp.eq.s32.totalorder %s20, 1
      %p126 = por %p124, %p125
      %p127 = scmp.ne.s32.totalorder %s118, %s119
      %p128 = scmp.eq.s32.totalorder %s20, 0
      %p129 = por %p127, %p128
      %p130 = scmp.ne.s32.totalorder %s118, %s119
      %p131 = scmp.eq.s32.totalorder %s21, 1
      %p132 = por %p130, %p131
      %p134 = scmp.ne.s32.totalorder %s119, %s133
      %p135 = scmp.eq.s32.totalorder %s21, 0
      %p136 = por %p134, %p135
      %s138 = sadd.s32 %s137, 1
      %p141 = scmp.eq.s32.totalorder %s15, 1
      %p142 = scmp.ne.s32.totalorder %s137, %s139
      %p143 = scmp.eq.s32.totalorder %s15, 0
      %p144 = por %p142, %p143
      %p145 = scmp.ne.s32.totalorder %s137, %s139
      %p146 = scmp.eq.s32.totalorder %s20, 1
      %p147 = por %p145, %p146
      %p148 = scmp.ne.s32.totalorder %s139, %s140
      %p149 = scmp.eq.s32.totalorder %s20, 0
      %p150 = por %p148, %p149
      %p151 = scmp.ne.s32.totalorder %s139, %s140
      %p152 = scmp.eq.s32.totalorder %s21, 1
      %p153 = por %p151, %p152
      %p155 = scmp.ne.s32.totalorder %s140, %s154
      %p156 = scmp.eq.s32.totalorder %s21, 0
      %p157 = por %p155, %p156
      %s159 = sadd.s32 %s158, 1
      %p162 = scmp.eq.s32.totalorder %s15, 1
      %p163 = scmp.ne.s32.totalorder %s158, %s160
      %p164 = scmp.eq.s32.totalorder %s15, 0
      %p165 = por %p163, %p164
      %p166 = scmp.ne.s32.totalorder %s158, %s160
      %p167 = scmp.eq.s32.totalorder %s20, 1
      %p168 = por %p166, %p167
      %p169 = scmp.ne.s32.totalorder %s160, %s161
      %p170 = scmp.eq.s32.totalorder %s20, 0
      %p171 = por %p169, %p170
      %p172 = scmp.ne.s32.totalorder %s160, %s161
      %p173 = scmp.eq.s32.totalorder %s21, 1
      %p174 = por %p172, %p173
      %p176 = scmp.ne.s32.totalorder %s161, %s175
      %p177 = scmp.eq.s32.totalorder %s21, 0
      %p178 = por %p176, %p177
      %s179 = ssub.s32 %s22, %s34
      %s180 = ssub.s32 %s23, %s30
      %s181 = sor.u32 %s179, %s180
      %p182 = scmp.eq.s32.totalorder %s181, 0
      %s184 = sadd.s32 %s183, 1
      %s185 = scalar_select %p182, %s183, %s184
      %p188 = pneg %p182
      %p189 = scmp.eq.s32.totalorder %s15, 1
      %p190 = por %p188, %p189
      %p191 = scmp.ne.s32.totalorder %s183, %s186
      %p192 = scmp.eq.s32.totalorder %s15, 0
      %p193 = por %p191, %p192
      %p194 = scmp.ne.s32.totalorder %s183, %s186
      %p195 = scmp.eq.s32.totalorder %s20, 1
      %p196 = por %p194, %p195
      %p197 = scmp.ne.s32.totalorder %s186, %s187
      %p198 = scmp.eq.s32.totalorder %s20, 0
      %p199 = por %p197, %p198
      %p200 = scmp.ne.s32.totalorder %s186, %s187
      %p201 = scmp.eq.s32.totalorder %s21, 1
      %p202 = por %p200, %p201
      %p204 = scmp.ne.s32.totalorder %s187, %s203
      %p205 = scmp.eq.s32.totalorder %s21, 0
      %p206 = por %p204, %p205
      %p207 = scmp.le.s32.totalorder 1, %s15
      %p208 = scmp.lt.s32.totalorder %s15, 3
      %p209 = pnand %p207, %p208
      %p210 = pneg %p209
      // Predicated region
      $region9: #{tpu_custom_call.1} parent=5 // pred_check
        _
      $region10: #{tpu_custom_call.1} parent=5 // pred_check_branch
        %212 = sbr.rel (%p209) target = $region12
      $region11: #{tpu_custom_call.1} parent=5 // pred_region
        %s213 = ssub.s32 %s15, 1
        // Predicated region
        $region13: #{tpu_custom_call.1} parent=11 // pred_check
          %p214 = pneg %p108
        $region14: #{tpu_custom_call.1} parent=11 // pred_check_branch
          %216 = sbr.rel (%p214) target = $region16
        $region15: #{tpu_custom_call.1} parent=11 // pred_region
          _
        $region16: #{tpu_custom_call.1} parent=11 // pred_fallthru
          _
        // Predicated region
        $region17: #{tpu_custom_call.1} parent=11 // pred_check
          %p217 = pneg %p129
        $region18: #{tpu_custom_call.1} parent=11 // pred_check_branch
          %219 = sbr.rel (%p217) target = $region20
        $region19: #{tpu_custom_call.1} parent=11 // pred_region
          _
        $region20: #{tpu_custom_call.1} parent=11 // pred_fallthru
          _
        // Predicated region
        $region21: #{tpu_custom_call.1} parent=11 // pred_check
          %p220 = pneg %p150
        $region22: #{tpu_custom_call.1} parent=11 // pred_check_branch
          %222 = sbr.rel (%p220) target = $region24
        $region23: #{tpu_custom_call.1} parent=11 // pred_region
          _
        $region24: #{tpu_custom_call.1} parent=11 // pred_fallthru
          _
        // Predicated region
        $region25: #{tpu_custom_call.1} parent=11 // pred_check
          %p223 = pneg %p171
        $region26: #{tpu_custom_call.1} parent=11 // pred_check_branch
          %225 = sbr.rel (%p223) target = $region28
        $region27: #{tpu_custom_call.1} parent=11 // pred_region
          _
        $region28: #{tpu_custom_call.1} parent=11 // pred_fallthru
          _
      $region12: #{tpu_custom_call.1} parent=5 // pred_fallthru
        _
      %p226 = scmp.lt.s32.totalorder %s15, 2
      // Predicated region
      $region29: #{tpu_custom_call.1} parent=5 // pred_check
        %p227 = pneg %p226
      $region30: #{tpu_custom_call.1} parent=5 // pred_check_branch
        %229 = sbr.rel (%p227) target = $region32
      $region31: #{tpu_custom_call.1} parent=5 // pred_region
        // Predicated region
        $region33: #{tpu_custom_call.1} parent=31 // pred_check
          %p230 = pneg %p49
        $region34: #{tpu_custom_call.1} parent=31 // pred_check_branch
          %232 = sbr.rel (%p230) target = $region36
        $region35: #{tpu_custom_call.1} parent=31 // pred_region
          %s233 = smul.u32 16, %s23
          %s234 = ssub.s32 20, %s233
          %p235 = scmp.lt.s32.totalorder %s234, 16
          %s236 = scalar_select %p235, %s234, 16
          %s237 = smul.u32 128, %s236
          %s238 = smul.u32 %s237, 3
          %p239 = scmp.lt.s32.totalorder %s22, 1
          %s240 = scalar_select %p239, %s22, 1
          %p241 = scmp.lt.s32.totalorder %s233, 19
          %s242 = scalar_select %p241, %s233, 19
          %s243 = smul.addr %s242, 3
          %s244 = smul.addr %s240, 60
          %s245 = sadd.s32 %s243, %s244
          %s246 = smul.addr %s245, 8
          %s247 = scalar_lea.vmem %s0, %s246
          %s248 = smul.u32 16, %s23
          %s249 = ssub.s32 20, %s248
          %p250 = scmp.lt.s32.totalorder %s249, 16
          %s251 = scalar_select %p250, %s249, 16
          %s252 = smul.u32 128, %s251
          %s253 = smul.u32 %s252, 3
        $region36: #{tpu_custom_call.1} parent=31 // pred_fallthru
          _
        // Predicated region
        $region37: #{tpu_custom_call.1} parent=31 // pred_check
          %p254 = pneg %p81
        $region38: #{tpu_custom_call.1} parent=31 // pred_check_branch
          %256 = sbr.rel (%p254) target = $region40
        $region39: #{tpu_custom_call.1} parent=31 // pred_region
          %s257 = sadd.s32 %s23, 1
          %s258 = smul.u32 %s257, 4
          %s259 = smul.u32 4, %s258
          %p260 = scmp.lt.s32.totalorder %s22, 1
          %s261 = scalar_select %p260, %s22, 1
          %p262 = scmp.lt.s32.totalorder %s259, 19
          %s263 = scalar_select %p262, %s259, 19
          %s264 = smul.addr %s263, 3
          %s265 = smul.addr %s261, 60
          %s266 = sadd.s32 %s264, %s265
          %s267 = smul.addr %s266, 8
          %s268 = scalar_lea.vmem %s1, %s267
          %s269 = sadd.s32 %s23, 1
          %s270 = smul.u32 %s269, 4
          %s271 = smul.u32 4, %s270
        $region40: #{tpu_custom_call.1} parent=31 // pred_fallthru
          _
      $region32: #{tpu_custom_call.1} parent=5 // pred_fallthru
        _
      %p272 = scmp.le.s32.totalorder 1, %s15
      %p273 = scmp.lt.s32.totalorder %s15, 3
      %p274 = pnand %p272, %p273
      %p275 = pneg %p274
      // Predicated region
      $region41: #{tpu_custom_call.1} parent=5 // pred_check
        _
      $region42: #{tpu_custom_call.1} parent=5 // pred_check_branch
        %277 = sbr.rel (%p274) target = $region44
      $region43: #{tpu_custom_call.1} parent=5 // pred_region
        %s278 = ssub.s32 %s15, 1
        %s279 = smul.u32 16, %s25
        %s280 = ssub.s32 20, %s279
        %p281 = scmp.lt.s32.totalorder %s280, 16
        %s282 = scalar_select %p281, %s280, 16
        %s283 = smul.u32 128, %s282
        %s284 = smul.u32 %s283, 3
        %p285 = scmp.lt.s32.totalorder %s24, 1
        %s286 = scalar_select %p285, %s24, 1
        %p287 = scmp.lt.s32.totalorder %s279, 19
        %s288 = scalar_select %p287, %s279, 19
        %s289 = smul.addr %s288, 3
        %s290 = smul.addr %s286, 60
        %s291 = sadd.s32 %s289, %s290
        %s292 = smul.addr %s291, 8
        %s293 = scalar_lea.vmem %s0, %s292
        %p294 = pneg %p55
        %p295 = pneg %p52
        %s296 = sadd.s32 %s25, 1
        %s297 = smul.u32 %s296, 4
        %s298 = smul.u32 4, %s297
        %p299 = scmp.lt.s32.totalorder %s24, 1
        %s300 = scalar_select %p299, %s24, 1
        %p301 = scmp.lt.s32.totalorder %s298, 19
        %s302 = scalar_select %p301, %s298, 19
        %s303 = smul.addr %s302, 3
        %s304 = smul.addr %s300, 60
        %s305 = sadd.s32 %s303, %s304
        %s306 = smul.addr %s305, 8
        %s307 = scalar_lea.vmem %s1, %s306
        %p308 = pneg %p87
        %p309 = pneg %p84
        %p310 = pneg %p108
        %p311 = pneg %p105
        %p312 = pneg %p129
        %p313 = pneg %p126
        %p314 = pneg %p150
        %p315 = pneg %p147
        %p316 = pneg %p171
        %p317 = pneg %p168
        %p318 = pneg %p199
        %p319 = pneg %p196
        %s320 = sand.u32 %s186, 1
        %s321 = scalar_lea.sflag [#allocation3], %s320
        %s322 = sand.u32 %s186, 1
        %s323 = smul.addr %s322, 256
        %s324 = scalar_lea.vmem [#allocation2], %s323
        %s325 = smul.u32 16, %s25
        %s326 = ssub.s32 20, %s325
        %p327 = scmp.lt.s32.totalorder %s326, 16
        %s328 = scalar_select %p327, %s326, 16
        %s329 = smul.u32 128, %s328
        %s330 = smul.u32 %s329, 3
        %p331 = scmp.lt.s32.totalorder %s24, 1
        %s332 = scalar_select %p331, %s24, 1
        %p333 = scmp.lt.s32.totalorder %s325, 19
        %s334 = scalar_select %p333, %s325, 19
        %s335 = smul.addr %s334, 3
        %s336 = smul.addr %s332, 60
        %s337 = sadd.s32 %s335, %s336
        %s338 = smul.addr %s337, 8
        %s339 = scalar_lea.vmem %s0, %s338
        %s340 = smul.u32 16, %s25
        %s341 = ssub.s32 20, %s340
        %p342 = scmp.lt.s32.totalorder %s341, 16
        %s343 = scalar_select %p342, %s341, 16
        %s344 = smul.u32 128, %s343
        %s345 = smul.u32 %s344, 3
        %s346 = sadd.s32 %s25, 1
        %s347 = smul.u32 %s346, 4
        %s348 = smul.u32 4, %s347
        %p349 = scmp.lt.s32.totalorder %s24, 1
        %s350 = scalar_select %p349, %s24, 1
        %p351 = scmp.lt.s32.totalorder %s348, 19
        %s352 = scalar_select %p351, %s348, 19
        %s353 = smul.addr %s352, 3
        %s354 = smul.addr %s350, 60
        %s355 = sadd.s32 %s353, %s354
        %s356 = smul.addr %s355, 8
        %s357 = scalar_lea.vmem %s1, %s356
        %s358 = sadd.s32 %s25, 1
        %s359 = smul.u32 %s358, 4
        %s360 = smul.u32 4, %s359
        %s361 = smul.u32 16, %s25
        %v363 = vld [vmem:[%s339] sm:$0xff]
        %v364 = vld [vmem:[%s339 + $0x8] sm:$0xff]
        %v365 = vld [vmem:[%s339 + $0x10] sm:$0xf]
        %v366 = vld [vmem:[%s339 + $0x18] sm:$0xff]
        %v367 = vld [vmem:[%s339 + $0x20] sm:$0xff]
        %v368 = vld [vmem:[%s339 + $0x28] sm:$0xf]
        %v369 = vld [vmem:[%s339 + $0x30] sm:$0xff]
        %v370 = vld [vmem:[%s339 + $0x38] sm:$0xff]
        %v371 = vld [vmem:[%s339 + $0x40] sm:$0xf]
        %v372 = vld [vmem:[%s339 + $0x48] sm:$0xff]
        %v373 = vld [vmem:[%s339 + $0x50] sm:$0xff]
        %v374 = vld [vmem:[%s339 + $0x58] sm:$0xf]
        %v375 = vld [vmem:[%s339 + $0x60] sm:$0xff]
        %v376 = vld [vmem:[%s339 + $0x68] sm:$0xff]
        %v377 = vld [vmem:[%s339 + $0x70] sm:$0xf]
        %v378 = vld [vmem:[%s339 + $0x78] sm:$0xff]
        %v379 = vld [vmem:[%s339 + $0x80] sm:$0xff]
        %v380 = vld [vmem:[%s339 + $0x88] sm:$0xf]
        %v381 = vld [vmem:[%s339 + $0x90] sm:$0xff]
        %v382 = vld [vmem:[%s339 + $0x98] sm:$0xff]
        %v383 = vld [vmem:[%s339 + $0xa0] sm:$0xf]
        %v384 = vld [vmem:[%s339 + $0xa8] sm:$0xff]
        %v385 = vld [vmem:[%s339 + $0xb0] sm:$0xff]
        %v386 = vld [vmem:[%s339 + $0xb8] sm:$0xf]
        %v387 = vld [vmem:[%s339 + $0xc0] sm:$0xff]
        %v388 = vld [vmem:[%s339 + $0xc8] sm:$0xff]
        %v389 = vld [vmem:[%s339 + $0xd0] sm:$0xf]
        %v390 = vld [vmem:[%s339 + $0xd8] sm:$0xff]
        %v391 = vld [vmem:[%s339 + $0xe0] sm:$0xff]
        %v392 = vld [vmem:[%s339 + $0xe8] sm:$0xf]
        %v393 = vld [vmem:[%s339 + $0xf0] sm:$0xff]
        %v394 = vld [vmem:[%s339 + $0xf8] sm:$0xff]
        %v395 = vld [vmem:[%s339 + $0x100] sm:$0xf]
        %v396 = vld [vmem:[%s339 + $0x108] sm:$0xff]
        %v397 = vld [vmem:[%s339 + $0x110] sm:$0xff]
        %v398 = vld [vmem:[%s339 + $0x118] sm:$0xf]
        %v399 = vld [vmem:[%s339 + $0x120] sm:$0xff]
        %v400 = vld [vmem:[%s339 + $0x128] sm:$0xff]
        %v401 = vld [vmem:[%s339 + $0x130] sm:$0xf]
        %v402 = vld [vmem:[%s339 + $0x138] sm:$0xff]
        %v403 = vld [vmem:[%s339 + $0x140] sm:$0xff]
        %v404 = vld [vmem:[%s339 + $0x148] sm:$0xf]
        %v405 = vld [vmem:[%s339 + $0x150] sm:$0xff]
        %v406 = vld [vmem:[%s339 + $0x158] sm:$0xff]
        %v407 = vld [vmem:[%s339 + $0x160] sm:$0xf]
        %v408 = vld [vmem:[%s339 + $0x168] sm:$0xff]
        %v409 = vld [vmem:[%s339 + $0x170] sm:$0xff]
        %v410 = vld [vmem:[%s339 + $0x178] sm:$0xf]
        %v411 = vld [vmem:[%s357] sm:$0xff]
        %v412 = vld [vmem:[%s357 + $0x8] sm:$0xff]
        %v413 = vld [vmem:[%s357 + $0x10] sm:$0xf]
        %v414 = vld [vmem:[%s357 + $0x18] sm:$0xff]
        %v415 = vld [vmem:[%s357 + $0x20] sm:$0xff]
        %v416 = vld [vmem:[%s357 + $0x28] sm:$0xf]
        %v417 = vld [vmem:[%s357 + $0x30] sm:$0xff]
        %v418 = vld [vmem:[%s357 + $0x38] sm:$0xff]
        %v419 = vld [vmem:[%s357 + $0x40] sm:$0xf]
        %v420 = vld [vmem:[%s357 + $0x48] sm:$0xff]
        %v421 = vld [vmem:[%s357 + $0x50] sm:$0xff]
        %v422 = vld [vmem:[%s357 + $0x58] sm:$0xf]
        %v423 = vpack.c.bf16 %v364, %v363
        %v424 = vpack.c.bf16 %v365, %v365
        %v425 = vpack.c.bf16 %v367, %v366
        %v426 = vpack.c.bf16 %v368, %v368
        %v427 = vpack.c.bf16 %v370, %v369
        %v428 = vpack.c.bf16 %v371, %v371
        %v429 = vpack.c.bf16 %v373, %v372
        %v430 = vpack.c.bf16 %v374, %v374
        %v431 = vpack.c.bf16 %v376, %v375
        %v432 = vpack.c.bf16 %v377, %v377
        %v433 = vpack.c.bf16 %v379, %v378
        %v434 = vpack.c.bf16 %v380, %v380
        %v435 = vpack.c.bf16 %v382, %v381
        %v436 = vpack.c.bf16 %v383, %v383
        %v437 = vpack.c.bf16 %v385, %v384
        %v438 = vpack.c.bf16 %v386, %v386
        %v439 = vpack.c.bf16 %v388, %v387
        %v440 = vpack.c.bf16 %v389, %v389
        %v441 = vpack.c.bf16 %v391, %v390
        %v442 = vpack.c.bf16 %v392, %v392
        %v443 = vpack.c.bf16 %v394, %v393
        %v444 = vpack.c.bf16 %v395, %v395
        %v445 = vpack.c.bf16 %v397, %v396
        %v446 = vpack.c.bf16 %v398, %v398
        %v447 = vpack.c.bf16 %v400, %v399
        %v448 = vpack.c.bf16 %v401, %v401
        %v449 = vpack.c.bf16 %v403, %v402
        %v450 = vpack.c.bf16 %v404, %v404
        %v451 = vpack.c.bf16 %v406, %v405
        %v452 = vpack.c.bf16 %v407, %v407
        %v453 = vpack.c.bf16 %v409, %v408
        %v454 = vpack.c.bf16 %v410, %v410
        %v455 = vpack.c.bf16 %v412, %v411
        %v456 = vpack.c.bf16 %v413, %v413
        %v457 = vpack.c.bf16 %v415, %v414
        %v458 = vpack.c.bf16 %v416, %v416
        %v459 = vpack.c.bf16 %v418, %v417
        %v460 = vpack.c.bf16 %v419, %v419
        %v461 = vpack.c.bf16 %v421, %v420
        %v462 = vpack.c.bf16 %v422, %v422
        %vm463 = vsmask.f32 7424
        %v465 = vshrl.u32 %v423, 16
        %v467 = vshll.u32 %v423, 16
        %v469 = vrot.slane %v467, 1
        %v470 = vor.u32 %v465, %v469
        %v472 = vshll.u32 %v424, 16
        %v474 = vrot.slane %v472, 1
        %v475 = vsel %vm463, %v470, %v474
        %v476 = vshrl.u32 %v424, 16
        %v478 = vor.u32 %v476, %v474
        %v480 = vshrl.u32 %v425, 16
        %v482 = vshll.u32 %v425, 16
        %v484 = vrot.slane %v482, 1
        %v485 = vor.u32 %v480, %v484
        %v487 = vshll.u32 %v426, 16
        %v489 = vrot.slane %v487, 1
        %v490 = vsel %vm463, %v485, %v489
        %v491 = vshrl.u32 %v426, 16
        %v493 = vor.u32 %v491, %v489
        %v495 = vshrl.u32 %v427, 16
        %v497 = vshll.u32 %v427, 16
        %v499 = vrot.slane %v497, 1
        %v500 = vor.u32 %v495, %v499
        %v502 = vshll.u32 %v428, 16
        %v504 = vrot.slane %v502, 1
        %v505 = vsel %vm463, %v500, %v504
        %v506 = vshrl.u32 %v428, 16
        %v508 = vor.u32 %v506, %v504
        %v510 = vshrl.u32 %v429, 16
        %v512 = vshll.u32 %v429, 16
        %v514 = vrot.slane %v512, 1
        %v515 = vor.u32 %v510, %v514
        %v517 = vshll.u32 %v430, 16
        %v519 = vrot.slane %v517, 1
        %v520 = vsel %vm463, %v515, %v519
        %v521 = vshrl.u32 %v430, 16
        %v523 = vor.u32 %v521, %v519
        %v525 = vshrl.u32 %v431, 16
        %v527 = vshll.u32 %v431, 16
        %v529 = vrot.slane %v527, 1
        %v530 = vor.u32 %v525, %v529
        %v532 = vshll.u32 %v432, 16
        %v534 = vrot.slane %v532, 1
        %v535 = vsel %vm463, %v530, %v534
        %v536 = vshrl.u32 %v432, 16
        %v538 = vor.u32 %v536, %v534
        %v540 = vshrl.u32 %v433, 16
        %v542 = vshll.u32 %v433, 16
        %v544 = vrot.slane %v542, 1
        %v545 = vor.u32 %v540, %v544
        %v547 = vshll.u32 %v434, 16
        %v549 = vrot.slane %v547, 1
        %v550 = vsel %vm463, %v545, %v549
        %v551 = vshrl.u32 %v434, 16
        %v553 = vor.u32 %v551, %v549
        %v555 = vshrl.u32 %v435, 16
        %v557 = vshll.u32 %v435, 16
        %v559 = vrot.slane %v557, 1
        %v560 = vor.u32 %v555, %v559
        %v562 = vshll.u32 %v436, 16
        %v564 = vrot.slane %v562, 1
        %v565 = vsel %vm463, %v560, %v564
        %v566 = vshrl.u32 %v436, 16
        %v568 = vor.u32 %v566, %v564
        %v570 = vshrl.u32 %v437, 16
        %v572 = vshll.u32 %v437, 16
        %v574 = vrot.slane %v572, 1
        %v575 = vor.u32 %v570, %v574
        %v577 = vshll.u32 %v438, 16
        %v579 = vrot.slane %v577, 1
        %v580 = vsel %vm463, %v575, %v579
        %v581 = vshrl.u32 %v438, 16
        %v583 = vor.u32 %v581, %v579
        %v585 = vshrl.u32 %v439, 16
        %v587 = vshll.u32 %v439, 16
        %v589 = vrot.slane %v587, 1
        %v590 = vor.u32 %v585, %v589
        %v592 = vshll.u32 %v440, 16
        %v594 = vrot.slane %v592, 1
        %v595 = vsel %vm463, %v590, %v594
        %v596 = vshrl.u32 %v440, 16
        %v598 = vor.u32 %v596, %v594
        %v600 = vshrl.u32 %v441, 16
        %v602 = vshll.u32 %v441, 16
        %v604 = vrot.slane %v602, 1
        %v605 = vor.u32 %v600, %v604
        %v607 = vshll.u32 %v442, 16
        %v609 = vrot.slane %v607, 1
        %v610 = vsel %vm463, %v605, %v609
        %v611 = vshrl.u32 %v442, 16
        %v613 = vor.u32 %v611, %v609
        %v615 = vshrl.u32 %v443, 16
        %v617 = vshll.u32 %v443, 16
        %v619 = vrot.slane %v617, 1
        %v620 = vor.u32 %v615, %v619
        %v622 = vshll.u32 %v444, 16
        %v624 = vrot.slane %v622, 1
        %v625 = vsel %vm463, %v620, %v624
        %v626 = vshrl.u32 %v444, 16
        %v628 = vor.u32 %v626, %v624
        %v630 = vshrl.u32 %v445, 16
        %v632 = vshll.u32 %v445, 16
        %v634 = vrot.slane %v632, 1
        %v635 = vor.u32 %v630, %v634
        %v637 = vshll.u32 %v446, 16
        %v639 = vrot.slane %v637, 1
        %v640 = vsel %vm463, %v635, %v639
        %v641 = vshrl.u32 %v446, 16
        %v643 = vor.u32 %v641, %v639
        %v645 = vshrl.u32 %v447, 16
        %v647 = vshll.u32 %v447, 16
        %v649 = vrot.slane %v647, 1
        %v650 = vor.u32 %v645, %v649
        %v652 = vshll.u32 %v448, 16
        %v654 = vrot.slane %v652, 1
        %v655 = vsel %vm463, %v650, %v654
        %v656 = vshrl.u32 %v448, 16
        %v658 = vor.u32 %v656, %v654
        %v660 = vshrl.u32 %v449, 16
        %v662 = vshll.u32 %v449, 16
        %v664 = vrot.slane %v662, 1
        %v665 = vor.u32 %v660, %v664
        %v667 = vshll.u32 %v450, 16
        %v669 = vrot.slane %v667, 1
        %v670 = vsel %vm463, %v665, %v669
        %v671 = vshrl.u32 %v450, 16
        %v673 = vor.u32 %v671, %v669
        %v675 = vshrl.u32 %v451, 16
        %v677 = vshll.u32 %v451, 16
        %v679 = vrot.slane %v677, 1
        %v680 = vor.u32 %v675, %v679
        %v682 = vshll.u32 %v452, 16
        %v684 = vrot.slane %v682, 1
        %v685 = vsel %vm463, %v680, %v684
        %v686 = vshrl.u32 %v452, 16
        %v688 = vor.u32 %v686, %v684
        %v690 = vshrl.u32 %v453, 16
        %v692 = vshll.u32 %v453, 16
        %v694 = vrot.slane %v692, 1
        %v695 = vor.u32 %v690, %v694
        %v697 = vshll.u32 %v454, 16
        %v699 = vrot.slane %v697, 1
        %v700 = vsel %vm463, %v695, %v699
        %v701 = vshrl.u32 %v454, 16
        %v703 = vor.u32 %v701, %v699
        %v705 = vshrl.u32 %v455, 16
        %v707 = vshll.u32 %v455, 16
        %v709 = vrot.slane %v707, 1
        %v710 = vor.u32 %v705, %v709
        %v712 = vshll.u32 %v456, 16
        %v714 = vrot.slane %v712, 1
        %v715 = vsel %vm463, %v710, %v714
        %v716 = vshrl.u32 %v456, 16
        %v718 = vor.u32 %v716, %v714
        %v720 = vshrl.u32 %v457, 16
        %v722 = vshll.u32 %v457, 16
        %v724 = vrot.slane %v722, 1
        %v725 = vor.u32 %v720, %v724
        %v727 = vshll.u32 %v458, 16
        %v729 = vrot.slane %v727, 1
        %v730 = vsel %vm463, %v725, %v729
        %v731 = vshrl.u32 %v458, 16
        %v733 = vor.u32 %v731, %v729
        %734 = vrot.lane.b32.xlu0 %v475, 64
        %v735 = vpop.permute.xlu0 %734
        %736 = vrot.lane.b32.xlu0 %v478, 64
        %v737 = vpop.permute.xlu0 %736
        %738 = vrot.lane.b32.xlu0 %v490, 64
        %v739 = vpop.permute.xlu0 %738
        %740 = vrot.lane.b32.xlu0 %v493, 64
        %v741 = vpop.permute.xlu0 %740
        %742 = vrot.lane.b32.xlu0 %v505, 64
        %v743 = vpop.permute.xlu0 %742
        %744 = vrot.lane.b32.xlu0 %v508, 64
        %v745 = vpop.permute.xlu0 %744
        %746 = vrot.lane.b32.xlu0 %v520, 64
        %v747 = vpop.permute.xlu0 %746
        %748 = vrot.lane.b32.xlu0 %v523, 64
        %v749 = vpop.permute.xlu0 %748
        %750 = vrot.lane.b32.xlu0 %v535, 64
        %v751 = vpop.permute.xlu0 %750
        %752 = vrot.lane.b32.xlu0 %v538, 64
        %v753 = vpop.permute.xlu0 %752
        %754 = vrot.lane.b32.xlu0 %v550, 64
        %v755 = vpop.permute.xlu0 %754
        %756 = vrot.lane.b32.xlu0 %v553, 64
        %v757 = vpop.permute.xlu0 %756
        %758 = vrot.lane.b32.xlu0 %v565, 64
        %v759 = vpop.permute.xlu0 %758
        %760 = vrot.lane.b32.xlu0 %v568, 64
        %v761 = vpop.permute.xlu0 %760
        %762 = vrot.lane.b32.xlu0 %v580, 64
        %v763 = vpop.permute.xlu0 %762
        %764 = vrot.lane.b32.xlu0 %v583, 64
        %v765 = vpop.permute.xlu0 %764
        %766 = vrot.lane.b32.xlu0 %v595, 64
        %v767 = vpop.permute.xlu0 %766
        %768 = vrot.lane.b32.xlu0 %v598, 64
        %v769 = vpop.permute.xlu0 %768
        %770 = vrot.lane.b32.xlu0 %v610, 64
        %v771 = vpop.permute.xlu0 %770
        %772 = vrot.lane.b32.xlu0 %v613, 64
        %v773 = vpop.permute.xlu0 %772
        %774 = vrot.lane.b32.xlu0 %v625, 64
        %v775 = vpop.permute.xlu0 %774
        %776 = vrot.lane.b32.xlu0 %v628, 64
        %v777 = vpop.permute.xlu0 %776
        %778 = vrot.lane.b32.xlu0 %v640, 64
        %v779 = vpop.permute.xlu0 %778
        %780 = vrot.lane.b32.xlu0 %v643, 64
        %v781 = vpop.permute.xlu0 %780
        %782 = vrot.lane.b32.xlu0 %v655, 64
        %v783 = vpop.permute.xlu0 %782
        %784 = vrot.lane.b32.xlu0 %v658, 64
        %v785 = vpop.permute.xlu0 %784
        %786 = vrot.lane.b32.xlu0 %v670, 64
        %v787 = vpop.permute.xlu0 %786
        %788 = vrot.lane.b32.xlu0 %v673, 64
        %v789 = vpop.permute.xlu0 %788
        %790 = vrot.lane.b32.xlu0 %v685, 64
        %v791 = vpop.permute.xlu0 %790
        %792 = vrot.lane.b32.xlu0 %v688, 64
        %v793 = vpop.permute.xlu0 %792
        %794 = vrot.lane.b32.xlu0 %v700, 64
        %v795 = vpop.permute.xlu0 %794
        %796 = vrot.lane.b32.xlu0 %v703, 64
        %v797 = vpop.permute.xlu0 %796
        %798 = vrot.lane.b32.xlu0 %v715, 64
        %v799 = vpop.permute.xlu0 %798
        %800 = vrot.lane.b32.xlu0 %v718, 64
        %v801 = vpop.permute.xlu0 %800
        %802 = vrot.lane.b32.xlu0 %v730, 64
        %v803 = vpop.permute.xlu0 %802
        %804 = vrot.lane.b32.xlu0 %v733, 64
        %v805 = vpop.permute.xlu0 %804
        %vm842 = vcmask 1046528
        %v843 = vrot.slane %v423, 1
        %v844 = vrot.slane %v424, 1
        %v845 = vsel %vm842, %v843, %v844
        %v846 = vrot.slane %v425, 1
        %v847 = vrot.slane %v426, 1
        %v848 = vsel %vm842, %v846, %v847
        %v849 = vrot.slane %v427, 1
        %v850 = vrot.slane %v428, 1
        %v851 = vsel %vm842, %v849, %v850
        %v852 = vrot.slane %v429, 1
        %v853 = vrot.slane %v430, 1
        %v854 = vsel %vm842, %v852, %v853
        %v855 = vrot.slane %v431, 1
        %v856 = vrot.slane %v432, 1
        %v857 = vsel %vm842, %v855, %v856
        %v858 = vrot.slane %v433, 1
        %v859 = vrot.slane %v434, 1
        %v860 = vsel %vm842, %v858, %v859
        %v861 = vrot.slane %v435, 1
        %v862 = vrot.slane %v436, 1
        %v863 = vsel %vm842, %v861, %v862
        %v864 = vrot.slane %v437, 1
        %v865 = vrot.slane %v438, 1
        %v866 = vsel %vm842, %v864, %v865
        %v867 = vrot.slane %v439, 1
        %v868 = vrot.slane %v440, 1
        %v869 = vsel %vm842, %v867, %v868
        %v870 = vrot.slane %v441, 1
        %v871 = vrot.slane %v442, 1
        %v872 = vsel %vm842, %v870, %v871
        %v873 = vrot.slane %v443, 1
        %v874 = vrot.slane %v444, 1
        %v875 = vsel %vm842, %v873, %v874
        %v876 = vrot.slane %v445, 1
        %v877 = vrot.slane %v446, 1
        %v878 = vsel %vm842, %v876, %v877
        %v879 = vrot.slane %v447, 1
        %v880 = vrot.slane %v448, 1
        %v881 = vsel %vm842, %v879, %v880
        %v882 = vrot.slane %v449, 1
        %v883 = vrot.slane %v450, 1
        %v884 = vsel %vm842, %v882, %v883
        %v885 = vrot.slane %v451, 1
        %v886 = vrot.slane %v452, 1
        %v887 = vsel %vm842, %v885, %v886
        %v888 = vrot.slane %v453, 1
        %v889 = vrot.slane %v454, 1
        %v890 = vsel %vm842, %v888, %v889
        %v891 = vrot.slane %v455, 1
        %v892 = vrot.slane %v456, 1
        %v893 = vsel %vm842, %v891, %v892
        %v894 = vrot.slane %v457, 1
        %v895 = vrot.slane %v458, 1
        %v896 = vsel %vm842, %v894, %v895
        %899 = vrot.lane.b32.xlu0 %v425, 64
        %v900 = vpop.permute.xlu0 %899
        %901 = vrot.lane.b32.xlu0 %v426, 64
        %v902 = vpop.permute.xlu0 %901
        %903 = vrot.lane.b32.xlu0 %v427, 64
        %v904 = vpop.permute.xlu0 %903
        %905 = vrot.lane.b32.xlu0 %v428, 64
        %v906 = vpop.permute.xlu0 %905
        %907 = vrot.lane.b32.xlu0 %v429, 64
        %v908 = vpop.permute.xlu0 %907
        %909 = vrot.lane.b32.xlu0 %v430, 64
        %v910 = vpop.permute.xlu0 %909
        %911 = vrot.lane.b32.xlu0 %v431, 64
        %v912 = vpop.permute.xlu0 %911
        %913 = vrot.lane.b32.xlu0 %v432, 64
        %v914 = vpop.permute.xlu0 %913
        %915 = vrot.lane.b32.xlu0 %v433, 64
        %v916 = vpop.permute.xlu0 %915
        %917 = vrot.lane.b32.xlu0 %v434, 64
        %v918 = vpop.permute.xlu0 %917
        %919 = vrot.lane.b32.xlu0 %v435, 64
        %v920 = vpop.permute.xlu0 %919
        %921 = vrot.lane.b32.xlu0 %v436, 64
        %v922 = vpop.permute.xlu0 %921
        %923 = vrot.lane.b32.xlu0 %v437, 64
        %v924 = vpop.permute.xlu0 %923
        %925 = vrot.lane.b32.xlu0 %v438, 64
        %v926 = vpop.permute.xlu0 %925
        %927 = vrot.lane.b32.xlu0 %v439, 64
        %v928 = vpop.permute.xlu0 %927
        %929 = vrot.lane.b32.xlu0 %v440, 64
        %v930 = vpop.permute.xlu0 %929
        %931 = vrot.lane.b32.xlu0 %v441, 64
        %v932 = vpop.permute.xlu0 %931
        %933 = vrot.lane.b32.xlu0 %v442, 64
        %v934 = vpop.permute.xlu0 %933
        %935 = vrot.lane.b32.xlu0 %v443, 64
        %v936 = vpop.permute.xlu0 %935
        %937 = vrot.lane.b32.xlu0 %v444, 64
        %v938 = vpop.permute.xlu0 %937
        %939 = vrot.lane.b32.xlu0 %v445, 64
        %v940 = vpop.permute.xlu0 %939
        %941 = vrot.lane.b32.xlu0 %v446, 64
        %v942 = vpop.permute.xlu0 %941
        %943 = vrot.lane.b32.xlu0 %v447, 64
        %v944 = vpop.permute.xlu0 %943
        %945 = vrot.lane.b32.xlu0 %v448, 64
        %v946 = vpop.permute.xlu0 %945
        %947 = vrot.lane.b32.xlu0 %v449, 64
        %v948 = vpop.permute.xlu0 %947
        %949 = vrot.lane.b32.xlu0 %v450, 64
        %v950 = vpop.permute.xlu0 %949
        %951 = vrot.lane.b32.xlu0 %v451, 64
        %v952 = vpop.permute.xlu0 %951
        %953 = vrot.lane.b32.xlu0 %v452, 64
        %v954 = vpop.permute.xlu0 %953
        %955 = vrot.lane.b32.xlu0 %v453, 64
        %v956 = vpop.permute.xlu0 %955
        %957 = vrot.lane.b32.xlu0 %v454, 64
        %v958 = vpop.permute.xlu0 %957
        %959 = vrot.lane.b32.xlu0 %v455, 64
        %v960 = vpop.permute.xlu0 %959
        %961 = vrot.lane.b32.xlu0 %v456, 64
        %v962 = vpop.permute.xlu0 %961
        %963 = vrot.lane.b32.xlu0 %v457, 64
        %v964 = vpop.permute.xlu0 %963
        %965 = vrot.lane.b32.xlu0 %v458, 64
        %v966 = vpop.permute.xlu0 %965
        %967 = vrot.lane.b32.xlu0 %v459, 64
        %v968 = vpop.permute.xlu0 %967
        %969 = vrot.lane.b32.xlu0 %v460, 64
        %v970 = vpop.permute.xlu0 %969
        %v972 = vshrl.u32 %v459, 16
        %v974 = vshll.u32 %v459, 16
        %v976 = vrot.slane %v974, 1
        %v977 = vor.u32 %v972, %v976
        %v979 = vshll.u32 %v460, 16
        %v981 = vrot.slane %v979, 1
        %v982 = vsel %vm463, %v977, %v981
        %v983 = vshrl.u32 %v460, 16
        %v985 = vor.u32 %v983, %v981
        %v986 = vrot.slane %v459, 1
        %v987 = vrot.slane %v460, 1
        %v988 = vsel %vm842, %v986, %v987
        %989 = vrot.lane.b32.xlu0 %v848, 64
        %v990 = vpop.permute.xlu0 %989
        %991 = vrot.lane.b32.xlu0 %v847, 64
        %v992 = vpop.permute.xlu0 %991
        %993 = vrot.lane.b32.xlu0 %v851, 64
        %v994 = vpop.permute.xlu0 %993
        %995 = vrot.lane.b32.xlu0 %v850, 64
        %v996 = vpop.permute.xlu0 %995
        %997 = vrot.lane.b32.xlu0 %v854, 64
        %v998 = vpop.permute.xlu0 %997
        %999 = vrot.lane.b32.xlu0 %v853, 64
        %v1000 = vpop.permute.xlu0 %999
        %1001 = vrot.lane.b32.xlu0 %v857, 64
        %v1002 = vpop.permute.xlu0 %1001
        %1003 = vrot.lane.b32.xlu0 %v856, 64
        %v1004 = vpop.permute.xlu0 %1003
        %1005 = vrot.lane.b32.xlu0 %v860, 64
        %v1006 = vpop.permute.xlu0 %1005
        %1007 = vrot.lane.b32.xlu0 %v859, 64
        %v1008 = vpop.permute.xlu0 %1007
        %1009 = vrot.lane.b32.xlu0 %v863, 64
        %v1010 = vpop.permute.xlu0 %1009
        %1011 = vrot.lane.b32.xlu0 %v862, 64
        %v1012 = vpop.permute.xlu0 %1011
        %1013 = vrot.lane.b32.xlu0 %v866, 64
        %v1014 = vpop.permute.xlu0 %1013
        %1015 = vrot.lane.b32.xlu0 %v865, 64
        %v1016 = vpop.permute.xlu0 %1015
        %1017 = vrot.lane.b32.xlu0 %v869, 64
        %v1018 = vpop.permute.xlu0 %1017
        %1019 = vrot.lane.b32.xlu0 %v868, 64
        %v1020 = vpop.permute.xlu0 %1019
        %1021 = vrot.lane.b32.xlu0 %v872, 64
        %v1022 = vpop.permute.xlu0 %1021
        %1023 = vrot.lane.b32.xlu0 %v871, 64
        %v1024 = vpop.permute.xlu0 %1023
        %1025 = vrot.lane.b32.xlu0 %v875, 64
        %v1026 = vpop.permute.xlu0 %1025
        %1027 = vrot.lane.b32.xlu0 %v874, 64
        %v1028 = vpop.permute.xlu0 %1027
        %1029 = vrot.lane.b32.xlu0 %v878, 64
        %v1030 = vpop.permute.xlu0 %1029
        %1031 = vrot.lane.b32.xlu0 %v877, 64
        %v1032 = vpop.permute.xlu0 %1031
        %1033 = vrot.lane.b32.xlu0 %v881, 64
        %v1034 = vpop.permute.xlu0 %1033
        %1035 = vrot.lane.b32.xlu0 %v880, 64
        %v1036 = vpop.permute.xlu0 %1035
        %1037 = vrot.lane.b32.xlu0 %v884, 64
        %v1038 = vpop.permute.xlu0 %1037
        %1039 = vrot.lane.b32.xlu0 %v883, 64
        %v1040 = vpop.permute.xlu0 %1039
        %1041 = vrot.lane.b32.xlu0 %v887, 64
        %v1042 = vpop.permute.xlu0 %1041
        %1043 = vrot.lane.b32.xlu0 %v886, 64
        %v1044 = vpop.permute.xlu0 %1043
        %1045 = vrot.lane.b32.xlu0 %v890, 64
        %v1046 = vpop.permute.xlu0 %1045
        %1047 = vrot.lane.b32.xlu0 %v889, 64
        %v1048 = vpop.permute.xlu0 %1047
        %1049 = vrot.lane.b32.xlu0 %v893, 64
        %v1050 = vpop.permute.xlu0 %1049
        %1051 = vrot.lane.b32.xlu0 %v892, 64
        %v1052 = vpop.permute.xlu0 %1051
        %1053 = vrot.lane.b32.xlu0 %v896, 64
        %v1054 = vpop.permute.xlu0 %1053
        %1055 = vrot.lane.b32.xlu0 %v895, 64
        %v1056 = vpop.permute.xlu0 %1055
        %1057 = vrot.lane.b32.xlu0 %v988, 64
        %v1058 = vpop.permute.xlu0 %1057
        %1059 = vrot.lane.b32.xlu0 %v987, 64
        %v1060 = vpop.permute.xlu0 %1059
        %v1062 = vshrl.u32 %v461, 16
        %v1064 = vshll.u32 %v461, 16
        %v1066 = vrot.slane %v1064, 1
        %v1067 = vor.u32 %v1062, %v1066
        %v1069 = vshll.u32 %v462, 16
        %v1071 = vrot.slane %v1069, 1
        %v1072 = vsel %vm463, %v1067, %v1071
        %v1073 = vshrl.u32 %v462, 16
        %v1075 = vor.u32 %v1073, %v1071
        %1076 = vrot.lane.b32.xlu0 %v982, 64
        %v1077 = vpop.permute.xlu0 %1076
        %1078 = vrot.lane.b32.xlu0 %v985, 64
        %v1079 = vpop.permute.xlu0 %1078
        %1080 = vrot.lane.b32.xlu0 %v1072, 64
        %v1081 = vpop.permute.xlu0 %1080
        %1082 = vrot.lane.b32.xlu0 %v1075, 64
        %v1083 = vpop.permute.xlu0 %1082
        %v1086 = vrot.slane %v461, 1
        %v1087 = vrot.slane %v462, 1
        %v1088 = vsel %vm842, %v1086, %v1087
        %vm1089 = vcmask 523264
        %v1091 = vsel %vm1089, %v423, %v735
        %v1093 = vsel %vm1089, %v424, %v737
        %v1095 = vsel %vm1089, %v425, %v739
        %v1097 = vsel %vm1089, %v426, %v741
        %v1099 = vsel %vm1089, %v427, %v743
        %v1101 = vsel %vm1089, %v428, %v745
        %v1103 = vsel %vm1089, %v429, %v747
        %v1105 = vsel %vm1089, %v430, %v749
        %v1107 = vsel %vm1089, %v431, %v751
        %v1109 = vsel %vm1089, %v432, %v753
        %v1111 = vsel %vm1089, %v433, %v755
        %v1113 = vsel %vm1089, %v434, %v757
        %v1115 = vsel %vm1089, %v435, %v759
        %v1117 = vsel %vm1089, %v436, %v761
        %v1119 = vsel %vm1089, %v437, %v763
        %v1121 = vsel %vm1089, %v438, %v765
        %v1123 = vsel %vm1089, %v439, %v767
        %v1125 = vsel %vm1089, %v440, %v769
        %v1127 = vsel %vm1089, %v441, %v771
        %v1129 = vsel %vm1089, %v442, %v773
        %v1131 = vsel %vm1089, %v443, %v775
        %v1133 = vsel %vm1089, %v444, %v777
        %v1135 = vsel %vm1089, %v445, %v779
        %v1137 = vsel %vm1089, %v446, %v781
        %v1139 = vsel %vm1089, %v447, %v783
        %v1141 = vsel %vm1089, %v448, %v785
        %v1143 = vsel %vm1089, %v449, %v787
        %v1145 = vsel %vm1089, %v450, %v789
        %v1147 = vsel %vm1089, %v451, %v791
        %v1149 = vsel %vm1089, %v452, %v793
        %v1151 = vsel %vm1089, %v453, %v795
        %v1153 = vsel %vm1089, %v454, %v797
        %v1155 = vsel %vm1089, %v455, %v799
        %v1157 = vsel %vm1089, %v456, %v801
        %v1159 = vsel %vm1089, %v457, %v803
        %v1161 = vsel %vm1089, %v458, %v805
        %v1164 = vsel %vm1089, %v845, %v900
        %v1167 = vsel %vm1089, %v844, %v902
        %v1170 = vsel %vm1089, %v848, %v904
        %v1173 = vsel %vm1089, %v847, %v906
        %v1176 = vsel %vm1089, %v851, %v908
        %v1179 = vsel %vm1089, %v850, %v910
        %v1182 = vsel %vm1089, %v854, %v912
        %v1185 = vsel %vm1089, %v853, %v914
        %v1188 = vsel %vm1089, %v857, %v916
        %v1191 = vsel %vm1089, %v856, %v918
        %v1194 = vsel %vm1089, %v860, %v920
        %v1197 = vsel %vm1089, %v859, %v922
        %v1200 = vsel %vm1089, %v863, %v924
        %v1203 = vsel %vm1089, %v862, %v926
        %v1206 = vsel %vm1089, %v866, %v928
        %v1209 = vsel %vm1089, %v865, %v930
        %v1212 = vsel %vm1089, %v869, %v932
        %v1215 = vsel %vm1089, %v868, %v934
        %v1218 = vsel %vm1089, %v872, %v936
        %v1221 = vsel %vm1089, %v871, %v938
        %v1224 = vsel %vm1089, %v875, %v940
        %v1227 = vsel %vm1089, %v874, %v942
        %v1230 = vsel %vm1089, %v878, %v944
        %v1233 = vsel %vm1089, %v877, %v946
        %v1236 = vsel %vm1089, %v881, %v948
        %v1239 = vsel %vm1089, %v880, %v950
        %v1242 = vsel %vm1089, %v884, %v952
        %v1245 = vsel %vm1089, %v883, %v954
        %v1248 = vsel %vm1089, %v887, %v956
        %v1251 = vsel %vm1089, %v886, %v958
        %v1254 = vsel %vm1089, %v890, %v960
        %v1257 = vsel %vm1089, %v889, %v962
        %v1260 = vsel %vm1089, %v893, %v964
        %v1263 = vsel %vm1089, %v892, %v966
        %v1266 = vsel %vm1089, %v896, %v968
        %v1269 = vsel %vm1089, %v895, %v970
        %v1272 = vsel %vm1089, %v490, %v990
        %v1275 = vsel %vm1089, %v493, %v992
        %v1278 = vsel %vm1089, %v505, %v994
        %v1281 = vsel %vm1089, %v508, %v996
        %v1284 = vsel %vm1089, %v520, %v998
        %v1287 = vsel %vm1089, %v523, %v1000
        %v1290 = vsel %vm1089, %v535, %v1002
        %v1293 = vsel %vm1089, %v538, %v1004
        %v1296 = vsel %vm1089, %v550, %v1006
        %v1299 = vsel %vm1089, %v553, %v1008
        %v1302 = vsel %vm1089, %v565, %v1010
        %v1305 = vsel %vm1089, %v568, %v1012
        %v1308 = vsel %vm1089, %v580, %v1014
        %v1311 = vsel %vm1089, %v583, %v1016
        %v1314 = vsel %vm1089, %v595, %v1018
        %v1317 = vsel %vm1089, %v598, %v1020
        %v1320 = vsel %vm1089, %v610, %v1022
        %v1323 = vsel %vm1089, %v613, %v1024
        %v1326 = vsel %vm1089, %v625, %v1026
        %v1329 = vsel %vm1089, %v628, %v1028
        %v1332 = vsel %vm1089, %v640, %v1030
        %v1335 = vsel %vm1089, %v643, %v1032
        %v1338 = vsel %vm1089, %v655, %v1034
        %v1341 = vsel %vm1089, %v658, %v1036
        %v1344 = vsel %vm1089, %v670, %v1038
        %v1347 = vsel %vm1089, %v673, %v1040
        %v1350 = vsel %vm1089, %v685, %v1042
        %v1353 = vsel %vm1089, %v688, %v1044
        %v1356 = vsel %vm1089, %v700, %v1046
        %v1359 = vsel %vm1089, %v703, %v1048
        %v1362 = vsel %vm1089, %v715, %v1050
        %v1365 = vsel %vm1089, %v718, %v1052
        %v1368 = vsel %vm1089, %v730, %v1054
        %v1371 = vsel %vm1089, %v733, %v1056
        %v1374 = vsel %vm1089, %v982, %v1058
        %v1377 = vsel %vm1089, %v985, %v1060
        %v1379 = vsel %vm1089, %v459, %v1077
        %v1381 = vsel %vm1089, %v460, %v1079
        %v1383 = vsel %vm1089, %v461, %v1081
        %v1385 = vsel %vm1089, %v462, %v1083
        %v1498 = vcombine.low %v1091, %v1164
        %v1499 = vcombine.high %v1091, %v1164
        %v1500 = vcombine.low %v1272, %v1099
        %v1501 = vcombine.high %v1272, %v1099
        %v1502 = vcombine.high %v851, %v851
        %v1504 = vunpack.c.l.s4 1966171168
        %v1505 = vunpack.c.0.s8 %v1504
        %v1506 = vlaneseq
        %v1507 = vshrl.u32 %v1506, 7
        %v1508 = vsub.s32 %v1505, %v1507
        %v1509 = vrot.slane %v1498, %v1508
        %v1511 = vunpack.c.l.s4 1966171168
        %v1512 = vunpack.c.0.s8 %v1511
        %v1513 = vlaneseq
        %v1514 = vshrl.u32 %v1513, 7
        %v1515 = vsub.s32 %v1512, %v1514
        %v1516 = vrot.slane %v1499, %v1515
        %v1518 = vunpack.c.l.s4 1966171168
        %v1519 = vunpack.c.0.s8 %v1518
        %v1520 = vlaneseq
        %v1521 = vshrl.u32 %v1520, 7
        %v1522 = vsub.s32 %v1519, %v1521
        %v1523 = vrot.slane %v1500, %v1522
        %v1525 = vunpack.c.l.s4 1966171168
        %v1526 = vunpack.c.0.s8 %v1525
        %v1527 = vlaneseq
        %v1528 = vshrl.u32 %v1527, 7
        %v1529 = vsub.s32 %v1526, %v1528
        %v1530 = vrot.slane %v1501, %v1529
        %v1532 = vunpack.c.l.s4 1966171168
        %v1533 = vunpack.c.0.s8 %v1532
        %v1534 = vlaneseq
        %v1535 = vshrl.u32 %v1534, 7
        %v1536 = vsub.s32 %v1533, %v1535
        %v1537 = vrot.slane %v851, %v1536
        %v1539 = vunpack.c.l.s4 1966171168
        %v1540 = vunpack.c.0.s8 %v1539
        %v1541 = vlaneseq
        %v1542 = vshrl.u32 %v1541, 7
        %v1543 = vsub.s32 %v1540, %v1542
        %v1544 = vrot.slane %v1502, %v1543
        %v1545 = vcombine.low %v1509, %v1523
        %v1546 = vcombine.high %v1509, %v1523
        %v1547 = vcombine.low %v1516, %v1530
        %v1548 = vcombine.high %v1516, %v1530
        %v1549 = vcombine.high %v1537, %v1537
        %v1550 = vcombine.high %v1544, %v1544
        %v1552 = vunpack.c.l.s4 1966171168
        %v1553 = vunpack.c.0.s8 %v1552
        %v1554 = vlaneseq
        %v1555 = vshrl.u32 %v1554, 7
        %v1556 = vsub.s32 %v1553, %v1555
        %v1557 = vrot.slane %v1545, %v1556
        %v1559 = vunpack.c.l.s4 1966171168
        %v1560 = vunpack.c.0.s8 %v1559
        %v1561 = vlaneseq
        %v1562 = vshrl.u32 %v1561, 7
        %v1563 = vsub.s32 %v1560, %v1562
        %v1564 = vrot.slane %v1547, %v1563
        %v1566 = vunpack.c.l.s4 1966171168
        %v1567 = vunpack.c.0.s8 %v1566
        %v1568 = vlaneseq
        %v1569 = vshrl.u32 %v1568, 7
        %v1570 = vsub.s32 %v1567, %v1569
        %v1571 = vrot.slane %v1546, %v1570
        %v1573 = vunpack.c.l.s4 1966171168
        %v1574 = vunpack.c.0.s8 %v1573
        %v1575 = vlaneseq
        %v1576 = vshrl.u32 %v1575, 7
        %v1577 = vsub.s32 %v1574, %v1576
        %v1578 = vrot.slane %v1548, %v1577
        %v1580 = vunpack.c.l.s4 1966171168
        %v1581 = vunpack.c.0.s8 %v1580
        %v1582 = vlaneseq
        %v1583 = vshrl.u32 %v1582, 7
        %v1584 = vsub.s32 %v1581, %v1583
        %v1585 = vrot.slane %v1537, %v1584
        %v1587 = vunpack.c.l.s4 1966171168
        %v1588 = vunpack.c.0.s8 %v1587
        %v1589 = vlaneseq
        %v1590 = vshrl.u32 %v1589, 7
        %v1591 = vsub.s32 %v1588, %v1590
        %v1592 = vrot.slane %v1544, %v1591
        %v1594 = vunpack.c.l.s4 1966171168
        %v1595 = vunpack.c.0.s8 %v1594
        %v1596 = vlaneseq
        %v1597 = vshrl.u32 %v1596, 7
        %v1598 = vsub.s32 %v1595, %v1597
        %v1599 = vrot.slane %v1549, %v1598
        %v1601 = vunpack.c.l.s4 1966171168
        %v1602 = vunpack.c.0.s8 %v1601
        %v1603 = vlaneseq
        %v1604 = vshrl.u32 %v1603, 7
        %v1605 = vsub.s32 %v1602, %v1604
        %v1606 = vrot.slane %v1550, %v1605
        %v1607 = vcombine.low %v1557, %v1585
        %v1608 = vcombine.high %v1557, %v1585
        %v1609 = vcombine.low %v1564, %v1592
        %v1610 = vcombine.high %v1564, %v1592
        %v1611 = vcombine.low %v1571, %v1599
        %v1612 = vcombine.high %v1571, %v1599
        %v1613 = vcombine.low %v1578, %v1606
        %v1614 = vcombine.high %v1578, %v1606
        %v1615 = vcombine.low %v1093, %v1167
        %v1616 = vcombine.low %v1275, %v1101
        %v1618 = vunpack.c.l.s4 1966171168
        %v1619 = vunpack.c.0.s8 %v1618
        %v1620 = vlaneseq
        %v1621 = vshrl.u32 %v1620, 7
        %v1622 = vsub.s32 %v1619, %v1621
        %v1623 = vrot.slane %v1615, %v1622
        %v1625 = vunpack.c.l.s4 1966171168
        %v1626 = vunpack.c.0.s8 %v1625
        %v1627 = vlaneseq
        %v1628 = vshrl.u32 %v1627, 7
        %v1629 = vsub.s32 %v1626, %v1628
        %v1630 = vrot.slane %v1616, %v1629
        %v1632 = vunpack.c.l.s4 1966171168
        %v1633 = vunpack.c.0.s8 %v1632
        %v1634 = vlaneseq
        %v1635 = vshrl.u32 %v1634, 7
        %v1636 = vsub.s32 %v1633, %v1635
        %v1637 = vrot.slane %v850, %v1636
        %v1638 = vcombine.low %v1623, %v1630
        %v1640 = vunpack.c.l.s4 1966171168
        %v1641 = vunpack.c.0.s8 %v1640
        %v1642 = vlaneseq
        %v1643 = vshrl.u32 %v1642, 7
        %v1644 = vsub.s32 %v1641, %v1643
        %v1645 = vrot.slane %v1638, %v1644
        %v1647 = vunpack.c.l.s4 1966171168
        %v1648 = vunpack.c.0.s8 %v1647
        %v1649 = vlaneseq
        %v1650 = vshrl.u32 %v1649, 7
        %v1651 = vsub.s32 %v1648, %v1650
        %v1652 = vrot.slane %v1637, %v1651
        %v1653 = vcombine.low %v1645, %v1652
        %v1654 = vcombine.low %v1095, %v1170
        %v1655 = vcombine.high %v1095, %v1170
        %v1656 = vcombine.low %v1278, %v1103
        %v1657 = vcombine.high %v1278, %v1103
        %v1658 = vcombine.high %v854, %v854
        %v1660 = vunpack.c.l.s4 1966171168
        %v1661 = vunpack.c.0.s8 %v1660
        %v1662 = vlaneseq
        %v1663 = vshrl.u32 %v1662, 7
        %v1664 = vsub.s32 %v1661, %v1663
        %v1665 = vrot.slane %v1654, %v1664
        %v1667 = vunpack.c.l.s4 1966171168
        %v1668 = vunpack.c.0.s8 %v1667
        %v1669 = vlaneseq
        %v1670 = vshrl.u32 %v1669, 7
        %v1671 = vsub.s32 %v1668, %v1670
        %v1672 = vrot.slane %v1655, %v1671
        %v1674 = vunpack.c.l.s4 1966171168
        %v1675 = vunpack.c.0.s8 %v1674
        %v1676 = vlaneseq
        %v1677 = vshrl.u32 %v1676, 7
        %v1678 = vsub.s32 %v1675, %v1677
        %v1679 = vrot.slane %v1656, %v1678
        %v1681 = vunpack.c.l.s4 1966171168
        %v1682 = vunpack.c.0.s8 %v1681
        %v1683 = vlaneseq
        %v1684 = vshrl.u32 %v1683, 7
        %v1685 = vsub.s32 %v1682, %v1684
        %v1686 = vrot.slane %v1657, %v1685
        %v1688 = vunpack.c.l.s4 1966171168
        %v1689 = vunpack.c.0.s8 %v1688
        %v1690 = vlaneseq
        %v1691 = vshrl.u32 %v1690, 7
        %v1692 = vsub.s32 %v1689, %v1691
        %v1693 = vrot.slane %v854, %v1692
        %v1695 = vunpack.c.l.s4 1966171168
        %v1696 = vunpack.c.0.s8 %v1695
        %v1697 = vlaneseq
        %v1698 = vshrl.u32 %v1697, 7
        %v1699 = vsub.s32 %v1696, %v1698
        %v1700 = vrot.slane %v1658, %v1699
        %v1701 = vcombine.low %v1665, %v1679
        %v1702 = vcombine.high %v1665, %v1679
        %v1703 = vcombine.low %v1672, %v1686
        %v1704 = vcombine.high %v1672, %v1686
        %v1705 = vcombine.high %v1693, %v1693
        %v1706 = vcombine.high %v1700, %v1700
        %v1708 = vunpack.c.l.s4 1966171168
        %v1709 = vunpack.c.0.s8 %v1708
        %v1710 = vlaneseq
        %v1711 = vshrl.u32 %v1710, 7
        %v1712 = vsub.s32 %v1709, %v1711
        %v1713 = vrot.slane %v1701, %v1712
        %v1715 = vunpack.c.l.s4 1966171168
        %v1716 = vunpack.c.0.s8 %v1715
        %v1717 = vlaneseq
        %v1718 = vshrl.u32 %v1717, 7
        %v1719 = vsub.s32 %v1716, %v1718
        %v1720 = vrot.slane %v1703, %v1719
        %v1722 = vunpack.c.l.s4 1966171168
        %v1723 = vunpack.c.0.s8 %v1722
        %v1724 = vlaneseq
        %v1725 = vshrl.u32 %v1724, 7
        %v1726 = vsub.s32 %v1723, %v1725
        %v1727 = vrot.slane %v1702, %v1726
        %v1729 = vunpack.c.l.s4 1966171168
        %v1730 = vunpack.c.0.s8 %v1729
        %v1731 = vlaneseq
        %v1732 = vshrl.u32 %v1731, 7
        %v1733 = vsub.s32 %v1730, %v1732
        %v1734 = vrot.slane %v1704, %v1733
        %v1736 = vunpack.c.l.s4 1966171168
        %v1737 = vunpack.c.0.s8 %v1736
        %v1738 = vlaneseq
        %v1739 = vshrl.u32 %v1738, 7
        %v1740 = vsub.s32 %v1737, %v1739
        %v1741 = vrot.slane %v1693, %v1740
        %v1743 = vunpack.c.l.s4 1966171168
        %v1744 = vunpack.c.0.s8 %v1743
        %v1745 = vlaneseq
        %v1746 = vshrl.u32 %v1745, 7
        %v1747 = vsub.s32 %v1744, %v1746
        %v1748 = vrot.slane %v1700, %v1747
        %v1750 = vunpack.c.l.s4 1966171168
        %v1751 = vunpack.c.0.s8 %v1750
        %v1752 = vlaneseq
        %v1753 = vshrl.u32 %v1752, 7
        %v1754 = vsub.s32 %v1751, %v1753
        %v1755 = vrot.slane %v1705, %v1754
        %v1757 = vunpack.c.l.s4 1966171168
        %v1758 = vunpack.c.0.s8 %v1757
        %v1759 = vlaneseq
        %v1760 = vshrl.u32 %v1759, 7
        %v1761 = vsub.s32 %v1758, %v1760
        %v1762 = vrot.slane %v1706, %v1761
        %v1763 = vcombine.low %v1713, %v1741
        %v1764 = vcombine.high %v1713, %v1741
        %v1765 = vcombine.low %v1720, %v1748
        %v1766 = vcombine.high %v1720, %v1748
        %v1767 = vcombine.low %v1727, %v1755
        %v1768 = vcombine.high %v1727, %v1755
        %v1769 = vcombine.low %v1734, %v1762
        %v1770 = vcombine.high %v1734, %v1762
        %v1771 = vcombine.low %v1097, %v1173
        %v1772 = vcombine.low %v1281, %v1105
        %v1774 = vunpack.c.l.s4 1966171168
        %v1775 = vunpack.c.0.s8 %v1774
        %v1776 = vlaneseq
        %v1777 = vshrl.u32 %v1776, 7
        %v1778 = vsub.s32 %v1775, %v1777
        %v1779 = vrot.slane %v1771, %v1778
        %v1781 = vunpack.c.l.s4 1966171168
        %v1782 = vunpack.c.0.s8 %v1781
        %v1783 = vlaneseq
        %v1784 = vshrl.u32 %v1783, 7
        %v1785 = vsub.s32 %v1782, %v1784
        %v1786 = vrot.slane %v1772, %v1785
        %v1788 = vunpack.c.l.s4 1966171168
        %v1789 = vunpack.c.0.s8 %v1788
        %v1790 = vlaneseq
        %v1791 = vshrl.u32 %v1790, 7
        %v1792 = vsub.s32 %v1789, %v1791
        %v1793 = vrot.slane %v853, %v1792
        %v1794 = vcombine.low %v1779, %v1786
        %v1796 = vunpack.c.l.s4 1966171168
        %v1797 = vunpack.c.0.s8 %v1796
        %v1798 = vlaneseq
        %v1799 = vshrl.u32 %v1798, 7
        %v1800 = vsub.s32 %v1797, %v1799
        %v1801 = vrot.slane %v1794, %v1800
        %v1803 = vunpack.c.l.s4 1966171168
        %v1804 = vunpack.c.0.s8 %v1803
        %v1805 = vlaneseq
        %v1806 = vshrl.u32 %v1805, 7
        %v1807 = vsub.s32 %v1804, %v1806
        %v1808 = vrot.slane %v1793, %v1807
        %v1809 = vcombine.low %v1801, %v1808
        %v1810 = vcombine.low %v1099, %v1176
        %v1811 = vcombine.high %v1099, %v1176
        %v1812 = vcombine.low %v1284, %v1107
        %v1813 = vcombine.high %v1284, %v1107
        %v1814 = vcombine.high %v857, %v857
        %v1816 = vunpack.c.l.s4 1966171168
        %v1817 = vunpack.c.0.s8 %v1816
        %v1818 = vlaneseq
        %v1819 = vshrl.u32 %v1818, 7
        %v1820 = vsub.s32 %v1817, %v1819
        %v1821 = vrot.slane %v1810, %v1820
        %v1823 = vunpack.c.l.s4 1966171168
        %v1824 = vunpack.c.0.s8 %v1823
        %v1825 = vlaneseq
        %v1826 = vshrl.u32 %v1825, 7
        %v1827 = vsub.s32 %v1824, %v1826
        %v1828 = vrot.slane %v1811, %v1827
        %v1830 = vunpack.c.l.s4 1966171168
        %v1831 = vunpack.c.0.s8 %v1830
        %v1832 = vlaneseq
        %v1833 = vshrl.u32 %v1832, 7
        %v1834 = vsub.s32 %v1831, %v1833
        %v1835 = vrot.slane %v1812, %v1834
        %v1837 = vunpack.c.l.s4 1966171168
        %v1838 = vunpack.c.0.s8 %v1837
        %v1839 = vlaneseq
        %v1840 = vshrl.u32 %v1839, 7
        %v1841 = vsub.s32 %v1838, %v1840
        %v1842 = vrot.slane %v1813, %v1841
        %v1844 = vunpack.c.l.s4 1966171168
        %v1845 = vunpack.c.0.s8 %v1844
        %v1846 = vlaneseq
        %v1847 = vshrl.u32 %v1846, 7
        %v1848 = vsub.s32 %v1845, %v1847
        %v1849 = vrot.slane %v857, %v1848
        %v1851 = vunpack.c.l.s4 1966171168
        %v1852 = vunpack.c.0.s8 %v1851
        %v1853 = vlaneseq
        %v1854 = vshrl.u32 %v1853, 7
        %v1855 = vsub.s32 %v1852, %v1854
        %v1856 = vrot.slane %v1814, %v1855
        %v1857 = vcombine.low %v1821, %v1835
        %v1858 = vcombine.high %v1821, %v1835
        %v1859 = vcombine.low %v1828, %v1842
        %v1860 = vcombine.high %v1828, %v1842
        %v1861 = vcombine.high %v1849, %v1849
        %v1862 = vcombine.high %v1856, %v1856
        %v1864 = vunpack.c.l.s4 1966171168
        %v1865 = vunpack.c.0.s8 %v1864
        %v1866 = vlaneseq
        %v1867 = vshrl.u32 %v1866, 7
        %v1868 = vsub.s32 %v1865, %v1867
        %v1869 = vrot.slane %v1857, %v1868
        %v1871 = vunpack.c.l.s4 1966171168
        %v1872 = vunpack.c.0.s8 %v1871
        %v1873 = vlaneseq
        %v1874 = vshrl.u32 %v1873, 7
        %v1875 = vsub.s32 %v1872, %v1874
        %v1876 = vrot.slane %v1859, %v1875
        %v1878 = vunpack.c.l.s4 1966171168
        %v1879 = vunpack.c.0.s8 %v1878
        %v1880 = vlaneseq
        %v1881 = vshrl.u32 %v1880, 7
        %v1882 = vsub.s32 %v1879, %v1881
        %v1883 = vrot.slane %v1858, %v1882
        %v1885 = vunpack.c.l.s4 1966171168
        %v1886 = vunpack.c.0.s8 %v1885
        %v1887 = vlaneseq
        %v1888 = vshrl.u32 %v1887, 7
        %v1889 = vsub.s32 %v1886, %v1888
        %v1890 = vrot.slane %v1860, %v1889
        %v1892 = vunpack.c.l.s4 1966171168
        %v1893 = vunpack.c.0.s8 %v1892
        %v1894 = vlaneseq
        %v1895 = vshrl.u32 %v1894, 7
        %v1896 = vsub.s32 %v1893, %v1895
        %v1897 = vrot.slane %v1849, %v1896
        %v1899 = vunpack.c.l.s4 1966171168
        %v1900 = vunpack.c.0.s8 %v1899
        %v1901 = vlaneseq
        %v1902 = vshrl.u32 %v1901, 7
        %v1903 = vsub.s32 %v1900, %v1902
        %v1904 = vrot.slane %v1856, %v1903
        %v1906 = vunpack.c.l.s4 1966171168
        %v1907 = vunpack.c.0.s8 %v1906
        %v1908 = vlaneseq
        %v1909 = vshrl.u32 %v1908, 7
        %v1910 = vsub.s32 %v1907, %v1909
        %v1911 = vrot.slane %v1861, %v1910
        %v1913 = vunpack.c.l.s4 1966171168
        %v1914 = vunpack.c.0.s8 %v1913
        %v1915 = vlaneseq
        %v1916 = vshrl.u32 %v1915, 7
        %v1917 = vsub.s32 %v1914, %v1916
        %v1918 = vrot.slane %v1862, %v1917
        %v1919 = vcombine.low %v1869, %v1897
        %v1920 = vcombine.high %v1869, %v1897
        %v1921 = vcombine.low %v1876, %v1904
        %v1922 = vcombine.high %v1876, %v1904
        %v1923 = vcombine.low %v1883, %v1911
        %v1924 = vcombine.high %v1883, %v1911
        %v1925 = vcombine.low %v1890, %v1918
        %v1926 = vcombine.high %v1890, %v1918
        %v1927 = vcombine.low %v1101, %v1179
        %v1928 = vcombine.low %v1287, %v1109
        %v1930 = vunpack.c.l.s4 1966171168
        %v1931 = vunpack.c.0.s8 %v1930
        %v1932 = vlaneseq
        %v1933 = vshrl.u32 %v1932, 7
        %v1934 = vsub.s32 %v1931, %v1933
        %v1935 = vrot.slane %v1927, %v1934
        %v1937 = vunpack.c.l.s4 1966171168
        %v1938 = vunpack.c.0.s8 %v1937
        %v1939 = vlaneseq
        %v1940 = vshrl.u32 %v1939, 7
        %v1941 = vsub.s32 %v1938, %v1940
        %v1942 = vrot.slane %v1928, %v1941
        %v1944 = vunpack.c.l.s4 1966171168
        %v1945 = vunpack.c.0.s8 %v1944
        %v1946 = vlaneseq
        %v1947 = vshrl.u32 %v1946, 7
        %v1948 = vsub.s32 %v1945, %v1947
        %v1949 = vrot.slane %v856, %v1948
        %v1950 = vcombine.low %v1935, %v1942
        %v1952 = vunpack.c.l.s4 1966171168
        %v1953 = vunpack.c.0.s8 %v1952
        %v1954 = vlaneseq
        %v1955 = vshrl.u32 %v1954, 7
        %v1956 = vsub.s32 %v1953, %v1955
        %v1957 = vrot.slane %v1950, %v1956
        %v1959 = vunpack.c.l.s4 1966171168
        %v1960 = vunpack.c.0.s8 %v1959
        %v1961 = vlaneseq
        %v1962 = vshrl.u32 %v1961, 7
        %v1963 = vsub.s32 %v1960, %v1962
        %v1964 = vrot.slane %v1949, %v1963
        %v1965 = vcombine.low %v1957, %v1964
        %v1966 = vcombine.low %v1103, %v1182
        %v1967 = vcombine.high %v1103, %v1182
        %v1968 = vcombine.low %v1290, %v1111
        %v1969 = vcombine.high %v1290, %v1111
        %v1970 = vcombine.high %v860, %v860
        %v1972 = vunpack.c.l.s4 1966171168
        %v1973 = vunpack.c.0.s8 %v1972
        %v1974 = vlaneseq
        %v1975 = vshrl.u32 %v1974, 7
        %v1976 = vsub.s32 %v1973, %v1975
        %v1977 = vrot.slane %v1966, %v1976
        %v1979 = vunpack.c.l.s4 1966171168
        %v1980 = vunpack.c.0.s8 %v1979
        %v1981 = vlaneseq
        %v1982 = vshrl.u32 %v1981, 7
        %v1983 = vsub.s32 %v1980, %v1982
        %v1984 = vrot.slane %v1967, %v1983
        %v1986 = vunpack.c.l.s4 1966171168
        %v1987 = vunpack.c.0.s8 %v1986
        %v1988 = vlaneseq
        %v1989 = vshrl.u32 %v1988, 7
        %v1990 = vsub.s32 %v1987, %v1989
        %v1991 = vrot.slane %v1968, %v1990
        %v1993 = vunpack.c.l.s4 1966171168
        %v1994 = vunpack.c.0.s8 %v1993
        %v1995 = vlaneseq
        %v1996 = vshrl.u32 %v1995, 7
        %v1997 = vsub.s32 %v1994, %v1996
        %v1998 = vrot.slane %v1969, %v1997
        %v2000 = vunpack.c.l.s4 1966171168
        %v2001 = vunpack.c.0.s8 %v2000
        %v2002 = vlaneseq
        %v2003 = vshrl.u32 %v2002, 7
        %v2004 = vsub.s32 %v2001, %v2003
        %v2005 = vrot.slane %v860, %v2004
        %v2007 = vunpack.c.l.s4 1966171168
        %v2008 = vunpack.c.0.s8 %v2007
        %v2009 = vlaneseq
        %v2010 = vshrl.u32 %v2009, 7
        %v2011 = vsub.s32 %v2008, %v2010
        %v2012 = vrot.slane %v1970, %v2011
        %v2013 = vcombine.low %v1977, %v1991
        %v2014 = vcombine.high %v1977, %v1991
        %v2015 = vcombine.low %v1984, %v1998
        %v2016 = vcombine.high %v1984, %v1998
        %v2017 = vcombine.high %v2005, %v2005
        %v2018 = vcombine.high %v2012, %v2012
        %v2020 = vunpack.c.l.s4 1966171168
        %v2021 = vunpack.c.0.s8 %v2020
        %v2022 = vlaneseq
        %v2023 = vshrl.u32 %v2022, 7
        %v2024 = vsub.s32 %v2021, %v2023
        %v2025 = vrot.slane %v2013, %v2024
        %v2027 = vunpack.c.l.s4 1966171168
        %v2028 = vunpack.c.0.s8 %v2027
        %v2029 = vlaneseq
        %v2030 = vshrl.u32 %v2029, 7
        %v2031 = vsub.s32 %v2028, %v2030
        %v2032 = vrot.slane %v2015, %v2031
        %v2034 = vunpack.c.l.s4 1966171168
        %v2035 = vunpack.c.0.s8 %v2034
        %v2036 = vlaneseq
        %v2037 = vshrl.u32 %v2036, 7
        %v2038 = vsub.s32 %v2035, %v2037
        %v2039 = vrot.slane %v2014, %v2038
        %v2041 = vunpack.c.l.s4 1966171168
        %v2042 = vunpack.c.0.s8 %v2041
        %v2043 = vlaneseq
        %v2044 = vshrl.u32 %v2043, 7
        %v2045 = vsub.s32 %v2042, %v2044
        %v2046 = vrot.slane %v2016, %v2045
        %v2048 = vunpack.c.l.s4 1966171168
        %v2049 = vunpack.c.0.s8 %v2048
        %v2050 = vlaneseq
        %v2051 = vshrl.u32 %v2050, 7
        %v2052 = vsub.s32 %v2049, %v2051
        %v2053 = vrot.slane %v2005, %v2052
        %v2055 = vunpack.c.l.s4 1966171168
        %v2056 = vunpack.c.0.s8 %v2055
        %v2057 = vlaneseq
        %v2058 = vshrl.u32 %v2057, 7
        %v2059 = vsub.s32 %v2056, %v2058
        %v2060 = vrot.slane %v2012, %v2059
        %v2062 = vunpack.c.l.s4 1966171168
        %v2063 = vunpack.c.0.s8 %v2062
        %v2064 = vlaneseq
        %v2065 = vshrl.u32 %v2064, 7
        %v2066 = vsub.s32 %v2063, %v2065
        %v2067 = vrot.slane %v2017, %v2066
        %v2069 = vunpack.c.l.s4 1966171168
        %v2070 = vunpack.c.0.s8 %v2069
        %v2071 = vlaneseq
        %v2072 = vshrl.u32 %v2071, 7
        %v2073 = vsub.s32 %v2070, %v2072
        %v2074 = vrot.slane %v2018, %v2073
        %v2075 = vcombine.low %v2025, %v2053
        %v2076 = vcombine.high %v2025, %v2053
        %v2077 = vcombine.low %v2032, %v2060
        %v2078 = vcombine.high %v2032, %v2060
        %v2079 = vcombine.low %v2039, %v2067
        %v2080 = vcombine.high %v2039, %v2067
        %v2081 = vcombine.low %v2046, %v2074
        %v2082 = vcombine.high %v2046, %v2074
        %v2083 = vcombine.low %v1105, %v1185
        %v2084 = vcombine.low %v1293, %v1113
        %v2086 = vunpack.c.l.s4 1966171168
        %v2087 = vunpack.c.0.s8 %v2086
        %v2088 = vlaneseq
        %v2089 = vshrl.u32 %v2088, 7
        %v2090 = vsub.s32 %v2087, %v2089
        %v2091 = vrot.slane %v2083, %v2090
        %v2093 = vunpack.c.l.s4 1966171168
        %v2094 = vunpack.c.0.s8 %v2093
        %v2095 = vlaneseq
        %v2096 = vshrl.u32 %v2095, 7
        %v2097 = vsub.s32 %v2094, %v2096
        %v2098 = vrot.slane %v2084, %v2097
        %v2100 = vunpack.c.l.s4 1966171168
        %v2101 = vunpack.c.0.s8 %v2100
        %v2102 = vlaneseq
        %v2103 = vshrl.u32 %v2102, 7
        %v2104 = vsub.s32 %v2101, %v2103
        %v2105 = vrot.slane %v859, %v2104
        %v2106 = vcombine.low %v2091, %v2098
        %v2108 = vunpack.c.l.s4 1966171168
        %v2109 = vunpack.c.0.s8 %v2108
        %v2110 = vlaneseq
        %v2111 = vshrl.u32 %v2110, 7
        %v2112 = vsub.s32 %v2109, %v2111
        %v2113 = vrot.slane %v2106, %v2112
        %v2115 = vunpack.c.l.s4 1966171168
        %v2116 = vunpack.c.0.s8 %v2115
        %v2117 = vlaneseq
        %v2118 = vshrl.u32 %v2117, 7
        %v2119 = vsub.s32 %v2116, %v2118
        %v2120 = vrot.slane %v2105, %v2119
        %v2121 = vcombine.low %v2113, %v2120
        %v2122 = vcombine.low %v1107, %v1188
        %v2123 = vcombine.high %v1107, %v1188
        %v2124 = vcombine.low %v1296, %v1115
        %v2125 = vcombine.high %v1296, %v1115
        %v2126 = vcombine.high %v863, %v863
        %v2128 = vunpack.c.l.s4 1966171168
        %v2129 = vunpack.c.0.s8 %v2128
        %v2130 = vlaneseq
        %v2131 = vshrl.u32 %v2130, 7
        %v2132 = vsub.s32 %v2129, %v2131
        %v2133 = vrot.slane %v2122, %v2132
        %v2135 = vunpack.c.l.s4 1966171168
        %v2136 = vunpack.c.0.s8 %v2135
        %v2137 = vlaneseq
        %v2138 = vshrl.u32 %v2137, 7
        %v2139 = vsub.s32 %v2136, %v2138
        %v2140 = vrot.slane %v2123, %v2139
        %v2142 = vunpack.c.l.s4 1966171168
        %v2143 = vunpack.c.0.s8 %v2142
        %v2144 = vlaneseq
        %v2145 = vshrl.u32 %v2144, 7
        %v2146 = vsub.s32 %v2143, %v2145
        %v2147 = vrot.slane %v2124, %v2146
        %v2149 = vunpack.c.l.s4 1966171168
        %v2150 = vunpack.c.0.s8 %v2149
        %v2151 = vlaneseq
        %v2152 = vshrl.u32 %v2151, 7
        %v2153 = vsub.s32 %v2150, %v2152
        %v2154 = vrot.slane %v2125, %v2153
        %v2156 = vunpack.c.l.s4 1966171168
        %v2157 = vunpack.c.0.s8 %v2156
        %v2158 = vlaneseq
        %v2159 = vshrl.u32 %v2158, 7
        %v2160 = vsub.s32 %v2157, %v2159
        %v2161 = vrot.slane %v863, %v2160
        %v2163 = vunpack.c.l.s4 1966171168
        %v2164 = vunpack.c.0.s8 %v2163
        %v2165 = vlaneseq
        %v2166 = vshrl.u32 %v2165, 7
        %v2167 = vsub.s32 %v2164, %v2166
        %v2168 = vrot.slane %v2126, %v2167
        %v2169 = vcombine.low %v2133, %v2147
        %v2170 = vcombine.high %v2133, %v2147
        %v2171 = vcombine.low %v2140, %v2154
        %v2172 = vcombine.high %v2140, %v2154
        %v2173 = vcombine.high %v2161, %v2161
        %v2174 = vcombine.high %v2168, %v2168
        %v2176 = vunpack.c.l.s4 1966171168
        %v2177 = vunpack.c.0.s8 %v2176
        %v2178 = vlaneseq
        %v2179 = vshrl.u32 %v2178, 7
        %v2180 = vsub.s32 %v2177, %v2179
        %v2181 = vrot.slane %v2169, %v2180
        %v2183 = vunpack.c.l.s4 1966171168
        %v2184 = vunpack.c.0.s8 %v2183
        %v2185 = vlaneseq
        %v2186 = vshrl.u32 %v2185, 7
        %v2187 = vsub.s32 %v2184, %v2186
        %v2188 = vrot.slane %v2171, %v2187
        %v2190 = vunpack.c.l.s4 1966171168
        %v2191 = vunpack.c.0.s8 %v2190
        %v2192 = vlaneseq
        %v2193 = vshrl.u32 %v2192, 7
        %v2194 = vsub.s32 %v2191, %v2193
        %v2195 = vrot.slane %v2170, %v2194
        %v2197 = vunpack.c.l.s4 1966171168
        %v2198 = vunpack.c.0.s8 %v2197
        %v2199 = vlaneseq
        %v2200 = vshrl.u32 %v2199, 7
        %v2201 = vsub.s32 %v2198, %v2200
        %v2202 = vrot.slane %v2172, %v2201
        %v2204 = vunpack.c.l.s4 1966171168
        %v2205 = vunpack.c.0.s8 %v2204
        %v2206 = vlaneseq
        %v2207 = vshrl.u32 %v2206, 7
        %v2208 = vsub.s32 %v2205, %v2207
        %v2209 = vrot.slane %v2161, %v2208
        %v2211 = vunpack.c.l.s4 1966171168
        %v2212 = vunpack.c.0.s8 %v2211
        %v2213 = vlaneseq
        %v2214 = vshrl.u32 %v2213, 7
        %v2215 = vsub.s32 %v2212, %v2214
        %v2216 = vrot.slane %v2168, %v2215
        %v2218 = vunpack.c.l.s4 1966171168
        %v2219 = vunpack.c.0.s8 %v2218
        %v2220 = vlaneseq
        %v2221 = vshrl.u32 %v2220, 7
        %v2222 = vsub.s32 %v2219, %v2221
        %v2223 = vrot.slane %v2173, %v2222
        %v2225 = vunpack.c.l.s4 1966171168
        %v2226 = vunpack.c.0.s8 %v2225
        %v2227 = vlaneseq
        %v2228 = vshrl.u32 %v2227, 7
        %v2229 = vsub.s32 %v2226, %v2228
        %v2230 = vrot.slane %v2174, %v2229
        %v2231 = vcombine.low %v2181, %v2209
        %v2232 = vcombine.high %v2181, %v2209
        %v2233 = vcombine.low %v2188, %v2216
        %v2234 = vcombine.high %v2188, %v2216
        %v2235 = vcombine.low %v2195, %v2223
        %v2236 = vcombine.high %v2195, %v2223
        %v2237 = vcombine.low %v2202, %v2230
        %v2238 = vcombine.high %v2202, %v2230
        %v2239 = vcombine.low %v1109, %v1191
        %v2240 = vcombine.low %v1299, %v1117
        %v2242 = vunpack.c.l.s4 1966171168
        %v2243 = vunpack.c.0.s8 %v2242
        %v2244 = vlaneseq
        %v2245 = vshrl.u32 %v2244, 7
        %v2246 = vsub.s32 %v2243, %v2245
        %v2247 = vrot.slane %v2239, %v2246
        %v2249 = vunpack.c.l.s4 1966171168
        %v2250 = vunpack.c.0.s8 %v2249
        %v2251 = vlaneseq
        %v2252 = vshrl.u32 %v2251, 7
        %v2253 = vsub.s32 %v2250, %v2252
        %v2254 = vrot.slane %v2240, %v2253
        %v2256 = vunpack.c.l.s4 1966171168
        %v2257 = vunpack.c.0.s8 %v2256
        %v2258 = vlaneseq
        %v2259 = vshrl.u32 %v2258, 7
        %v2260 = vsub.s32 %v2257, %v2259
        %v2261 = vrot.slane %v862, %v2260
        %v2262 = vcombine.low %v2247, %v2254
        %v2264 = vunpack.c.l.s4 1966171168
        %v2265 = vunpack.c.0.s8 %v2264
        %v2266 = vlaneseq
        %v2267 = vshrl.u32 %v2266, 7
        %v2268 = vsub.s32 %v2265, %v2267
        %v2269 = vrot.slane %v2262, %v2268
        %v2271 = vunpack.c.l.s4 1966171168
        %v2272 = vunpack.c.0.s8 %v2271
        %v2273 = vlaneseq
        %v2274 = vshrl.u32 %v2273, 7
        %v2275 = vsub.s32 %v2272, %v2274
        %v2276 = vrot.slane %v2261, %v2275
        %v2277 = vcombine.low %v2269, %v2276
        %v2278 = vcombine.low %v1111, %v1194
        %v2279 = vcombine.high %v1111, %v1194
        %v2280 = vcombine.low %v1302, %v1119
        %v2281 = vcombine.high %v1302, %v1119
        %v2282 = vcombine.high %v866, %v866
        %v2284 = vunpack.c.l.s4 1966171168
        %v2285 = vunpack.c.0.s8 %v2284
        %v2286 = vlaneseq
        %v2287 = vshrl.u32 %v2286, 7
        %v2288 = vsub.s32 %v2285, %v2287
        %v2289 = vrot.slane %v2278, %v2288
        %v2291 = vunpack.c.l.s4 1966171168
        %v2292 = vunpack.c.0.s8 %v2291
        %v2293 = vlaneseq
        %v2294 = vshrl.u32 %v2293, 7
        %v2295 = vsub.s32 %v2292, %v2294
        %v2296 = vrot.slane %v2279, %v2295
        %v2298 = vunpack.c.l.s4 1966171168
        %v2299 = vunpack.c.0.s8 %v2298
        %v2300 = vlaneseq
        %v2301 = vshrl.u32 %v2300, 7
        %v2302 = vsub.s32 %v2299, %v2301
        %v2303 = vrot.slane %v2280, %v2302
        %v2305 = vunpack.c.l.s4 1966171168
        %v2306 = vunpack.c.0.s8 %v2305
        %v2307 = vlaneseq
        %v2308 = vshrl.u32 %v2307, 7
        %v2309 = vsub.s32 %v2306, %v2308
        %v2310 = vrot.slane %v2281, %v2309
        %v2312 = vunpack.c.l.s4 1966171168
        %v2313 = vunpack.c.0.s8 %v2312
        %v2314 = vlaneseq
        %v2315 = vshrl.u32 %v2314, 7
        %v2316 = vsub.s32 %v2313, %v2315
        %v2317 = vrot.slane %v866, %v2316
        %v2319 = vunpack.c.l.s4 1966171168
        %v2320 = vunpack.c.0.s8 %v2319
        %v2321 = vlaneseq
        %v2322 = vshrl.u32 %v2321, 7
        %v2323 = vsub.s32 %v2320, %v2322
        %v2324 = vrot.slane %v2282, %v2323
        %v2325 = vcombine.low %v2289, %v2303
        %v2326 = vcombine.high %v2289, %v2303
        %v2327 = vcombine.low %v2296, %v2310
        %v2328 = vcombine.high %v2296, %v2310
        %v2329 = vcombine.high %v2317, %v2317
        %v2330 = vcombine.high %v2324, %v2324
        %v2332 = vunpack.c.l.s4 1966171168
        %v2333 = vunpack.c.0.s8 %v2332
        %v2334 = vlaneseq
        %v2335 = vshrl.u32 %v2334, 7
        %v2336 = vsub.s32 %v2333, %v2335
        %v2337 = vrot.slane %v2325, %v2336
        %v2339 = vunpack.c.l.s4 1966171168
        %v2340 = vunpack.c.0.s8 %v2339
        %v2341 = vlaneseq
        %v2342 = vshrl.u32 %v2341, 7
        %v2343 = vsub.s32 %v2340, %v2342
        %v2344 = vrot.slane %v2327, %v2343
        %v2346 = vunpack.c.l.s4 1966171168
        %v2347 = vunpack.c.0.s8 %v2346
        %v2348 = vlaneseq
        %v2349 = vshrl.u32 %v2348, 7
        %v2350 = vsub.s32 %v2347, %v2349
        %v2351 = vrot.slane %v2326, %v2350
        %v2353 = vunpack.c.l.s4 1966171168
        %v2354 = vunpack.c.0.s8 %v2353
        %v2355 = vlaneseq
        %v2356 = vshrl.u32 %v2355, 7
        %v2357 = vsub.s32 %v2354, %v2356
        %v2358 = vrot.slane %v2328, %v2357
        %v2360 = vunpack.c.l.s4 1966171168
        %v2361 = vunpack.c.0.s8 %v2360
        %v2362 = vlaneseq
        %v2363 = vshrl.u32 %v2362, 7
        %v2364 = vsub.s32 %v2361, %v2363
        %v2365 = vrot.slane %v2317, %v2364
        %v2367 = vunpack.c.l.s4 1966171168
        %v2368 = vunpack.c.0.s8 %v2367
        %v2369 = vlaneseq
        %v2370 = vshrl.u32 %v2369, 7
        %v2371 = vsub.s32 %v2368, %v2370
        %v2372 = vrot.slane %v2324, %v2371
        %v2374 = vunpack.c.l.s4 1966171168
        %v2375 = vunpack.c.0.s8 %v2374
        %v2376 = vlaneseq
        %v2377 = vshrl.u32 %v2376, 7
        %v2378 = vsub.s32 %v2375, %v2377
        %v2379 = vrot.slane %v2329, %v2378
        %v2381 = vunpack.c.l.s4 1966171168
        %v2382 = vunpack.c.0.s8 %v2381
        %v2383 = vlaneseq
        %v2384 = vshrl.u32 %v2383, 7
        %v2385 = vsub.s32 %v2382, %v2384
        %v2386 = vrot.slane %v2330, %v2385
        %v2387 = vcombine.low %v2337, %v2365
        %v2388 = vcombine.high %v2337, %v2365
        %v2389 = vcombine.low %v2344, %v2372
        %v2390 = vcombine.high %v2344, %v2372
        %v2391 = vcombine.low %v2351, %v2379
        %v2392 = vcombine.high %v2351, %v2379
        %v2393 = vcombine.low %v2358, %v2386
        %v2394 = vcombine.high %v2358, %v2386
        %v2395 = vcombine.low %v1113, %v1197
        %v2396 = vcombine.low %v1305, %v1121
        %v2398 = vunpack.c.l.s4 1966171168
        %v2399 = vunpack.c.0.s8 %v2398
        %v2400 = vlaneseq
        %v2401 = vshrl.u32 %v2400, 7
        %v2402 = vsub.s32 %v2399, %v2401
        %v2403 = vrot.slane %v2395, %v2402
        %v2405 = vunpack.c.l.s4 1966171168
        %v2406 = vunpack.c.0.s8 %v2405
        %v2407 = vlaneseq
        %v2408 = vshrl.u32 %v2407, 7
        %v2409 = vsub.s32 %v2406, %v2408
        %v2410 = vrot.slane %v2396, %v2409
        %v2412 = vunpack.c.l.s4 1966171168
        %v2413 = vunpack.c.0.s8 %v2412
        %v2414 = vlaneseq
        %v2415 = vshrl.u32 %v2414, 7
        %v2416 = vsub.s32 %v2413, %v2415
        %v2417 = vrot.slane %v865, %v2416
        %v2418 = vcombine.low %v2403, %v2410
        %v2420 = vunpack.c.l.s4 1966171168
        %v2421 = vunpack.c.0.s8 %v2420
        %v2422 = vlaneseq
        %v2423 = vshrl.u32 %v2422, 7
        %v2424 = vsub.s32 %v2421, %v2423
        %v2425 = vrot.slane %v2418, %v2424
        %v2427 = vunpack.c.l.s4 1966171168
        %v2428 = vunpack.c.0.s8 %v2427
        %v2429 = vlaneseq
        %v2430 = vshrl.u32 %v2429, 7
        %v2431 = vsub.s32 %v2428, %v2430
        %v2432 = vrot.slane %v2417, %v2431
        %v2433 = vcombine.low %v2425, %v2432
        %v2434 = vcombine.low %v1115, %v1200
        %v2435 = vcombine.high %v1115, %v1200
        %v2436 = vcombine.low %v1308, %v1123
        %v2437 = vcombine.high %v1308, %v1123
        %v2438 = vcombine.high %v869, %v869
        %v2440 = vunpack.c.l.s4 1966171168
        %v2441 = vunpack.c.0.s8 %v2440
        %v2442 = vlaneseq
        %v2443 = vshrl.u32 %v2442, 7
        %v2444 = vsub.s32 %v2441, %v2443
        %v2445 = vrot.slane %v2434, %v2444
        %v2447 = vunpack.c.l.s4 1966171168
        %v2448 = vunpack.c.0.s8 %v2447
        %v2449 = vlaneseq
        %v2450 = vshrl.u32 %v2449, 7
        %v2451 = vsub.s32 %v2448, %v2450
        %v2452 = vrot.slane %v2435, %v2451
        %v2454 = vunpack.c.l.s4 1966171168
        %v2455 = vunpack.c.0.s8 %v2454
        %v2456 = vlaneseq
        %v2457 = vshrl.u32 %v2456, 7
        %v2458 = vsub.s32 %v2455, %v2457
        %v2459 = vrot.slane %v2436, %v2458
        %v2461 = vunpack.c.l.s4 1966171168
        %v2462 = vunpack.c.0.s8 %v2461
        %v2463 = vlaneseq
        %v2464 = vshrl.u32 %v2463, 7
        %v2465 = vsub.s32 %v2462, %v2464
        %v2466 = vrot.slane %v2437, %v2465
        %v2468 = vunpack.c.l.s4 1966171168
        %v2469 = vunpack.c.0.s8 %v2468
        %v2470 = vlaneseq
        %v2471 = vshrl.u32 %v2470, 7
        %v2472 = vsub.s32 %v2469, %v2471
        %v2473 = vrot.slane %v869, %v2472
        %v2475 = vunpack.c.l.s4 1966171168
        %v2476 = vunpack.c.0.s8 %v2475
        %v2477 = vlaneseq
        %v2478 = vshrl.u32 %v2477, 7
        %v2479 = vsub.s32 %v2476, %v2478
        %v2480 = vrot.slane %v2438, %v2479
        %v2481 = vcombine.low %v2445, %v2459
        %v2482 = vcombine.high %v2445, %v2459
        %v2483 = vcombine.low %v2452, %v2466
        %v2484 = vcombine.high %v2452, %v2466
        %v2485 = vcombine.high %v2473, %v2473
        %v2486 = vcombine.high %v2480, %v2480
        %v2488 = vunpack.c.l.s4 1966171168
        %v2489 = vunpack.c.0.s8 %v2488
        %v2490 = vlaneseq
        %v2491 = vshrl.u32 %v2490, 7
        %v2492 = vsub.s32 %v2489, %v2491
        %v2493 = vrot.slane %v2481, %v2492
        %v2495 = vunpack.c.l.s4 1966171168
        %v2496 = vunpack.c.0.s8 %v2495
        %v2497 = vlaneseq
        %v2498 = vshrl.u32 %v2497, 7
        %v2499 = vsub.s32 %v2496, %v2498
        %v2500 = vrot.slane %v2483, %v2499
        %v2502 = vunpack.c.l.s4 1966171168
        %v2503 = vunpack.c.0.s8 %v2502
        %v2504 = vlaneseq
        %v2505 = vshrl.u32 %v2504, 7
        %v2506 = vsub.s32 %v2503, %v2505
        %v2507 = vrot.slane %v2482, %v2506
        %v2509 = vunpack.c.l.s4 1966171168
        %v2510 = vunpack.c.0.s8 %v2509
        %v2511 = vlaneseq
        %v2512 = vshrl.u32 %v2511, 7
        %v2513 = vsub.s32 %v2510, %v2512
        %v2514 = vrot.slane %v2484, %v2513
        %v2516 = vunpack.c.l.s4 1966171168
        %v2517 = vunpack.c.0.s8 %v2516
        %v2518 = vlaneseq
        %v2519 = vshrl.u32 %v2518, 7
        %v2520 = vsub.s32 %v2517, %v2519
        %v2521 = vrot.slane %v2473, %v2520
        %v2523 = vunpack.c.l.s4 1966171168
        %v2524 = vunpack.c.0.s8 %v2523
        %v2525 = vlaneseq
        %v2526 = vshrl.u32 %v2525, 7
        %v2527 = vsub.s32 %v2524, %v2526
        %v2528 = vrot.slane %v2480, %v2527
        %v2530 = vunpack.c.l.s4 1966171168
        %v2531 = vunpack.c.0.s8 %v2530
        %v2532 = vlaneseq
        %v2533 = vshrl.u32 %v2532, 7
        %v2534 = vsub.s32 %v2531, %v2533
        %v2535 = vrot.slane %v2485, %v2534
        %v2537 = vunpack.c.l.s4 1966171168
        %v2538 = vunpack.c.0.s8 %v2537
        %v2539 = vlaneseq
        %v2540 = vshrl.u32 %v2539, 7
        %v2541 = vsub.s32 %v2538, %v2540
        %v2542 = vrot.slane %v2486, %v2541
        %v2543 = vcombine.low %v2493, %v2521
        %v2544 = vcombine.high %v2493, %v2521
        %v2545 = vcombine.low %v2500, %v2528
        %v2546 = vcombine.high %v2500, %v2528
        %v2547 = vcombine.low %v2507, %v2535
        %v2548 = vcombine.high %v2507, %v2535
        %v2549 = vcombine.low %v2514, %v2542
        %v2550 = vcombine.high %v2514, %v2542
        %v2551 = vcombine.low %v1117, %v1203
        %v2552 = vcombine.low %v1311, %v1125
        %v2554 = vunpack.c.l.s4 1966171168
        %v2555 = vunpack.c.0.s8 %v2554
        %v2556 = vlaneseq
        %v2557 = vshrl.u32 %v2556, 7
        %v2558 = vsub.s32 %v2555, %v2557
        %v2559 = vrot.slane %v2551, %v2558
        %v2561 = vunpack.c.l.s4 1966171168
        %v2562 = vunpack.c.0.s8 %v2561
        %v2563 = vlaneseq
        %v2564 = vshrl.u32 %v2563, 7
        %v2565 = vsub.s32 %v2562, %v2564
        %v2566 = vrot.slane %v2552, %v2565
        %v2568 = vunpack.c.l.s4 1966171168
        %v2569 = vunpack.c.0.s8 %v2568
        %v2570 = vlaneseq
        %v2571 = vshrl.u32 %v2570, 7
        %v2572 = vsub.s32 %v2569, %v2571
        %v2573 = vrot.slane %v868, %v2572
        %v2574 = vcombine.low %v2559, %v2566
        %v2576 = vunpack.c.l.s4 1966171168
        %v2577 = vunpack.c.0.s8 %v2576
        %v2578 = vlaneseq
        %v2579 = vshrl.u32 %v2578, 7
        %v2580 = vsub.s32 %v2577, %v2579
        %v2581 = vrot.slane %v2574, %v2580
        %v2583 = vunpack.c.l.s4 1966171168
        %v2584 = vunpack.c.0.s8 %v2583
        %v2585 = vlaneseq
        %v2586 = vshrl.u32 %v2585, 7
        %v2587 = vsub.s32 %v2584, %v2586
        %v2588 = vrot.slane %v2573, %v2587
        %v2589 = vcombine.low %v2581, %v2588
        %v2590 = vcombine.low %v1119, %v1206
        %v2591 = vcombine.high %v1119, %v1206
        %v2592 = vcombine.low %v1314, %v1127
        %v2593 = vcombine.high %v1314, %v1127
        %v2594 = vcombine.high %v872, %v872
        %v2596 = vunpack.c.l.s4 1966171168
        %v2597 = vunpack.c.0.s8 %v2596
        %v2598 = vlaneseq
        %v2599 = vshrl.u32 %v2598, 7
        %v2600 = vsub.s32 %v2597, %v2599
        %v2601 = vrot.slane %v2590, %v2600
        %v2603 = vunpack.c.l.s4 1966171168
        %v2604 = vunpack.c.0.s8 %v2603
        %v2605 = vlaneseq
        %v2606 = vshrl.u32 %v2605, 7
        %v2607 = vsub.s32 %v2604, %v2606
        %v2608 = vrot.slane %v2591, %v2607
        %v2610 = vunpack.c.l.s4 1966171168
        %v2611 = vunpack.c.0.s8 %v2610
        %v2612 = vlaneseq
        %v2613 = vshrl.u32 %v2612, 7
        %v2614 = vsub.s32 %v2611, %v2613
        %v2615 = vrot.slane %v2592, %v2614
        %v2617 = vunpack.c.l.s4 1966171168
        %v2618 = vunpack.c.0.s8 %v2617
        %v2619 = vlaneseq
        %v2620 = vshrl.u32 %v2619, 7
        %v2621 = vsub.s32 %v2618, %v2620
        %v2622 = vrot.slane %v2593, %v2621
        %v2624 = vunpack.c.l.s4 1966171168
        %v2625 = vunpack.c.0.s8 %v2624
        %v2626 = vlaneseq
        %v2627 = vshrl.u32 %v2626, 7
        %v2628 = vsub.s32 %v2625, %v2627
        %v2629 = vrot.slane %v872, %v2628
        %v2631 = vunpack.c.l.s4 1966171168
        %v2632 = vunpack.c.0.s8 %v2631
        %v2633 = vlaneseq
        %v2634 = vshrl.u32 %v2633, 7
        %v2635 = vsub.s32 %v2632, %v2634
        %v2636 = vrot.slane %v2594, %v2635
        %v2637 = vcombine.low %v2601, %v2615
        %v2638 = vcombine.high %v2601, %v2615
        %v2639 = vcombine.low %v2608, %v2622
        %v2640 = vcombine.high %v2608, %v2622
        %v2641 = vcombine.high %v2629, %v2629
        %v2642 = vcombine.high %v2636, %v2636
        %v2644 = vunpack.c.l.s4 1966171168
        %v2645 = vunpack.c.0.s8 %v2644
        %v2646 = vlaneseq
        %v2647 = vshrl.u32 %v2646, 7
        %v2648 = vsub.s32 %v2645, %v2647
        %v2649 = vrot.slane %v2637, %v2648
        %v2651 = vunpack.c.l.s4 1966171168
        %v2652 = vunpack.c.0.s8 %v2651
        %v2653 = vlaneseq
        %v2654 = vshrl.u32 %v2653, 7
        %v2655 = vsub.s32 %v2652, %v2654
        %v2656 = vrot.slane %v2639, %v2655
        %v2658 = vunpack.c.l.s4 1966171168
        %v2659 = vunpack.c.0.s8 %v2658
        %v2660 = vlaneseq
        %v2661 = vshrl.u32 %v2660, 7
        %v2662 = vsub.s32 %v2659, %v2661
        %v2663 = vrot.slane %v2638, %v2662
        %v2665 = vunpack.c.l.s4 1966171168
        %v2666 = vunpack.c.0.s8 %v2665
        %v2667 = vlaneseq
        %v2668 = vshrl.u32 %v2667, 7
        %v2669 = vsub.s32 %v2666, %v2668
        %v2670 = vrot.slane %v2640, %v2669
        %v2672 = vunpack.c.l.s4 1966171168
        %v2673 = vunpack.c.0.s8 %v2672
        %v2674 = vlaneseq
        %v2675 = vshrl.u32 %v2674, 7
        %v2676 = vsub.s32 %v2673, %v2675
        %v2677 = vrot.slane %v2629, %v2676
        %v2679 = vunpack.c.l.s4 1966171168
        %v2680 = vunpack.c.0.s8 %v2679
        %v2681 = vlaneseq
        %v2682 = vshrl.u32 %v2681, 7
        %v2683 = vsub.s32 %v2680, %v2682
        %v2684 = vrot.slane %v2636, %v2683
        %v2686 = vunpack.c.l.s4 1966171168
        %v2687 = vunpack.c.0.s8 %v2686
        %v2688 = vlaneseq
        %v2689 = vshrl.u32 %v2688, 7
        %v2690 = vsub.s32 %v2687, %v2689
        %v2691 = vrot.slane %v2641, %v2690
        %v2693 = vunpack.c.l.s4 1966171168
        %v2694 = vunpack.c.0.s8 %v2693
        %v2695 = vlaneseq
        %v2696 = vshrl.u32 %v2695, 7
        %v2697 = vsub.s32 %v2694, %v2696
        %v2698 = vrot.slane %v2642, %v2697
        %v2699 = vcombine.low %v2649, %v2677
        %v2700 = vcombine.high %v2649, %v2677
        %v2701 = vcombine.low %v2656, %v2684
        %v2702 = vcombine.high %v2656, %v2684
        %v2703 = vcombine.low %v2663, %v2691
        %v2704 = vcombine.high %v2663, %v2691
        %v2705 = vcombine.low %v2670, %v2698
        %v2706 = vcombine.high %v2670, %v2698
        %v2707 = vcombine.low %v1121, %v1209
        %v2708 = vcombine.low %v1317, %v1129
        %v2710 = vunpack.c.l.s4 1966171168
        %v2711 = vunpack.c.0.s8 %v2710
        %v2712 = vlaneseq
        %v2713 = vshrl.u32 %v2712, 7
        %v2714 = vsub.s32 %v2711, %v2713
        %v2715 = vrot.slane %v2707, %v2714
        %v2717 = vunpack.c.l.s4 1966171168
        %v2718 = vunpack.c.0.s8 %v2717
        %v2719 = vlaneseq
        %v2720 = vshrl.u32 %v2719, 7
        %v2721 = vsub.s32 %v2718, %v2720
        %v2722 = vrot.slane %v2708, %v2721
        %v2724 = vunpack.c.l.s4 1966171168
        %v2725 = vunpack.c.0.s8 %v2724
        %v2726 = vlaneseq
        %v2727 = vshrl.u32 %v2726, 7
        %v2728 = vsub.s32 %v2725, %v2727
        %v2729 = vrot.slane %v871, %v2728
        %v2730 = vcombine.low %v2715, %v2722
        %v2732 = vunpack.c.l.s4 1966171168
        %v2733 = vunpack.c.0.s8 %v2732
        %v2734 = vlaneseq
        %v2735 = vshrl.u32 %v2734, 7
        %v2736 = vsub.s32 %v2733, %v2735
        %v2737 = vrot.slane %v2730, %v2736
        %v2739 = vunpack.c.l.s4 1966171168
        %v2740 = vunpack.c.0.s8 %v2739
        %v2741 = vlaneseq
        %v2742 = vshrl.u32 %v2741, 7
        %v2743 = vsub.s32 %v2740, %v2742
        %v2744 = vrot.slane %v2729, %v2743
        %v2745 = vcombine.low %v2737, %v2744
        %v2746 = vcombine.low %v1123, %v1212
        %v2747 = vcombine.high %v1123, %v1212
        %v2748 = vcombine.low %v1320, %v1131
        %v2749 = vcombine.high %v1320, %v1131
        %v2750 = vcombine.high %v875, %v875
        %v2752 = vunpack.c.l.s4 1966171168
        %v2753 = vunpack.c.0.s8 %v2752
        %v2754 = vlaneseq
        %v2755 = vshrl.u32 %v2754, 7
        %v2756 = vsub.s32 %v2753, %v2755
        %v2757 = vrot.slane %v2746, %v2756
        %v2759 = vunpack.c.l.s4 1966171168
        %v2760 = vunpack.c.0.s8 %v2759
        %v2761 = vlaneseq
        %v2762 = vshrl.u32 %v2761, 7
        %v2763 = vsub.s32 %v2760, %v2762
        %v2764 = vrot.slane %v2747, %v2763
        %v2766 = vunpack.c.l.s4 1966171168
        %v2767 = vunpack.c.0.s8 %v2766
        %v2768 = vlaneseq
        %v2769 = vshrl.u32 %v2768, 7
        %v2770 = vsub.s32 %v2767, %v2769
        %v2771 = vrot.slane %v2748, %v2770
        %v2773 = vunpack.c.l.s4 1966171168
        %v2774 = vunpack.c.0.s8 %v2773
        %v2775 = vlaneseq
        %v2776 = vshrl.u32 %v2775, 7
        %v2777 = vsub.s32 %v2774, %v2776
        %v2778 = vrot.slane %v2749, %v2777
        %v2780 = vunpack.c.l.s4 1966171168
        %v2781 = vunpack.c.0.s8 %v2780
        %v2782 = vlaneseq
        %v2783 = vshrl.u32 %v2782, 7
        %v2784 = vsub.s32 %v2781, %v2783
        %v2785 = vrot.slane %v875, %v2784
        %v2787 = vunpack.c.l.s4 1966171168
        %v2788 = vunpack.c.0.s8 %v2787
        %v2789 = vlaneseq
        %v2790 = vshrl.u32 %v2789, 7
        %v2791 = vsub.s32 %v2788, %v2790
        %v2792 = vrot.slane %v2750, %v2791
        %v2793 = vcombine.low %v2757, %v2771
        %v2794 = vcombine.high %v2757, %v2771
        %v2795 = vcombine.low %v2764, %v2778
        %v2796 = vcombine.high %v2764, %v2778
        %v2797 = vcombine.high %v2785, %v2785
        %v2798 = vcombine.high %v2792, %v2792
        %v2800 = vunpack.c.l.s4 1966171168
        %v2801 = vunpack.c.0.s8 %v2800
        %v2802 = vlaneseq
        %v2803 = vshrl.u32 %v2802, 7
        %v2804 = vsub.s32 %v2801, %v2803
        %v2805 = vrot.slane %v2793, %v2804
        %v2807 = vunpack.c.l.s4 1966171168
        %v2808 = vunpack.c.0.s8 %v2807
        %v2809 = vlaneseq
        %v2810 = vshrl.u32 %v2809, 7
        %v2811 = vsub.s32 %v2808, %v2810
        %v2812 = vrot.slane %v2795, %v2811
        %v2814 = vunpack.c.l.s4 1966171168
        %v2815 = vunpack.c.0.s8 %v2814
        %v2816 = vlaneseq
        %v2817 = vshrl.u32 %v2816, 7
        %v2818 = vsub.s32 %v2815, %v2817
        %v2819 = vrot.slane %v2794, %v2818
        %v2821 = vunpack.c.l.s4 1966171168
        %v2822 = vunpack.c.0.s8 %v2821
        %v2823 = vlaneseq
        %v2824 = vshrl.u32 %v2823, 7
        %v2825 = vsub.s32 %v2822, %v2824
        %v2826 = vrot.slane %v2796, %v2825
        %v2828 = vunpack.c.l.s4 1966171168
        %v2829 = vunpack.c.0.s8 %v2828
        %v2830 = vlaneseq
        %v2831 = vshrl.u32 %v2830, 7
        %v2832 = vsub.s32 %v2829, %v2831
        %v2833 = vrot.slane %v2785, %v2832
        %v2835 = vunpack.c.l.s4 1966171168
        %v2836 = vunpack.c.0.s8 %v2835
        %v2837 = vlaneseq
        %v2838 = vshrl.u32 %v2837, 7
        %v2839 = vsub.s32 %v2836, %v2838
        %v2840 = vrot.slane %v2792, %v2839
        %v2842 = vunpack.c.l.s4 1966171168
        %v2843 = vunpack.c.0.s8 %v2842
        %v2844 = vlaneseq
        %v2845 = vshrl.u32 %v2844, 7
        %v2846 = vsub.s32 %v2843, %v2845
        %v2847 = vrot.slane %v2797, %v2846
        %v2849 = vunpack.c.l.s4 1966171168
        %v2850 = vunpack.c.0.s8 %v2849
        %v2851 = vlaneseq
        %v2852 = vshrl.u32 %v2851, 7
        %v2853 = vsub.s32 %v2850, %v2852
        %v2854 = vrot.slane %v2798, %v2853
        %v2855 = vcombine.low %v2805, %v2833
        %v2856 = vcombine.high %v2805, %v2833
        %v2857 = vcombine.low %v2812, %v2840
        %v2858 = vcombine.high %v2812, %v2840
        %v2859 = vcombine.low %v2819, %v2847
        %v2860 = vcombine.high %v2819, %v2847
        %v2861 = vcombine.low %v2826, %v2854
        %v2862 = vcombine.high %v2826, %v2854
        %v2863 = vcombine.low %v1125, %v1215
        %v2864 = vcombine.low %v1323, %v1133
        %v2866 = vunpack.c.l.s4 1966171168
        %v2867 = vunpack.c.0.s8 %v2866
        %v2868 = vlaneseq
        %v2869 = vshrl.u32 %v2868, 7
        %v2870 = vsub.s32 %v2867, %v2869
        %v2871 = vrot.slane %v2863, %v2870
        %v2873 = vunpack.c.l.s4 1966171168
        %v2874 = vunpack.c.0.s8 %v2873
        %v2875 = vlaneseq
        %v2876 = vshrl.u32 %v2875, 7
        %v2877 = vsub.s32 %v2874, %v2876
        %v2878 = vrot.slane %v2864, %v2877
        %v2880 = vunpack.c.l.s4 1966171168
        %v2881 = vunpack.c.0.s8 %v2880
        %v2882 = vlaneseq
        %v2883 = vshrl.u32 %v2882, 7
        %v2884 = vsub.s32 %v2881, %v2883
        %v2885 = vrot.slane %v874, %v2884
        %v2886 = vcombine.low %v2871, %v2878
        %v2888 = vunpack.c.l.s4 1966171168
        %v2889 = vunpack.c.0.s8 %v2888
        %v2890 = vlaneseq
        %v2891 = vshrl.u32 %v2890, 7
        %v2892 = vsub.s32 %v2889, %v2891
        %v2893 = vrot.slane %v2886, %v2892
        %v2895 = vunpack.c.l.s4 1966171168
        %v2896 = vunpack.c.0.s8 %v2895
        %v2897 = vlaneseq
        %v2898 = vshrl.u32 %v2897, 7
        %v2899 = vsub.s32 %v2896, %v2898
        %v2900 = vrot.slane %v2885, %v2899
        %v2901 = vcombine.low %v2893, %v2900
        %v2902 = vcombine.low %v1127, %v1218
        %v2903 = vcombine.high %v1127, %v1218
        %v2904 = vcombine.low %v1326, %v1135
        %v2905 = vcombine.high %v1326, %v1135
        %v2906 = vcombine.high %v878, %v878
        %v2908 = vunpack.c.l.s4 1966171168
        %v2909 = vunpack.c.0.s8 %v2908
        %v2910 = vlaneseq
        %v2911 = vshrl.u32 %v2910, 7
        %v2912 = vsub.s32 %v2909, %v2911
        %v2913 = vrot.slane %v2902, %v2912
        %v2915 = vunpack.c.l.s4 1966171168
        %v2916 = vunpack.c.0.s8 %v2915
        %v2917 = vlaneseq
        %v2918 = vshrl.u32 %v2917, 7
        %v2919 = vsub.s32 %v2916, %v2918
        %v2920 = vrot.slane %v2903, %v2919
        %v2922 = vunpack.c.l.s4 1966171168
        %v2923 = vunpack.c.0.s8 %v2922
        %v2924 = vlaneseq
        %v2925 = vshrl.u32 %v2924, 7
        %v2926 = vsub.s32 %v2923, %v2925
        %v2927 = vrot.slane %v2904, %v2926
        %v2929 = vunpack.c.l.s4 1966171168
        %v2930 = vunpack.c.0.s8 %v2929
        %v2931 = vlaneseq
        %v2932 = vshrl.u32 %v2931, 7
        %v2933 = vsub.s32 %v2930, %v2932
        %v2934 = vrot.slane %v2905, %v2933
        %v2936 = vunpack.c.l.s4 1966171168
        %v2937 = vunpack.c.0.s8 %v2936
        %v2938 = vlaneseq
        %v2939 = vshrl.u32 %v2938, 7
        %v2940 = vsub.s32 %v2937, %v2939
        %v2941 = vrot.slane %v878, %v2940
        %v2943 = vunpack.c.l.s4 1966171168
        %v2944 = vunpack.c.0.s8 %v2943
        %v2945 = vlaneseq
        %v2946 = vshrl.u32 %v2945, 7
        %v2947 = vsub.s32 %v2944, %v2946
        %v2948 = vrot.slane %v2906, %v2947
        %v2949 = vcombine.low %v2913, %v2927
        %v2950 = vcombine.high %v2913, %v2927
        %v2951 = vcombine.low %v2920, %v2934
        %v2952 = vcombine.high %v2920, %v2934
        %v2953 = vcombine.high %v2941, %v2941
        %v2954 = vcombine.high %v2948, %v2948
        %v2956 = vunpack.c.l.s4 1966171168
        %v2957 = vunpack.c.0.s8 %v2956
        %v2958 = vlaneseq
        %v2959 = vshrl.u32 %v2958, 7
        %v2960 = vsub.s32 %v2957, %v2959
        %v2961 = vrot.slane %v2949, %v2960
        %v2963 = vunpack.c.l.s4 1966171168
        %v2964 = vunpack.c.0.s8 %v2963
        %v2965 = vlaneseq
        %v2966 = vshrl.u32 %v2965, 7
        %v2967 = vsub.s32 %v2964, %v2966
        %v2968 = vrot.slane %v2951, %v2967
        %v2970 = vunpack.c.l.s4 1966171168
        %v2971 = vunpack.c.0.s8 %v2970
        %v2972 = vlaneseq
        %v2973 = vshrl.u32 %v2972, 7
        %v2974 = vsub.s32 %v2971, %v2973
        %v2975 = vrot.slane %v2950, %v2974
        %v2977 = vunpack.c.l.s4 1966171168
        %v2978 = vunpack.c.0.s8 %v2977
        %v2979 = vlaneseq
        %v2980 = vshrl.u32 %v2979, 7
        %v2981 = vsub.s32 %v2978, %v2980
        %v2982 = vrot.slane %v2952, %v2981
        %v2984 = vunpack.c.l.s4 1966171168
        %v2985 = vunpack.c.0.s8 %v2984
        %v2986 = vlaneseq
        %v2987 = vshrl.u32 %v2986, 7
        %v2988 = vsub.s32 %v2985, %v2987
        %v2989 = vrot.slane %v2941, %v2988
        %v2991 = vunpack.c.l.s4 1966171168
        %v2992 = vunpack.c.0.s8 %v2991
        %v2993 = vlaneseq
        %v2994 = vshrl.u32 %v2993, 7
        %v2995 = vsub.s32 %v2992, %v2994
        %v2996 = vrot.slane %v2948, %v2995
        %v2998 = vunpack.c.l.s4 1966171168
        %v2999 = vunpack.c.0.s8 %v2998
        %v3000 = vlaneseq
        %v3001 = vshrl.u32 %v3000, 7
        %v3002 = vsub.s32 %v2999, %v3001
        %v3003 = vrot.slane %v2953, %v3002
        %v3005 = vunpack.c.l.s4 1966171168
        %v3006 = vunpack.c.0.s8 %v3005
        %v3007 = vlaneseq
        %v3008 = vshrl.u32 %v3007, 7
        %v3009 = vsub.s32 %v3006, %v3008
        %v3010 = vrot.slane %v2954, %v3009
        %v3011 = vcombine.low %v2961, %v2989
        %v3012 = vcombine.high %v2961, %v2989
        %v3013 = vcombine.low %v2968, %v2996
        %v3014 = vcombine.high %v2968, %v2996
        %v3015 = vcombine.low %v2975, %v3003
        %v3016 = vcombine.high %v2975, %v3003
        %v3017 = vcombine.low %v2982, %v3010
        %v3018 = vcombine.high %v2982, %v3010
        %v3019 = vcombine.low %v1129, %v1221
        %v3020 = vcombine.low %v1329, %v1137
        %v3022 = vunpack.c.l.s4 1966171168
        %v3023 = vunpack.c.0.s8 %v3022
        %v3024 = vlaneseq
        %v3025 = vshrl.u32 %v3024, 7
        %v3026 = vsub.s32 %v3023, %v3025
        %v3027 = vrot.slane %v3019, %v3026
        %v3029 = vunpack.c.l.s4 1966171168
        %v3030 = vunpack.c.0.s8 %v3029
        %v3031 = vlaneseq
        %v3032 = vshrl.u32 %v3031, 7
        %v3033 = vsub.s32 %v3030, %v3032
        %v3034 = vrot.slane %v3020, %v3033
        %v3036 = vunpack.c.l.s4 1966171168
        %v3037 = vunpack.c.0.s8 %v3036
        %v3038 = vlaneseq
        %v3039 = vshrl.u32 %v3038, 7
        %v3040 = vsub.s32 %v3037, %v3039
        %v3041 = vrot.slane %v877, %v3040
        %v3042 = vcombine.low %v3027, %v3034
        %v3044 = vunpack.c.l.s4 1966171168
        %v3045 = vunpack.c.0.s8 %v3044
        %v3046 = vlaneseq
        %v3047 = vshrl.u32 %v3046, 7
        %v3048 = vsub.s32 %v3045, %v3047
        %v3049 = vrot.slane %v3042, %v3048
        %v3051 = vunpack.c.l.s4 1966171168
        %v3052 = vunpack.c.0.s8 %v3051
        %v3053 = vlaneseq
        %v3054 = vshrl.u32 %v3053, 7
        %v3055 = vsub.s32 %v3052, %v3054
        %v3056 = vrot.slane %v3041, %v3055
        %v3057 = vcombine.low %v3049, %v3056
        %v3058 = vcombine.low %v1131, %v1224
        %v3059 = vcombine.high %v1131, %v1224
        %v3060 = vcombine.low %v1332, %v1139
        %v3061 = vcombine.high %v1332, %v1139
        %v3062 = vcombine.high %v881, %v881
        %v3064 = vunpack.c.l.s4 1966171168
        %v3065 = vunpack.c.0.s8 %v3064
        %v3066 = vlaneseq
        %v3067 = vshrl.u32 %v3066, 7
        %v3068 = vsub.s32 %v3065, %v3067
        %v3069 = vrot.slane %v3058, %v3068
        %v3071 = vunpack.c.l.s4 1966171168
        %v3072 = vunpack.c.0.s8 %v3071
        %v3073 = vlaneseq
        %v3074 = vshrl.u32 %v3073, 7
        %v3075 = vsub.s32 %v3072, %v3074
        %v3076 = vrot.slane %v3059, %v3075
        %v3078 = vunpack.c.l.s4 1966171168
        %v3079 = vunpack.c.0.s8 %v3078
        %v3080 = vlaneseq
        %v3081 = vshrl.u32 %v3080, 7
        %v3082 = vsub.s32 %v3079, %v3081
        %v3083 = vrot.slane %v3060, %v3082
        %v3085 = vunpack.c.l.s4 1966171168
        %v3086 = vunpack.c.0.s8 %v3085
        %v3087 = vlaneseq
        %v3088 = vshrl.u32 %v3087, 7
        %v3089 = vsub.s32 %v3086, %v3088
        %v3090 = vrot.slane %v3061, %v3089
        %v3092 = vunpack.c.l.s4 1966171168
        %v3093 = vunpack.c.0.s8 %v3092
        %v3094 = vlaneseq
        %v3095 = vshrl.u32 %v3094, 7
        %v3096 = vsub.s32 %v3093, %v3095
        %v3097 = vrot.slane %v881, %v3096
        %v3099 = vunpack.c.l.s4 1966171168
        %v3100 = vunpack.c.0.s8 %v3099
        %v3101 = vlaneseq
        %v3102 = vshrl.u32 %v3101, 7
        %v3103 = vsub.s32 %v3100, %v3102
        %v3104 = vrot.slane %v3062, %v3103
        %v3105 = vcombine.low %v3069, %v3083
        %v3106 = vcombine.high %v3069, %v3083
        %v3107 = vcombine.low %v3076, %v3090
        %v3108 = vcombine.high %v3076, %v3090
        %v3109 = vcombine.high %v3097, %v3097
        %v3110 = vcombine.high %v3104, %v3104
        %v3112 = vunpack.c.l.s4 1966171168
        %v3113 = vunpack.c.0.s8 %v3112
        %v3114 = vlaneseq
        %v3115 = vshrl.u32 %v3114, 7
        %v3116 = vsub.s32 %v3113, %v3115
        %v3117 = vrot.slane %v3105, %v3116
        %v3119 = vunpack.c.l.s4 1966171168
        %v3120 = vunpack.c.0.s8 %v3119
        %v3121 = vlaneseq
        %v3122 = vshrl.u32 %v3121, 7
        %v3123 = vsub.s32 %v3120, %v3122
        %v3124 = vrot.slane %v3107, %v3123
        %v3126 = vunpack.c.l.s4 1966171168
        %v3127 = vunpack.c.0.s8 %v3126
        %v3128 = vlaneseq
        %v3129 = vshrl.u32 %v3128, 7
        %v3130 = vsub.s32 %v3127, %v3129
        %v3131 = vrot.slane %v3106, %v3130
        %v3133 = vunpack.c.l.s4 1966171168
        %v3134 = vunpack.c.0.s8 %v3133
        %v3135 = vlaneseq
        %v3136 = vshrl.u32 %v3135, 7
        %v3137 = vsub.s32 %v3134, %v3136
        %v3138 = vrot.slane %v3108, %v3137
        %v3140 = vunpack.c.l.s4 1966171168
        %v3141 = vunpack.c.0.s8 %v3140
        %v3142 = vlaneseq
        %v3143 = vshrl.u32 %v3142, 7
        %v3144 = vsub.s32 %v3141, %v3143
        %v3145 = vrot.slane %v3097, %v3144
        %v3147 = vunpack.c.l.s4 1966171168
        %v3148 = vunpack.c.0.s8 %v3147
        %v3149 = vlaneseq
        %v3150 = vshrl.u32 %v3149, 7
        %v3151 = vsub.s32 %v3148, %v3150
        %v3152 = vrot.slane %v3104, %v3151
        %v3154 = vunpack.c.l.s4 1966171168
        %v3155 = vunpack.c.0.s8 %v3154
        %v3156 = vlaneseq
        %v3157 = vshrl.u32 %v3156, 7
        %v3158 = vsub.s32 %v3155, %v3157
        %v3159 = vrot.slane %v3109, %v3158
        %v3161 = vunpack.c.l.s4 1966171168
        %v3162 = vunpack.c.0.s8 %v3161
        %v3163 = vlaneseq
        %v3164 = vshrl.u32 %v3163, 7
        %v3165 = vsub.s32 %v3162, %v3164
        %v3166 = vrot.slane %v3110, %v3165
        %v3167 = vcombine.low %v3117, %v3145
        %v3168 = vcombine.high %v3117, %v3145
        %v3169 = vcombine.low %v3124, %v3152
        %v3170 = vcombine.high %v3124, %v3152
        %v3171 = vcombine.low %v3131, %v3159
        %v3172 = vcombine.high %v3131, %v3159
        %v3173 = vcombine.low %v3138, %v3166
        %v3174 = vcombine.high %v3138, %v3166
        %v3175 = vcombine.low %v1133, %v1227
        %v3176 = vcombine.low %v1335, %v1141
        %v3178 = vunpack.c.l.s4 1966171168
        %v3179 = vunpack.c.0.s8 %v3178
        %v3180 = vlaneseq
        %v3181 = vshrl.u32 %v3180, 7
        %v3182 = vsub.s32 %v3179, %v3181
        %v3183 = vrot.slane %v3175, %v3182
        %v3185 = vunpack.c.l.s4 1966171168
        %v3186 = vunpack.c.0.s8 %v3185
        %v3187 = vlaneseq
        %v3188 = vshrl.u32 %v3187, 7
        %v3189 = vsub.s32 %v3186, %v3188
        %v3190 = vrot.slane %v3176, %v3189
        %v3192 = vunpack.c.l.s4 1966171168
        %v3193 = vunpack.c.0.s8 %v3192
        %v3194 = vlaneseq
        %v3195 = vshrl.u32 %v3194, 7
        %v3196 = vsub.s32 %v3193, %v3195
        %v3197 = vrot.slane %v880, %v3196
        %v3198 = vcombine.low %v3183, %v3190
        %v3200 = vunpack.c.l.s4 1966171168
        %v3201 = vunpack.c.0.s8 %v3200
        %v3202 = vlaneseq
        %v3203 = vshrl.u32 %v3202, 7
        %v3204 = vsub.s32 %v3201, %v3203
        %v3205 = vrot.slane %v3198, %v3204
        %v3207 = vunpack.c.l.s4 1966171168
        %v3208 = vunpack.c.0.s8 %v3207
        %v3209 = vlaneseq
        %v3210 = vshrl.u32 %v3209, 7
        %v3211 = vsub.s32 %v3208, %v3210
        %v3212 = vrot.slane %v3197, %v3211
        %v3213 = vcombine.low %v3205, %v3212
        %v3214 = vcombine.low %v1135, %v1230
        %v3215 = vcombine.high %v1135, %v1230
        %v3216 = vcombine.low %v1338, %v1143
        %v3217 = vcombine.high %v1338, %v1143
        %v3218 = vcombine.high %v884, %v884
        %v3220 = vunpack.c.l.s4 1966171168
        %v3221 = vunpack.c.0.s8 %v3220
        %v3222 = vlaneseq
        %v3223 = vshrl.u32 %v3222, 7
        %v3224 = vsub.s32 %v3221, %v3223
        %v3225 = vrot.slane %v3214, %v3224
        %v3227 = vunpack.c.l.s4 1966171168
        %v3228 = vunpack.c.0.s8 %v3227
        %v3229 = vlaneseq
        %v3230 = vshrl.u32 %v3229, 7
        %v3231 = vsub.s32 %v3228, %v3230
        %v3232 = vrot.slane %v3215, %v3231
        %v3234 = vunpack.c.l.s4 1966171168
        %v3235 = vunpack.c.0.s8 %v3234
        %v3236 = vlaneseq
        %v3237 = vshrl.u32 %v3236, 7
        %v3238 = vsub.s32 %v3235, %v3237
        %v3239 = vrot.slane %v3216, %v3238
        %v3241 = vunpack.c.l.s4 1966171168
        %v3242 = vunpack.c.0.s8 %v3241
        %v3243 = vlaneseq
        %v3244 = vshrl.u32 %v3243, 7
        %v3245 = vsub.s32 %v3242, %v3244
        %v3246 = vrot.slane %v3217, %v3245
        %v3248 = vunpack.c.l.s4 1966171168
        %v3249 = vunpack.c.0.s8 %v3248
        %v3250 = vlaneseq
        %v3251 = vshrl.u32 %v3250, 7
        %v3252 = vsub.s32 %v3249, %v3251
        %v3253 = vrot.slane %v884, %v3252
        %v3255 = vunpack.c.l.s4 1966171168
        %v3256 = vunpack.c.0.s8 %v3255
        %v3257 = vlaneseq
        %v3258 = vshrl.u32 %v3257, 7
        %v3259 = vsub.s32 %v3256, %v3258
        %v3260 = vrot.slane %v3218, %v3259
        %v3261 = vcombine.low %v3225, %v3239
        %v3262 = vcombine.high %v3225, %v3239
        %v3263 = vcombine.low %v3232, %v3246
        %v3264 = vcombine.high %v3232, %v3246
        %v3265 = vcombine.high %v3253, %v3253
        %v3266 = vcombine.high %v3260, %v3260
        %v3268 = vunpack.c.l.s4 1966171168
        %v3269 = vunpack.c.0.s8 %v3268
        %v3270 = vlaneseq
        %v3271 = vshrl.u32 %v3270, 7
        %v3272 = vsub.s32 %v3269, %v3271
        %v3273 = vrot.slane %v3261, %v3272
        %v3275 = vunpack.c.l.s4 1966171168
        %v3276 = vunpack.c.0.s8 %v3275
        %v3277 = vlaneseq
        %v3278 = vshrl.u32 %v3277, 7
        %v3279 = vsub.s32 %v3276, %v3278
        %v3280 = vrot.slane %v3263, %v3279
        %v3282 = vunpack.c.l.s4 1966171168
        %v3283 = vunpack.c.0.s8 %v3282
        %v3284 = vlaneseq
        %v3285 = vshrl.u32 %v3284, 7
        %v3286 = vsub.s32 %v3283, %v3285
        %v3287 = vrot.slane %v3262, %v3286
        %v3289 = vunpack.c.l.s4 1966171168
        %v3290 = vunpack.c.0.s8 %v3289
        %v3291 = vlaneseq
        %v3292 = vshrl.u32 %v3291, 7
        %v3293 = vsub.s32 %v3290, %v3292
        %v3294 = vrot.slane %v3264, %v3293
        %v3296 = vunpack.c.l.s4 1966171168
        %v3297 = vunpack.c.0.s8 %v3296
        %v3298 = vlaneseq
        %v3299 = vshrl.u32 %v3298, 7
        %v3300 = vsub.s32 %v3297, %v3299
        %v3301 = vrot.slane %v3253, %v3300
        %v3303 = vunpack.c.l.s4 1966171168
        %v3304 = vunpack.c.0.s8 %v3303
        %v3305 = vlaneseq
        %v3306 = vshrl.u32 %v3305, 7
        %v3307 = vsub.s32 %v3304, %v3306
        %v3308 = vrot.slane %v3260, %v3307
        %v3310 = vunpack.c.l.s4 1966171168
        %v3311 = vunpack.c.0.s8 %v3310
        %v3312 = vlaneseq
        %v3313 = vshrl.u32 %v3312, 7
        %v3314 = vsub.s32 %v3311, %v3313
        %v3315 = vrot.slane %v3265, %v3314
        %v3317 = vunpack.c.l.s4 1966171168
        %v3318 = vunpack.c.0.s8 %v3317
        %v3319 = vlaneseq
        %v3320 = vshrl.u32 %v3319, 7
        %v3321 = vsub.s32 %v3318, %v3320
        %v3322 = vrot.slane %v3266, %v3321
        %v3323 = vcombine.low %v3273, %v3301
        %v3324 = vcombine.high %v3273, %v3301
        %v3325 = vcombine.low %v3280, %v3308
        %v3326 = vcombine.high %v3280, %v3308
        %v3327 = vcombine.low %v3287, %v3315
        %v3328 = vcombine.high %v3287, %v3315
        %v3329 = vcombine.low %v3294, %v3322
        %v3330 = vcombine.high %v3294, %v3322
        %v3331 = vcombine.low %v1137, %v1233
        %v3332 = vcombine.low %v1341, %v1145
        %v3334 = vunpack.c.l.s4 1966171168
        %v3335 = vunpack.c.0.s8 %v3334
        %v3336 = vlaneseq
        %v3337 = vshrl.u32 %v3336, 7
        %v3338 = vsub.s32 %v3335, %v3337
        %v3339 = vrot.slane %v3331, %v3338
        %v3341 = vunpack.c.l.s4 1966171168
        %v3342 = vunpack.c.0.s8 %v3341
        %v3343 = vlaneseq
        %v3344 = vshrl.u32 %v3343, 7
        %v3345 = vsub.s32 %v3342, %v3344
        %v3346 = vrot.slane %v3332, %v3345
        %v3348 = vunpack.c.l.s4 1966171168
        %v3349 = vunpack.c.0.s8 %v3348
        %v3350 = vlaneseq
        %v3351 = vshrl.u32 %v3350, 7
        %v3352 = vsub.s32 %v3349, %v3351
        %v3353 = vrot.slane %v883, %v3352
        %v3354 = vcombine.low %v3339, %v3346
        %v3356 = vunpack.c.l.s4 1966171168
        %v3357 = vunpack.c.0.s8 %v3356
        %v3358 = vlaneseq
        %v3359 = vshrl.u32 %v3358, 7
        %v3360 = vsub.s32 %v3357, %v3359
        %v3361 = vrot.slane %v3354, %v3360
        %v3363 = vunpack.c.l.s4 1966171168
        %v3364 = vunpack.c.0.s8 %v3363
        %v3365 = vlaneseq
        %v3366 = vshrl.u32 %v3365, 7
        %v3367 = vsub.s32 %v3364, %v3366
        %v3368 = vrot.slane %v3353, %v3367
        %v3369 = vcombine.low %v3361, %v3368
        %v3370 = vcombine.low %v1139, %v1236
        %v3371 = vcombine.high %v1139, %v1236
        %v3372 = vcombine.low %v1344, %v1147
        %v3373 = vcombine.high %v1344, %v1147
        %v3374 = vcombine.high %v887, %v887
        %v3376 = vunpack.c.l.s4 1966171168
        %v3377 = vunpack.c.0.s8 %v3376
        %v3378 = vlaneseq
        %v3379 = vshrl.u32 %v3378, 7
        %v3380 = vsub.s32 %v3377, %v3379
        %v3381 = vrot.slane %v3370, %v3380
        %v3383 = vunpack.c.l.s4 1966171168
        %v3384 = vunpack.c.0.s8 %v3383
        %v3385 = vlaneseq
        %v3386 = vshrl.u32 %v3385, 7
        %v3387 = vsub.s32 %v3384, %v3386
        %v3388 = vrot.slane %v3371, %v3387
        %v3390 = vunpack.c.l.s4 1966171168
        %v3391 = vunpack.c.0.s8 %v3390
        %v3392 = vlaneseq
        %v3393 = vshrl.u32 %v3392, 7
        %v3394 = vsub.s32 %v3391, %v3393
        %v3395 = vrot.slane %v3372, %v3394
        %v3397 = vunpack.c.l.s4 1966171168
        %v3398 = vunpack.c.0.s8 %v3397
        %v3399 = vlaneseq
        %v3400 = vshrl.u32 %v3399, 7
        %v3401 = vsub.s32 %v3398, %v3400
        %v3402 = vrot.slane %v3373, %v3401
        %v3404 = vunpack.c.l.s4 1966171168
        %v3405 = vunpack.c.0.s8 %v3404
        %v3406 = vlaneseq
        %v3407 = vshrl.u32 %v3406, 7
        %v3408 = vsub.s32 %v3405, %v3407
        %v3409 = vrot.slane %v887, %v3408
        %v3411 = vunpack.c.l.s4 1966171168
        %v3412 = vunpack.c.0.s8 %v3411
        %v3413 = vlaneseq
        %v3414 = vshrl.u32 %v3413, 7
        %v3415 = vsub.s32 %v3412, %v3414
        %v3416 = vrot.slane %v3374, %v3415
        %v3417 = vcombine.low %v3381, %v3395
        %v3418 = vcombine.high %v3381, %v3395
        %v3419 = vcombine.low %v3388, %v3402
        %v3420 = vcombine.high %v3388, %v3402
        %v3421 = vcombine.high %v3409, %v3409
        %v3422 = vcombine.high %v3416, %v3416
        %v3424 = vunpack.c.l.s4 1966171168
        %v3425 = vunpack.c.0.s8 %v3424
        %v3426 = vlaneseq
        %v3427 = vshrl.u32 %v3426, 7
        %v3428 = vsub.s32 %v3425, %v3427
        %v3429 = vrot.slane %v3417, %v3428
        %v3431 = vunpack.c.l.s4 1966171168
        %v3432 = vunpack.c.0.s8 %v3431
        %v3433 = vlaneseq
        %v3434 = vshrl.u32 %v3433, 7
        %v3435 = vsub.s32 %v3432, %v3434
        %v3436 = vrot.slane %v3419, %v3435
        %v3438 = vunpack.c.l.s4 1966171168
        %v3439 = vunpack.c.0.s8 %v3438
        %v3440 = vlaneseq
        %v3441 = vshrl.u32 %v3440, 7
        %v3442 = vsub.s32 %v3439, %v3441
        %v3443 = vrot.slane %v3418, %v3442
        %v3445 = vunpack.c.l.s4 1966171168
        %v3446 = vunpack.c.0.s8 %v3445
        %v3447 = vlaneseq
        %v3448 = vshrl.u32 %v3447, 7
        %v3449 = vsub.s32 %v3446, %v3448
        %v3450 = vrot.slane %v3420, %v3449
        %v3452 = vunpack.c.l.s4 1966171168
        %v3453 = vunpack.c.0.s8 %v3452
        %v3454 = vlaneseq
        %v3455 = vshrl.u32 %v3454, 7
        %v3456 = vsub.s32 %v3453, %v3455
        %v3457 = vrot.slane %v3409, %v3456
        %v3459 = vunpack.c.l.s4 1966171168
        %v3460 = vunpack.c.0.s8 %v3459
        %v3461 = vlaneseq
        %v3462 = vshrl.u32 %v3461, 7
        %v3463 = vsub.s32 %v3460, %v3462
        %v3464 = vrot.slane %v3416, %v3463
        %v3466 = vunpack.c.l.s4 1966171168
        %v3467 = vunpack.c.0.s8 %v3466
        %v3468 = vlaneseq
        %v3469 = vshrl.u32 %v3468, 7
        %v3470 = vsub.s32 %v3467, %v3469
        %v3471 = vrot.slane %v3421, %v3470
        %v3473 = vunpack.c.l.s4 1966171168
        %v3474 = vunpack.c.0.s8 %v3473
        %v3475 = vlaneseq
        %v3476 = vshrl.u32 %v3475, 7
        %v3477 = vsub.s32 %v3474, %v3476
        %v3478 = vrot.slane %v3422, %v3477
        %v3479 = vcombine.low %v3429, %v3457
        %v3480 = vcombine.high %v3429, %v3457
        %v3481 = vcombine.low %v3436, %v3464
        %v3482 = vcombine.high %v3436, %v3464
        %v3483 = vcombine.low %v3443, %v3471
        %v3484 = vcombine.high %v3443, %v3471
        %v3485 = vcombine.low %v3450, %v3478
        %v3486 = vcombine.high %v3450, %v3478
        %v3487 = vcombine.low %v1141, %v1239
        %v3488 = vcombine.low %v1347, %v1149
        %v3490 = vunpack.c.l.s4 1966171168
        %v3491 = vunpack.c.0.s8 %v3490
        %v3492 = vlaneseq
        %v3493 = vshrl.u32 %v3492, 7
        %v3494 = vsub.s32 %v3491, %v3493
        %v3495 = vrot.slane %v3487, %v3494
        %v3497 = vunpack.c.l.s4 1966171168
        %v3498 = vunpack.c.0.s8 %v3497
        %v3499 = vlaneseq
        %v3500 = vshrl.u32 %v3499, 7
        %v3501 = vsub.s32 %v3498, %v3500
        %v3502 = vrot.slane %v3488, %v3501
        %v3504 = vunpack.c.l.s4 1966171168
        %v3505 = vunpack.c.0.s8 %v3504
        %v3506 = vlaneseq
        %v3507 = vshrl.u32 %v3506, 7
        %v3508 = vsub.s32 %v3505, %v3507
        %v3509 = vrot.slane %v886, %v3508
        %v3510 = vcombine.low %v3495, %v3502
        %v3512 = vunpack.c.l.s4 1966171168
        %v3513 = vunpack.c.0.s8 %v3512
        %v3514 = vlaneseq
        %v3515 = vshrl.u32 %v3514, 7
        %v3516 = vsub.s32 %v3513, %v3515
        %v3517 = vrot.slane %v3510, %v3516
        %v3519 = vunpack.c.l.s4 1966171168
        %v3520 = vunpack.c.0.s8 %v3519
        %v3521 = vlaneseq
        %v3522 = vshrl.u32 %v3521, 7
        %v3523 = vsub.s32 %v3520, %v3522
        %v3524 = vrot.slane %v3509, %v3523
        %v3525 = vcombine.low %v3517, %v3524
        %v3526 = vcombine.low %v1143, %v1242
        %v3527 = vcombine.high %v1143, %v1242
        %v3528 = vcombine.low %v1350, %v1151
        %v3529 = vcombine.high %v1350, %v1151
        %v3530 = vcombine.high %v890, %v890
        %v3532 = vunpack.c.l.s4 1966171168
        %v3533 = vunpack.c.0.s8 %v3532
        %v3534 = vlaneseq
        %v3535 = vshrl.u32 %v3534, 7
        %v3536 = vsub.s32 %v3533, %v3535
        %v3537 = vrot.slane %v3526, %v3536
        %v3539 = vunpack.c.l.s4 1966171168
        %v3540 = vunpack.c.0.s8 %v3539
        %v3541 = vlaneseq
        %v3542 = vshrl.u32 %v3541, 7
        %v3543 = vsub.s32 %v3540, %v3542
        %v3544 = vrot.slane %v3527, %v3543
        %v3546 = vunpack.c.l.s4 1966171168
        %v3547 = vunpack.c.0.s8 %v3546
        %v3548 = vlaneseq
        %v3549 = vshrl.u32 %v3548, 7
        %v3550 = vsub.s32 %v3547, %v3549
        %v3551 = vrot.slane %v3528, %v3550
        %v3553 = vunpack.c.l.s4 1966171168
        %v3554 = vunpack.c.0.s8 %v3553
        %v3555 = vlaneseq
        %v3556 = vshrl.u32 %v3555, 7
        %v3557 = vsub.s32 %v3554, %v3556
        %v3558 = vrot.slane %v3529, %v3557
        %v3560 = vunpack.c.l.s4 1966171168
        %v3561 = vunpack.c.0.s8 %v3560
        %v3562 = vlaneseq
        %v3563 = vshrl.u32 %v3562, 7
        %v3564 = vsub.s32 %v3561, %v3563
        %v3565 = vrot.slane %v890, %v3564
        %v3567 = vunpack.c.l.s4 1966171168
        %v3568 = vunpack.c.0.s8 %v3567
        %v3569 = vlaneseq
        %v3570 = vshrl.u32 %v3569, 7
        %v3571 = vsub.s32 %v3568, %v3570
        %v3572 = vrot.slane %v3530, %v3571
        %v3573 = vcombine.low %v3537, %v3551
        %v3574 = vcombine.high %v3537, %v3551
        %v3575 = vcombine.low %v3544, %v3558
        %v3576 = vcombine.high %v3544, %v3558
        %v3577 = vcombine.high %v3565, %v3565
        %v3578 = vcombine.high %v3572, %v3572
        %v3580 = vunpack.c.l.s4 1966171168
        %v3581 = vunpack.c.0.s8 %v3580
        %v3582 = vlaneseq
        %v3583 = vshrl.u32 %v3582, 7
        %v3584 = vsub.s32 %v3581, %v3583
        %v3585 = vrot.slane %v3573, %v3584
        %v3587 = vunpack.c.l.s4 1966171168
        %v3588 = vunpack.c.0.s8 %v3587
        %v3589 = vlaneseq
        %v3590 = vshrl.u32 %v3589, 7
        %v3591 = vsub.s32 %v3588, %v3590
        %v3592 = vrot.slane %v3575, %v3591
        %v3594 = vunpack.c.l.s4 1966171168
        %v3595 = vunpack.c.0.s8 %v3594
        %v3596 = vlaneseq
        %v3597 = vshrl.u32 %v3596, 7
        %v3598 = vsub.s32 %v3595, %v3597
        %v3599 = vrot.slane %v3574, %v3598
        %v3601 = vunpack.c.l.s4 1966171168
        %v3602 = vunpack.c.0.s8 %v3601
        %v3603 = vlaneseq
        %v3604 = vshrl.u32 %v3603, 7
        %v3605 = vsub.s32 %v3602, %v3604
        %v3606 = vrot.slane %v3576, %v3605
        %v3608 = vunpack.c.l.s4 1966171168
        %v3609 = vunpack.c.0.s8 %v3608
        %v3610 = vlaneseq
        %v3611 = vshrl.u32 %v3610, 7
        %v3612 = vsub.s32 %v3609, %v3611
        %v3613 = vrot.slane %v3565, %v3612
        %v3615 = vunpack.c.l.s4 1966171168
        %v3616 = vunpack.c.0.s8 %v3615
        %v3617 = vlaneseq
        %v3618 = vshrl.u32 %v3617, 7
        %v3619 = vsub.s32 %v3616, %v3618
        %v3620 = vrot.slane %v3572, %v3619
        %v3622 = vunpack.c.l.s4 1966171168
        %v3623 = vunpack.c.0.s8 %v3622
        %v3624 = vlaneseq
        %v3625 = vshrl.u32 %v3624, 7
        %v3626 = vsub.s32 %v3623, %v3625
        %v3627 = vrot.slane %v3577, %v3626
        %v3629 = vunpack.c.l.s4 1966171168
        %v3630 = vunpack.c.0.s8 %v3629
        %v3631 = vlaneseq
        %v3632 = vshrl.u32 %v3631, 7
        %v3633 = vsub.s32 %v3630, %v3632
        %v3634 = vrot.slane %v3578, %v3633
        %v3635 = vcombine.low %v3585, %v3613
        %v3636 = vcombine.high %v3585, %v3613
        %v3637 = vcombine.low %v3592, %v3620
        %v3638 = vcombine.high %v3592, %v3620
        %v3639 = vcombine.low %v3599, %v3627
        %v3640 = vcombine.high %v3599, %v3627
        %v3641 = vcombine.low %v3606, %v3634
        %v3642 = vcombine.high %v3606, %v3634
        %v3643 = vcombine.low %v1145, %v1245
        %v3644 = vcombine.low %v1353, %v1153
        %v3646 = vunpack.c.l.s4 1966171168
        %v3647 = vunpack.c.0.s8 %v3646
        %v3648 = vlaneseq
        %v3649 = vshrl.u32 %v3648, 7
        %v3650 = vsub.s32 %v3647, %v3649
        %v3651 = vrot.slane %v3643, %v3650
        %v3653 = vunpack.c.l.s4 1966171168
        %v3654 = vunpack.c.0.s8 %v3653
        %v3655 = vlaneseq
        %v3656 = vshrl.u32 %v3655, 7
        %v3657 = vsub.s32 %v3654, %v3656
        %v3658 = vrot.slane %v3644, %v3657
        %v3660 = vunpack.c.l.s4 1966171168
        %v3661 = vunpack.c.0.s8 %v3660
        %v3662 = vlaneseq
        %v3663 = vshrl.u32 %v3662, 7
        %v3664 = vsub.s32 %v3661, %v3663
        %v3665 = vrot.slane %v889, %v3664
        %v3666 = vcombine.low %v3651, %v3658
        %v3668 = vunpack.c.l.s4 1966171168
        %v3669 = vunpack.c.0.s8 %v3668
        %v3670 = vlaneseq
        %v3671 = vshrl.u32 %v3670, 7
        %v3672 = vsub.s32 %v3669, %v3671
        %v3673 = vrot.slane %v3666, %v3672
        %v3675 = vunpack.c.l.s4 1966171168
        %v3676 = vunpack.c.0.s8 %v3675
        %v3677 = vlaneseq
        %v3678 = vshrl.u32 %v3677, 7
        %v3679 = vsub.s32 %v3676, %v3678
        %v3680 = vrot.slane %v3665, %v3679
        %v3681 = vcombine.low %v3673, %v3680
        %v3682 = vcombine.low %v1147, %v1248
        %v3683 = vcombine.high %v1147, %v1248
        %v3684 = vcombine.low %v1356, %v1155
        %v3685 = vcombine.high %v1356, %v1155
        %v3686 = vcombine.high %v893, %v893
        %v3688 = vunpack.c.l.s4 1966171168
        %v3689 = vunpack.c.0.s8 %v3688
        %v3690 = vlaneseq
        %v3691 = vshrl.u32 %v3690, 7
        %v3692 = vsub.s32 %v3689, %v3691
        %v3693 = vrot.slane %v3682, %v3692
        %v3695 = vunpack.c.l.s4 1966171168
        %v3696 = vunpack.c.0.s8 %v3695
        %v3697 = vlaneseq
        %v3698 = vshrl.u32 %v3697, 7
        %v3699 = vsub.s32 %v3696, %v3698
        %v3700 = vrot.slane %v3683, %v3699
        %v3702 = vunpack.c.l.s4 1966171168
        %v3703 = vunpack.c.0.s8 %v3702
        %v3704 = vlaneseq
        %v3705 = vshrl.u32 %v3704, 7
        %v3706 = vsub.s32 %v3703, %v3705
        %v3707 = vrot.slane %v3684, %v3706
        %v3709 = vunpack.c.l.s4 1966171168
        %v3710 = vunpack.c.0.s8 %v3709
        %v3711 = vlaneseq
        %v3712 = vshrl.u32 %v3711, 7
        %v3713 = vsub.s32 %v3710, %v3712
        %v3714 = vrot.slane %v3685, %v3713
        %v3716 = vunpack.c.l.s4 1966171168
        %v3717 = vunpack.c.0.s8 %v3716
        %v3718 = vlaneseq
        %v3719 = vshrl.u32 %v3718, 7
        %v3720 = vsub.s32 %v3717, %v3719
        %v3721 = vrot.slane %v893, %v3720
        %v3723 = vunpack.c.l.s4 1966171168
        %v3724 = vunpack.c.0.s8 %v3723
        %v3725 = vlaneseq
        %v3726 = vshrl.u32 %v3725, 7
        %v3727 = vsub.s32 %v3724, %v3726
        %v3728 = vrot.slane %v3686, %v3727
        %v3729 = vcombine.low %v3693, %v3707
        %v3730 = vcombine.high %v3693, %v3707
        %v3731 = vcombine.low %v3700, %v3714
        %v3732 = vcombine.high %v3700, %v3714
        %v3733 = vcombine.high %v3721, %v3721
        %v3734 = vcombine.high %v3728, %v3728
        %v3736 = vunpack.c.l.s4 1966171168
        %v3737 = vunpack.c.0.s8 %v3736
        %v3738 = vlaneseq
        %v3739 = vshrl.u32 %v3738, 7
        %v3740 = vsub.s32 %v3737, %v3739
        %v3741 = vrot.slane %v3729, %v3740
        %v3743 = vunpack.c.l.s4 1966171168
        %v3744 = vunpack.c.0.s8 %v3743
        %v3745 = vlaneseq
        %v3746 = vshrl.u32 %v3745, 7
        %v3747 = vsub.s32 %v3744, %v3746
        %v3748 = vrot.slane %v3731, %v3747
        %v3750 = vunpack.c.l.s4 1966171168
        %v3751 = vunpack.c.0.s8 %v3750
        %v3752 = vlaneseq
        %v3753 = vshrl.u32 %v3752, 7
        %v3754 = vsub.s32 %v3751, %v3753
        %v3755 = vrot.slane %v3730, %v3754
        %v3757 = vunpack.c.l.s4 1966171168
        %v3758 = vunpack.c.0.s8 %v3757
        %v3759 = vlaneseq
        %v3760 = vshrl.u32 %v3759, 7
        %v3761 = vsub.s32 %v3758, %v3760
        %v3762 = vrot.slane %v3732, %v3761
        %v3764 = vunpack.c.l.s4 1966171168
        %v3765 = vunpack.c.0.s8 %v3764
        %v3766 = vlaneseq
        %v3767 = vshrl.u32 %v3766, 7
        %v3768 = vsub.s32 %v3765, %v3767
        %v3769 = vrot.slane %v3721, %v3768
        %v3771 = vunpack.c.l.s4 1966171168
        %v3772 = vunpack.c.0.s8 %v3771
        %v3773 = vlaneseq
        %v3774 = vshrl.u32 %v3773, 7
        %v3775 = vsub.s32 %v3772, %v3774
        %v3776 = vrot.slane %v3728, %v3775
        %v3778 = vunpack.c.l.s4 1966171168
        %v3779 = vunpack.c.0.s8 %v3778
        %v3780 = vlaneseq
        %v3781 = vshrl.u32 %v3780, 7
        %v3782 = vsub.s32 %v3779, %v3781
        %v3783 = vrot.slane %v3733, %v3782
        %v3785 = vunpack.c.l.s4 1966171168
        %v3786 = vunpack.c.0.s8 %v3785
        %v3787 = vlaneseq
        %v3788 = vshrl.u32 %v3787, 7
        %v3789 = vsub.s32 %v3786, %v3788
        %v3790 = vrot.slane %v3734, %v3789
        %v3791 = vcombine.low %v3741, %v3769
        %v3792 = vcombine.high %v3741, %v3769
        %v3793 = vcombine.low %v3748, %v3776
        %v3794 = vcombine.high %v3748, %v3776
        %v3795 = vcombine.low %v3755, %v3783
        %v3796 = vcombine.high %v3755, %v3783
        %v3797 = vcombine.low %v3762, %v3790
        %v3798 = vcombine.high %v3762, %v3790
        %v3799 = vcombine.low %v1149, %v1251
        %v3800 = vcombine.low %v1359, %v1157
        %v3802 = vunpack.c.l.s4 1966171168
        %v3803 = vunpack.c.0.s8 %v3802
        %v3804 = vlaneseq
        %v3805 = vshrl.u32 %v3804, 7
        %v3806 = vsub.s32 %v3803, %v3805
        %v3807 = vrot.slane %v3799, %v3806
        %v3809 = vunpack.c.l.s4 1966171168
        %v3810 = vunpack.c.0.s8 %v3809
        %v3811 = vlaneseq
        %v3812 = vshrl.u32 %v3811, 7
        %v3813 = vsub.s32 %v3810, %v3812
        %v3814 = vrot.slane %v3800, %v3813
        %v3816 = vunpack.c.l.s4 1966171168
        %v3817 = vunpack.c.0.s8 %v3816
        %v3818 = vlaneseq
        %v3819 = vshrl.u32 %v3818, 7
        %v3820 = vsub.s32 %v3817, %v3819
        %v3821 = vrot.slane %v892, %v3820
        %v3822 = vcombine.low %v3807, %v3814
        %v3824 = vunpack.c.l.s4 1966171168
        %v3825 = vunpack.c.0.s8 %v3824
        %v3826 = vlaneseq
        %v3827 = vshrl.u32 %v3826, 7
        %v3828 = vsub.s32 %v3825, %v3827
        %v3829 = vrot.slane %v3822, %v3828
        %v3831 = vunpack.c.l.s4 1966171168
        %v3832 = vunpack.c.0.s8 %v3831
        %v3833 = vlaneseq
        %v3834 = vshrl.u32 %v3833, 7
        %v3835 = vsub.s32 %v3832, %v3834
        %v3836 = vrot.slane %v3821, %v3835
        %v3837 = vcombine.low %v3829, %v3836
        %v3838 = vcombine.low %v1151, %v1254
        %v3839 = vcombine.high %v1151, %v1254
        %v3840 = vcombine.low %v1362, %v1159
        %v3841 = vcombine.high %v1362, %v1159
        %v3842 = vcombine.high %v896, %v896
        %v3844 = vunpack.c.l.s4 1966171168
        %v3845 = vunpack.c.0.s8 %v3844
        %v3846 = vlaneseq
        %v3847 = vshrl.u32 %v3846, 7
        %v3848 = vsub.s32 %v3845, %v3847
        %v3849 = vrot.slane %v3838, %v3848
        %v3851 = vunpack.c.l.s4 1966171168
        %v3852 = vunpack.c.0.s8 %v3851
        %v3853 = vlaneseq
        %v3854 = vshrl.u32 %v3853, 7
        %v3855 = vsub.s32 %v3852, %v3854
        %v3856 = vrot.slane %v3839, %v3855
        %v3858 = vunpack.c.l.s4 1966171168
        %v3859 = vunpack.c.0.s8 %v3858
        %v3860 = vlaneseq
        %v3861 = vshrl.u32 %v3860, 7
        %v3862 = vsub.s32 %v3859, %v3861
        %v3863 = vrot.slane %v3840, %v3862
        %v3865 = vunpack.c.l.s4 1966171168
        %v3866 = vunpack.c.0.s8 %v3865
        %v3867 = vlaneseq
        %v3868 = vshrl.u32 %v3867, 7
        %v3869 = vsub.s32 %v3866, %v3868
        %v3870 = vrot.slane %v3841, %v3869
        %v3872 = vunpack.c.l.s4 1966171168
        %v3873 = vunpack.c.0.s8 %v3872
        %v3874 = vlaneseq
        %v3875 = vshrl.u32 %v3874, 7
        %v3876 = vsub.s32 %v3873, %v3875
        %v3877 = vrot.slane %v896, %v3876
        %v3879 = vunpack.c.l.s4 1966171168
        %v3880 = vunpack.c.0.s8 %v3879
        %v3881 = vlaneseq
        %v3882 = vshrl.u32 %v3881, 7
        %v3883 = vsub.s32 %v3880, %v3882
        %v3884 = vrot.slane %v3842, %v3883
        %v3885 = vcombine.low %v3849, %v3863
        %v3886 = vcombine.high %v3849, %v3863
        %v3887 = vcombine.low %v3856, %v3870
        %v3888 = vcombine.high %v3856, %v3870
        %v3889 = vcombine.high %v3877, %v3877
        %v3890 = vcombine.high %v3884, %v3884
        %v3892 = vunpack.c.l.s4 1966171168
        %v3893 = vunpack.c.0.s8 %v3892
        %v3894 = vlaneseq
        %v3895 = vshrl.u32 %v3894, 7
        %v3896 = vsub.s32 %v3893, %v3895
        %v3897 = vrot.slane %v3885, %v3896
        %v3899 = vunpack.c.l.s4 1966171168
        %v3900 = vunpack.c.0.s8 %v3899
        %v3901 = vlaneseq
        %v3902 = vshrl.u32 %v3901, 7
        %v3903 = vsub.s32 %v3900, %v3902
        %v3904 = vrot.slane %v3887, %v3903
        %v3906 = vunpack.c.l.s4 1966171168
        %v3907 = vunpack.c.0.s8 %v3906
        %v3908 = vlaneseq
        %v3909 = vshrl.u32 %v3908, 7
        %v3910 = vsub.s32 %v3907, %v3909
        %v3911 = vrot.slane %v3886, %v3910
        %v3913 = vunpack.c.l.s4 1966171168
        %v3914 = vunpack.c.0.s8 %v3913
        %v3915 = vlaneseq
        %v3916 = vshrl.u32 %v3915, 7
        %v3917 = vsub.s32 %v3914, %v3916
        %v3918 = vrot.slane %v3888, %v3917
        %v3920 = vunpack.c.l.s4 1966171168
        %v3921 = vunpack.c.0.s8 %v3920
        %v3922 = vlaneseq
        %v3923 = vshrl.u32 %v3922, 7
        %v3924 = vsub.s32 %v3921, %v3923
        %v3925 = vrot.slane %v3877, %v3924
        %v3927 = vunpack.c.l.s4 1966171168
        %v3928 = vunpack.c.0.s8 %v3927
        %v3929 = vlaneseq
        %v3930 = vshrl.u32 %v3929, 7
        %v3931 = vsub.s32 %v3928, %v3930
        %v3932 = vrot.slane %v3884, %v3931
        %v3934 = vunpack.c.l.s4 1966171168
        %v3935 = vunpack.c.0.s8 %v3934
        %v3936 = vlaneseq
        %v3937 = vshrl.u32 %v3936, 7
        %v3938 = vsub.s32 %v3935, %v3937
        %v3939 = vrot.slane %v3889, %v3938
        %v3941 = vunpack.c.l.s4 1966171168
        %v3942 = vunpack.c.0.s8 %v3941
        %v3943 = vlaneseq
        %v3944 = vshrl.u32 %v3943, 7
        %v3945 = vsub.s32 %v3942, %v3944
        %v3946 = vrot.slane %v3890, %v3945
        %v3947 = vcombine.low %v3897, %v3925
        %v3948 = vcombine.high %v3897, %v3925
        %v3949 = vcombine.low %v3904, %v3932
        %v3950 = vcombine.high %v3904, %v3932
        %v3951 = vcombine.low %v3911, %v3939
        %v3952 = vcombine.high %v3911, %v3939
        %v3953 = vcombine.low %v3918, %v3946
        %v3954 = vcombine.high %v3918, %v3946
        %v3955 = vcombine.low %v1153, %v1257
        %v3956 = vcombine.low %v1365, %v1161
        %v3958 = vunpack.c.l.s4 1966171168
        %v3959 = vunpack.c.0.s8 %v3958
        %v3960 = vlaneseq
        %v3961 = vshrl.u32 %v3960, 7
        %v3962 = vsub.s32 %v3959, %v3961
        %v3963 = vrot.slane %v3955, %v3962
        %v3965 = vunpack.c.l.s4 1966171168
        %v3966 = vunpack.c.0.s8 %v3965
        %v3967 = vlaneseq
        %v3968 = vshrl.u32 %v3967, 7
        %v3969 = vsub.s32 %v3966, %v3968
        %v3970 = vrot.slane %v3956, %v3969
        %v3972 = vunpack.c.l.s4 1966171168
        %v3973 = vunpack.c.0.s8 %v3972
        %v3974 = vlaneseq
        %v3975 = vshrl.u32 %v3974, 7
        %v3976 = vsub.s32 %v3973, %v3975
        %v3977 = vrot.slane %v895, %v3976
        %v3978 = vcombine.low %v3963, %v3970
        %v3980 = vunpack.c.l.s4 1966171168
        %v3981 = vunpack.c.0.s8 %v3980
        %v3982 = vlaneseq
        %v3983 = vshrl.u32 %v3982, 7
        %v3984 = vsub.s32 %v3981, %v3983
        %v3985 = vrot.slane %v3978, %v3984
        %v3987 = vunpack.c.l.s4 1966171168
        %v3988 = vunpack.c.0.s8 %v3987
        %v3989 = vlaneseq
        %v3990 = vshrl.u32 %v3989, 7
        %v3991 = vsub.s32 %v3988, %v3990
        %v3992 = vrot.slane %v3977, %v3991
        %v3993 = vcombine.low %v3985, %v3992
        %v3994 = vcombine.low %v1155, %v1260
        %v3995 = vcombine.high %v1155, %v1260
        %v3996 = vcombine.low %v1368, %v1379
        %v3997 = vcombine.high %v1368, %v1379
        %v3998 = vcombine.high %v988, %v988
        %v4000 = vunpack.c.l.s4 1966171168
        %v4001 = vunpack.c.0.s8 %v4000
        %v4002 = vlaneseq
        %v4003 = vshrl.u32 %v4002, 7
        %v4004 = vsub.s32 %v4001, %v4003
        %v4005 = vrot.slane %v3994, %v4004
        %v4007 = vunpack.c.l.s4 1966171168
        %v4008 = vunpack.c.0.s8 %v4007
        %v4009 = vlaneseq
        %v4010 = vshrl.u32 %v4009, 7
        %v4011 = vsub.s32 %v4008, %v4010
        %v4012 = vrot.slane %v3995, %v4011
        %v4014 = vunpack.c.l.s4 1966171168
        %v4015 = vunpack.c.0.s8 %v4014
        %v4016 = vlaneseq
        %v4017 = vshrl.u32 %v4016, 7
        %v4018 = vsub.s32 %v4015, %v4017
        %v4019 = vrot.slane %v3996, %v4018
        %v4021 = vunpack.c.l.s4 1966171168
        %v4022 = vunpack.c.0.s8 %v4021
        %v4023 = vlaneseq
        %v4024 = vshrl.u32 %v4023, 7
        %v4025 = vsub.s32 %v4022, %v4024
        %v4026 = vrot.slane %v3997, %v4025
        %v4028 = vunpack.c.l.s4 1966171168
        %v4029 = vunpack.c.0.s8 %v4028
        %v4030 = vlaneseq
        %v4031 = vshrl.u32 %v4030, 7
        %v4032 = vsub.s32 %v4029, %v4031
        %v4033 = vrot.slane %v988, %v4032
        %v4035 = vunpack.c.l.s4 1966171168
        %v4036 = vunpack.c.0.s8 %v4035
        %v4037 = vlaneseq
        %v4038 = vshrl.u32 %v4037, 7
        %v4039 = vsub.s32 %v4036, %v4038
        %v4040 = vrot.slane %v3998, %v4039
        %v4041 = vcombine.low %v4005, %v4019
        %v4042 = vcombine.high %v4005, %v4019
        %v4043 = vcombine.low %v4012, %v4026
        %v4044 = vcombine.high %v4012, %v4026
        %v4045 = vcombine.high %v4033, %v4033
        %v4046 = vcombine.high %v4040, %v4040
        %v4048 = vunpack.c.l.s4 1966171168
        %v4049 = vunpack.c.0.s8 %v4048
        %v4050 = vlaneseq
        %v4051 = vshrl.u32 %v4050, 7
        %v4052 = vsub.s32 %v4049, %v4051
        %v4053 = vrot.slane %v4041, %v4052
        %v4055 = vunpack.c.l.s4 1966171168
        %v4056 = vunpack.c.0.s8 %v4055
        %v4057 = vlaneseq
        %v4058 = vshrl.u32 %v4057, 7
        %v4059 = vsub.s32 %v4056, %v4058
        %v4060 = vrot.slane %v4043, %v4059
        %v4062 = vunpack.c.l.s4 1966171168
        %v4063 = vunpack.c.0.s8 %v4062
        %v4064 = vlaneseq
        %v4065 = vshrl.u32 %v4064, 7
        %v4066 = vsub.s32 %v4063, %v4065
        %v4067 = vrot.slane %v4042, %v4066
        %v4069 = vunpack.c.l.s4 1966171168
        %v4070 = vunpack.c.0.s8 %v4069
        %v4071 = vlaneseq
        %v4072 = vshrl.u32 %v4071, 7
        %v4073 = vsub.s32 %v4070, %v4072
        %v4074 = vrot.slane %v4044, %v4073
        %v4076 = vunpack.c.l.s4 1966171168
        %v4077 = vunpack.c.0.s8 %v4076
        %v4078 = vlaneseq
        %v4079 = vshrl.u32 %v4078, 7
        %v4080 = vsub.s32 %v4077, %v4079
        %v4081 = vrot.slane %v4033, %v4080
        %v4083 = vunpack.c.l.s4 1966171168
        %v4084 = vunpack.c.0.s8 %v4083
        %v4085 = vlaneseq
        %v4086 = vshrl.u32 %v4085, 7
        %v4087 = vsub.s32 %v4084, %v4086
        %v4088 = vrot.slane %v4040, %v4087
        %v4090 = vunpack.c.l.s4 1966171168
        %v4091 = vunpack.c.0.s8 %v4090
        %v4092 = vlaneseq
        %v4093 = vshrl.u32 %v4092, 7
        %v4094 = vsub.s32 %v4091, %v4093
        %v4095 = vrot.slane %v4045, %v4094
        %v4097 = vunpack.c.l.s4 1966171168
        %v4098 = vunpack.c.0.s8 %v4097
        %v4099 = vlaneseq
        %v4100 = vshrl.u32 %v4099, 7
        %v4101 = vsub.s32 %v4098, %v4100
        %v4102 = vrot.slane %v4046, %v4101
        %v4103 = vcombine.low %v4053, %v4081
        %v4104 = vcombine.high %v4053, %v4081
        %v4105 = vcombine.low %v4060, %v4088
        %v4106 = vcombine.high %v4060, %v4088
        %v4107 = vcombine.low %v4067, %v4095
        %v4108 = vcombine.high %v4067, %v4095
        %v4109 = vcombine.low %v4074, %v4102
        %v4110 = vcombine.high %v4074, %v4102
        %v4111 = vcombine.low %v1157, %v1263
        %v4112 = vcombine.low %v1371, %v1381
        %v4114 = vunpack.c.l.s4 1966171168
        %v4115 = vunpack.c.0.s8 %v4114
        %v4116 = vlaneseq
        %v4117 = vshrl.u32 %v4116, 7
        %v4118 = vsub.s32 %v4115, %v4117
        %v4119 = vrot.slane %v4111, %v4118
        %v4121 = vunpack.c.l.s4 1966171168
        %v4122 = vunpack.c.0.s8 %v4121
        %v4123 = vlaneseq
        %v4124 = vshrl.u32 %v4123, 7
        %v4125 = vsub.s32 %v4122, %v4124
        %v4126 = vrot.slane %v4112, %v4125
        %v4128 = vunpack.c.l.s4 1966171168
        %v4129 = vunpack.c.0.s8 %v4128
        %v4130 = vlaneseq
        %v4131 = vshrl.u32 %v4130, 7
        %v4132 = vsub.s32 %v4129, %v4131
        %v4133 = vrot.slane %v987, %v4132
        %v4134 = vcombine.low %v4119, %v4126
        %v4136 = vunpack.c.l.s4 1966171168
        %v4137 = vunpack.c.0.s8 %v4136
        %v4138 = vlaneseq
        %v4139 = vshrl.u32 %v4138, 7
        %v4140 = vsub.s32 %v4137, %v4139
        %v4141 = vrot.slane %v4134, %v4140
        %v4143 = vunpack.c.l.s4 1966171168
        %v4144 = vunpack.c.0.s8 %v4143
        %v4145 = vlaneseq
        %v4146 = vshrl.u32 %v4145, 7
        %v4147 = vsub.s32 %v4144, %v4146
        %v4148 = vrot.slane %v4133, %v4147
        %v4149 = vcombine.low %v4141, %v4148
        %v4150 = vcombine.low %v1159, %v1266
        %v4151 = vcombine.high %v1159, %v1266
        %v4152 = vcombine.low %v1374, %v1383
        %v4153 = vcombine.high %v1374, %v1383
        %v4154 = vcombine.high %v1088, %v1088
        %v4156 = vunpack.c.l.s4 1966171168
        %v4157 = vunpack.c.0.s8 %v4156
        %v4158 = vlaneseq
        %v4159 = vshrl.u32 %v4158, 7
        %v4160 = vsub.s32 %v4157, %v4159
        %v4161 = vrot.slane %v4150, %v4160
        %v4163 = vunpack.c.l.s4 1966171168
        %v4164 = vunpack.c.0.s8 %v4163
        %v4165 = vlaneseq
        %v4166 = vshrl.u32 %v4165, 7
        %v4167 = vsub.s32 %v4164, %v4166
        %v4168 = vrot.slane %v4151, %v4167
        %v4170 = vunpack.c.l.s4 1966171168
        %v4171 = vunpack.c.0.s8 %v4170
        %v4172 = vlaneseq
        %v4173 = vshrl.u32 %v4172, 7
        %v4174 = vsub.s32 %v4171, %v4173
        %v4175 = vrot.slane %v4152, %v4174
        %v4177 = vunpack.c.l.s4 1966171168
        %v4178 = vunpack.c.0.s8 %v4177
        %v4179 = vlaneseq
        %v4180 = vshrl.u32 %v4179, 7
        %v4181 = vsub.s32 %v4178, %v4180
        %v4182 = vrot.slane %v4153, %v4181
        %v4184 = vunpack.c.l.s4 1966171168
        %v4185 = vunpack.c.0.s8 %v4184
        %v4186 = vlaneseq
        %v4187 = vshrl.u32 %v4186, 7
        %v4188 = vsub.s32 %v4185, %v4187
        %v4189 = vrot.slane %v1088, %v4188
        %v4191 = vunpack.c.l.s4 1966171168
        %v4192 = vunpack.c.0.s8 %v4191
        %v4193 = vlaneseq
        %v4194 = vshrl.u32 %v4193, 7
        %v4195 = vsub.s32 %v4192, %v4194
        %v4196 = vrot.slane %v4154, %v4195
        %v4197 = vcombine.low %v4161, %v4175
        %v4198 = vcombine.high %v4161, %v4175
        %v4199 = vcombine.low %v4168, %v4182
        %v4200 = vcombine.high %v4168, %v4182
        %v4201 = vcombine.high %v4189, %v4189
        %v4202 = vcombine.high %v4196, %v4196
        %v4204 = vunpack.c.l.s4 1966171168
        %v4205 = vunpack.c.0.s8 %v4204
        %v4206 = vlaneseq
        %v4207 = vshrl.u32 %v4206, 7
        %v4208 = vsub.s32 %v4205, %v4207
        %v4209 = vrot.slane %v4197, %v4208
        %v4211 = vunpack.c.l.s4 1966171168
        %v4212 = vunpack.c.0.s8 %v4211
        %v4213 = vlaneseq
        %v4214 = vshrl.u32 %v4213, 7
        %v4215 = vsub.s32 %v4212, %v4214
        %v4216 = vrot.slane %v4199, %v4215
        %v4218 = vunpack.c.l.s4 1966171168
        %v4219 = vunpack.c.0.s8 %v4218
        %v4220 = vlaneseq
        %v4221 = vshrl.u32 %v4220, 7
        %v4222 = vsub.s32 %v4219, %v4221
        %v4223 = vrot.slane %v4198, %v4222
        %v4225 = vunpack.c.l.s4 1966171168
        %v4226 = vunpack.c.0.s8 %v4225
        %v4227 = vlaneseq
        %v4228 = vshrl.u32 %v4227, 7
        %v4229 = vsub.s32 %v4226, %v4228
        %v4230 = vrot.slane %v4200, %v4229
        %v4232 = vunpack.c.l.s4 1966171168
        %v4233 = vunpack.c.0.s8 %v4232
        %v4234 = vlaneseq
        %v4235 = vshrl.u32 %v4234, 7
        %v4236 = vsub.s32 %v4233, %v4235
        %v4237 = vrot.slane %v4189, %v4236
        %v4239 = vunpack.c.l.s4 1966171168
        %v4240 = vunpack.c.0.s8 %v4239
        %v4241 = vlaneseq
        %v4242 = vshrl.u32 %v4241, 7
        %v4243 = vsub.s32 %v4240, %v4242
        %v4244 = vrot.slane %v4196, %v4243
        %v4246 = vunpack.c.l.s4 1966171168
        %v4247 = vunpack.c.0.s8 %v4246
        %v4248 = vlaneseq
        %v4249 = vshrl.u32 %v4248, 7
        %v4250 = vsub.s32 %v4247, %v4249
        %v4251 = vrot.slane %v4201, %v4250
        %v4253 = vunpack.c.l.s4 1966171168
        %v4254 = vunpack.c.0.s8 %v4253
        %v4255 = vlaneseq
        %v4256 = vshrl.u32 %v4255, 7
        %v4257 = vsub.s32 %v4254, %v4256
        %v4258 = vrot.slane %v4202, %v4257
        %v4259 = vcombine.low %v4209, %v4237
        %v4260 = vcombine.high %v4209, %v4237
        %v4261 = vcombine.low %v4216, %v4244
        %v4262 = vcombine.high %v4216, %v4244
        %v4263 = vcombine.low %v4223, %v4251
        %v4264 = vcombine.high %v4223, %v4251
        %v4265 = vcombine.low %v4230, %v4258
        %v4266 = vcombine.high %v4230, %v4258
        %v4267 = vcombine.low %v1161, %v1269
        %v4268 = vcombine.low %v1377, %v1385
        %v4270 = vunpack.c.l.s4 1966171168
        %v4271 = vunpack.c.0.s8 %v4270
        %v4272 = vlaneseq
        %v4273 = vshrl.u32 %v4272, 7
        %v4274 = vsub.s32 %v4271, %v4273
        %v4275 = vrot.slane %v4267, %v4274
        %v4277 = vunpack.c.l.s4 1966171168
        %v4278 = vunpack.c.0.s8 %v4277
        %v4279 = vlaneseq
        %v4280 = vshrl.u32 %v4279, 7
        %v4281 = vsub.s32 %v4278, %v4280
        %v4282 = vrot.slane %v4268, %v4281
        %v4284 = vunpack.c.l.s4 1966171168
        %v4285 = vunpack.c.0.s8 %v4284
        %v4286 = vlaneseq
        %v4287 = vshrl.u32 %v4286, 7
        %v4288 = vsub.s32 %v4285, %v4287
        %v4289 = vrot.slane %v1087, %v4288
        %v4290 = vcombine.low %v4275, %v4282
        %v4292 = vunpack.c.l.s4 1966171168
        %v4293 = vunpack.c.0.s8 %v4292
        %v4294 = vlaneseq
        %v4295 = vshrl.u32 %v4294, 7
        %v4296 = vsub.s32 %v4293, %v4295
        %v4297 = vrot.slane %v4290, %v4296
        %v4299 = vunpack.c.l.s4 1966171168
        %v4300 = vunpack.c.0.s8 %v4299
        %v4301 = vlaneseq
        %v4302 = vshrl.u32 %v4301, 7
        %v4303 = vsub.s32 %v4300, %v4302
        %v4304 = vrot.slane %v4289, %v4303
        %v4305 = vcombine.low %v4297, %v4304
        %v4306 = vld [vmem:[%s2] sm:$0xf]
        %v4307 = vld [vmem:[%s2 + $0x4] sm:$0xf]
        %v4308 = vld [vmem:[%s2 + $0x8] sm:$0xf]
        %v4309 = vld [vmem:[%s2 + $0xc] sm:$0xf]
        %v4310 = vld [vmem:[%s2 + $0x10] sm:$0xf]
        %v4311 = vld [vmem:[%s2 + $0x14] sm:$0xf]
        %v4312 = vld [vmem:[%s2 + $0x18] sm:$0xf]
        %v4313 = vld [vmem:[%s2 + $0x1c] sm:$0xf]
        %v4314 = vld [vmem:[%s2 + $0x20] sm:$0xf]
        %v4315 = vld [vmem:[%s2 + $0x24] sm:$0xf]
        %v4316 = vld [vmem:[%s2 + $0x28] sm:$0xf]
        %v4317 = vld [vmem:[%s2 + $0x2c] sm:$0xf]
        %v4318 = vld [vmem:[%s2 + $0x30] sm:$0xf]
        %v4319 = vld [vmem:[%s2 + $0x34] sm:$0xf]
        %v4320 = vld [vmem:[%s2 + $0x38] sm:$0xf]
        %v4321 = vld [vmem:[%s2 + $0x3c] sm:$0xf]
        %v4322 = vld [vmem:[%s2 + $0x40] sm:$0xf]
        %v4323 = vld [vmem:[%s2 + $0x44] sm:$0xf]
        %v4324 = vld [vmem:[%s2 + $0x48] sm:$0xf]
        %v4325 = vld [vmem:[%s2 + $0x4c] sm:$0xf]
        %v4326 = vld [vmem:[%s2 + $0x50] sm:$0xf]
        %v4327 = vld [vmem:[%s2 + $0x54] sm:$0xf]
        %v4328 = vld [vmem:[%s2 + $0x58] sm:$0xf]
        %v4329 = vld [vmem:[%s2 + $0x5c] sm:$0xf]
        %v4330 = vld [vmem:[%s2 + $0x60] sm:$0xf]
        %v4331 = vld [vmem:[%s2 + $0x64] sm:$0xf]
        %v4332 = vld [vmem:[%s2 + $0x68] sm:$0xf]
        %v4333 = vld [vmem:[%s2 + $0x6c] sm:$0xf]
        %v4334 = vld [vmem:[%s2 + $0x70] sm:$0xf]
        %v4335 = vld [vmem:[%s2 + $0x74] sm:$0xf]
        %v4336 = vld [vmem:[%s2 + $0x78] sm:$0xf]
        %v4337 = vld [vmem:[%s2 + $0x7c] sm:$0xf]
        %v4338 = vld [vmem:[%s2 + $0x80] sm:$0xf]
        %v4339 = vld [vmem:[%s2 + $0x84] sm:$0xf]
        %v4340 = vld [vmem:[%s2 + $0x88] sm:$0xf]
        %v4341 = vld [vmem:[%s2 + $0x8c] sm:$0xf]
        %v4342 = vld [vmem:[%s2 + $0x90] sm:$0xf]
        %v4343 = vld [vmem:[%s2 + $0x94] sm:$0xf]
        %v4344 = vld [vmem:[%s2 + $0x98] sm:$0xf]
        %v4345 = vld [vmem:[%s2 + $0x9c] sm:$0xf]
        %v4346 = vld [vmem:[%s2 + $0xa0] sm:$0xf]
        %v4347 = vld [vmem:[%s2 + $0xa4] sm:$0xf]
        %v4348 = vld [vmem:[%s2 + $0xa8] sm:$0xf]
        %v4349 = vld [vmem:[%s2 + $0xac] sm:$0xf]
        %v4350 = vld [vmem:[%s2 + $0xb0] sm:$0xf]
        %v4351 = vld [vmem:[%s2 + $0xb4] sm:$0xf]
        %v4352 = vld [vmem:[%s2 + $0xb8] sm:$0xf]
        %v4353 = vld [vmem:[%s2 + $0xbc] sm:$0xf]
        %v4354 = vld [vmem:[%s2 + $0xc0] sm:$0xf]
        %v4355 = vld [vmem:[%s2 + $0xc4] sm:$0xf]
        %v4356 = vld [vmem:[%s2 + $0xc8] sm:$0xf]
        %v4357 = vld [vmem:[%s2 + $0xcc] sm:$0xf]
        %v4358 = vld [vmem:[%s2 + $0xd0] sm:$0xf]
        %v4359 = vld [vmem:[%s2 + $0xd4] sm:$0xf]
        %v4360 = vld [vmem:[%s2 + $0xd8] sm:$0xf]
        %v4361 = vld [vmem:[%s2 + $0xdc] sm:$0xf]
        %v4362 = vld [vmem:[%s2 + $0xe0] sm:$0xf]
        %v4363 = vld [vmem:[%s2 + $0xe4] sm:$0xf]
        %v4364 = vld [vmem:[%s2 + $0xe8] sm:$0xf]
        %v4365 = vld [vmem:[%s2 + $0xec] sm:$0xf]
        %v4366 = vld [vmem:[%s2 + $0xf0] sm:$0xf]
        %v4367 = vld [vmem:[%s2 + $0xf4] sm:$0xf]
        %v4368 = vld [vmem:[%s2 + $0xf8] sm:$0xf]
        %v4369 = vld [vmem:[%s2 + $0xfc] sm:$0xf]
        %v4370 = vld [vmem:[%s2 + $0x100] sm:$0xf]
        %v4371 = vld [vmem:[%s2 + $0x104] sm:$0xf]
        %v4372 = vld [vmem:[%s2 + $0x108] sm:$0xf]
        %v4373 = vld [vmem:[%s2 + $0x10c] sm:$0xf]
        %v4374 = vld [vmem:[%s2 + $0x110] sm:$0xf]
        %v4375 = vld [vmem:[%s2 + $0x114] sm:$0xf]
        %v4376 = vld [vmem:[%s2 + $0x118] sm:$0xf]
        %v4377 = vld [vmem:[%s2 + $0x11c] sm:$0xf]
        %v4378 = vcombine.low %v1607, %v1611
        %v4379 = vcombine.high %v1607, %v1611
        %v4380 = vcombine.low %v1608, %v1612
        %v4381 = vcombine.high %v1608, %v1612
        %v4382 = vcombine.low %v1609, %v1613
        %v4383 = vcombine.high %v1609, %v1613
        %v4384 = vcombine.low %v1610, %v1614
        %v4385 = vcombine.high %v1610, %v1614
        %v4387 = vunpack.c.l.s4 1966171168
        %v4388 = vunpack.c.0.s8 %v4387
        %v4389 = vlaneseq
        %v4390 = vshrl.u32 %v4389, 7
        %v4391 = vsub.s32 %v4388, %v4390
        %v4392 = vrot.slane %v4378, %v4391
        %v4394 = vunpack.c.l.s4 1966171168
        %v4395 = vunpack.c.0.s8 %v4394
        %v4396 = vlaneseq
        %v4397 = vshrl.u32 %v4396, 7
        %v4398 = vsub.s32 %v4395, %v4397
        %v4399 = vrot.slane %v4379, %v4398
        %v4401 = vunpack.c.l.s4 1966171168
        %v4402 = vunpack.c.0.s8 %v4401
        %v4403 = vlaneseq
        %v4404 = vshrl.u32 %v4403, 7
        %v4405 = vsub.s32 %v4402, %v4404
        %v4406 = vrot.slane %v4380, %v4405
        %v4408 = vunpack.c.l.s4 1966171168
        %v4409 = vunpack.c.0.s8 %v4408
        %v4410 = vlaneseq
        %v4411 = vshrl.u32 %v4410, 7
        %v4412 = vsub.s32 %v4409, %v4411
        %v4413 = vrot.slane %v4381, %v4412
        %v4415 = vunpack.c.l.s4 1966171168
        %v4416 = vunpack.c.0.s8 %v4415
        %v4417 = vlaneseq
        %v4418 = vshrl.u32 %v4417, 7
        %v4419 = vsub.s32 %v4416, %v4418
        %v4420 = vrot.slane %v4382, %v4419
        %v4422 = vunpack.c.l.s4 1966171168
        %v4423 = vunpack.c.0.s8 %v4422
        %v4424 = vlaneseq
        %v4425 = vshrl.u32 %v4424, 7
        %v4426 = vsub.s32 %v4423, %v4425
        %v4427 = vrot.slane %v4383, %v4426
        %v4429 = vunpack.c.l.s4 1966171168
        %v4430 = vunpack.c.0.s8 %v4429
        %v4431 = vlaneseq
        %v4432 = vshrl.u32 %v4431, 7
        %v4433 = vsub.s32 %v4430, %v4432
        %v4434 = vrot.slane %v4384, %v4433
        %v4436 = vunpack.c.l.s4 1966171168
        %v4437 = vunpack.c.0.s8 %v4436
        %v4438 = vlaneseq
        %v4439 = vshrl.u32 %v4438, 7
        %v4440 = vsub.s32 %v4437, %v4439
        %v4441 = vrot.slane %v4385, %v4440
        %v4442 = vcombine.low %v4392, %v4406
        %v4443 = vcombine.high %v4392, %v4406
        %v4444 = vcombine.low %v4399, %v4413
        %v4445 = vcombine.low %v4420, %v4434
        %v4446 = vcombine.high %v4420, %v4434
        %v4447 = vcombine.low %v4427, %v4441
        %v4449 = vunpack.c.l.s4 1966171168
        %v4450 = vunpack.c.0.s8 %v4449
        %v4451 = vlaneseq
        %v4452 = vshrl.u32 %v4451, 7
        %v4453 = vsub.s32 %v4450, %v4452
        %v4454 = vrot.slane %v4442, %v4453
        %v4456 = vunpack.c.l.s4 1966171168
        %v4457 = vunpack.c.0.s8 %v4456
        %v4458 = vlaneseq
        %v4459 = vshrl.u32 %v4458, 7
        %v4460 = vsub.s32 %v4457, %v4459
        %v4461 = vrot.slane %v4444, %v4460
        %v4463 = vunpack.c.l.s4 1966171168
        %v4464 = vunpack.c.0.s8 %v4463
        %v4465 = vlaneseq
        %v4466 = vshrl.u32 %v4465, 7
        %v4467 = vsub.s32 %v4464, %v4466
        %v4468 = vrot.slane %v4443, %v4467
        %v4470 = vunpack.c.l.s4 1966171168
        %v4471 = vunpack.c.0.s8 %v4470
        %v4472 = vlaneseq
        %v4473 = vshrl.u32 %v4472, 7
        %v4474 = vsub.s32 %v4471, %v4473
        %v4475 = vrot.slane %v4445, %v4474
        %v4477 = vunpack.c.l.s4 1966171168
        %v4478 = vunpack.c.0.s8 %v4477
        %v4479 = vlaneseq
        %v4480 = vshrl.u32 %v4479, 7
        %v4481 = vsub.s32 %v4478, %v4480
        %v4482 = vrot.slane %v4447, %v4481
        %v4484 = vunpack.c.l.s4 1966171168
        %v4485 = vunpack.c.0.s8 %v4484
        %v4486 = vlaneseq
        %v4487 = vshrl.u32 %v4486, 7
        %v4488 = vsub.s32 %v4485, %v4487
        %v4489 = vrot.slane %v4446, %v4488
        %v4490 = vcombine.low %v4454, %v4475
        %v4491 = vcombine.high %v4454, %v4475
        %v4492 = vcombine.low %v4461, %v4482
        %v4493 = vcombine.low %v4468, %v4489
        %v4494 = vcombine.high %v4468, %v4489
        %v4495 = vcombine.low %v1653, %v1763
        %v4496 = vcombine.high %v1653, %v1763
        %v4497 = vcombine.low %v1767, %v1764
        %v4498 = vcombine.high %v1767, %v1764
        %v4499 = vcombine.low %v1768, %v1765
        %v4500 = vcombine.high %v1768, %v1765
        %v4501 = vcombine.low %v1769, %v1766
        %v4502 = vcombine.high %v1769, %v1766
        %v4504 = vunpack.c.l.s4 1966171168
        %v4505 = vunpack.c.0.s8 %v4504
        %v4506 = vlaneseq
        %v4507 = vshrl.u32 %v4506, 7
        %v4508 = vsub.s32 %v4505, %v4507
        %v4509 = vrot.slane %v4495, %v4508
        %v4511 = vunpack.c.l.s4 1966171168
        %v4512 = vunpack.c.0.s8 %v4511
        %v4513 = vlaneseq
        %v4514 = vshrl.u32 %v4513, 7
        %v4515 = vsub.s32 %v4512, %v4514
        %v4516 = vrot.slane %v4496, %v4515
        %v4518 = vunpack.c.l.s4 1966171168
        %v4519 = vunpack.c.0.s8 %v4518
        %v4520 = vlaneseq
        %v4521 = vshrl.u32 %v4520, 7
        %v4522 = vsub.s32 %v4519, %v4521
        %v4523 = vrot.slane %v4497, %v4522
        %v4525 = vunpack.c.l.s4 1966171168
        %v4526 = vunpack.c.0.s8 %v4525
        %v4527 = vlaneseq
        %v4528 = vshrl.u32 %v4527, 7
        %v4529 = vsub.s32 %v4526, %v4528
        %v4530 = vrot.slane %v4498, %v4529
        %v4532 = vunpack.c.l.s4 1966171168
        %v4533 = vunpack.c.0.s8 %v4532
        %v4534 = vlaneseq
        %v4535 = vshrl.u32 %v4534, 7
        %v4536 = vsub.s32 %v4533, %v4535
        %v4537 = vrot.slane %v4499, %v4536
        %v4539 = vunpack.c.l.s4 1966171168
        %v4540 = vunpack.c.0.s8 %v4539
        %v4541 = vlaneseq
        %v4542 = vshrl.u32 %v4541, 7
        %v4543 = vsub.s32 %v4540, %v4542
        %v4544 = vrot.slane %v4500, %v4543
        %v4546 = vunpack.c.l.s4 1966171168
        %v4547 = vunpack.c.0.s8 %v4546
        %v4548 = vlaneseq
        %v4549 = vshrl.u32 %v4548, 7
        %v4550 = vsub.s32 %v4547, %v4549
        %v4551 = vrot.slane %v4501, %v4550
        %v4553 = vunpack.c.l.s4 1966171168
        %v4554 = vunpack.c.0.s8 %v4553
        %v4555 = vlaneseq
        %v4556 = vshrl.u32 %v4555, 7
        %v4557 = vsub.s32 %v4554, %v4556
        %v4558 = vrot.slane %v4502, %v4557
        %v4559 = vcombine.low %v4509, %v4523
        %v4560 = vcombine.high %v4509, %v4523
        %v4561 = vcombine.low %v4516, %v4530
        %v4562 = vcombine.low %v4537, %v4551
        %v4563 = vcombine.high %v4537, %v4551
        %v4564 = vcombine.low %v4544, %v4558
        %v4566 = vunpack.c.l.s4 1966171168
        %v4567 = vunpack.c.0.s8 %v4566
        %v4568 = vlaneseq
        %v4569 = vshrl.u32 %v4568, 7
        %v4570 = vsub.s32 %v4567, %v4569
        %v4571 = vrot.slane %v4559, %v4570
        %v4573 = vunpack.c.l.s4 1966171168
        %v4574 = vunpack.c.0.s8 %v4573
        %v4575 = vlaneseq
        %v4576 = vshrl.u32 %v4575, 7
        %v4577 = vsub.s32 %v4574, %v4576
        %v4578 = vrot.slane %v4561, %v4577
        %v4580 = vunpack.c.l.s4 1966171168
        %v4581 = vunpack.c.0.s8 %v4580
        %v4582 = vlaneseq
        %v4583 = vshrl.u32 %v4582, 7
        %v4584 = vsub.s32 %v4581, %v4583
        %v4585 = vrot.slane %v4560, %v4584
        %v4587 = vunpack.c.l.s4 1966171168
        %v4588 = vunpack.c.0.s8 %v4587
        %v4589 = vlaneseq
        %v4590 = vshrl.u32 %v4589, 7
        %v4591 = vsub.s32 %v4588, %v4590
        %v4592 = vrot.slane %v4562, %v4591
        %v4594 = vunpack.c.l.s4 1966171168
        %v4595 = vunpack.c.0.s8 %v4594
        %v4596 = vlaneseq
        %v4597 = vshrl.u32 %v4596, 7
        %v4598 = vsub.s32 %v4595, %v4597
        %v4599 = vrot.slane %v4564, %v4598
        %v4601 = vunpack.c.l.s4 1966171168
        %v4602 = vunpack.c.0.s8 %v4601
        %v4603 = vlaneseq
        %v4604 = vshrl.u32 %v4603, 7
        %v4605 = vsub.s32 %v4602, %v4604
        %v4606 = vrot.slane %v4563, %v4605
        %v4607 = vcombine.low %v4571, %v4592
        %v4608 = vcombine.high %v4571, %v4592
        %v4609 = vcombine.low %v4578, %v4599
        %v4610 = vcombine.low %v4585, %v4606
        %v4611 = vcombine.high %v4585, %v4606
        %v4612 = vcombine.low %v1770, %v1809
        %v4613 = vcombine.high %v1770, %v1809
        %v4614 = vcombine.low %v1919, %v1923
        %v4615 = vcombine.high %v1919, %v1923
        %v4616 = vcombine.low %v1920, %v1924
        %v4617 = vcombine.high %v1920, %v1924
        %v4618 = vcombine.low %v1921, %v1925
        %v4619 = vcombine.high %v1921, %v1925
        %v4621 = vunpack.c.l.s4 1966171168
        %v4622 = vunpack.c.0.s8 %v4621
        %v4623 = vlaneseq
        %v4624 = vshrl.u32 %v4623, 7
        %v4625 = vsub.s32 %v4622, %v4624
        %v4626 = vrot.slane %v4612, %v4625
        %v4628 = vunpack.c.l.s4 1966171168
        %v4629 = vunpack.c.0.s8 %v4628
        %v4630 = vlaneseq
        %v4631 = vshrl.u32 %v4630, 7
        %v4632 = vsub.s32 %v4629, %v4631
        %v4633 = vrot.slane %v4613, %v4632
        %v4635 = vunpack.c.l.s4 1966171168
        %v4636 = vunpack.c.0.s8 %v4635
        %v4637 = vlaneseq
        %v4638 = vshrl.u32 %v4637, 7
        %v4639 = vsub.s32 %v4636, %v4638
        %v4640 = vrot.slane %v4614, %v4639
        %v4642 = vunpack.c.l.s4 1966171168
        %v4643 = vunpack.c.0.s8 %v4642
        %v4644 = vlaneseq
        %v4645 = vshrl.u32 %v4644, 7
        %v4646 = vsub.s32 %v4643, %v4645
        %v4647 = vrot.slane %v4615, %v4646
        %v4649 = vunpack.c.l.s4 1966171168
        %v4650 = vunpack.c.0.s8 %v4649
        %v4651 = vlaneseq
        %v4652 = vshrl.u32 %v4651, 7
        %v4653 = vsub.s32 %v4650, %v4652
        %v4654 = vrot.slane %v4616, %v4653
        %v4656 = vunpack.c.l.s4 1966171168
        %v4657 = vunpack.c.0.s8 %v4656
        %v4658 = vlaneseq
        %v4659 = vshrl.u32 %v4658, 7
        %v4660 = vsub.s32 %v4657, %v4659
        %v4661 = vrot.slane %v4617, %v4660
        %v4663 = vunpack.c.l.s4 1966171168
        %v4664 = vunpack.c.0.s8 %v4663
        %v4665 = vlaneseq
        %v4666 = vshrl.u32 %v4665, 7
        %v4667 = vsub.s32 %v4664, %v4666
        %v4668 = vrot.slane %v4618, %v4667
        %v4670 = vunpack.c.l.s4 1966171168
        %v4671 = vunpack.c.0.s8 %v4670
        %v4672 = vlaneseq
        %v4673 = vshrl.u32 %v4672, 7
        %v4674 = vsub.s32 %v4671, %v4673
        %v4675 = vrot.slane %v4619, %v4674
        %v4676 = vcombine.low %v4626, %v4640
        %v4677 = vcombine.high %v4626, %v4640
        %v4678 = vcombine.low %v4633, %v4647
        %v4679 = vcombine.low %v4654, %v4668
        %v4680 = vcombine.high %v4654, %v4668
        %v4681 = vcombine.low %v4661, %v4675
        %v4683 = vunpack.c.l.s4 1966171168
        %v4684 = vunpack.c.0.s8 %v4683
        %v4685 = vlaneseq
        %v4686 = vshrl.u32 %v4685, 7
        %v4687 = vsub.s32 %v4684, %v4686
        %v4688 = vrot.slane %v4676, %v4687
        %v4690 = vunpack.c.l.s4 1966171168
        %v4691 = vunpack.c.0.s8 %v4690
        %v4692 = vlaneseq
        %v4693 = vshrl.u32 %v4692, 7
        %v4694 = vsub.s32 %v4691, %v4693
        %v4695 = vrot.slane %v4678, %v4694
        %v4697 = vunpack.c.l.s4 1966171168
        %v4698 = vunpack.c.0.s8 %v4697
        %v4699 = vlaneseq
        %v4700 = vshrl.u32 %v4699, 7
        %v4701 = vsub.s32 %v4698, %v4700
        %v4702 = vrot.slane %v4677, %v4701
        %v4704 = vunpack.c.l.s4 1966171168
        %v4705 = vunpack.c.0.s8 %v4704
        %v4706 = vlaneseq
        %v4707 = vshrl.u32 %v4706, 7
        %v4708 = vsub.s32 %v4705, %v4707
        %v4709 = vrot.slane %v4679, %v4708
        %v4711 = vunpack.c.l.s4 1966171168
        %v4712 = vunpack.c.0.s8 %v4711
        %v4713 = vlaneseq
        %v4714 = vshrl.u32 %v4713, 7
        %v4715 = vsub.s32 %v4712, %v4714
        %v4716 = vrot.slane %v4681, %v4715
        %v4718 = vunpack.c.l.s4 1966171168
        %v4719 = vunpack.c.0.s8 %v4718
        %v4720 = vlaneseq
        %v4721 = vshrl.u32 %v4720, 7
        %v4722 = vsub.s32 %v4719, %v4721
        %v4723 = vrot.slane %v4680, %v4722
        %v4724 = vcombine.low %v4688, %v4709
        %v4725 = vcombine.high %v4688, %v4709
        %v4726 = vcombine.low %v4695, %v4716
        %v4727 = vcombine.low %v4702, %v4723
        %v4728 = vcombine.high %v4702, %v4723
        %v4729 = vcombine.low %v1922, %v1926
        %v4730 = vcombine.high %v1922, %v1926
        %v4731 = vcombine.low %v1965, %v2075
        %v4732 = vcombine.high %v1965, %v2075
        %v4733 = vcombine.low %v2079, %v2076
        %v4734 = vcombine.high %v2079, %v2076
        %v4735 = vcombine.low %v2080, %v2077
        %v4736 = vcombine.high %v2080, %v2077
        %v4738 = vunpack.c.l.s4 1966171168
        %v4739 = vunpack.c.0.s8 %v4738
        %v4740 = vlaneseq
        %v4741 = vshrl.u32 %v4740, 7
        %v4742 = vsub.s32 %v4739, %v4741
        %v4743 = vrot.slane %v4729, %v4742
        %v4745 = vunpack.c.l.s4 1966171168
        %v4746 = vunpack.c.0.s8 %v4745
        %v4747 = vlaneseq
        %v4748 = vshrl.u32 %v4747, 7
        %v4749 = vsub.s32 %v4746, %v4748
        %v4750 = vrot.slane %v4730, %v4749
        %v4752 = vunpack.c.l.s4 1966171168
        %v4753 = vunpack.c.0.s8 %v4752
        %v4754 = vlaneseq
        %v4755 = vshrl.u32 %v4754, 7
        %v4756 = vsub.s32 %v4753, %v4755
        %v4757 = vrot.slane %v4731, %v4756
        %v4759 = vunpack.c.l.s4 1966171168
        %v4760 = vunpack.c.0.s8 %v4759
        %v4761 = vlaneseq
        %v4762 = vshrl.u32 %v4761, 7
        %v4763 = vsub.s32 %v4760, %v4762
        %v4764 = vrot.slane %v4732, %v4763
        %v4766 = vunpack.c.l.s4 1966171168
        %v4767 = vunpack.c.0.s8 %v4766
        %v4768 = vlaneseq
        %v4769 = vshrl.u32 %v4768, 7
        %v4770 = vsub.s32 %v4767, %v4769
        %v4771 = vrot.slane %v4733, %v4770
        %v4773 = vunpack.c.l.s4 1966171168
        %v4774 = vunpack.c.0.s8 %v4773
        %v4775 = vlaneseq
        %v4776 = vshrl.u32 %v4775, 7
        %v4777 = vsub.s32 %v4774, %v4776
        %v4778 = vrot.slane %v4734, %v4777
        %v4780 = vunpack.c.l.s4 1966171168
        %v4781 = vunpack.c.0.s8 %v4780
        %v4782 = vlaneseq
        %v4783 = vshrl.u32 %v4782, 7
        %v4784 = vsub.s32 %v4781, %v4783
        %v4785 = vrot.slane %v4735, %v4784
        %v4787 = vunpack.c.l.s4 1966171168
        %v4788 = vunpack.c.0.s8 %v4787
        %v4789 = vlaneseq
        %v4790 = vshrl.u32 %v4789, 7
        %v4791 = vsub.s32 %v4788, %v4790
        %v4792 = vrot.slane %v4736, %v4791
        %v4793 = vcombine.low %v4743, %v4757
        %v4794 = vcombine.high %v4743, %v4757
        %v4795 = vcombine.low %v4750, %v4764
        %v4796 = vcombine.low %v4771, %v4785
        %v4797 = vcombine.high %v4771, %v4785
        %v4798 = vcombine.low %v4778, %v4792
        %v4800 = vunpack.c.l.s4 1966171168
        %v4801 = vunpack.c.0.s8 %v4800
        %v4802 = vlaneseq
        %v4803 = vshrl.u32 %v4802, 7
        %v4804 = vsub.s32 %v4801, %v4803
        %v4805 = vrot.slane %v4793, %v4804
        %v4807 = vunpack.c.l.s4 1966171168
        %v4808 = vunpack.c.0.s8 %v4807
        %v4809 = vlaneseq
        %v4810 = vshrl.u32 %v4809, 7
        %v4811 = vsub.s32 %v4808, %v4810
        %v4812 = vrot.slane %v4795, %v4811
        %v4814 = vunpack.c.l.s4 1966171168
        %v4815 = vunpack.c.0.s8 %v4814
        %v4816 = vlaneseq
        %v4817 = vshrl.u32 %v4816, 7
        %v4818 = vsub.s32 %v4815, %v4817
        %v4819 = vrot.slane %v4794, %v4818
        %v4821 = vunpack.c.l.s4 1966171168
        %v4822 = vunpack.c.0.s8 %v4821
        %v4823 = vlaneseq
        %v4824 = vshrl.u32 %v4823, 7
        %v4825 = vsub.s32 %v4822, %v4824
        %v4826 = vrot.slane %v4796, %v4825
        %v4828 = vunpack.c.l.s4 1966171168
        %v4829 = vunpack.c.0.s8 %v4828
        %v4830 = vlaneseq
        %v4831 = vshrl.u32 %v4830, 7
        %v4832 = vsub.s32 %v4829, %v4831
        %v4833 = vrot.slane %v4798, %v4832
        %v4835 = vunpack.c.l.s4 1966171168
        %v4836 = vunpack.c.0.s8 %v4835
        %v4837 = vlaneseq
        %v4838 = vshrl.u32 %v4837, 7
        %v4839 = vsub.s32 %v4836, %v4838
        %v4840 = vrot.slane %v4797, %v4839
        %v4841 = vcombine.low %v4805, %v4826
        %v4842 = vcombine.high %v4805, %v4826
        %v4843 = vcombine.low %v4812, %v4833
        %v4844 = vcombine.low %v4819, %v4840
        %v4845 = vcombine.high %v4819, %v4840
        %v4846 = vcombine.low %v2081, %v2078
        %v4847 = vcombine.high %v2081, %v2078
        %v4848 = vcombine.low %v2082, %v2121
        %v4849 = vcombine.high %v2082, %v2121
        %v4850 = vcombine.low %v2231, %v2235
        %v4851 = vcombine.high %v2231, %v2235
        %v4852 = vcombine.low %v2232, %v2236
        %v4853 = vcombine.high %v2232, %v2236
        %v4855 = vunpack.c.l.s4 1966171168
        %v4856 = vunpack.c.0.s8 %v4855
        %v4857 = vlaneseq
        %v4858 = vshrl.u32 %v4857, 7
        %v4859 = vsub.s32 %v4856, %v4858
        %v4860 = vrot.slane %v4846, %v4859
        %v4862 = vunpack.c.l.s4 1966171168
        %v4863 = vunpack.c.0.s8 %v4862
        %v4864 = vlaneseq
        %v4865 = vshrl.u32 %v4864, 7
        %v4866 = vsub.s32 %v4863, %v4865
        %v4867 = vrot.slane %v4847, %v4866
        %v4869 = vunpack.c.l.s4 1966171168
        %v4870 = vunpack.c.0.s8 %v4869
        %v4871 = vlaneseq
        %v4872 = vshrl.u32 %v4871, 7
        %v4873 = vsub.s32 %v4870, %v4872
        %v4874 = vrot.slane %v4848, %v4873
        %v4876 = vunpack.c.l.s4 1966171168
        %v4877 = vunpack.c.0.s8 %v4876
        %v4878 = vlaneseq
        %v4879 = vshrl.u32 %v4878, 7
        %v4880 = vsub.s32 %v4877, %v4879
        %v4881 = vrot.slane %v4849, %v4880
        %v4883 = vunpack.c.l.s4 1966171168
        %v4884 = vunpack.c.0.s8 %v4883
        %v4885 = vlaneseq
        %v4886 = vshrl.u32 %v4885, 7
        %v4887 = vsub.s32 %v4884, %v4886
        %v4888 = vrot.slane %v4850, %v4887
        %v4890 = vunpack.c.l.s4 1966171168
        %v4891 = vunpack.c.0.s8 %v4890
        %v4892 = vlaneseq
        %v4893 = vshrl.u32 %v4892, 7
        %v4894 = vsub.s32 %v4891, %v4893
        %v4895 = vrot.slane %v4851, %v4894
        %v4897 = vunpack.c.l.s4 1966171168
        %v4898 = vunpack.c.0.s8 %v4897
        %v4899 = vlaneseq
        %v4900 = vshrl.u32 %v4899, 7
        %v4901 = vsub.s32 %v4898, %v4900
        %v4902 = vrot.slane %v4852, %v4901
        %v4904 = vunpack.c.l.s4 1966171168
        %v4905 = vunpack.c.0.s8 %v4904
        %v4906 = vlaneseq
        %v4907 = vshrl.u32 %v4906, 7
        %v4908 = vsub.s32 %v4905, %v4907
        %v4909 = vrot.slane %v4853, %v4908
        %v4910 = vcombine.low %v4860, %v4874
        %v4911 = vcombine.high %v4860, %v4874
        %v4912 = vcombine.low %v4867, %v4881
        %v4913 = vcombine.low %v4888, %v4902
        %v4914 = vcombine.high %v4888, %v4902
        %v4915 = vcombine.low %v4895, %v4909
        %v4917 = vunpack.c.l.s4 1966171168
        %v4918 = vunpack.c.0.s8 %v4917
        %v4919 = vlaneseq
        %v4920 = vshrl.u32 %v4919, 7
        %v4921 = vsub.s32 %v4918, %v4920
        %v4922 = vrot.slane %v4910, %v4921
        %v4924 = vunpack.c.l.s4 1966171168
        %v4925 = vunpack.c.0.s8 %v4924
        %v4926 = vlaneseq
        %v4927 = vshrl.u32 %v4926, 7
        %v4928 = vsub.s32 %v4925, %v4927
        %v4929 = vrot.slane %v4912, %v4928
        %v4931 = vunpack.c.l.s4 1966171168
        %v4932 = vunpack.c.0.s8 %v4931
        %v4933 = vlaneseq
        %v4934 = vshrl.u32 %v4933, 7
        %v4935 = vsub.s32 %v4932, %v4934
        %v4936 = vrot.slane %v4911, %v4935
        %v4938 = vunpack.c.l.s4 1966171168
        %v4939 = vunpack.c.0.s8 %v4938
        %v4940 = vlaneseq
        %v4941 = vshrl.u32 %v4940, 7
        %v4942 = vsub.s32 %v4939, %v4941
        %v4943 = vrot.slane %v4913, %v4942
        %v4945 = vunpack.c.l.s4 1966171168
        %v4946 = vunpack.c.0.s8 %v4945
        %v4947 = vlaneseq
        %v4948 = vshrl.u32 %v4947, 7
        %v4949 = vsub.s32 %v4946, %v4948
        %v4950 = vrot.slane %v4915, %v4949
        %v4952 = vunpack.c.l.s4 1966171168
        %v4953 = vunpack.c.0.s8 %v4952
        %v4954 = vlaneseq
        %v4955 = vshrl.u32 %v4954, 7
        %v4956 = vsub.s32 %v4953, %v4955
        %v4957 = vrot.slane %v4914, %v4956
        %v4958 = vcombine.low %v4922, %v4943
        %v4959 = vcombine.high %v4922, %v4943
        %v4960 = vcombine.low %v4929, %v4950
        %v4961 = vcombine.low %v4936, %v4957
        %v4962 = vcombine.high %v4936, %v4957
        %v4963 = vcombine.low %v2233, %v2237
        %v4964 = vcombine.high %v2233, %v2237
        %v4965 = vcombine.low %v2234, %v2238
        %v4966 = vcombine.high %v2234, %v2238
        %v4967 = vcombine.low %v2277, %v2387
        %v4968 = vcombine.high %v2277, %v2387
        %v4969 = vcombine.low %v2391, %v2388
        %v4970 = vcombine.high %v2391, %v2388
        %v4972 = vunpack.c.l.s4 1966171168
        %v4973 = vunpack.c.0.s8 %v4972
        %v4974 = vlaneseq
        %v4975 = vshrl.u32 %v4974, 7
        %v4976 = vsub.s32 %v4973, %v4975
        %v4977 = vrot.slane %v4963, %v4976
        %v4979 = vunpack.c.l.s4 1966171168
        %v4980 = vunpack.c.0.s8 %v4979
        %v4981 = vlaneseq
        %v4982 = vshrl.u32 %v4981, 7
        %v4983 = vsub.s32 %v4980, %v4982
        %v4984 = vrot.slane %v4964, %v4983
        %v4986 = vunpack.c.l.s4 1966171168
        %v4987 = vunpack.c.0.s8 %v4986
        %v4988 = vlaneseq
        %v4989 = vshrl.u32 %v4988, 7
        %v4990 = vsub.s32 %v4987, %v4989
        %v4991 = vrot.slane %v4965, %v4990
        %v4993 = vunpack.c.l.s4 1966171168
        %v4994 = vunpack.c.0.s8 %v4993
        %v4995 = vlaneseq
        %v4996 = vshrl.u32 %v4995, 7
        %v4997 = vsub.s32 %v4994, %v4996
        %v4998 = vrot.slane %v4966, %v4997
        %v5000 = vunpack.c.l.s4 1966171168
        %v5001 = vunpack.c.0.s8 %v5000
        %v5002 = vlaneseq
        %v5003 = vshrl.u32 %v5002, 7
        %v5004 = vsub.s32 %v5001, %v5003
        %v5005 = vrot.slane %v4967, %v5004
        %v5007 = vunpack.c.l.s4 1966171168
        %v5008 = vunpack.c.0.s8 %v5007
        %v5009 = vlaneseq
        %v5010 = vshrl.u32 %v5009, 7
        %v5011 = vsub.s32 %v5008, %v5010
        %v5012 = vrot.slane %v4968, %v5011
        %v5014 = vunpack.c.l.s4 1966171168
        %v5015 = vunpack.c.0.s8 %v5014
        %v5016 = vlaneseq
        %v5017 = vshrl.u32 %v5016, 7
        %v5018 = vsub.s32 %v5015, %v5017
        %v5019 = vrot.slane %v4969, %v5018
        %v5021 = vunpack.c.l.s4 1966171168
        %v5022 = vunpack.c.0.s8 %v5021
        %v5023 = vlaneseq
        %v5024 = vshrl.u32 %v5023, 7
        %v5025 = vsub.s32 %v5022, %v5024
        %v5026 = vrot.slane %v4970, %v5025
        %v5027 = vcombine.low %v4977, %v4991
        %v5028 = vcombine.high %v4977, %v4991
        %v5029 = vcombine.low %v4984, %v4998
        %v5030 = vcombine.low %v5005, %v5019
        %v5031 = vcombine.high %v5005, %v5019
        %v5032 = vcombine.low %v5012, %v5026
        %v5034 = vunpack.c.l.s4 1966171168
        %v5035 = vunpack.c.0.s8 %v5034
        %v5036 = vlaneseq
        %v5037 = vshrl.u32 %v5036, 7
        %v5038 = vsub.s32 %v5035, %v5037
        %v5039 = vrot.slane %v5027, %v5038
        %v5041 = vunpack.c.l.s4 1966171168
        %v5042 = vunpack.c.0.s8 %v5041
        %v5043 = vlaneseq
        %v5044 = vshrl.u32 %v5043, 7
        %v5045 = vsub.s32 %v5042, %v5044
        %v5046 = vrot.slane %v5029, %v5045
        %v5048 = vunpack.c.l.s4 1966171168
        %v5049 = vunpack.c.0.s8 %v5048
        %v5050 = vlaneseq
        %v5051 = vshrl.u32 %v5050, 7
        %v5052 = vsub.s32 %v5049, %v5051
        %v5053 = vrot.slane %v5028, %v5052
        %v5055 = vunpack.c.l.s4 1966171168
        %v5056 = vunpack.c.0.s8 %v5055
        %v5057 = vlaneseq
        %v5058 = vshrl.u32 %v5057, 7
        %v5059 = vsub.s32 %v5056, %v5058
        %v5060 = vrot.slane %v5030, %v5059
        %v5062 = vunpack.c.l.s4 1966171168
        %v5063 = vunpack.c.0.s8 %v5062
        %v5064 = vlaneseq
        %v5065 = vshrl.u32 %v5064, 7
        %v5066 = vsub.s32 %v5063, %v5065
        %v5067 = vrot.slane %v5032, %v5066
        %v5069 = vunpack.c.l.s4 1966171168
        %v5070 = vunpack.c.0.s8 %v5069
        %v5071 = vlaneseq
        %v5072 = vshrl.u32 %v5071, 7
        %v5073 = vsub.s32 %v5070, %v5072
        %v5074 = vrot.slane %v5031, %v5073
        %v5075 = vcombine.low %v5039, %v5060
        %v5076 = vcombine.high %v5039, %v5060
        %v5077 = vcombine.low %v5046, %v5067
        %v5078 = vcombine.low %v5053, %v5074
        %v5079 = vcombine.high %v5053, %v5074
        %v5080 = vcombine.low %v2392, %v2389
        %v5081 = vcombine.high %v2392, %v2389
        %v5082 = vcombine.low %v2393, %v2390
        %v5083 = vcombine.high %v2393, %v2390
        %v5084 = vcombine.low %v2394, %v2433
        %v5085 = vcombine.high %v2394, %v2433
        %v5086 = vcombine.low %v2543, %v2547
        %v5087 = vcombine.high %v2543, %v2547
        %v5089 = vunpack.c.l.s4 1966171168
        %v5090 = vunpack.c.0.s8 %v5089
        %v5091 = vlaneseq
        %v5092 = vshrl.u32 %v5091, 7
        %v5093 = vsub.s32 %v5090, %v5092
        %v5094 = vrot.slane %v5080, %v5093
        %v5096 = vunpack.c.l.s4 1966171168
        %v5097 = vunpack.c.0.s8 %v5096
        %v5098 = vlaneseq
        %v5099 = vshrl.u32 %v5098, 7
        %v5100 = vsub.s32 %v5097, %v5099
        %v5101 = vrot.slane %v5081, %v5100
        %v5103 = vunpack.c.l.s4 1966171168
        %v5104 = vunpack.c.0.s8 %v5103
        %v5105 = vlaneseq
        %v5106 = vshrl.u32 %v5105, 7
        %v5107 = vsub.s32 %v5104, %v5106
        %v5108 = vrot.slane %v5082, %v5107
        %v5110 = vunpack.c.l.s4 1966171168
        %v5111 = vunpack.c.0.s8 %v5110
        %v5112 = vlaneseq
        %v5113 = vshrl.u32 %v5112, 7
        %v5114 = vsub.s32 %v5111, %v5113
        %v5115 = vrot.slane %v5083, %v5114
        %v5117 = vunpack.c.l.s4 1966171168
        %v5118 = vunpack.c.0.s8 %v5117
        %v5119 = vlaneseq
        %v5120 = vshrl.u32 %v5119, 7
        %v5121 = vsub.s32 %v5118, %v5120
        %v5122 = vrot.slane %v5084, %v5121
        %v5124 = vunpack.c.l.s4 1966171168
        %v5125 = vunpack.c.0.s8 %v5124
        %v5126 = vlaneseq
        %v5127 = vshrl.u32 %v5126, 7
        %v5128 = vsub.s32 %v5125, %v5127
        %v5129 = vrot.slane %v5085, %v5128
        %v5131 = vunpack.c.l.s4 1966171168
        %v5132 = vunpack.c.0.s8 %v5131
        %v5133 = vlaneseq
        %v5134 = vshrl.u32 %v5133, 7
        %v5135 = vsub.s32 %v5132, %v5134
        %v5136 = vrot.slane %v5086, %v5135
        %v5138 = vunpack.c.l.s4 1966171168
        %v5139 = vunpack.c.0.s8 %v5138
        %v5140 = vlaneseq
        %v5141 = vshrl.u32 %v5140, 7
        %v5142 = vsub.s32 %v5139, %v5141
        %v5143 = vrot.slane %v5087, %v5142
        %v5144 = vcombine.low %v5094, %v5108
        %v5145 = vcombine.high %v5094, %v5108
        %v5146 = vcombine.low %v5101, %v5115
        %v5147 = vcombine.low %v5122, %v5136
        %v5148 = vcombine.high %v5122, %v5136
        %v5149 = vcombine.low %v5129, %v5143
        %v5151 = vunpack.c.l.s4 1966171168
        %v5152 = vunpack.c.0.s8 %v5151
        %v5153 = vlaneseq
        %v5154 = vshrl.u32 %v5153, 7
        %v5155 = vsub.s32 %v5152, %v5154
        %v5156 = vrot.slane %v5144, %v5155
        %v5158 = vunpack.c.l.s4 1966171168
        %v5159 = vunpack.c.0.s8 %v5158
        %v5160 = vlaneseq
        %v5161 = vshrl.u32 %v5160, 7
        %v5162 = vsub.s32 %v5159, %v5161
        %v5163 = vrot.slane %v5146, %v5162
        %v5165 = vunpack.c.l.s4 1966171168
        %v5166 = vunpack.c.0.s8 %v5165
        %v5167 = vlaneseq
        %v5168 = vshrl.u32 %v5167, 7
        %v5169 = vsub.s32 %v5166, %v5168
        %v5170 = vrot.slane %v5145, %v5169
        %v5172 = vunpack.c.l.s4 1966171168
        %v5173 = vunpack.c.0.s8 %v5172
        %v5174 = vlaneseq
        %v5175 = vshrl.u32 %v5174, 7
        %v5176 = vsub.s32 %v5173, %v5175
        %v5177 = vrot.slane %v5147, %v5176
        %v5179 = vunpack.c.l.s4 1966171168
        %v5180 = vunpack.c.0.s8 %v5179
        %v5181 = vlaneseq
        %v5182 = vshrl.u32 %v5181, 7
        %v5183 = vsub.s32 %v5180, %v5182
        %v5184 = vrot.slane %v5149, %v5183
        %v5186 = vunpack.c.l.s4 1966171168
        %v5187 = vunpack.c.0.s8 %v5186
        %v5188 = vlaneseq
        %v5189 = vshrl.u32 %v5188, 7
        %v5190 = vsub.s32 %v5187, %v5189
        %v5191 = vrot.slane %v5148, %v5190
        %v5192 = vcombine.low %v5156, %v5177
        %v5193 = vcombine.high %v5156, %v5177
        %v5194 = vcombine.low %v5163, %v5184
        %v5195 = vcombine.low %v5170, %v5191
        %v5196 = vcombine.high %v5170, %v5191
        %v5197 = vcombine.low %v2544, %v2548
        %v5198 = vcombine.high %v2544, %v2548
        %v5199 = vcombine.low %v2545, %v2549
        %v5200 = vcombine.high %v2545, %v2549
        %v5201 = vcombine.low %v2546, %v2550
        %v5202 = vcombine.high %v2546, %v2550
        %v5203 = vcombine.low %v2589, %v2699
        %v5204 = vcombine.high %v2589, %v2699
        %v5206 = vunpack.c.l.s4 1966171168
        %v5207 = vunpack.c.0.s8 %v5206
        %v5208 = vlaneseq
        %v5209 = vshrl.u32 %v5208, 7
        %v5210 = vsub.s32 %v5207, %v5209
        %v5211 = vrot.slane %v5197, %v5210
        %v5213 = vunpack.c.l.s4 1966171168
        %v5214 = vunpack.c.0.s8 %v5213
        %v5215 = vlaneseq
        %v5216 = vshrl.u32 %v5215, 7
        %v5217 = vsub.s32 %v5214, %v5216
        %v5218 = vrot.slane %v5198, %v5217
        %v5220 = vunpack.c.l.s4 1966171168
        %v5221 = vunpack.c.0.s8 %v5220
        %v5222 = vlaneseq
        %v5223 = vshrl.u32 %v5222, 7
        %v5224 = vsub.s32 %v5221, %v5223
        %v5225 = vrot.slane %v5199, %v5224
        %v5227 = vunpack.c.l.s4 1966171168
        %v5228 = vunpack.c.0.s8 %v5227
        %v5229 = vlaneseq
        %v5230 = vshrl.u32 %v5229, 7
        %v5231 = vsub.s32 %v5228, %v5230
        %v5232 = vrot.slane %v5200, %v5231
        %v5234 = vunpack.c.l.s4 1966171168
        %v5235 = vunpack.c.0.s8 %v5234
        %v5236 = vlaneseq
        %v5237 = vshrl.u32 %v5236, 7
        %v5238 = vsub.s32 %v5235, %v5237
        %v5239 = vrot.slane %v5201, %v5238
        %v5241 = vunpack.c.l.s4 1966171168
        %v5242 = vunpack.c.0.s8 %v5241
        %v5243 = vlaneseq
        %v5244 = vshrl.u32 %v5243, 7
        %v5245 = vsub.s32 %v5242, %v5244
        %v5246 = vrot.slane %v5202, %v5245
        %v5248 = vunpack.c.l.s4 1966171168
        %v5249 = vunpack.c.0.s8 %v5248
        %v5250 = vlaneseq
        %v5251 = vshrl.u32 %v5250, 7
        %v5252 = vsub.s32 %v5249, %v5251
        %v5253 = vrot.slane %v5203, %v5252
        %v5255 = vunpack.c.l.s4 1966171168
        %v5256 = vunpack.c.0.s8 %v5255
        %v5257 = vlaneseq
        %v5258 = vshrl.u32 %v5257, 7
        %v5259 = vsub.s32 %v5256, %v5258
        %v5260 = vrot.slane %v5204, %v5259
        %v5261 = vcombine.low %v5211, %v5225
        %v5262 = vcombine.high %v5211, %v5225
        %v5263 = vcombine.low %v5218, %v5232
        %v5264 = vcombine.low %v5239, %v5253
        %v5265 = vcombine.high %v5239, %v5253
        %v5266 = vcombine.low %v5246, %v5260
        %v5268 = vunpack.c.l.s4 1966171168
        %v5269 = vunpack.c.0.s8 %v5268
        %v5270 = vlaneseq
        %v5271 = vshrl.u32 %v5270, 7
        %v5272 = vsub.s32 %v5269, %v5271
        %v5273 = vrot.slane %v5261, %v5272
        %v5275 = vunpack.c.l.s4 1966171168
        %v5276 = vunpack.c.0.s8 %v5275
        %v5277 = vlaneseq
        %v5278 = vshrl.u32 %v5277, 7
        %v5279 = vsub.s32 %v5276, %v5278
        %v5280 = vrot.slane %v5263, %v5279
        %v5282 = vunpack.c.l.s4 1966171168
        %v5283 = vunpack.c.0.s8 %v5282
        %v5284 = vlaneseq
        %v5285 = vshrl.u32 %v5284, 7
        %v5286 = vsub.s32 %v5283, %v5285
        %v5287 = vrot.slane %v5262, %v5286
        %v5289 = vunpack.c.l.s4 1966171168
        %v5290 = vunpack.c.0.s8 %v5289
        %v5291 = vlaneseq
        %v5292 = vshrl.u32 %v5291, 7
        %v5293 = vsub.s32 %v5290, %v5292
        %v5294 = vrot.slane %v5264, %v5293
        %v5296 = vunpack.c.l.s4 1966171168
        %v5297 = vunpack.c.0.s8 %v5296
        %v5298 = vlaneseq
        %v5299 = vshrl.u32 %v5298, 7
        %v5300 = vsub.s32 %v5297, %v5299
        %v5301 = vrot.slane %v5266, %v5300
        %v5303 = vunpack.c.l.s4 1966171168
        %v5304 = vunpack.c.0.s8 %v5303
        %v5305 = vlaneseq
        %v5306 = vshrl.u32 %v5305, 7
        %v5307 = vsub.s32 %v5304, %v5306
        %v5308 = vrot.slane %v5265, %v5307
        %v5309 = vcombine.low %v5273, %v5294
        %v5310 = vcombine.high %v5273, %v5294
        %v5311 = vcombine.low %v5280, %v5301
        %v5312 = vcombine.low %v5287, %v5308
        %v5313 = vcombine.high %v5287, %v5308
        %v5314 = vcombine.low %v2703, %v2700
        %v5315 = vcombine.high %v2703, %v2700
        %v5316 = vcombine.low %v2704, %v2701
        %v5317 = vcombine.high %v2704, %v2701
        %v5318 = vcombine.low %v2705, %v2702
        %v5319 = vcombine.high %v2705, %v2702
        %v5320 = vcombine.low %v2706, %v2745
        %v5321 = vcombine.high %v2706, %v2745
        %v5323 = vunpack.c.l.s4 1966171168
        %v5324 = vunpack.c.0.s8 %v5323
        %v5325 = vlaneseq
        %v5326 = vshrl.u32 %v5325, 7
        %v5327 = vsub.s32 %v5324, %v5326
        %v5328 = vrot.slane %v5314, %v5327
        %v5330 = vunpack.c.l.s4 1966171168
        %v5331 = vunpack.c.0.s8 %v5330
        %v5332 = vlaneseq
        %v5333 = vshrl.u32 %v5332, 7
        %v5334 = vsub.s32 %v5331, %v5333
        %v5335 = vrot.slane %v5315, %v5334
        %v5337 = vunpack.c.l.s4 1966171168
        %v5338 = vunpack.c.0.s8 %v5337
        %v5339 = vlaneseq
        %v5340 = vshrl.u32 %v5339, 7
        %v5341 = vsub.s32 %v5338, %v5340
        %v5342 = vrot.slane %v5316, %v5341
        %v5344 = vunpack.c.l.s4 1966171168
        %v5345 = vunpack.c.0.s8 %v5344
        %v5346 = vlaneseq
        %v5347 = vshrl.u32 %v5346, 7
        %v5348 = vsub.s32 %v5345, %v5347
        %v5349 = vrot.slane %v5317, %v5348
        %v5351 = vunpack.c.l.s4 1966171168
        %v5352 = vunpack.c.0.s8 %v5351
        %v5353 = vlaneseq
        %v5354 = vshrl.u32 %v5353, 7
        %v5355 = vsub.s32 %v5352, %v5354
        %v5356 = vrot.slane %v5318, %v5355
        %v5358 = vunpack.c.l.s4 1966171168
        %v5359 = vunpack.c.0.s8 %v5358
        %v5360 = vlaneseq
        %v5361 = vshrl.u32 %v5360, 7
        %v5362 = vsub.s32 %v5359, %v5361
        %v5363 = vrot.slane %v5319, %v5362
        %v5365 = vunpack.c.l.s4 1966171168
        %v5366 = vunpack.c.0.s8 %v5365
        %v5367 = vlaneseq
        %v5368 = vshrl.u32 %v5367, 7
        %v5369 = vsub.s32 %v5366, %v5368
        %v5370 = vrot.slane %v5320, %v5369
        %v5372 = vunpack.c.l.s4 1966171168
        %v5373 = vunpack.c.0.s8 %v5372
        %v5374 = vlaneseq
        %v5375 = vshrl.u32 %v5374, 7
        %v5376 = vsub.s32 %v5373, %v5375
        %v5377 = vrot.slane %v5321, %v5376
        %v5378 = vcombine.low %v5328, %v5342
        %v5379 = vcombine.high %v5328, %v5342
        %v5380 = vcombine.low %v5335, %v5349
        %v5381 = vcombine.low %v5356, %v5370
        %v5382 = vcombine.high %v5356, %v5370
        %v5383 = vcombine.low %v5363, %v5377
        %v5385 = vunpack.c.l.s4 1966171168
        %v5386 = vunpack.c.0.s8 %v5385
        %v5387 = vlaneseq
        %v5388 = vshrl.u32 %v5387, 7
        %v5389 = vsub.s32 %v5386, %v5388
        %v5390 = vrot.slane %v5378, %v5389
        %v5392 = vunpack.c.l.s4 1966171168
        %v5393 = vunpack.c.0.s8 %v5392
        %v5394 = vlaneseq
        %v5395 = vshrl.u32 %v5394, 7
        %v5396 = vsub.s32 %v5393, %v5395
        %v5397 = vrot.slane %v5380, %v5396
        %v5399 = vunpack.c.l.s4 1966171168
        %v5400 = vunpack.c.0.s8 %v5399
        %v5401 = vlaneseq
        %v5402 = vshrl.u32 %v5401, 7
        %v5403 = vsub.s32 %v5400, %v5402
        %v5404 = vrot.slane %v5379, %v5403
        %v5406 = vunpack.c.l.s4 1966171168
        %v5407 = vunpack.c.0.s8 %v5406
        %v5408 = vlaneseq
        %v5409 = vshrl.u32 %v5408, 7
        %v5410 = vsub.s32 %v5407, %v5409
        %v5411 = vrot.slane %v5381, %v5410
        %v5413 = vunpack.c.l.s4 1966171168
        %v5414 = vunpack.c.0.s8 %v5413
        %v5415 = vlaneseq
        %v5416 = vshrl.u32 %v5415, 7
        %v5417 = vsub.s32 %v5414, %v5416
        %v5418 = vrot.slane %v5383, %v5417
        %v5420 = vunpack.c.l.s4 1966171168
        %v5421 = vunpack.c.0.s8 %v5420
        %v5422 = vlaneseq
        %v5423 = vshrl.u32 %v5422, 7
        %v5424 = vsub.s32 %v5421, %v5423
        %v5425 = vrot.slane %v5382, %v5424
        %v5426 = vcombine.low %v5390, %v5411
        %v5427 = vcombine.high %v5390, %v5411
        %v5428 = vcombine.low %v5397, %v5418
        %v5429 = vcombine.low %v5404, %v5425
        %v5430 = vcombine.high %v5404, %v5425
        %v5431 = vcombine.low %v2855, %v2859
        %v5432 = vcombine.high %v2855, %v2859
        %v5433 = vcombine.low %v2856, %v2860
        %v5434 = vcombine.high %v2856, %v2860
        %v5435 = vcombine.low %v2857, %v2861
        %v5436 = vcombine.high %v2857, %v2861
        %v5437 = vcombine.low %v2858, %v2862
        %v5438 = vcombine.high %v2858, %v2862
        %v5440 = vunpack.c.l.s4 1966171168
        %v5441 = vunpack.c.0.s8 %v5440
        %v5442 = vlaneseq
        %v5443 = vshrl.u32 %v5442, 7
        %v5444 = vsub.s32 %v5441, %v5443
        %v5445 = vrot.slane %v5431, %v5444
        %v5447 = vunpack.c.l.s4 1966171168
        %v5448 = vunpack.c.0.s8 %v5447
        %v5449 = vlaneseq
        %v5450 = vshrl.u32 %v5449, 7
        %v5451 = vsub.s32 %v5448, %v5450
        %v5452 = vrot.slane %v5432, %v5451
        %v5454 = vunpack.c.l.s4 1966171168
        %v5455 = vunpack.c.0.s8 %v5454
        %v5456 = vlaneseq
        %v5457 = vshrl.u32 %v5456, 7
        %v5458 = vsub.s32 %v5455, %v5457
        %v5459 = vrot.slane %v5433, %v5458
        %v5461 = vunpack.c.l.s4 1966171168
        %v5462 = vunpack.c.0.s8 %v5461
        %v5463 = vlaneseq
        %v5464 = vshrl.u32 %v5463, 7
        %v5465 = vsub.s32 %v5462, %v5464
        %v5466 = vrot.slane %v5434, %v5465
        %v5468 = vunpack.c.l.s4 1966171168
        %v5469 = vunpack.c.0.s8 %v5468
        %v5470 = vlaneseq
        %v5471 = vshrl.u32 %v5470, 7
        %v5472 = vsub.s32 %v5469, %v5471
        %v5473 = vrot.slane %v5435, %v5472
        %v5475 = vunpack.c.l.s4 1966171168
        %v5476 = vunpack.c.0.s8 %v5475
        %v5477 = vlaneseq
        %v5478 = vshrl.u32 %v5477, 7
        %v5479 = vsub.s32 %v5476, %v5478
        %v5480 = vrot.slane %v5436, %v5479
        %v5482 = vunpack.c.l.s4 1966171168
        %v5483 = vunpack.c.0.s8 %v5482
        %v5484 = vlaneseq
        %v5485 = vshrl.u32 %v5484, 7
        %v5486 = vsub.s32 %v5483, %v5485
        %v5487 = vrot.slane %v5437, %v5486
        %v5489 = vunpack.c.l.s4 1966171168
        %v5490 = vunpack.c.0.s8 %v5489
        %v5491 = vlaneseq
        %v5492 = vshrl.u32 %v5491, 7
        %v5493 = vsub.s32 %v5490, %v5492
        %v5494 = vrot.slane %v5438, %v5493
        %v5495 = vcombine.low %v5445, %v5459
        %v5496 = vcombine.high %v5445, %v5459
        %v5497 = vcombine.low %v5452, %v5466
        %v5498 = vcombine.low %v5473, %v5487
        %v5499 = vcombine.high %v5473, %v5487
        %v5500 = vcombine.low %v5480, %v5494
        %v5502 = vunpack.c.l.s4 1966171168
        %v5503 = vunpack.c.0.s8 %v5502
        %v5504 = vlaneseq
        %v5505 = vshrl.u32 %v5504, 7
        %v5506 = vsub.s32 %v5503, %v5505
        %v5507 = vrot.slane %v5495, %v5506
        %v5509 = vunpack.c.l.s4 1966171168
        %v5510 = vunpack.c.0.s8 %v5509
        %v5511 = vlaneseq
        %v5512 = vshrl.u32 %v5511, 7
        %v5513 = vsub.s32 %v5510, %v5512
        %v5514 = vrot.slane %v5497, %v5513
        %v5516 = vunpack.c.l.s4 1966171168
        %v5517 = vunpack.c.0.s8 %v5516
        %v5518 = vlaneseq
        %v5519 = vshrl.u32 %v5518, 7
        %v5520 = vsub.s32 %v5517, %v5519
        %v5521 = vrot.slane %v5496, %v5520
        %v5523 = vunpack.c.l.s4 1966171168
        %v5524 = vunpack.c.0.s8 %v5523
        %v5525 = vlaneseq
        %v5526 = vshrl.u32 %v5525, 7
        %v5527 = vsub.s32 %v5524, %v5526
        %v5528 = vrot.slane %v5498, %v5527
        %v5530 = vunpack.c.l.s4 1966171168
        %v5531 = vunpack.c.0.s8 %v5530
        %v5532 = vlaneseq
        %v5533 = vshrl.u32 %v5532, 7
        %v5534 = vsub.s32 %v5531, %v5533
        %v5535 = vrot.slane %v5500, %v5534
        %v5537 = vunpack.c.l.s4 1966171168
        %v5538 = vunpack.c.0.s8 %v5537
        %v5539 = vlaneseq
        %v5540 = vshrl.u32 %v5539, 7
        %v5541 = vsub.s32 %v5538, %v5540
        %v5542 = vrot.slane %v5499, %v5541
        %v5543 = vcombine.low %v5507, %v5528
        %v5544 = vcombine.high %v5507, %v5528
        %v5545 = vcombine.low %v5514, %v5535
        %v5546 = vcombine.low %v5521, %v5542
        %v5547 = vcombine.high %v5521, %v5542
        %v5548 = vcombine.low %v2901, %v3011
        %v5549 = vcombine.high %v2901, %v3011
        %v5550 = vcombine.low %v3015, %v3012
        %v5551 = vcombine.high %v3015, %v3012
        %v5552 = vcombine.low %v3016, %v3013
        %v5553 = vcombine.high %v3016, %v3013
        %v5554 = vcombine.low %v3017, %v3014
        %v5555 = vcombine.high %v3017, %v3014
        %v5557 = vunpack.c.l.s4 1966171168
        %v5558 = vunpack.c.0.s8 %v5557
        %v5559 = vlaneseq
        %v5560 = vshrl.u32 %v5559, 7
        %v5561 = vsub.s32 %v5558, %v5560
        %v5562 = vrot.slane %v5548, %v5561
        %v5564 = vunpack.c.l.s4 1966171168
        %v5565 = vunpack.c.0.s8 %v5564
        %v5566 = vlaneseq
        %v5567 = vshrl.u32 %v5566, 7
        %v5568 = vsub.s32 %v5565, %v5567
        %v5569 = vrot.slane %v5549, %v5568
        %v5571 = vunpack.c.l.s4 1966171168
        %v5572 = vunpack.c.0.s8 %v5571
        %v5573 = vlaneseq
        %v5574 = vshrl.u32 %v5573, 7
        %v5575 = vsub.s32 %v5572, %v5574
        %v5576 = vrot.slane %v5550, %v5575
        %v5578 = vunpack.c.l.s4 1966171168
        %v5579 = vunpack.c.0.s8 %v5578
        %v5580 = vlaneseq
        %v5581 = vshrl.u32 %v5580, 7
        %v5582 = vsub.s32 %v5579, %v5581
        %v5583 = vrot.slane %v5551, %v5582
        %v5585 = vunpack.c.l.s4 1966171168
        %v5586 = vunpack.c.0.s8 %v5585
        %v5587 = vlaneseq
        %v5588 = vshrl.u32 %v5587, 7
        %v5589 = vsub.s32 %v5586, %v5588
        %v5590 = vrot.slane %v5552, %v5589
        %v5592 = vunpack.c.l.s4 1966171168
        %v5593 = vunpack.c.0.s8 %v5592
        %v5594 = vlaneseq
        %v5595 = vshrl.u32 %v5594, 7
        %v5596 = vsub.s32 %v5593, %v5595
        %v5597 = vrot.slane %v5553, %v5596
        %v5599 = vunpack.c.l.s4 1966171168
        %v5600 = vunpack.c.0.s8 %v5599
        %v5601 = vlaneseq
        %v5602 = vshrl.u32 %v5601, 7
        %v5603 = vsub.s32 %v5600, %v5602
        %v5604 = vrot.slane %v5554, %v5603
        %v5606 = vunpack.c.l.s4 1966171168
        %v5607 = vunpack.c.0.s8 %v5606
        %v5608 = vlaneseq
        %v5609 = vshrl.u32 %v5608, 7
        %v5610 = vsub.s32 %v5607, %v5609
        %v5611 = vrot.slane %v5555, %v5610
        %v5612 = vcombine.low %v5562, %v5576
        %v5613 = vcombine.high %v5562, %v5576
        %v5614 = vcombine.low %v5569, %v5583
        %v5615 = vcombine.low %v5590, %v5604
        %v5616 = vcombine.high %v5590, %v5604
        %v5617 = vcombine.low %v5597, %v5611
        %v5619 = vunpack.c.l.s4 1966171168
        %v5620 = vunpack.c.0.s8 %v5619
        %v5621 = vlaneseq
        %v5622 = vshrl.u32 %v5621, 7
        %v5623 = vsub.s32 %v5620, %v5622
        %v5624 = vrot.slane %v5612, %v5623
        %v5626 = vunpack.c.l.s4 1966171168
        %v5627 = vunpack.c.0.s8 %v5626
        %v5628 = vlaneseq
        %v5629 = vshrl.u32 %v5628, 7
        %v5630 = vsub.s32 %v5627, %v5629
        %v5631 = vrot.slane %v5614, %v5630
        %v5633 = vunpack.c.l.s4 1966171168
        %v5634 = vunpack.c.0.s8 %v5633
        %v5635 = vlaneseq
        %v5636 = vshrl.u32 %v5635, 7
        %v5637 = vsub.s32 %v5634, %v5636
        %v5638 = vrot.slane %v5613, %v5637
        %v5640 = vunpack.c.l.s4 1966171168
        %v5641 = vunpack.c.0.s8 %v5640
        %v5642 = vlaneseq
        %v5643 = vshrl.u32 %v5642, 7
        %v5644 = vsub.s32 %v5641, %v5643
        %v5645 = vrot.slane %v5615, %v5644
        %v5647 = vunpack.c.l.s4 1966171168
        %v5648 = vunpack.c.0.s8 %v5647
        %v5649 = vlaneseq
        %v5650 = vshrl.u32 %v5649, 7
        %v5651 = vsub.s32 %v5648, %v5650
        %v5652 = vrot.slane %v5617, %v5651
        %v5654 = vunpack.c.l.s4 1966171168
        %v5655 = vunpack.c.0.s8 %v5654
        %v5656 = vlaneseq
        %v5657 = vshrl.u32 %v5656, 7
        %v5658 = vsub.s32 %v5655, %v5657
        %v5659 = vrot.slane %v5616, %v5658
        %v5660 = vcombine.low %v5624, %v5645
        %v5661 = vcombine.high %v5624, %v5645
        %v5662 = vcombine.low %v5631, %v5652
        %v5663 = vcombine.low %v5638, %v5659
        %v5664 = vcombine.high %v5638, %v5659
        %v5665 = vcombine.low %v3018, %v3057
        %v5666 = vcombine.high %v3018, %v3057
        %v5667 = vcombine.low %v3167, %v3171
        %v5668 = vcombine.high %v3167, %v3171
        %v5669 = vcombine.low %v3168, %v3172
        %v5670 = vcombine.high %v3168, %v3172
        %v5671 = vcombine.low %v3169, %v3173
        %v5672 = vcombine.high %v3169, %v3173
        %v5674 = vunpack.c.l.s4 1966171168
        %v5675 = vunpack.c.0.s8 %v5674
        %v5676 = vlaneseq
        %v5677 = vshrl.u32 %v5676, 7
        %v5678 = vsub.s32 %v5675, %v5677
        %v5679 = vrot.slane %v5665, %v5678
        %v5681 = vunpack.c.l.s4 1966171168
        %v5682 = vunpack.c.0.s8 %v5681
        %v5683 = vlaneseq
        %v5684 = vshrl.u32 %v5683, 7
        %v5685 = vsub.s32 %v5682, %v5684
        %v5686 = vrot.slane %v5666, %v5685
        %v5688 = vunpack.c.l.s4 1966171168
        %v5689 = vunpack.c.0.s8 %v5688
        %v5690 = vlaneseq
        %v5691 = vshrl.u32 %v5690, 7
        %v5692 = vsub.s32 %v5689, %v5691
        %v5693 = vrot.slane %v5667, %v5692
        %v5695 = vunpack.c.l.s4 1966171168
        %v5696 = vunpack.c.0.s8 %v5695
        %v5697 = vlaneseq
        %v5698 = vshrl.u32 %v5697, 7
        %v5699 = vsub.s32 %v5696, %v5698
        %v5700 = vrot.slane %v5668, %v5699
        %v5702 = vunpack.c.l.s4 1966171168
        %v5703 = vunpack.c.0.s8 %v5702
        %v5704 = vlaneseq
        %v5705 = vshrl.u32 %v5704, 7
        %v5706 = vsub.s32 %v5703, %v5705
        %v5707 = vrot.slane %v5669, %v5706
        %v5709 = vunpack.c.l.s4 1966171168
        %v5710 = vunpack.c.0.s8 %v5709
        %v5711 = vlaneseq
        %v5712 = vshrl.u32 %v5711, 7
        %v5713 = vsub.s32 %v5710, %v5712
        %v5714 = vrot.slane %v5670, %v5713
        %v5716 = vunpack.c.l.s4 1966171168
        %v5717 = vunpack.c.0.s8 %v5716
        %v5718 = vlaneseq
        %v5719 = vshrl.u32 %v5718, 7
        %v5720 = vsub.s32 %v5717, %v5719
        %v5721 = vrot.slane %v5671, %v5720
        %v5723 = vunpack.c.l.s4 1966171168
        %v5724 = vunpack.c.0.s8 %v5723
        %v5725 = vlaneseq
        %v5726 = vshrl.u32 %v5725, 7
        %v5727 = vsub.s32 %v5724, %v5726
        %v5728 = vrot.slane %v5672, %v5727
        %v5729 = vcombine.low %v5679, %v5693
        %v5730 = vcombine.high %v5679, %v5693
        %v5731 = vcombine.low %v5686, %v5700
        %v5732 = vcombine.low %v5707, %v5721
        %v5733 = vcombine.high %v5707, %v5721
        %v5734 = vcombine.low %v5714, %v5728
        %v5736 = vunpack.c.l.s4 1966171168
        %v5737 = vunpack.c.0.s8 %v5736
        %v5738 = vlaneseq
        %v5739 = vshrl.u32 %v5738, 7
        %v5740 = vsub.s32 %v5737, %v5739
        %v5741 = vrot.slane %v5729, %v5740
        %v5743 = vunpack.c.l.s4 1966171168
        %v5744 = vunpack.c.0.s8 %v5743
        %v5745 = vlaneseq
        %v5746 = vshrl.u32 %v5745, 7
        %v5747 = vsub.s32 %v5744, %v5746
        %v5748 = vrot.slane %v5731, %v5747
        %v5750 = vunpack.c.l.s4 1966171168
        %v5751 = vunpack.c.0.s8 %v5750
        %v5752 = vlaneseq
        %v5753 = vshrl.u32 %v5752, 7
        %v5754 = vsub.s32 %v5751, %v5753
        %v5755 = vrot.slane %v5730, %v5754
        %v5757 = vunpack.c.l.s4 1966171168
        %v5758 = vunpack.c.0.s8 %v5757
        %v5759 = vlaneseq
        %v5760 = vshrl.u32 %v5759, 7
        %v5761 = vsub.s32 %v5758, %v5760
        %v5762 = vrot.slane %v5732, %v5761
        %v5764 = vunpack.c.l.s4 1966171168
        %v5765 = vunpack.c.0.s8 %v5764
        %v5766 = vlaneseq
        %v5767 = vshrl.u32 %v5766, 7
        %v5768 = vsub.s32 %v5765, %v5767
        %v5769 = vrot.slane %v5734, %v5768
        %v5771 = vunpack.c.l.s4 1966171168
        %v5772 = vunpack.c.0.s8 %v5771
        %v5773 = vlaneseq
        %v5774 = vshrl.u32 %v5773, 7
        %v5775 = vsub.s32 %v5772, %v5774
        %v5776 = vrot.slane %v5733, %v5775
        %v5777 = vcombine.low %v5741, %v5762
        %v5778 = vcombine.high %v5741, %v5762
        %v5779 = vcombine.low %v5748, %v5769
        %v5780 = vcombine.low %v5755, %v5776
        %v5781 = vcombine.high %v5755, %v5776
        %v5782 = vcombine.low %v3170, %v3174
        %v5783 = vcombine.high %v3170, %v3174
        %v5784 = vcombine.low %v3213, %v3323
        %v5785 = vcombine.high %v3213, %v3323
        %v5786 = vcombine.low %v3327, %v3324
        %v5787 = vcombine.high %v3327, %v3324
        %v5788 = vcombine.low %v3328, %v3325
        %v5789 = vcombine.high %v3328, %v3325
        %v5791 = vunpack.c.l.s4 1966171168
        %v5792 = vunpack.c.0.s8 %v5791
        %v5793 = vlaneseq
        %v5794 = vshrl.u32 %v5793, 7
        %v5795 = vsub.s32 %v5792, %v5794
        %v5796 = vrot.slane %v5782, %v5795
        %v5798 = vunpack.c.l.s4 1966171168
        %v5799 = vunpack.c.0.s8 %v5798
        %v5800 = vlaneseq
        %v5801 = vshrl.u32 %v5800, 7
        %v5802 = vsub.s32 %v5799, %v5801
        %v5803 = vrot.slane %v5783, %v5802
        %v5805 = vunpack.c.l.s4 1966171168
        %v5806 = vunpack.c.0.s8 %v5805
        %v5807 = vlaneseq
        %v5808 = vshrl.u32 %v5807, 7
        %v5809 = vsub.s32 %v5806, %v5808
        %v5810 = vrot.slane %v5784, %v5809
        %v5812 = vunpack.c.l.s4 1966171168
        %v5813 = vunpack.c.0.s8 %v5812
        %v5814 = vlaneseq
        %v5815 = vshrl.u32 %v5814, 7
        %v5816 = vsub.s32 %v5813, %v5815
        %v5817 = vrot.slane %v5785, %v5816
        %v5819 = vunpack.c.l.s4 1966171168
        %v5820 = vunpack.c.0.s8 %v5819
        %v5821 = vlaneseq
        %v5822 = vshrl.u32 %v5821, 7
        %v5823 = vsub.s32 %v5820, %v5822
        %v5824 = vrot.slane %v5786, %v5823
        %v5826 = vunpack.c.l.s4 1966171168
        %v5827 = vunpack.c.0.s8 %v5826
        %v5828 = vlaneseq
        %v5829 = vshrl.u32 %v5828, 7
        %v5830 = vsub.s32 %v5827, %v5829
        %v5831 = vrot.slane %v5787, %v5830
        %v5833 = vunpack.c.l.s4 1966171168
        %v5834 = vunpack.c.0.s8 %v5833
        %v5835 = vlaneseq
        %v5836 = vshrl.u32 %v5835, 7
        %v5837 = vsub.s32 %v5834, %v5836
        %v5838 = vrot.slane %v5788, %v5837
        %v5840 = vunpack.c.l.s4 1966171168
        %v5841 = vunpack.c.0.s8 %v5840
        %v5842 = vlaneseq
        %v5843 = vshrl.u32 %v5842, 7
        %v5844 = vsub.s32 %v5841, %v5843
        %v5845 = vrot.slane %v5789, %v5844
        %v5846 = vcombine.low %v5796, %v5810
        %v5847 = vcombine.high %v5796, %v5810
        %v5848 = vcombine.low %v5803, %v5817
        %v5849 = vcombine.low %v5824, %v5838
        %v5850 = vcombine.high %v5824, %v5838
        %v5851 = vcombine.low %v5831, %v5845
        %v5853 = vunpack.c.l.s4 1966171168
        %v5854 = vunpack.c.0.s8 %v5853
        %v5855 = vlaneseq
        %v5856 = vshrl.u32 %v5855, 7
        %v5857 = vsub.s32 %v5854, %v5856
        %v5858 = vrot.slane %v5846, %v5857
        %v5860 = vunpack.c.l.s4 1966171168
        %v5861 = vunpack.c.0.s8 %v5860
        %v5862 = vlaneseq
        %v5863 = vshrl.u32 %v5862, 7
        %v5864 = vsub.s32 %v5861, %v5863
        %v5865 = vrot.slane %v5848, %v5864
        %v5867 = vunpack.c.l.s4 1966171168
        %v5868 = vunpack.c.0.s8 %v5867
        %v5869 = vlaneseq
        %v5870 = vshrl.u32 %v5869, 7
        %v5871 = vsub.s32 %v5868, %v5870
        %v5872 = vrot.slane %v5847, %v5871
        %v5874 = vunpack.c.l.s4 1966171168
        %v5875 = vunpack.c.0.s8 %v5874
        %v5876 = vlaneseq
        %v5877 = vshrl.u32 %v5876, 7
        %v5878 = vsub.s32 %v5875, %v5877
        %v5879 = vrot.slane %v5849, %v5878
        %v5881 = vunpack.c.l.s4 1966171168
        %v5882 = vunpack.c.0.s8 %v5881
        %v5883 = vlaneseq
        %v5884 = vshrl.u32 %v5883, 7
        %v5885 = vsub.s32 %v5882, %v5884
        %v5886 = vrot.slane %v5851, %v5885
        %v5888 = vunpack.c.l.s4 1966171168
        %v5889 = vunpack.c.0.s8 %v5888
        %v5890 = vlaneseq
        %v5891 = vshrl.u32 %v5890, 7
        %v5892 = vsub.s32 %v5889, %v5891
        %v5893 = vrot.slane %v5850, %v5892
        %v5894 = vcombine.low %v5858, %v5879
        %v5895 = vcombine.high %v5858, %v5879
        %v5896 = vcombine.low %v5865, %v5886
        %v5897 = vcombine.low %v5872, %v5893
        %v5898 = vcombine.high %v5872, %v5893
        %v5899 = vcombine.low %v3329, %v3326
        %v5900 = vcombine.high %v3329, %v3326
        %v5901 = vcombine.low %v3330, %v3369
        %v5902 = vcombine.high %v3330, %v3369
        %v5903 = vcombine.low %v3479, %v3483
        %v5904 = vcombine.high %v3479, %v3483
        %v5905 = vcombine.low %v3480, %v3484
        %v5906 = vcombine.high %v3480, %v3484
        %v5908 = vunpack.c.l.s4 1966171168
        %v5909 = vunpack.c.0.s8 %v5908
        %v5910 = vlaneseq
        %v5911 = vshrl.u32 %v5910, 7
        %v5912 = vsub.s32 %v5909, %v5911
        %v5913 = vrot.slane %v5899, %v5912
        %v5915 = vunpack.c.l.s4 1966171168
        %v5916 = vunpack.c.0.s8 %v5915
        %v5917 = vlaneseq
        %v5918 = vshrl.u32 %v5917, 7
        %v5919 = vsub.s32 %v5916, %v5918
        %v5920 = vrot.slane %v5900, %v5919
        %v5922 = vunpack.c.l.s4 1966171168
        %v5923 = vunpack.c.0.s8 %v5922
        %v5924 = vlaneseq
        %v5925 = vshrl.u32 %v5924, 7
        %v5926 = vsub.s32 %v5923, %v5925
        %v5927 = vrot.slane %v5901, %v5926
        %v5929 = vunpack.c.l.s4 1966171168
        %v5930 = vunpack.c.0.s8 %v5929
        %v5931 = vlaneseq
        %v5932 = vshrl.u32 %v5931, 7
        %v5933 = vsub.s32 %v5930, %v5932
        %v5934 = vrot.slane %v5902, %v5933
        %v5936 = vunpack.c.l.s4 1966171168
        %v5937 = vunpack.c.0.s8 %v5936
        %v5938 = vlaneseq
        %v5939 = vshrl.u32 %v5938, 7
        %v5940 = vsub.s32 %v5937, %v5939
        %v5941 = vrot.slane %v5903, %v5940
        %v5943 = vunpack.c.l.s4 1966171168
        %v5944 = vunpack.c.0.s8 %v5943
        %v5945 = vlaneseq
        %v5946 = vshrl.u32 %v5945, 7
        %v5947 = vsub.s32 %v5944, %v5946
        %v5948 = vrot.slane %v5904, %v5947
        %v5950 = vunpack.c.l.s4 1966171168
        %v5951 = vunpack.c.0.s8 %v5950
        %v5952 = vlaneseq
        %v5953 = vshrl.u32 %v5952, 7
        %v5954 = vsub.s32 %v5951, %v5953
        %v5955 = vrot.slane %v5905, %v5954
        %v5957 = vunpack.c.l.s4 1966171168
        %v5958 = vunpack.c.0.s8 %v5957
        %v5959 = vlaneseq
        %v5960 = vshrl.u32 %v5959, 7
        %v5961 = vsub.s32 %v5958, %v5960
        %v5962 = vrot.slane %v5906, %v5961
        %v5963 = vcombine.low %v5913, %v5927
        %v5964 = vcombine.high %v5913, %v5927
        %v5965 = vcombine.low %v5920, %v5934
        %v5966 = vcombine.low %v5941, %v5955
        %v5967 = vcombine.high %v5941, %v5955
        %v5968 = vcombine.low %v5948, %v5962
        %v5970 = vunpack.c.l.s4 1966171168
        %v5971 = vunpack.c.0.s8 %v5970
        %v5972 = vlaneseq
        %v5973 = vshrl.u32 %v5972, 7
        %v5974 = vsub.s32 %v5971, %v5973
        %v5975 = vrot.slane %v5963, %v5974
        %v5977 = vunpack.c.l.s4 1966171168
        %v5978 = vunpack.c.0.s8 %v5977
        %v5979 = vlaneseq
        %v5980 = vshrl.u32 %v5979, 7
        %v5981 = vsub.s32 %v5978, %v5980
        %v5982 = vrot.slane %v5965, %v5981
        %v5984 = vunpack.c.l.s4 1966171168
        %v5985 = vunpack.c.0.s8 %v5984
        %v5986 = vlaneseq
        %v5987 = vshrl.u32 %v5986, 7
        %v5988 = vsub.s32 %v5985, %v5987
        %v5989 = vrot.slane %v5964, %v5988
        %v5991 = vunpack.c.l.s4 1966171168
        %v5992 = vunpack.c.0.s8 %v5991
        %v5993 = vlaneseq
        %v5994 = vshrl.u32 %v5993, 7
        %v5995 = vsub.s32 %v5992, %v5994
        %v5996 = vrot.slane %v5966, %v5995
        %v5998 = vunpack.c.l.s4 1966171168
        %v5999 = vunpack.c.0.s8 %v5998
        %v6000 = vlaneseq
        %v6001 = vshrl.u32 %v6000, 7
        %v6002 = vsub.s32 %v5999, %v6001
        %v6003 = vrot.slane %v5968, %v6002
        %v6005 = vunpack.c.l.s4 1966171168
        %v6006 = vunpack.c.0.s8 %v6005
        %v6007 = vlaneseq
        %v6008 = vshrl.u32 %v6007, 7
        %v6009 = vsub.s32 %v6006, %v6008
        %v6010 = vrot.slane %v5967, %v6009
        %v6011 = vcombine.low %v5975, %v5996
        %v6012 = vcombine.high %v5975, %v5996
        %v6013 = vcombine.low %v5982, %v6003
        %v6014 = vcombine.low %v5989, %v6010
        %v6015 = vcombine.high %v5989, %v6010
        %v6016 = vcombine.low %v3481, %v3485
        %v6017 = vcombine.high %v3481, %v3485
        %v6018 = vcombine.low %v3482, %v3486
        %v6019 = vcombine.high %v3482, %v3486
        %v6020 = vcombine.low %v3525, %v3635
        %v6021 = vcombine.high %v3525, %v3635
        %v6022 = vcombine.low %v3639, %v3636
        %v6023 = vcombine.high %v3639, %v3636
        %v6025 = vunpack.c.l.s4 1966171168
        %v6026 = vunpack.c.0.s8 %v6025
        %v6027 = vlaneseq
        %v6028 = vshrl.u32 %v6027, 7
        %v6029 = vsub.s32 %v6026, %v6028
        %v6030 = vrot.slane %v6016, %v6029
        %v6032 = vunpack.c.l.s4 1966171168
        %v6033 = vunpack.c.0.s8 %v6032
        %v6034 = vlaneseq
        %v6035 = vshrl.u32 %v6034, 7
        %v6036 = vsub.s32 %v6033, %v6035
        %v6037 = vrot.slane %v6017, %v6036
        %v6039 = vunpack.c.l.s4 1966171168
        %v6040 = vunpack.c.0.s8 %v6039
        %v6041 = vlaneseq
        %v6042 = vshrl.u32 %v6041, 7
        %v6043 = vsub.s32 %v6040, %v6042
        %v6044 = vrot.slane %v6018, %v6043
        %v6046 = vunpack.c.l.s4 1966171168
        %v6047 = vunpack.c.0.s8 %v6046
        %v6048 = vlaneseq
        %v6049 = vshrl.u32 %v6048, 7
        %v6050 = vsub.s32 %v6047, %v6049
        %v6051 = vrot.slane %v6019, %v6050
        %v6053 = vunpack.c.l.s4 1966171168
        %v6054 = vunpack.c.0.s8 %v6053
        %v6055 = vlaneseq
        %v6056 = vshrl.u32 %v6055, 7
        %v6057 = vsub.s32 %v6054, %v6056
        %v6058 = vrot.slane %v6020, %v6057
        %v6060 = vunpack.c.l.s4 1966171168
        %v6061 = vunpack.c.0.s8 %v6060
        %v6062 = vlaneseq
        %v6063 = vshrl.u32 %v6062, 7
        %v6064 = vsub.s32 %v6061, %v6063
        %v6065 = vrot.slane %v6021, %v6064
        %v6067 = vunpack.c.l.s4 1966171168
        %v6068 = vunpack.c.0.s8 %v6067
        %v6069 = vlaneseq
        %v6070 = vshrl.u32 %v6069, 7
        %v6071 = vsub.s32 %v6068, %v6070
        %v6072 = vrot.slane %v6022, %v6071
        %v6074 = vunpack.c.l.s4 1966171168
        %v6075 = vunpack.c.0.s8 %v6074
        %v6076 = vlaneseq
        %v6077 = vshrl.u32 %v6076, 7
        %v6078 = vsub.s32 %v6075, %v6077
        %v6079 = vrot.slane %v6023, %v6078
        %v6080 = vcombine.low %v6030, %v6044
        %v6081 = vcombine.high %v6030, %v6044
        %v6082 = vcombine.low %v6037, %v6051
        %v6083 = vcombine.low %v6058, %v6072
        %v6084 = vcombine.high %v6058, %v6072
        %v6085 = vcombine.low %v6065, %v6079
        %v6087 = vunpack.c.l.s4 1966171168
        %v6088 = vunpack.c.0.s8 %v6087
        %v6089 = vlaneseq
        %v6090 = vshrl.u32 %v6089, 7
        %v6091 = vsub.s32 %v6088, %v6090
        %v6092 = vrot.slane %v6080, %v6091
        %v6094 = vunpack.c.l.s4 1966171168
        %v6095 = vunpack.c.0.s8 %v6094
        %v6096 = vlaneseq
        %v6097 = vshrl.u32 %v6096, 7
        %v6098 = vsub.s32 %v6095, %v6097
        %v6099 = vrot.slane %v6082, %v6098
        %v6101 = vunpack.c.l.s4 1966171168
        %v6102 = vunpack.c.0.s8 %v6101
        %v6103 = vlaneseq
        %v6104 = vshrl.u32 %v6103, 7
        %v6105 = vsub.s32 %v6102, %v6104
        %v6106 = vrot.slane %v6081, %v6105
        %v6108 = vunpack.c.l.s4 1966171168
        %v6109 = vunpack.c.0.s8 %v6108
        %v6110 = vlaneseq
        %v6111 = vshrl.u32 %v6110, 7
        %v6112 = vsub.s32 %v6109, %v6111
        %v6113 = vrot.slane %v6083, %v6112
        %v6115 = vunpack.c.l.s4 1966171168
        %v6116 = vunpack.c.0.s8 %v6115
        %v6117 = vlaneseq
        %v6118 = vshrl.u32 %v6117, 7
        %v6119 = vsub.s32 %v6116, %v6118
        %v6120 = vrot.slane %v6085, %v6119
        %v6122 = vunpack.c.l.s4 1966171168
        %v6123 = vunpack.c.0.s8 %v6122
        %v6124 = vlaneseq
        %v6125 = vshrl.u32 %v6124, 7
        %v6126 = vsub.s32 %v6123, %v6125
        %v6127 = vrot.slane %v6084, %v6126
        %v6128 = vcombine.low %v6092, %v6113
        %v6129 = vcombine.high %v6092, %v6113
        %v6130 = vcombine.low %v6099, %v6120
        %v6131 = vcombine.low %v6106, %v6127
        %v6132 = vcombine.high %v6106, %v6127
        %v6133 = vcombine.low %v3640, %v3637
        %v6134 = vcombine.high %v3640, %v3637
        %v6135 = vcombine.low %v3641, %v3638
        %v6136 = vcombine.high %v3641, %v3638
        %v6137 = vcombine.low %v3642, %v3681
        %v6138 = vcombine.high %v3642, %v3681
        %v6139 = vcombine.low %v3791, %v3795
        %v6140 = vcombine.high %v3791, %v3795
        %v6142 = vunpack.c.l.s4 1966171168
        %v6143 = vunpack.c.0.s8 %v6142
        %v6144 = vlaneseq
        %v6145 = vshrl.u32 %v6144, 7
        %v6146 = vsub.s32 %v6143, %v6145
        %v6147 = vrot.slane %v6133, %v6146
        %v6149 = vunpack.c.l.s4 1966171168
        %v6150 = vunpack.c.0.s8 %v6149
        %v6151 = vlaneseq
        %v6152 = vshrl.u32 %v6151, 7
        %v6153 = vsub.s32 %v6150, %v6152
        %v6154 = vrot.slane %v6134, %v6153
        %v6156 = vunpack.c.l.s4 1966171168
        %v6157 = vunpack.c.0.s8 %v6156
        %v6158 = vlaneseq
        %v6159 = vshrl.u32 %v6158, 7
        %v6160 = vsub.s32 %v6157, %v6159
        %v6161 = vrot.slane %v6135, %v6160
        %v6163 = vunpack.c.l.s4 1966171168
        %v6164 = vunpack.c.0.s8 %v6163
        %v6165 = vlaneseq
        %v6166 = vshrl.u32 %v6165, 7
        %v6167 = vsub.s32 %v6164, %v6166
        %v6168 = vrot.slane %v6136, %v6167
        %v6170 = vunpack.c.l.s4 1966171168
        %v6171 = vunpack.c.0.s8 %v6170
        %v6172 = vlaneseq
        %v6173 = vshrl.u32 %v6172, 7
        %v6174 = vsub.s32 %v6171, %v6173
        %v6175 = vrot.slane %v6137, %v6174
        %v6177 = vunpack.c.l.s4 1966171168
        %v6178 = vunpack.c.0.s8 %v6177
        %v6179 = vlaneseq
        %v6180 = vshrl.u32 %v6179, 7
        %v6181 = vsub.s32 %v6178, %v6180
        %v6182 = vrot.slane %v6138, %v6181
        %v6184 = vunpack.c.l.s4 1966171168
        %v6185 = vunpack.c.0.s8 %v6184
        %v6186 = vlaneseq
        %v6187 = vshrl.u32 %v6186, 7
        %v6188 = vsub.s32 %v6185, %v6187
        %v6189 = vrot.slane %v6139, %v6188
        %v6191 = vunpack.c.l.s4 1966171168
        %v6192 = vunpack.c.0.s8 %v6191
        %v6193 = vlaneseq
        %v6194 = vshrl.u32 %v6193, 7
        %v6195 = vsub.s32 %v6192, %v6194
        %v6196 = vrot.slane %v6140, %v6195
        %v6197 = vcombine.low %v6147, %v6161
        %v6198 = vcombine.high %v6147, %v6161
        %v6199 = vcombine.low %v6154, %v6168
        %v6200 = vcombine.low %v6175, %v6189
        %v6201 = vcombine.high %v6175, %v6189
        %v6202 = vcombine.low %v6182, %v6196
        %v6204 = vunpack.c.l.s4 1966171168
        %v6205 = vunpack.c.0.s8 %v6204
        %v6206 = vlaneseq
        %v6207 = vshrl.u32 %v6206, 7
        %v6208 = vsub.s32 %v6205, %v6207
        %v6209 = vrot.slane %v6197, %v6208
        %v6211 = vunpack.c.l.s4 1966171168
        %v6212 = vunpack.c.0.s8 %v6211
        %v6213 = vlaneseq
        %v6214 = vshrl.u32 %v6213, 7
        %v6215 = vsub.s32 %v6212, %v6214
        %v6216 = vrot.slane %v6199, %v6215
        %v6218 = vunpack.c.l.s4 1966171168
        %v6219 = vunpack.c.0.s8 %v6218
        %v6220 = vlaneseq
        %v6221 = vshrl.u32 %v6220, 7
        %v6222 = vsub.s32 %v6219, %v6221
        %v6223 = vrot.slane %v6198, %v6222
        %v6225 = vunpack.c.l.s4 1966171168
        %v6226 = vunpack.c.0.s8 %v6225
        %v6227 = vlaneseq
        %v6228 = vshrl.u32 %v6227, 7
        %v6229 = vsub.s32 %v6226, %v6228
        %v6230 = vrot.slane %v6200, %v6229
        %v6232 = vunpack.c.l.s4 1966171168
        %v6233 = vunpack.c.0.s8 %v6232
        %v6234 = vlaneseq
        %v6235 = vshrl.u32 %v6234, 7
        %v6236 = vsub.s32 %v6233, %v6235
        %v6237 = vrot.slane %v6202, %v6236
        %v6239 = vunpack.c.l.s4 1966171168
        %v6240 = vunpack.c.0.s8 %v6239
        %v6241 = vlaneseq
        %v6242 = vshrl.u32 %v6241, 7
        %v6243 = vsub.s32 %v6240, %v6242
        %v6244 = vrot.slane %v6201, %v6243
        %v6245 = vcombine.low %v6209, %v6230
        %v6246 = vcombine.high %v6209, %v6230
        %v6247 = vcombine.low %v6216, %v6237
        %v6248 = vcombine.low %v6223, %v6244
        %v6249 = vcombine.high %v6223, %v6244
        %v6250 = vcombine.low %v3792, %v3796
        %v6251 = vcombine.high %v3792, %v3796
        %v6252 = vcombine.low %v3793, %v3797
        %v6253 = vcombine.high %v3793, %v3797
        %v6254 = vcombine.low %v3794, %v3798
        %v6255 = vcombine.high %v3794, %v3798
        %v6256 = vcombine.low %v3837, %v3947
        %v6257 = vcombine.high %v3837, %v3947
        %v6259 = vunpack.c.l.s4 1966171168
        %v6260 = vunpack.c.0.s8 %v6259
        %v6261 = vlaneseq
        %v6262 = vshrl.u32 %v6261, 7
        %v6263 = vsub.s32 %v6260, %v6262
        %v6264 = vrot.slane %v6250, %v6263
        %v6266 = vunpack.c.l.s4 1966171168
        %v6267 = vunpack.c.0.s8 %v6266
        %v6268 = vlaneseq
        %v6269 = vshrl.u32 %v6268, 7
        %v6270 = vsub.s32 %v6267, %v6269
        %v6271 = vrot.slane %v6251, %v6270
        %v6273 = vunpack.c.l.s4 1966171168
        %v6274 = vunpack.c.0.s8 %v6273
        %v6275 = vlaneseq
        %v6276 = vshrl.u32 %v6275, 7
        %v6277 = vsub.s32 %v6274, %v6276
        %v6278 = vrot.slane %v6252, %v6277
        %v6280 = vunpack.c.l.s4 1966171168
        %v6281 = vunpack.c.0.s8 %v6280
        %v6282 = vlaneseq
        %v6283 = vshrl.u32 %v6282, 7
        %v6284 = vsub.s32 %v6281, %v6283
        %v6285 = vrot.slane %v6253, %v6284
        %v6287 = vunpack.c.l.s4 1966171168
        %v6288 = vunpack.c.0.s8 %v6287
        %v6289 = vlaneseq
        %v6290 = vshrl.u32 %v6289, 7
        %v6291 = vsub.s32 %v6288, %v6290
        %v6292 = vrot.slane %v6254, %v6291
        %v6294 = vunpack.c.l.s4 1966171168
        %v6295 = vunpack.c.0.s8 %v6294
        %v6296 = vlaneseq
        %v6297 = vshrl.u32 %v6296, 7
        %v6298 = vsub.s32 %v6295, %v6297
        %v6299 = vrot.slane %v6255, %v6298
        %v6301 = vunpack.c.l.s4 1966171168
        %v6302 = vunpack.c.0.s8 %v6301
        %v6303 = vlaneseq
        %v6304 = vshrl.u32 %v6303, 7
        %v6305 = vsub.s32 %v6302, %v6304
        %v6306 = vrot.slane %v6256, %v6305
        %v6308 = vunpack.c.l.s4 1966171168
        %v6309 = vunpack.c.0.s8 %v6308
        %v6310 = vlaneseq
        %v6311 = vshrl.u32 %v6310, 7
        %v6312 = vsub.s32 %v6309, %v6311
        %v6313 = vrot.slane %v6257, %v6312
        %v6314 = vcombine.low %v6264, %v6278
        %v6315 = vcombine.high %v6264, %v6278
        %v6316 = vcombine.low %v6271, %v6285
        %v6317 = vcombine.low %v6292, %v6306
        %v6318 = vcombine.high %v6292, %v6306
        %v6319 = vcombine.low %v6299, %v6313
        %v6321 = vunpack.c.l.s4 1966171168
        %v6322 = vunpack.c.0.s8 %v6321
        %v6323 = vlaneseq
        %v6324 = vshrl.u32 %v6323, 7
        %v6325 = vsub.s32 %v6322, %v6324
        %v6326 = vrot.slane %v6314, %v6325
        %v6328 = vunpack.c.l.s4 1966171168
        %v6329 = vunpack.c.0.s8 %v6328
        %v6330 = vlaneseq
        %v6331 = vshrl.u32 %v6330, 7
        %v6332 = vsub.s32 %v6329, %v6331
        %v6333 = vrot.slane %v6316, %v6332
        %v6335 = vunpack.c.l.s4 1966171168
        %v6336 = vunpack.c.0.s8 %v6335
        %v6337 = vlaneseq
        %v6338 = vshrl.u32 %v6337, 7
        %v6339 = vsub.s32 %v6336, %v6338
        %v6340 = vrot.slane %v6315, %v6339
        %v6342 = vunpack.c.l.s4 1966171168
        %v6343 = vunpack.c.0.s8 %v6342
        %v6344 = vlaneseq
        %v6345 = vshrl.u32 %v6344, 7
        %v6346 = vsub.s32 %v6343, %v6345
        %v6347 = vrot.slane %v6317, %v6346
        %v6349 = vunpack.c.l.s4 1966171168
        %v6350 = vunpack.c.0.s8 %v6349
        %v6351 = vlaneseq
        %v6352 = vshrl.u32 %v6351, 7
        %v6353 = vsub.s32 %v6350, %v6352
        %v6354 = vrot.slane %v6319, %v6353
        %v6356 = vunpack.c.l.s4 1966171168
        %v6357 = vunpack.c.0.s8 %v6356
        %v6358 = vlaneseq
        %v6359 = vshrl.u32 %v6358, 7
        %v6360 = vsub.s32 %v6357, %v6359
        %v6361 = vrot.slane %v6318, %v6360
        %v6362 = vcombine.low %v6326, %v6347
        %v6363 = vcombine.high %v6326, %v6347
        %v6364 = vcombine.low %v6333, %v6354
        %v6365 = vcombine.low %v6340, %v6361
        %v6366 = vcombine.high %v6340, %v6361
        %v6367 = vcombine.low %v3951, %v3948
        %v6368 = vcombine.high %v3951, %v3948
        %v6369 = vcombine.low %v3952, %v3949
        %v6370 = vcombine.high %v3952, %v3949
        %v6371 = vcombine.low %v3953, %v3950
        %v6372 = vcombine.high %v3953, %v3950
        %v6373 = vcombine.low %v3954, %v3993
        %v6374 = vcombine.high %v3954, %v3993
        %v6376 = vunpack.c.l.s4 1966171168
        %v6377 = vunpack.c.0.s8 %v6376
        %v6378 = vlaneseq
        %v6379 = vshrl.u32 %v6378, 7
        %v6380 = vsub.s32 %v6377, %v6379
        %v6381 = vrot.slane %v6367, %v6380
        %v6383 = vunpack.c.l.s4 1966171168
        %v6384 = vunpack.c.0.s8 %v6383
        %v6385 = vlaneseq
        %v6386 = vshrl.u32 %v6385, 7
        %v6387 = vsub.s32 %v6384, %v6386
        %v6388 = vrot.slane %v6368, %v6387
        %v6390 = vunpack.c.l.s4 1966171168
        %v6391 = vunpack.c.0.s8 %v6390
        %v6392 = vlaneseq
        %v6393 = vshrl.u32 %v6392, 7
        %v6394 = vsub.s32 %v6391, %v6393
        %v6395 = vrot.slane %v6369, %v6394
        %v6397 = vunpack.c.l.s4 1966171168
        %v6398 = vunpack.c.0.s8 %v6397
        %v6399 = vlaneseq
        %v6400 = vshrl.u32 %v6399, 7
        %v6401 = vsub.s32 %v6398, %v6400
        %v6402 = vrot.slane %v6370, %v6401
        %v6404 = vunpack.c.l.s4 1966171168
        %v6405 = vunpack.c.0.s8 %v6404
        %v6406 = vlaneseq
        %v6407 = vshrl.u32 %v6406, 7
        %v6408 = vsub.s32 %v6405, %v6407
        %v6409 = vrot.slane %v6371, %v6408
        %v6411 = vunpack.c.l.s4 1966171168
        %v6412 = vunpack.c.0.s8 %v6411
        %v6413 = vlaneseq
        %v6414 = vshrl.u32 %v6413, 7
        %v6415 = vsub.s32 %v6412, %v6414
        %v6416 = vrot.slane %v6372, %v6415
        %v6418 = vunpack.c.l.s4 1966171168
        %v6419 = vunpack.c.0.s8 %v6418
        %v6420 = vlaneseq
        %v6421 = vshrl.u32 %v6420, 7
        %v6422 = vsub.s32 %v6419, %v6421
        %v6423 = vrot.slane %v6373, %v6422
        %v6425 = vunpack.c.l.s4 1966171168
        %v6426 = vunpack.c.0.s8 %v6425
        %v6427 = vlaneseq
        %v6428 = vshrl.u32 %v6427, 7
        %v6429 = vsub.s32 %v6426, %v6428
        %v6430 = vrot.slane %v6374, %v6429
        %v6431 = vcombine.low %v6381, %v6395
        %v6432 = vcombine.high %v6381, %v6395
        %v6433 = vcombine.low %v6388, %v6402
        %v6434 = vcombine.low %v6409, %v6423
        %v6435 = vcombine.high %v6409, %v6423
        %v6436 = vcombine.low %v6416, %v6430
        %v6438 = vunpack.c.l.s4 1966171168
        %v6439 = vunpack.c.0.s8 %v6438
        %v6440 = vlaneseq
        %v6441 = vshrl.u32 %v6440, 7
        %v6442 = vsub.s32 %v6439, %v6441
        %v6443 = vrot.slane %v6431, %v6442
        %v6445 = vunpack.c.l.s4 1966171168
        %v6446 = vunpack.c.0.s8 %v6445
        %v6447 = vlaneseq
        %v6448 = vshrl.u32 %v6447, 7
        %v6449 = vsub.s32 %v6446, %v6448
        %v6450 = vrot.slane %v6433, %v6449
        %v6452 = vunpack.c.l.s4 1966171168
        %v6453 = vunpack.c.0.s8 %v6452
        %v6454 = vlaneseq
        %v6455 = vshrl.u32 %v6454, 7
        %v6456 = vsub.s32 %v6453, %v6455
        %v6457 = vrot.slane %v6432, %v6456
        %v6459 = vunpack.c.l.s4 1966171168
        %v6460 = vunpack.c.0.s8 %v6459
        %v6461 = vlaneseq
        %v6462 = vshrl.u32 %v6461, 7
        %v6463 = vsub.s32 %v6460, %v6462
        %v6464 = vrot.slane %v6434, %v6463
        %v6466 = vunpack.c.l.s4 1966171168
        %v6467 = vunpack.c.0.s8 %v6466
        %v6468 = vlaneseq
        %v6469 = vshrl.u32 %v6468, 7
        %v6470 = vsub.s32 %v6467, %v6469
        %v6471 = vrot.slane %v6436, %v6470
        %v6473 = vunpack.c.l.s4 1966171168
        %v6474 = vunpack.c.0.s8 %v6473
        %v6475 = vlaneseq
        %v6476 = vshrl.u32 %v6475, 7
        %v6477 = vsub.s32 %v6474, %v6476
        %v6478 = vrot.slane %v6435, %v6477
        %v6479 = vcombine.low %v6443, %v6464
        %v6480 = vcombine.high %v6443, %v6464
        %v6481 = vcombine.low %v6450, %v6471
        %v6482 = vcombine.low %v6457, %v6478
        %v6483 = vcombine.high %v6457, %v6478
        %v6484 = vcombine.low %v4103, %v4107
        %v6485 = vcombine.high %v4103, %v4107
        %v6486 = vcombine.low %v4104, %v4108
        %v6487 = vcombine.high %v4104, %v4108
        %v6488 = vcombine.low %v4105, %v4109
        %v6489 = vcombine.high %v4105, %v4109
        %v6490 = vcombine.low %v4106, %v4110
        %v6491 = vcombine.high %v4106, %v4110
        %v6493 = vunpack.c.l.s4 1966171168
        %v6494 = vunpack.c.0.s8 %v6493
        %v6495 = vlaneseq
        %v6496 = vshrl.u32 %v6495, 7
        %v6497 = vsub.s32 %v6494, %v6496
        %v6498 = vrot.slane %v6484, %v6497
        %v6500 = vunpack.c.l.s4 1966171168
        %v6501 = vunpack.c.0.s8 %v6500
        %v6502 = vlaneseq
        %v6503 = vshrl.u32 %v6502, 7
        %v6504 = vsub.s32 %v6501, %v6503
        %v6505 = vrot.slane %v6485, %v6504
        %v6507 = vunpack.c.l.s4 1966171168
        %v6508 = vunpack.c.0.s8 %v6507
        %v6509 = vlaneseq
        %v6510 = vshrl.u32 %v6509, 7
        %v6511 = vsub.s32 %v6508, %v6510
        %v6512 = vrot.slane %v6486, %v6511
        %v6514 = vunpack.c.l.s4 1966171168
        %v6515 = vunpack.c.0.s8 %v6514
        %v6516 = vlaneseq
        %v6517 = vshrl.u32 %v6516, 7
        %v6518 = vsub.s32 %v6515, %v6517
        %v6519 = vrot.slane %v6487, %v6518
        %v6521 = vunpack.c.l.s4 1966171168
        %v6522 = vunpack.c.0.s8 %v6521
        %v6523 = vlaneseq
        %v6524 = vshrl.u32 %v6523, 7
        %v6525 = vsub.s32 %v6522, %v6524
        %v6526 = vrot.slane %v6488, %v6525
        %v6528 = vunpack.c.l.s4 1966171168
        %v6529 = vunpack.c.0.s8 %v6528
        %v6530 = vlaneseq
        %v6531 = vshrl.u32 %v6530, 7
        %v6532 = vsub.s32 %v6529, %v6531
        %v6533 = vrot.slane %v6489, %v6532
        %v6535 = vunpack.c.l.s4 1966171168
        %v6536 = vunpack.c.0.s8 %v6535
        %v6537 = vlaneseq
        %v6538 = vshrl.u32 %v6537, 7
        %v6539 = vsub.s32 %v6536, %v6538
        %v6540 = vrot.slane %v6490, %v6539
        %v6542 = vunpack.c.l.s4 1966171168
        %v6543 = vunpack.c.0.s8 %v6542
        %v6544 = vlaneseq
        %v6545 = vshrl.u32 %v6544, 7
        %v6546 = vsub.s32 %v6543, %v6545
        %v6547 = vrot.slane %v6491, %v6546
        %v6548 = vcombine.low %v6498, %v6512
        %v6549 = vcombine.high %v6498, %v6512
        %v6550 = vcombine.low %v6505, %v6519
        %v6551 = vcombine.low %v6526, %v6540
        %v6552 = vcombine.high %v6526, %v6540
        %v6553 = vcombine.low %v6533, %v6547
        %v6555 = vunpack.c.l.s4 1966171168
        %v6556 = vunpack.c.0.s8 %v6555
        %v6557 = vlaneseq
        %v6558 = vshrl.u32 %v6557, 7
        %v6559 = vsub.s32 %v6556, %v6558
        %v6560 = vrot.slane %v6548, %v6559
        %v6562 = vunpack.c.l.s4 1966171168
        %v6563 = vunpack.c.0.s8 %v6562
        %v6564 = vlaneseq
        %v6565 = vshrl.u32 %v6564, 7
        %v6566 = vsub.s32 %v6563, %v6565
        %v6567 = vrot.slane %v6550, %v6566
        %v6569 = vunpack.c.l.s4 1966171168
        %v6570 = vunpack.c.0.s8 %v6569
        %v6571 = vlaneseq
        %v6572 = vshrl.u32 %v6571, 7
        %v6573 = vsub.s32 %v6570, %v6572
        %v6574 = vrot.slane %v6549, %v6573
        %v6576 = vunpack.c.l.s4 1966171168
        %v6577 = vunpack.c.0.s8 %v6576
        %v6578 = vlaneseq
        %v6579 = vshrl.u32 %v6578, 7
        %v6580 = vsub.s32 %v6577, %v6579
        %v6581 = vrot.slane %v6551, %v6580
        %v6583 = vunpack.c.l.s4 1966171168
        %v6584 = vunpack.c.0.s8 %v6583
        %v6585 = vlaneseq
        %v6586 = vshrl.u32 %v6585, 7
        %v6587 = vsub.s32 %v6584, %v6586
        %v6588 = vrot.slane %v6553, %v6587
        %v6590 = vunpack.c.l.s4 1966171168
        %v6591 = vunpack.c.0.s8 %v6590
        %v6592 = vlaneseq
        %v6593 = vshrl.u32 %v6592, 7
        %v6594 = vsub.s32 %v6591, %v6593
        %v6595 = vrot.slane %v6552, %v6594
        %v6596 = vcombine.low %v6560, %v6581
        %v6597 = vcombine.high %v6560, %v6581
        %v6598 = vcombine.low %v6567, %v6588
        %v6599 = vcombine.low %v6574, %v6595
        %v6600 = vcombine.high %v6574, %v6595
        %v6601 = vcombine.low %v4149, %v4259
        %v6602 = vcombine.high %v4149, %v4259
        %v6603 = vcombine.low %v4263, %v4260
        %v6604 = vcombine.high %v4263, %v4260
        %v6605 = vcombine.low %v4264, %v4261
        %v6606 = vcombine.high %v4264, %v4261
        %v6607 = vcombine.low %v4265, %v4262
        %v6608 = vcombine.high %v4265, %v4262
        %v6610 = vunpack.c.l.s4 1966171168
        %v6611 = vunpack.c.0.s8 %v6610
        %v6612 = vlaneseq
        %v6613 = vshrl.u32 %v6612, 7
        %v6614 = vsub.s32 %v6611, %v6613
        %v6615 = vrot.slane %v6601, %v6614
        %v6617 = vunpack.c.l.s4 1966171168
        %v6618 = vunpack.c.0.s8 %v6617
        %v6619 = vlaneseq
        %v6620 = vshrl.u32 %v6619, 7
        %v6621 = vsub.s32 %v6618, %v6620
        %v6622 = vrot.slane %v6602, %v6621
        %v6624 = vunpack.c.l.s4 1966171168
        %v6625 = vunpack.c.0.s8 %v6624
        %v6626 = vlaneseq
        %v6627 = vshrl.u32 %v6626, 7
        %v6628 = vsub.s32 %v6625, %v6627
        %v6629 = vrot.slane %v6603, %v6628
        %v6631 = vunpack.c.l.s4 1966171168
        %v6632 = vunpack.c.0.s8 %v6631
        %v6633 = vlaneseq
        %v6634 = vshrl.u32 %v6633, 7
        %v6635 = vsub.s32 %v6632, %v6634
        %v6636 = vrot.slane %v6604, %v6635
        %v6638 = vunpack.c.l.s4 1966171168
        %v6639 = vunpack.c.0.s8 %v6638
        %v6640 = vlaneseq
        %v6641 = vshrl.u32 %v6640, 7
        %v6642 = vsub.s32 %v6639, %v6641
        %v6643 = vrot.slane %v6605, %v6642
        %v6645 = vunpack.c.l.s4 1966171168
        %v6646 = vunpack.c.0.s8 %v6645
        %v6647 = vlaneseq
        %v6648 = vshrl.u32 %v6647, 7
        %v6649 = vsub.s32 %v6646, %v6648
        %v6650 = vrot.slane %v6606, %v6649
        %v6652 = vunpack.c.l.s4 1966171168
        %v6653 = vunpack.c.0.s8 %v6652
        %v6654 = vlaneseq
        %v6655 = vshrl.u32 %v6654, 7
        %v6656 = vsub.s32 %v6653, %v6655
        %v6657 = vrot.slane %v6607, %v6656
        %v6659 = vunpack.c.l.s4 1966171168
        %v6660 = vunpack.c.0.s8 %v6659
        %v6661 = vlaneseq
        %v6662 = vshrl.u32 %v6661, 7
        %v6663 = vsub.s32 %v6660, %v6662
        %v6664 = vrot.slane %v6608, %v6663
        %v6665 = vcombine.low %v6615, %v6629
        %v6666 = vcombine.high %v6615, %v6629
        %v6667 = vcombine.low %v6622, %v6636
        %v6668 = vcombine.low %v6643, %v6657
        %v6669 = vcombine.high %v6643, %v6657
        %v6670 = vcombine.low %v6650, %v6664
        %v6672 = vunpack.c.l.s4 1966171168
        %v6673 = vunpack.c.0.s8 %v6672
        %v6674 = vlaneseq
        %v6675 = vshrl.u32 %v6674, 7
        %v6676 = vsub.s32 %v6673, %v6675
        %v6677 = vrot.slane %v6665, %v6676
        %v6679 = vunpack.c.l.s4 1966171168
        %v6680 = vunpack.c.0.s8 %v6679
        %v6681 = vlaneseq
        %v6682 = vshrl.u32 %v6681, 7
        %v6683 = vsub.s32 %v6680, %v6682
        %v6684 = vrot.slane %v6667, %v6683
        %v6686 = vunpack.c.l.s4 1966171168
        %v6687 = vunpack.c.0.s8 %v6686
        %v6688 = vlaneseq
        %v6689 = vshrl.u32 %v6688, 7
        %v6690 = vsub.s32 %v6687, %v6689
        %v6691 = vrot.slane %v6666, %v6690
        %v6693 = vunpack.c.l.s4 1966171168
        %v6694 = vunpack.c.0.s8 %v6693
        %v6695 = vlaneseq
        %v6696 = vshrl.u32 %v6695, 7
        %v6697 = vsub.s32 %v6694, %v6696
        %v6698 = vrot.slane %v6668, %v6697
        %v6700 = vunpack.c.l.s4 1966171168
        %v6701 = vunpack.c.0.s8 %v6700
        %v6702 = vlaneseq
        %v6703 = vshrl.u32 %v6702, 7
        %v6704 = vsub.s32 %v6701, %v6703
        %v6705 = vrot.slane %v6670, %v6704
        %v6707 = vunpack.c.l.s4 1966171168
        %v6708 = vunpack.c.0.s8 %v6707
        %v6709 = vlaneseq
        %v6710 = vshrl.u32 %v6709, 7
        %v6711 = vsub.s32 %v6708, %v6710
        %v6712 = vrot.slane %v6669, %v6711
        %v6713 = vcombine.low %v6677, %v6698
        %v6714 = vcombine.high %v6677, %v6698
        %v6715 = vcombine.low %v6684, %v6705
        %v6716 = vcombine.low %v6691, %v6712
        %v6717 = vcombine.high %v6691, %v6712
        %v6718 = vcombine.low %v4266, %v4305
        %v6719 = vcombine.high %v4266, %v4305
        %v6721 = vunpack.c.l.s4 1966171168
        %v6722 = vunpack.c.0.s8 %v6721
        %v6723 = vlaneseq
        %v6724 = vshrl.u32 %v6723, 7
        %v6725 = vsub.s32 %v6722, %v6724
        %v6726 = vrot.slane %v6718, %v6725
        %v6728 = vunpack.c.l.s4 1966171168
        %v6729 = vunpack.c.0.s8 %v6728
        %v6730 = vlaneseq
        %v6731 = vshrl.u32 %v6730, 7
        %v6732 = vsub.s32 %v6729, %v6731
        %v6733 = vrot.slane %v6719, %v6732
        %v6734 = vcombine.high %v6726, %v6726
        %v6736 = vunpack.c.l.s4 1966171168
        %v6737 = vunpack.c.0.s8 %v6736
        %v6738 = vlaneseq
        %v6739 = vshrl.u32 %v6738, 7
        %v6740 = vsub.s32 %v6737, %v6739
        %v6741 = vrot.slane %v6726, %v6740
        %v6743 = vunpack.c.l.s4 1966171168
        %v6744 = vunpack.c.0.s8 %v6743
        %v6745 = vlaneseq
        %v6746 = vshrl.u32 %v6745, 7
        %v6747 = vsub.s32 %v6744, %v6746
        %v6748 = vrot.slane %v6733, %v6747
        %v6750 = vunpack.c.l.s4 1966171168
        %v6751 = vunpack.c.0.s8 %v6750
        %v6752 = vlaneseq
        %v6753 = vshrl.u32 %v6752, 7
        %v6754 = vsub.s32 %v6751, %v6753
        %v6755 = vrot.slane %v6734, %v6754
        %v6756 = vcombine.high %v6741, %v6741
        %v6757 = vcombine.high %v6755, %v6755
        %v6914 = vunpack.c.l.b16 %v4306
        %v6915 = vunpack.c.l.b16 %v4307
        %v6916 = vunpack.c.l.b16 %v4308
        %v6917 = vunpack.c.l.b16 %v4309
        %v6918 = vunpack.c.l.b16 %v4310
        %v6919 = vunpack.c.l.b16 %v4311
        %v6920 = vunpack.c.l.b16 %v4312
        %v6921 = vunpack.c.l.b16 %v4313
        %v6922 = vunpack.c.l.b16 %v4314
        %v6923 = vunpack.c.l.b16 %v4315
        %v6924 = vunpack.c.l.b16 %v4316
        %v6925 = vunpack.c.l.b16 %v4317
        %v6926 = vunpack.c.l.b16 %v4318
        %v6927 = vunpack.c.l.b16 %v4319
        %v6928 = vunpack.c.l.b16 %v4320
        %v6929 = vunpack.c.l.b16 %v4321
        %v6930 = vunpack.c.l.b16 %v4322
        %v6931 = vunpack.c.l.b16 %v4323
        %v6932 = vunpack.c.l.b16 %v4324
        %v6933 = vunpack.c.l.b16 %v4325
        %v6934 = vunpack.c.l.b16 %v4326
        %v6935 = vunpack.c.l.b16 %v4327
        %v6936 = vunpack.c.l.b16 %v4328
        %v6937 = vunpack.c.l.b16 %v4329
        %v6938 = vunpack.c.l.b16 %v4330
        %v6939 = vunpack.c.l.b16 %v4331
        %v6940 = vunpack.c.l.b16 %v4332
        %v6941 = vunpack.c.l.b16 %v4333
        %v6942 = vunpack.c.l.b16 %v4334
        %v6943 = vunpack.c.l.b16 %v4335
        %v6944 = vunpack.c.l.b16 %v4336
        %v6945 = vunpack.c.l.b16 %v4337
        %v6946 = vunpack.c.l.b16 %v4338
        %v6947 = vunpack.c.l.b16 %v4339
        %v6948 = vunpack.c.l.b16 %v4340
        %v6949 = vunpack.c.l.b16 %v4341
        %v6950 = vunpack.c.l.b16 %v4342
        %v6951 = vunpack.c.l.b16 %v4343
        %v6952 = vunpack.c.l.b16 %v4344
        %v6953 = vunpack.c.l.b16 %v4345
        %v6954 = vunpack.c.l.b16 %v4346
        %v6955 = vunpack.c.l.b16 %v4347
        %v6956 = vunpack.c.l.b16 %v4348
        %v6957 = vunpack.c.l.b16 %v4349
        %v6958 = vunpack.c.l.b16 %v4350
        %v6959 = vunpack.c.l.b16 %v4351
        %v6960 = vunpack.c.l.b16 %v4352
        %v6961 = vunpack.c.l.b16 %v4353
        %v6962 = vunpack.c.l.b16 %v4354
        %v6963 = vunpack.c.l.b16 %v4355
        %v6964 = vunpack.c.l.b16 %v4356
        %v6965 = vunpack.c.l.b16 %v4357
        %v6966 = vunpack.c.l.b16 %v4358
        %v6967 = vunpack.c.l.b16 %v4359
        %v6968 = vunpack.c.l.b16 %v4360
        %v6969 = vunpack.c.l.b16 %v4361
        %v6970 = vunpack.c.l.b16 %v4362
        %v6971 = vunpack.c.l.b16 %v4363
        %v6972 = vunpack.c.l.b16 %v4364
        %v6973 = vunpack.c.l.b16 %v4365
        %v6974 = vunpack.c.l.b16 %v4366
        %v6975 = vunpack.c.l.b16 %v4367
        %v6976 = vunpack.c.l.b16 %v4368
        %v6977 = vunpack.c.l.b16 %v4369
        %v6978 = vunpack.c.l.b16 %v4370
        %v6979 = vunpack.c.l.b16 %v4371
        %v6980 = vunpack.c.l.b16 %v4372
        %v6981 = vunpack.c.l.b16 %v4373
        %v6982 = vunpack.c.l.b16 %v4374
        %v6983 = vunpack.c.l.b16 %v4375
        %v6984 = vunpack.c.l.b16 %v4376
        %v6985 = vunpack.c.l.b16 %v4377
        %v6986 = vpack.c.b16 %v6915, %v6914
        %v6987 = vpack.c.b16 %v6917, %v6916
        %v6988 = vpack.c.b16 %v6919, %v6918
        %v6989 = vpack.c.b16 %v6921, %v6920
        %v6990 = vpack.c.b16 %v6923, %v6922
        %v6991 = vpack.c.b16 %v6925, %v6924
        %v6992 = vpack.c.b16 %v6927, %v6926
        %v6993 = vpack.c.b16 %v6929, %v6928
        %v6994 = vpack.c.b16 %v6931, %v6930
        %v6995 = vpack.c.b16 %v6933, %v6932
        %v6996 = vpack.c.b16 %v6935, %v6934
        %v6997 = vpack.c.b16 %v6937, %v6936
        %v6998 = vpack.c.b16 %v6939, %v6938
        %v6999 = vpack.c.b16 %v6941, %v6940
        %v7000 = vpack.c.b16 %v6943, %v6942
        %v7001 = vpack.c.b16 %v6945, %v6944
        %v7002 = vpack.c.b16 %v6947, %v6946
        %v7003 = vpack.c.b16 %v6949, %v6948
        %v7004 = vpack.c.b16 %v6951, %v6950
        %v7005 = vpack.c.b16 %v6953, %v6952
        %v7006 = vpack.c.b16 %v6955, %v6954
        %v7007 = vpack.c.b16 %v6957, %v6956
        %v7008 = vpack.c.b16 %v6959, %v6958
        %v7009 = vpack.c.b16 %v6961, %v6960
        %v7010 = vpack.c.b16 %v6963, %v6962
        %v7011 = vpack.c.b16 %v6965, %v6964
        %v7012 = vpack.c.b16 %v6967, %v6966
        %v7013 = vpack.c.b16 %v6969, %v6968
        %v7014 = vpack.c.b16 %v6971, %v6970
        %v7015 = vpack.c.b16 %v6973, %v6972
        %v7016 = vpack.c.b16 %v6975, %v6974
        %v7017 = vpack.c.b16 %v6977, %v6976
        %v7018 = vpack.c.b16 %v6979, %v6978
        %v7019 = vpack.c.b16 %v6981, %v6980
        %v7020 = vpack.c.b16 %v6983, %v6982
        %v7021 = vpack.c.b16 %v6985, %v6984
        %v7059 = vsel %vm1089, %v4492, 0
        %v7062 = vsel %vm1089, %v4609, 0
        %v7065 = vsel %vm1089, %v4726, 0
        %v7068 = vsel %vm1089, %v4843, 0
        %v7071 = vsel %vm1089, %v4960, 0
        %v7074 = vsel %vm1089, %v5077, 0
        %v7077 = vsel %vm1089, %v5194, 0
        %v7080 = vsel %vm1089, %v5311, 0
        %v7083 = vsel %vm1089, %v5428, 0
        %v7086 = vsel %vm1089, %v5545, 0
        %v7089 = vsel %vm1089, %v5662, 0
        %v7092 = vsel %vm1089, %v5779, 0
        %v7095 = vsel %vm1089, %v5896, 0
        %v7098 = vsel %vm1089, %v6013, 0
        %v7101 = vsel %vm1089, %v6130, 0
        %v7104 = vsel %vm1089, %v6247, 0
        %v7107 = vsel %vm1089, %v6364, 0
        %v7110 = vsel %vm1089, %v6481, 0
        %v7113 = vsel %vm1089, %v6598, 0
        %v7116 = vsel %vm1089, %v6715, 0
        %v7119 = vsel %vm1089, %v6748, 0
        %7121 = vmatprep.subr.bf16.mxu0 0
        %7122 = vmatpush1.bf16.msra.mxu0 %v6993
        %7123 = vmatprep.subr.bf16.mxu0 0
        %7124 = vmatpush1.bf16.msra.mxu0 %v6992
        %7125 = vmatprep.subr.bf16.mxu0 0
        %7126 = vmatpush1.bf16.msra.mxu0 %v6991
        %7127 = vmatprep.subr.bf16.mxu0 0
        %7128 = vmatpush1.bf16.msra.mxu0 %v6990
        %7129 = vmatprep.subr.bf16.mxu0 0
        %7130 = vmatpush1.bf16.msra.mxu0 %v6989
        %7131 = vmatprep.subr.bf16.mxu0 0
        %7132 = vmatpush1.bf16.msra.mxu0 %v6988
        %7133 = vmatprep.subr.bf16.mxu0 0
        %7134 = vmatpush1.bf16.msra.mxu0 %v6987
        %7135 = vmatprep.subr.bf16.mxu0 0
        %7136 = vmatpush1.bf16.msra.mxu0 %v6986
        %7137 = vmatprep.subr.bf16.mxu0 0
        %7138 = vmatpush2.bf16.msra.mxu0 %v7001
        %7139 = vmatprep.subr.bf16.mxu0 0
        %7140 = vmatpush2.bf16.msra.mxu0 %v7000
        %7141 = vmatprep.subr.bf16.mxu0 0
        %7142 = vmatpush2.bf16.msra.mxu0 %v6999
        %7143 = vmatprep.subr.bf16.mxu0 0
        %7144 = vmatpush2.bf16.msra.mxu0 %v6998
        %7145 = vmatprep.subr.bf16.mxu0 0
        %7146 = vmatpush2.bf16.msra.mxu0 %v6997
        %7147 = vmatprep.subr.bf16.mxu0 0
        %7148 = vmatpush2.bf16.msra.mxu0 %v6996
        %7149 = vmatprep.subr.bf16.mxu0 0
        %7150 = vmatpush2.bf16.msra.mxu0 %v6995
        %7151 = vmatprep.subr.bf16.mxu0 0
        %7152 = vmatpush2.bf16.msra.mxu0 %v6994
        %7153 = vmatprep.mubr.bf16.mxu0 %v4493
        %7154 = vmatmul.mubr.bf16.gmra.mxu0 %v4490
        %v7155 = vpop.f32.mrf.mxu0
        %v7156 = vadd.f32 0.0, %v7155
        %v7157 = vpop.f32.mrf.mxu0
        %v7158 = vpop.f32.mrf.mxu0
        %v7159 = vadd.f32 0.0, %v7158
        %v7160 = vpop.f32.mrf.mxu0
        %7161 = vmatprep.mubr.bf16.mxu0 %v4610
        %7162 = vmatmul.mubr.bf16.gmra.mxu0 %v4607
        %v7163 = vpop.f32.mrf.mxu0
        %v7164 = vadd.f32 0.0, %v7163
        %v7165 = vpop.f32.mrf.mxu0
        %v7166 = vpop.f32.mrf.mxu0
        %v7167 = vadd.f32 0.0, %v7166
        %v7168 = vpop.f32.mrf.mxu0
        %7169 = vmatprep.mubr.bf16.mxu0 %v4727
        %7170 = vmatmul.mubr.bf16.gmra.mxu0 %v4724
        %v7171 = vpop.f32.mrf.mxu0
        %v7172 = vadd.f32 0.0, %v7171
        %v7173 = vpop.f32.mrf.mxu0
        %v7174 = vpop.f32.mrf.mxu0
        %v7175 = vadd.f32 0.0, %v7174
        %v7176 = vpop.f32.mrf.mxu0
        %7177 = vmatprep.mubr.bf16.mxu0 %v4844
        %7178 = vmatmul.mubr.bf16.gmra.mxu0 %v4841
        %v7179 = vpop.f32.mrf.mxu0
        %v7180 = vadd.f32 0.0, %v7179
        %v7181 = vpop.f32.mrf.mxu0
        %v7182 = vpop.f32.mrf.mxu0
        %v7183 = vadd.f32 0.0, %v7182
        %v7184 = vpop.f32.mrf.mxu0
        %7185 = vmatprep.mubr.bf16.mxu0 %v4961
        %7186 = vmatmul.mubr.bf16.gmra.mxu0 %v4958
        %v7187 = vpop.f32.mrf.mxu0
        %v7188 = vadd.f32 0.0, %v7187
        %v7189 = vpop.f32.mrf.mxu0
        %v7190 = vpop.f32.mrf.mxu0
        %v7191 = vadd.f32 0.0, %v7190
        %v7192 = vpop.f32.mrf.mxu0
        %7193 = vmatprep.mubr.bf16.mxu0 %v5078
        %7194 = vmatmul.mubr.bf16.gmra.mxu0 %v5075
        %v7195 = vpop.f32.mrf.mxu0
        %v7196 = vadd.f32 0.0, %v7195
        %v7197 = vpop.f32.mrf.mxu0
        %v7198 = vpop.f32.mrf.mxu0
        %v7199 = vadd.f32 0.0, %v7198
        %v7200 = vpop.f32.mrf.mxu0
        %7201 = vmatprep.mubr.bf16.mxu0 %v5195
        %7202 = vmatmul.mubr.bf16.gmra.mxu0 %v5192
        %v7203 = vpop.f32.mrf.mxu0
        %v7204 = vadd.f32 0.0, %v7203
        %v7205 = vpop.f32.mrf.mxu0
        %v7206 = vpop.f32.mrf.mxu0
        %v7207 = vadd.f32 0.0, %v7206
        %v7208 = vpop.f32.mrf.mxu0
        %7209 = vmatprep.mubr.bf16.mxu0 %v5312
        %7210 = vmatmul.mubr.bf16.gmra.mxu0 %v5309
        %v7211 = vpop.f32.mrf.mxu0
        %v7212 = vadd.f32 0.0, %v7211
        %v7213 = vpop.f32.mrf.mxu0
        %v7214 = vpop.f32.mrf.mxu0
        %v7215 = vadd.f32 0.0, %v7214
        %v7216 = vpop.f32.mrf.mxu0
        %7217 = vmatprep.mubr.bf16.mxu0 %v5429
        %7218 = vmatmul.mubr.bf16.gmra.mxu0 %v5426
        %v7219 = vpop.f32.mrf.mxu0
        %v7220 = vadd.f32 0.0, %v7219
        %v7221 = vpop.f32.mrf.mxu0
        %v7222 = vpop.f32.mrf.mxu0
        %v7223 = vadd.f32 0.0, %v7222
        %v7224 = vpop.f32.mrf.mxu0
        %7225 = vmatprep.mubr.bf16.mxu0 %v5546
        %7226 = vmatmul.mubr.bf16.gmra.mxu0 %v5543
        %v7227 = vpop.f32.mrf.mxu0
        %v7228 = vadd.f32 0.0, %v7227
        %v7229 = vpop.f32.mrf.mxu0
        %v7230 = vpop.f32.mrf.mxu0
        %v7231 = vadd.f32 0.0, %v7230
        %v7232 = vpop.f32.mrf.mxu0
        %7233 = vmatprep.mubr.bf16.mxu0 %v5663
        %7234 = vmatmul.mubr.bf16.gmra.mxu0 %v5660
        %v7235 = vpop.f32.mrf.mxu0
        %v7236 = vadd.f32 0.0, %v7235
        %v7237 = vpop.f32.mrf.mxu0
        %v7238 = vpop.f32.mrf.mxu0
        %v7239 = vadd.f32 0.0, %v7238
        %v7240 = vpop.f32.mrf.mxu0
        %7241 = vmatprep.mubr.bf16.mxu0 %v5780
        %7242 = vmatmul.mubr.bf16.gmra.mxu0 %v5777
        %v7243 = vpop.f32.mrf.mxu0
        %v7244 = vadd.f32 0.0, %v7243
        %v7245 = vpop.f32.mrf.mxu0
        %v7246 = vpop.f32.mrf.mxu0
        %v7247 = vadd.f32 0.0, %v7246
        %v7248 = vpop.f32.mrf.mxu0
        %7249 = vmatprep.mubr.bf16.mxu0 %v5897
        %7250 = vmatmul.mubr.bf16.gmra.mxu0 %v5894
        %v7251 = vpop.f32.mrf.mxu0
        %v7252 = vadd.f32 0.0, %v7251
        %v7253 = vpop.f32.mrf.mxu0
        %v7254 = vpop.f32.mrf.mxu0
        %v7255 = vadd.f32 0.0, %v7254
        %v7256 = vpop.f32.mrf.mxu0
        %7257 = vmatprep.mubr.bf16.mxu0 %v6014
        %7258 = vmatmul.mubr.bf16.gmra.mxu0 %v6011
        %v7259 = vpop.f32.mrf.mxu0
        %v7260 = vadd.f32 0.0, %v7259
        %v7261 = vpop.f32.mrf.mxu0
        %v7262 = vpop.f32.mrf.mxu0
        %v7263 = vadd.f32 0.0, %v7262
        %v7264 = vpop.f32.mrf.mxu0
        %7265 = vmatprep.mubr.bf16.mxu0 %v6131
        %7266 = vmatmul.mubr.bf16.gmra.mxu0 %v6128
        %v7267 = vpop.f32.mrf.mxu0
        %v7268 = vadd.f32 0.0, %v7267
        %v7269 = vpop.f32.mrf.mxu0
        %v7270 = vpop.f32.mrf.mxu0
        %v7271 = vadd.f32 0.0, %v7270
        %v7272 = vpop.f32.mrf.mxu0
        %7273 = vmatprep.mubr.bf16.mxu0 %v6248
        %7274 = vmatmul.mubr.bf16.gmra.mxu0 %v6245
        %v7275 = vpop.f32.mrf.mxu0
        %v7276 = vadd.f32 0.0, %v7275
        %v7277 = vpop.f32.mrf.mxu0
        %v7278 = vpop.f32.mrf.mxu0
        %v7279 = vadd.f32 0.0, %v7278
        %v7280 = vpop.f32.mrf.mxu0
        %7281 = vmatprep.mubr.bf16.mxu0 %v6365
        %7282 = vmatmul.mubr.bf16.gmra.mxu0 %v6362
        %v7283 = vpop.f32.mrf.mxu0
        %v7284 = vadd.f32 0.0, %v7283
        %v7285 = vpop.f32.mrf.mxu0
        %v7286 = vpop.f32.mrf.mxu0
        %v7287 = vadd.f32 0.0, %v7286
        %v7288 = vpop.f32.mrf.mxu0
        %7289 = vmatprep.mubr.bf16.mxu0 %v6482
        %7290 = vmatmul.mubr.bf16.gmra.mxu0 %v6479
        %v7291 = vpop.f32.mrf.mxu0
        %v7292 = vadd.f32 0.0, %v7291
        %v7293 = vpop.f32.mrf.mxu0
        %v7294 = vpop.f32.mrf.mxu0
        %v7295 = vadd.f32 0.0, %v7294
        %v7296 = vpop.f32.mrf.mxu0
        %7297 = vmatprep.mubr.bf16.mxu0 %v6599
        %7298 = vmatmul.mubr.bf16.gmra.mxu0 %v6596
        %v7299 = vpop.f32.mrf.mxu0
        %v7300 = vadd.f32 0.0, %v7299
        %v7301 = vpop.f32.mrf.mxu0
        %v7302 = vpop.f32.mrf.mxu0
        %v7303 = vadd.f32 0.0, %v7302
        %v7304 = vpop.f32.mrf.mxu0
        %7305 = vmatprep.mubr.bf16.mxu0 %v6716
        %7306 = vmatmul.mubr.bf16.gmra.mxu0 %v6713
        %v7307 = vpop.f32.mrf.mxu0
        %v7308 = vadd.f32 0.0, %v7307
        %v7309 = vpop.f32.mrf.mxu0
        %v7310 = vpop.f32.mrf.mxu0
        %v7311 = vadd.f32 0.0, %v7310
        %v7312 = vpop.f32.mrf.mxu0
        %7313 = vmatprep.mubr.bf16.mxu0 %v6755
        %7314 = vmatmul.mubr.bf16.gmra.mxu0 %v6741
        %v7315 = vpop.f32.mrf.mxu0
        %v7316 = vadd.f32 0.0, %v7315
        %v7317 = vpop.f32.mrf.mxu0
        %v7318 = vpop.f32.mrf.mxu0
        %v7319 = vpop.f32.mrf.mxu0
        %7320 = vdwg.mxu0
        %7321 = vmatprep.subr.bf16.mxu0 0
        %7322 = vmatpush1.bf16.msra.mxu0 %v7009
        %7323 = vmatprep.subr.bf16.mxu0 0
        %7324 = vmatpush1.bf16.msra.mxu0 %v7008
        %7325 = vmatprep.subr.bf16.mxu0 0
        %7326 = vmatpush1.bf16.msra.mxu0 %v7007
        %7327 = vmatprep.subr.bf16.mxu0 0
        %7328 = vmatpush1.bf16.msra.mxu0 %v7006
        %7329 = vmatprep.subr.bf16.mxu0 0
        %7330 = vmatpush1.bf16.msra.mxu0 %v7005
        %7331 = vmatprep.subr.bf16.mxu0 0
        %7332 = vmatpush1.bf16.msra.mxu0 %v7004
        %7333 = vmatprep.subr.bf16.mxu0 0
        %7334 = vmatpush1.bf16.msra.mxu0 %v7003
        %7335 = vmatprep.subr.bf16.mxu0 0
        %7336 = vmatpush1.bf16.msra.mxu0 %v7002
        %7337 = vmatprep.subr.bf16.mxu0 0
        %7338 = vmatpush2.bf16.msra.mxu0 %v7017
        %7339 = vmatprep.subr.bf16.mxu0 0
        %7340 = vmatpush2.bf16.msra.mxu0 %v7016
        %7341 = vmatprep.subr.bf16.mxu0 0
        %7342 = vmatpush2.bf16.msra.mxu0 %v7015
        %7343 = vmatprep.subr.bf16.mxu0 0
        %7344 = vmatpush2.bf16.msra.mxu0 %v7014
        %7345 = vmatprep.subr.bf16.mxu0 0
        %7346 = vmatpush2.bf16.msra.mxu0 %v7013
        %7347 = vmatprep.subr.bf16.mxu0 0
        %7348 = vmatpush2.bf16.msra.mxu0 %v7012
        %7349 = vmatprep.subr.bf16.mxu0 0
        %7350 = vmatpush2.bf16.msra.mxu0 %v7011
        %7351 = vmatprep.subr.bf16.mxu0 0
        %7352 = vmatpush2.bf16.msra.mxu0 %v7010
        %7353 = vmatprep.mubr.bf16.mxu0 %v4494
        %7354 = vmatmul.mubr.bf16.gmra.mxu0 %v4491
        %v7355 = vpop.f32.mrf.mxu0
        %v7356 = vadd.f32 %v7156, %v7355
        %v7357 = vpop.f32.mrf.mxu0
        %v7358 = vpop.f32.mrf.mxu0
        %v7359 = vadd.f32 %v7159, %v7358
        %v7360 = vpop.f32.mrf.mxu0
        %7361 = vmatprep.mubr.bf16.mxu0 %v4611
        %7362 = vmatmul.mubr.bf16.gmra.mxu0 %v4608
        %v7363 = vpop.f32.mrf.mxu0
        %v7364 = vadd.f32 %v7164, %v7363
        %v7365 = vpop.f32.mrf.mxu0
        %v7366 = vpop.f32.mrf.mxu0
        %v7367 = vadd.f32 %v7167, %v7366
        %v7368 = vpop.f32.mrf.mxu0
        %7369 = vmatprep.mubr.bf16.mxu0 %v4728
        %7370 = vmatmul.mubr.bf16.gmra.mxu0 %v4725
        %v7371 = vpop.f32.mrf.mxu0
        %v7372 = vadd.f32 %v7172, %v7371
        %v7373 = vpop.f32.mrf.mxu0
        %v7374 = vpop.f32.mrf.mxu0
        %v7375 = vadd.f32 %v7175, %v7374
        %v7376 = vpop.f32.mrf.mxu0
        %7377 = vmatprep.mubr.bf16.mxu0 %v4845
        %7378 = vmatmul.mubr.bf16.gmra.mxu0 %v4842
        %v7379 = vpop.f32.mrf.mxu0
        %v7380 = vadd.f32 %v7180, %v7379
        %v7381 = vpop.f32.mrf.mxu0
        %v7382 = vpop.f32.mrf.mxu0
        %v7383 = vadd.f32 %v7183, %v7382
        %v7384 = vpop.f32.mrf.mxu0
        %7385 = vmatprep.mubr.bf16.mxu0 %v4962
        %7386 = vmatmul.mubr.bf16.gmra.mxu0 %v4959
        %v7387 = vpop.f32.mrf.mxu0
        %v7388 = vadd.f32 %v7188, %v7387
        %v7389 = vpop.f32.mrf.mxu0
        %v7390 = vpop.f32.mrf.mxu0
        %v7391 = vadd.f32 %v7191, %v7390
        %v7392 = vpop.f32.mrf.mxu0
        %7393 = vmatprep.mubr.bf16.mxu0 %v5079
        %7394 = vmatmul.mubr.bf16.gmra.mxu0 %v5076
        %v7395 = vpop.f32.mrf.mxu0
        %v7396 = vadd.f32 %v7196, %v7395
        %v7397 = vpop.f32.mrf.mxu0
        %v7398 = vpop.f32.mrf.mxu0
        %v7399 = vadd.f32 %v7199, %v7398
        %v7400 = vpop.f32.mrf.mxu0
        %7401 = vmatprep.mubr.bf16.mxu0 %v5196
        %7402 = vmatmul.mubr.bf16.gmra.mxu0 %v5193
        %v7403 = vpop.f32.mrf.mxu0
        %v7404 = vadd.f32 %v7204, %v7403
        %v7405 = vpop.f32.mrf.mxu0
        %v7406 = vpop.f32.mrf.mxu0
        %v7407 = vadd.f32 %v7207, %v7406
        %v7408 = vpop.f32.mrf.mxu0
        %7409 = vmatprep.mubr.bf16.mxu0 %v5313
        %7410 = vmatmul.mubr.bf16.gmra.mxu0 %v5310
        %v7411 = vpop.f32.mrf.mxu0
        %v7412 = vadd.f32 %v7212, %v7411
        %v7413 = vpop.f32.mrf.mxu0
        %v7414 = vpop.f32.mrf.mxu0
        %v7415 = vadd.f32 %v7215, %v7414
        %v7416 = vpop.f32.mrf.mxu0
        %7417 = vmatprep.mubr.bf16.mxu0 %v5430
        %7418 = vmatmul.mubr.bf16.gmra.mxu0 %v5427
        %v7419 = vpop.f32.mrf.mxu0
        %v7420 = vadd.f32 %v7220, %v7419
        %v7421 = vpop.f32.mrf.mxu0
        %v7422 = vpop.f32.mrf.mxu0
        %v7423 = vadd.f32 %v7223, %v7422
        %v7424 = vpop.f32.mrf.mxu0
        %7425 = vmatprep.mubr.bf16.mxu0 %v5547
        %7426 = vmatmul.mubr.bf16.gmra.mxu0 %v5544
        %v7427 = vpop.f32.mrf.mxu0
        %v7428 = vadd.f32 %v7228, %v7427
        %v7429 = vpop.f32.mrf.mxu0
        %v7430 = vpop.f32.mrf.mxu0
        %v7431 = vadd.f32 %v7231, %v7430
        %v7432 = vpop.f32.mrf.mxu0
        %7433 = vmatprep.mubr.bf16.mxu0 %v5664
        %7434 = vmatmul.mubr.bf16.gmra.mxu0 %v5661
        %v7435 = vpop.f32.mrf.mxu0
        %v7436 = vadd.f32 %v7236, %v7435
        %v7437 = vpop.f32.mrf.mxu0
        %v7438 = vpop.f32.mrf.mxu0
        %v7439 = vadd.f32 %v7239, %v7438
        %v7440 = vpop.f32.mrf.mxu0
        %7441 = vmatprep.mubr.bf16.mxu0 %v5781
        %7442 = vmatmul.mubr.bf16.gmra.mxu0 %v5778
        %v7443 = vpop.f32.mrf.mxu0
        %v7444 = vadd.f32 %v7244, %v7443
        %v7445 = vpop.f32.mrf.mxu0
        %v7446 = vpop.f32.mrf.mxu0
        %v7447 = vadd.f32 %v7247, %v7446
        %v7448 = vpop.f32.mrf.mxu0
        %7449 = vmatprep.mubr.bf16.mxu0 %v5898
        %7450 = vmatmul.mubr.bf16.gmra.mxu0 %v5895
        %v7451 = vpop.f32.mrf.mxu0
        %v7452 = vadd.f32 %v7252, %v7451
        %v7453 = vpop.f32.mrf.mxu0
        %v7454 = vpop.f32.mrf.mxu0
        %v7455 = vadd.f32 %v7255, %v7454
        %v7456 = vpop.f32.mrf.mxu0
        %7457 = vmatprep.mubr.bf16.mxu0 %v6015
        %7458 = vmatmul.mubr.bf16.gmra.mxu0 %v6012
        %v7459 = vpop.f32.mrf.mxu0
        %v7460 = vadd.f32 %v7260, %v7459
        %v7461 = vpop.f32.mrf.mxu0
        %v7462 = vpop.f32.mrf.mxu0
        %v7463 = vadd.f32 %v7263, %v7462
        %v7464 = vpop.f32.mrf.mxu0
        %7465 = vmatprep.mubr.bf16.mxu0 %v6132
        %7466 = vmatmul.mubr.bf16.gmra.mxu0 %v6129
        %v7467 = vpop.f32.mrf.mxu0
        %v7468 = vadd.f32 %v7268, %v7467
        %v7469 = vpop.f32.mrf.mxu0
        %v7470 = vpop.f32.mrf.mxu0
        %v7471 = vadd.f32 %v7271, %v7470
        %v7472 = vpop.f32.mrf.mxu0
        %7473 = vmatprep.mubr.bf16.mxu0 %v6249
        %7474 = vmatmul.mubr.bf16.gmra.mxu0 %v6246
        %v7475 = vpop.f32.mrf.mxu0
        %v7476 = vadd.f32 %v7276, %v7475
        %v7477 = vpop.f32.mrf.mxu0
        %v7478 = vpop.f32.mrf.mxu0
        %v7479 = vadd.f32 %v7279, %v7478
        %v7480 = vpop.f32.mrf.mxu0
        %7481 = vmatprep.mubr.bf16.mxu0 %v6366
        %7482 = vmatmul.mubr.bf16.gmra.mxu0 %v6363
        %v7483 = vpop.f32.mrf.mxu0
        %v7484 = vadd.f32 %v7284, %v7483
        %v7485 = vpop.f32.mrf.mxu0
        %v7486 = vpop.f32.mrf.mxu0
        %v7487 = vadd.f32 %v7287, %v7486
        %v7488 = vpop.f32.mrf.mxu0
        %7489 = vmatprep.mubr.bf16.mxu0 %v6483
        %7490 = vmatmul.mubr.bf16.gmra.mxu0 %v6480
        %v7491 = vpop.f32.mrf.mxu0
        %v7492 = vadd.f32 %v7292, %v7491
        %v7493 = vpop.f32.mrf.mxu0
        %v7494 = vpop.f32.mrf.mxu0
        %v7495 = vadd.f32 %v7295, %v7494
        %v7496 = vpop.f32.mrf.mxu0
        %7497 = vmatprep.mubr.bf16.mxu0 %v6600
        %7498 = vmatmul.mubr.bf16.gmra.mxu0 %v6597
        %v7499 = vpop.f32.mrf.mxu0
        %v7500 = vadd.f32 %v7300, %v7499
        %v7501 = vpop.f32.mrf.mxu0
        %v7502 = vpop.f32.mrf.mxu0
        %v7503 = vadd.f32 %v7303, %v7502
        %v7504 = vpop.f32.mrf.mxu0
        %7505 = vmatprep.mubr.bf16.mxu0 %v6717
        %7506 = vmatmul.mubr.bf16.gmra.mxu0 %v6714
        %v7507 = vpop.f32.mrf.mxu0
        %v7508 = vadd.f32 %v7308, %v7507
        %v7509 = vpop.f32.mrf.mxu0
        %v7510 = vpop.f32.mrf.mxu0
        %v7511 = vadd.f32 %v7311, %v7510
        %v7512 = vpop.f32.mrf.mxu0
        %7513 = vmatprep.mubr.bf16.mxu0 %v6757
        %7514 = vmatmul.mubr.bf16.gmra.mxu0 %v6756
        %v7515 = vpop.f32.mrf.mxu0
        %v7516 = vadd.f32 %v7316, %v7515
        %v7517 = vpop.f32.mrf.mxu0
        %v7518 = vpop.f32.mrf.mxu0
        %v7519 = vpop.f32.mrf.mxu0
        %7520 = vdwg.mxu0
        %7521 = vmatprep.subr.bf16.mxu0 0
        %7522 = vmatpush1.bf16.msra.mxu0 0
        %7523 = vmatprep.subr.bf16.mxu0 0
        %7524 = vmatpush1.bf16.msra.mxu0 0
        %7525 = vmatprep.subr.bf16.mxu0 0
        %7526 = vmatpush1.bf16.msra.mxu0 0
        %7527 = vmatprep.subr.bf16.mxu0 0
        %7528 = vmatpush1.bf16.msra.mxu0 0
        %7529 = vmatprep.subr.bf16.mxu0 0
        %7530 = vmatpush1.bf16.msra.mxu0 %v7021
        %7531 = vmatprep.subr.bf16.mxu0 0
        %7532 = vmatpush1.bf16.msra.mxu0 %v7020
        %7533 = vmatprep.subr.bf16.mxu0 0
        %7534 = vmatpush1.bf16.msra.mxu0 %v7019
        %7535 = vmatprep.subr.bf16.mxu0 0
        %7536 = vmatpush1.bf16.msra.mxu0 %v7018
        %7537 = vmatprep.subr.bf16.mxu0 0
        %7538 = vmatpush2.bf16.msra.mxu0 0
        %7539 = vmatprep.subr.bf16.mxu0 0
        %7540 = vmatpush2.bf16.msra.mxu0 0
        %7541 = vmatprep.subr.bf16.mxu0 0
        %7542 = vmatpush2.bf16.msra.mxu0 0
        %7543 = vmatprep.subr.bf16.mxu0 0
        %7544 = vmatpush2.bf16.msra.mxu0 0
        %7545 = vmatprep.subr.bf16.mxu0 0
        %7546 = vmatpush2.bf16.msra.mxu0 0
        %7547 = vmatprep.subr.bf16.mxu0 0
        %7548 = vmatpush2.bf16.msra.mxu0 0
        %7549 = vmatprep.subr.bf16.mxu0 0
        %7550 = vmatpush2.bf16.msra.mxu0 0
        %7551 = vmatprep.subr.bf16.mxu0 0
        %7552 = vmatpush2.bf16.msra.mxu0 0
        %7553 = vmatprep.mubr.bf16.mxu0 0
        %7554 = vmatmul.mubr.bf16.gmra.mxu0 %v7059
        %v7555 = vpop.f32.mrf.mxu0
        %v7556 = vadd.f32 %v7356, %v7555
        %v7557 = vpop.f32.mrf.mxu0
        %v7558 = vpop.f32.mrf.mxu0
        %v7559 = vadd.f32 %v7359, %v7558
        %v7560 = vpop.f32.mrf.mxu0
        %7561 = vmatprep.mubr.bf16.mxu0 0
        %7562 = vmatmul.mubr.bf16.gmra.mxu0 %v7062
        %v7563 = vpop.f32.mrf.mxu0
        %v7564 = vadd.f32 %v7364, %v7563
        %v7565 = vpop.f32.mrf.mxu0
        %v7566 = vpop.f32.mrf.mxu0
        %v7567 = vadd.f32 %v7367, %v7566
        %v7568 = vpop.f32.mrf.mxu0
        %7569 = vmatprep.mubr.bf16.mxu0 0
        %7570 = vmatmul.mubr.bf16.gmra.mxu0 %v7065
        %v7571 = vpop.f32.mrf.mxu0
        %v7572 = vadd.f32 %v7372, %v7571
        %v7573 = vpop.f32.mrf.mxu0
        %v7574 = vpop.f32.mrf.mxu0
        %v7575 = vadd.f32 %v7375, %v7574
        %v7576 = vpop.f32.mrf.mxu0
        %7577 = vmatprep.mubr.bf16.mxu0 0
        %7578 = vmatmul.mubr.bf16.gmra.mxu0 %v7068
        %v7579 = vpop.f32.mrf.mxu0
        %v7580 = vadd.f32 %v7380, %v7579
        %v7581 = vpop.f32.mrf.mxu0
        %v7582 = vpop.f32.mrf.mxu0
        %v7583 = vadd.f32 %v7383, %v7582
        %v7584 = vpop.f32.mrf.mxu0
        %7585 = vmatprep.mubr.bf16.mxu0 0
        %7586 = vmatmul.mubr.bf16.gmra.mxu0 %v7071
        %v7587 = vpop.f32.mrf.mxu0
        %v7588 = vadd.f32 %v7388, %v7587
        %v7589 = vpop.f32.mrf.mxu0
        %v7590 = vpop.f32.mrf.mxu0
        %v7591 = vadd.f32 %v7391, %v7590
        %v7592 = vpop.f32.mrf.mxu0
        %7593 = vmatprep.mubr.bf16.mxu0 0
        %7594 = vmatmul.mubr.bf16.gmra.mxu0 %v7074
        %v7595 = vpop.f32.mrf.mxu0
        %v7596 = vadd.f32 %v7396, %v7595
        %v7597 = vpop.f32.mrf.mxu0
        %v7598 = vpop.f32.mrf.mxu0
        %v7599 = vadd.f32 %v7399, %v7598
        %v7600 = vpop.f32.mrf.mxu0
        %7601 = vmatprep.mubr.bf16.mxu0 0
        %7602 = vmatmul.mubr.bf16.gmra.mxu0 %v7077
        %v7603 = vpop.f32.mrf.mxu0
        %v7604 = vadd.f32 %v7404, %v7603
        %v7605 = vpop.f32.mrf.mxu0
        %v7606 = vpop.f32.mrf.mxu0
        %v7607 = vadd.f32 %v7407, %v7606
        %v7608 = vpop.f32.mrf.mxu0
        %7609 = vmatprep.mubr.bf16.mxu0 0
        %7610 = vmatmul.mubr.bf16.gmra.mxu0 %v7080
        %v7611 = vpop.f32.mrf.mxu0
        %v7612 = vadd.f32 %v7412, %v7611
        %v7613 = vpop.f32.mrf.mxu0
        %v7614 = vpop.f32.mrf.mxu0
        %v7615 = vadd.f32 %v7415, %v7614
        %v7616 = vpop.f32.mrf.mxu0
        %7617 = vmatprep.mubr.bf16.mxu0 0
        %7618 = vmatmul.mubr.bf16.gmra.mxu0 %v7083
        %v7619 = vpop.f32.mrf.mxu0
        %v7620 = vadd.f32 %v7420, %v7619
        %v7621 = vpop.f32.mrf.mxu0
        %v7622 = vpop.f32.mrf.mxu0
        %v7623 = vadd.f32 %v7423, %v7622
        %v7624 = vpop.f32.mrf.mxu0
        %7625 = vmatprep.mubr.bf16.mxu0 0
        %7626 = vmatmul.mubr.bf16.gmra.mxu0 %v7086
        %v7627 = vpop.f32.mrf.mxu0
        %v7628 = vadd.f32 %v7428, %v7627
        %v7629 = vpop.f32.mrf.mxu0
        %v7630 = vpop.f32.mrf.mxu0
        %v7631 = vadd.f32 %v7431, %v7630
        %v7632 = vpop.f32.mrf.mxu0
        %7633 = vmatprep.mubr.bf16.mxu0 0
        %7634 = vmatmul.mubr.bf16.gmra.mxu0 %v7089
        %v7635 = vpop.f32.mrf.mxu0
        %v7636 = vadd.f32 %v7436, %v7635
        %v7637 = vpop.f32.mrf.mxu0
        %v7638 = vpop.f32.mrf.mxu0
        %v7639 = vadd.f32 %v7439, %v7638
        %v7640 = vpop.f32.mrf.mxu0
        %7641 = vmatprep.mubr.bf16.mxu0 0
        %7642 = vmatmul.mubr.bf16.gmra.mxu0 %v7092
        %v7643 = vpop.f32.mrf.mxu0
        %v7644 = vadd.f32 %v7444, %v7643
        %v7645 = vpop.f32.mrf.mxu0
        %v7646 = vpop.f32.mrf.mxu0
        %v7647 = vadd.f32 %v7447, %v7646
        %v7648 = vpop.f32.mrf.mxu0
        %7649 = vmatprep.mubr.bf16.mxu0 0
        %7650 = vmatmul.mubr.bf16.gmra.mxu0 %v7095
        %v7651 = vpop.f32.mrf.mxu0
        %v7652 = vadd.f32 %v7452, %v7651
        %v7653 = vpop.f32.mrf.mxu0
        %v7654 = vpop.f32.mrf.mxu0
        %v7655 = vadd.f32 %v7455, %v7654
        %v7656 = vpop.f32.mrf.mxu0
        %7657 = vmatprep.mubr.bf16.mxu0 0
        %7658 = vmatmul.mubr.bf16.gmra.mxu0 %v7098
        %v7659 = vpop.f32.mrf.mxu0
        %v7660 = vadd.f32 %v7460, %v7659
        %v7661 = vpop.f32.mrf.mxu0
        %v7662 = vpop.f32.mrf.mxu0
        %v7663 = vadd.f32 %v7463, %v7662
        %v7664 = vpop.f32.mrf.mxu0
        %7665 = vmatprep.mubr.bf16.mxu0 0
        %7666 = vmatmul.mubr.bf16.gmra.mxu0 %v7101
        %v7667 = vpop.f32.mrf.mxu0
        %v7668 = vadd.f32 %v7468, %v7667
        %v7669 = vpop.f32.mrf.mxu0
        %v7670 = vpop.f32.mrf.mxu0
        %v7671 = vadd.f32 %v7471, %v7670
        %v7672 = vpop.f32.mrf.mxu0
        %7673 = vmatprep.mubr.bf16.mxu0 0
        %7674 = vmatmul.mubr.bf16.gmra.mxu0 %v7104
        %v7675 = vpop.f32.mrf.mxu0
        %v7676 = vadd.f32 %v7476, %v7675
        %v7677 = vpop.f32.mrf.mxu0
        %v7678 = vpop.f32.mrf.mxu0
        %v7679 = vadd.f32 %v7479, %v7678
        %v7680 = vpop.f32.mrf.mxu0
        %7681 = vmatprep.mubr.bf16.mxu0 0
        %7682 = vmatmul.mubr.bf16.gmra.mxu0 %v7107
        %v7683 = vpop.f32.mrf.mxu0
        %v7684 = vadd.f32 %v7484, %v7683
        %v7685 = vpop.f32.mrf.mxu0
        %v7686 = vpop.f32.mrf.mxu0
        %v7687 = vadd.f32 %v7487, %v7686
        %v7688 = vpop.f32.mrf.mxu0
        %7689 = vmatprep.mubr.bf16.mxu0 0
        %7690 = vmatmul.mubr.bf16.gmra.mxu0 %v7110
        %v7691 = vpop.f32.mrf.mxu0
        %v7692 = vadd.f32 %v7492, %v7691
        %v7693 = vpop.f32.mrf.mxu0
        %v7694 = vpop.f32.mrf.mxu0
        %v7695 = vadd.f32 %v7495, %v7694
        %v7696 = vpop.f32.mrf.mxu0
        %7697 = vmatprep.mubr.bf16.mxu0 0
        %7698 = vmatmul.mubr.bf16.gmra.mxu0 %v7113
        %v7699 = vpop.f32.mrf.mxu0
        %v7700 = vadd.f32 %v7500, %v7699
        %v7701 = vpop.f32.mrf.mxu0
        %v7702 = vpop.f32.mrf.mxu0
        %v7703 = vadd.f32 %v7503, %v7702
        %v7704 = vpop.f32.mrf.mxu0
        %7705 = vmatprep.mubr.bf16.mxu0 0
        %7706 = vmatmul.mubr.bf16.gmra.mxu0 %v7116
        %v7707 = vpop.f32.mrf.mxu0
        %v7708 = vadd.f32 %v7508, %v7707
        %v7709 = vpop.f32.mrf.mxu0
        %v7710 = vpop.f32.mrf.mxu0
        %v7711 = vadd.f32 %v7511, %v7710
        %v7712 = vpop.f32.mrf.mxu0
        %7713 = vmatprep.mubr.bf16.mxu0 0
        %7714 = vmatmul.mubr.bf16.gmra.mxu0 %v7119
        %v7715 = vpop.f32.mrf.mxu0
        %v7716 = vadd.f32 %v7516, %v7715
        %v7717 = vpop.f32.mrf.mxu0
        %v7718 = vpop.f32.mrf.mxu0
        %v7719 = vpop.f32.mrf.mxu0
        %7720 = vdwg.mxu0
        %v7762 = vcombine.high %v7556, %v7556
        %v7764 = vunpack.c.l.s4 1983009808
        %v7765 = vunpack.c.0.s8 %v7764
        %v7766 = vlaneseq
        %v7767 = vshrl.u32 %v7766, 7
        %v7768 = vsub.s32 %v7765, %v7767
        %v7769 = vrot.slane %v7556, %v7768
        %v7771 = vunpack.c.l.s4 1983009808
        %v7772 = vunpack.c.0.s8 %v7771
        %v7773 = vlaneseq
        %v7774 = vshrl.u32 %v7773, 7
        %v7775 = vsub.s32 %v7772, %v7774
        %v7776 = vrot.slane %v7762, %v7775
        %v7777 = vcombine.high %v7769, %v7769
        %v7778 = vcombine.high %v7776, %v7776
        %v7779 = vcombine.high %v7559, %v7559
        %v7781 = vunpack.c.l.s4 1983009808
        %v7782 = vunpack.c.0.s8 %v7781
        %v7783 = vlaneseq
        %v7784 = vshrl.u32 %v7783, 7
        %v7785 = vsub.s32 %v7782, %v7784
        %v7786 = vrot.slane %v7559, %v7785
        %v7788 = vunpack.c.l.s4 1983009808
        %v7789 = vunpack.c.0.s8 %v7788
        %v7790 = vlaneseq
        %v7791 = vshrl.u32 %v7790, 7
        %v7792 = vsub.s32 %v7789, %v7791
        %v7793 = vrot.slane %v7779, %v7792
        %v7794 = vcombine.high %v7786, %v7786
        %v7795 = vcombine.high %v7793, %v7793
        %v7796 = vcombine.high %v7564, %v7564
        %v7798 = vunpack.c.l.s4 1983009808
        %v7799 = vunpack.c.0.s8 %v7798
        %v7800 = vlaneseq
        %v7801 = vshrl.u32 %v7800, 7
        %v7802 = vsub.s32 %v7799, %v7801
        %v7803 = vrot.slane %v7564, %v7802
        %v7805 = vunpack.c.l.s4 1983009808
        %v7806 = vunpack.c.0.s8 %v7805
        %v7807 = vlaneseq
        %v7808 = vshrl.u32 %v7807, 7
        %v7809 = vsub.s32 %v7806, %v7808
        %v7810 = vrot.slane %v7796, %v7809
        %v7811 = vcombine.high %v7803, %v7803
        %v7812 = vcombine.high %v7810, %v7810
        %v7813 = vcombine.high %v7567, %v7567
        %v7815 = vunpack.c.l.s4 1983009808
        %v7816 = vunpack.c.0.s8 %v7815
        %v7817 = vlaneseq
        %v7818 = vshrl.u32 %v7817, 7
        %v7819 = vsub.s32 %v7816, %v7818
        %v7820 = vrot.slane %v7567, %v7819
        %v7822 = vunpack.c.l.s4 1983009808
        %v7823 = vunpack.c.0.s8 %v7822
        %v7824 = vlaneseq
        %v7825 = vshrl.u32 %v7824, 7
        %v7826 = vsub.s32 %v7823, %v7825
        %v7827 = vrot.slane %v7813, %v7826
        %v7828 = vcombine.high %v7820, %v7820
        %v7829 = vcombine.high %v7827, %v7827
        %v7830 = vcombine.high %v7572, %v7572
        %v7832 = vunpack.c.l.s4 1983009808
        %v7833 = vunpack.c.0.s8 %v7832
        %v7834 = vlaneseq
        %v7835 = vshrl.u32 %v7834, 7
        %v7836 = vsub.s32 %v7833, %v7835
        %v7837 = vrot.slane %v7572, %v7836
        %v7839 = vunpack.c.l.s4 1983009808
        %v7840 = vunpack.c.0.s8 %v7839
        %v7841 = vlaneseq
        %v7842 = vshrl.u32 %v7841, 7
        %v7843 = vsub.s32 %v7840, %v7842
        %v7844 = vrot.slane %v7830, %v7843
        %v7845 = vcombine.high %v7837, %v7837
        %v7846 = vcombine.high %v7844, %v7844
        %v7847 = vcombine.high %v7575, %v7575
        %v7849 = vunpack.c.l.s4 1983009808
        %v7850 = vunpack.c.0.s8 %v7849
        %v7851 = vlaneseq
        %v7852 = vshrl.u32 %v7851, 7
        %v7853 = vsub.s32 %v7850, %v7852
        %v7854 = vrot.slane %v7575, %v7853
        %v7856 = vunpack.c.l.s4 1983009808
        %v7857 = vunpack.c.0.s8 %v7856
        %v7858 = vlaneseq
        %v7859 = vshrl.u32 %v7858, 7
        %v7860 = vsub.s32 %v7857, %v7859
        %v7861 = vrot.slane %v7847, %v7860
        %v7862 = vcombine.high %v7854, %v7854
        %v7863 = vcombine.high %v7861, %v7861
        %v7864 = vcombine.high %v7580, %v7580
        %v7866 = vunpack.c.l.s4 1983009808
        %v7867 = vunpack.c.0.s8 %v7866
        %v7868 = vlaneseq
        %v7869 = vshrl.u32 %v7868, 7
        %v7870 = vsub.s32 %v7867, %v7869
        %v7871 = vrot.slane %v7580, %v7870
        %v7873 = vunpack.c.l.s4 1983009808
        %v7874 = vunpack.c.0.s8 %v7873
        %v7875 = vlaneseq
        %v7876 = vshrl.u32 %v7875, 7
        %v7877 = vsub.s32 %v7874, %v7876
        %v7878 = vrot.slane %v7864, %v7877
        %v7879 = vcombine.high %v7871, %v7871
        %v7880 = vcombine.high %v7878, %v7878
        %v7881 = vcombine.high %v7583, %v7583
        %v7883 = vunpack.c.l.s4 1983009808
        %v7884 = vunpack.c.0.s8 %v7883
        %v7885 = vlaneseq
        %v7886 = vshrl.u32 %v7885, 7
        %v7887 = vsub.s32 %v7884, %v7886
        %v7888 = vrot.slane %v7583, %v7887
        %v7890 = vunpack.c.l.s4 1983009808
        %v7891 = vunpack.c.0.s8 %v7890
        %v7892 = vlaneseq
        %v7893 = vshrl.u32 %v7892, 7
        %v7894 = vsub.s32 %v7891, %v7893
        %v7895 = vrot.slane %v7881, %v7894
        %v7896 = vcombine.high %v7888, %v7888
        %v7897 = vcombine.high %v7895, %v7895
        %v7898 = vcombine.high %v7588, %v7588
        %v7900 = vunpack.c.l.s4 1983009808
        %v7901 = vunpack.c.0.s8 %v7900
        %v7902 = vlaneseq
        %v7903 = vshrl.u32 %v7902, 7
        %v7904 = vsub.s32 %v7901, %v7903
        %v7905 = vrot.slane %v7588, %v7904
        %v7907 = vunpack.c.l.s4 1983009808
        %v7908 = vunpack.c.0.s8 %v7907
        %v7909 = vlaneseq
        %v7910 = vshrl.u32 %v7909, 7
        %v7911 = vsub.s32 %v7908, %v7910
        %v7912 = vrot.slane %v7898, %v7911
        %v7913 = vcombine.high %v7905, %v7905
        %v7914 = vcombine.high %v7912, %v7912
        %v7915 = vcombine.high %v7591, %v7591
        %v7917 = vunpack.c.l.s4 1983009808
        %v7918 = vunpack.c.0.s8 %v7917
        %v7919 = vlaneseq
        %v7920 = vshrl.u32 %v7919, 7
        %v7921 = vsub.s32 %v7918, %v7920
        %v7922 = vrot.slane %v7591, %v7921
        %v7924 = vunpack.c.l.s4 1983009808
        %v7925 = vunpack.c.0.s8 %v7924
        %v7926 = vlaneseq
        %v7927 = vshrl.u32 %v7926, 7
        %v7928 = vsub.s32 %v7925, %v7927
        %v7929 = vrot.slane %v7915, %v7928
        %v7930 = vcombine.high %v7922, %v7922
        %v7931 = vcombine.high %v7929, %v7929
        %v7932 = vcombine.high %v7596, %v7596
        %v7934 = vunpack.c.l.s4 1983009808
        %v7935 = vunpack.c.0.s8 %v7934
        %v7936 = vlaneseq
        %v7937 = vshrl.u32 %v7936, 7
        %v7938 = vsub.s32 %v7935, %v7937
        %v7939 = vrot.slane %v7596, %v7938
        %v7941 = vunpack.c.l.s4 1983009808
        %v7942 = vunpack.c.0.s8 %v7941
        %v7943 = vlaneseq
        %v7944 = vshrl.u32 %v7943, 7
        %v7945 = vsub.s32 %v7942, %v7944
        %v7946 = vrot.slane %v7932, %v7945
        %v7947 = vcombine.high %v7939, %v7939
        %v7948 = vcombine.high %v7946, %v7946
        %v7949 = vcombine.high %v7599, %v7599
        %v7951 = vunpack.c.l.s4 1983009808
        %v7952 = vunpack.c.0.s8 %v7951
        %v7953 = vlaneseq
        %v7954 = vshrl.u32 %v7953, 7
        %v7955 = vsub.s32 %v7952, %v7954
        %v7956 = vrot.slane %v7599, %v7955
        %v7958 = vunpack.c.l.s4 1983009808
        %v7959 = vunpack.c.0.s8 %v7958
        %v7960 = vlaneseq
        %v7961 = vshrl.u32 %v7960, 7
        %v7962 = vsub.s32 %v7959, %v7961
        %v7963 = vrot.slane %v7949, %v7962
        %v7964 = vcombine.high %v7956, %v7956
        %v7965 = vcombine.high %v7963, %v7963
        %v7966 = vcombine.high %v7604, %v7604
        %v7968 = vunpack.c.l.s4 1983009808
        %v7969 = vunpack.c.0.s8 %v7968
        %v7970 = vlaneseq
        %v7971 = vshrl.u32 %v7970, 7
        %v7972 = vsub.s32 %v7969, %v7971
        %v7973 = vrot.slane %v7604, %v7972
        %v7975 = vunpack.c.l.s4 1983009808
        %v7976 = vunpack.c.0.s8 %v7975
        %v7977 = vlaneseq
        %v7978 = vshrl.u32 %v7977, 7
        %v7979 = vsub.s32 %v7976, %v7978
        %v7980 = vrot.slane %v7966, %v7979
        %v7981 = vcombine.high %v7973, %v7973
        %v7982 = vcombine.high %v7980, %v7980
        %v7983 = vcombine.high %v7607, %v7607
        %v7985 = vunpack.c.l.s4 1983009808
        %v7986 = vunpack.c.0.s8 %v7985
        %v7987 = vlaneseq
        %v7988 = vshrl.u32 %v7987, 7
        %v7989 = vsub.s32 %v7986, %v7988
        %v7990 = vrot.slane %v7607, %v7989
        %v7992 = vunpack.c.l.s4 1983009808
        %v7993 = vunpack.c.0.s8 %v7992
        %v7994 = vlaneseq
        %v7995 = vshrl.u32 %v7994, 7
        %v7996 = vsub.s32 %v7993, %v7995
        %v7997 = vrot.slane %v7983, %v7996
        %v7998 = vcombine.high %v7990, %v7990
        %v7999 = vcombine.high %v7997, %v7997
        %v8000 = vcombine.high %v7612, %v7612
        %v8002 = vunpack.c.l.s4 1983009808
        %v8003 = vunpack.c.0.s8 %v8002
        %v8004 = vlaneseq
        %v8005 = vshrl.u32 %v8004, 7
        %v8006 = vsub.s32 %v8003, %v8005
        %v8007 = vrot.slane %v7612, %v8006
        %v8009 = vunpack.c.l.s4 1983009808
        %v8010 = vunpack.c.0.s8 %v8009
        %v8011 = vlaneseq
        %v8012 = vshrl.u32 %v8011, 7
        %v8013 = vsub.s32 %v8010, %v8012
        %v8014 = vrot.slane %v8000, %v8013
        %v8015 = vcombine.high %v8007, %v8007
        %v8016 = vcombine.high %v8014, %v8014
        %v8017 = vcombine.high %v7615, %v7615
        %v8019 = vunpack.c.l.s4 1983009808
        %v8020 = vunpack.c.0.s8 %v8019
        %v8021 = vlaneseq
        %v8022 = vshrl.u32 %v8021, 7
        %v8023 = vsub.s32 %v8020, %v8022
        %v8024 = vrot.slane %v7615, %v8023
        %v8026 = vunpack.c.l.s4 1983009808
        %v8027 = vunpack.c.0.s8 %v8026
        %v8028 = vlaneseq
        %v8029 = vshrl.u32 %v8028, 7
        %v8030 = vsub.s32 %v8027, %v8029
        %v8031 = vrot.slane %v8017, %v8030
        %v8032 = vcombine.high %v8024, %v8024
        %v8033 = vcombine.high %v8031, %v8031
        %v8034 = vcombine.high %v7620, %v7620
        %v8036 = vunpack.c.l.s4 1983009808
        %v8037 = vunpack.c.0.s8 %v8036
        %v8038 = vlaneseq
        %v8039 = vshrl.u32 %v8038, 7
        %v8040 = vsub.s32 %v8037, %v8039
        %v8041 = vrot.slane %v7620, %v8040
        %v8043 = vunpack.c.l.s4 1983009808
        %v8044 = vunpack.c.0.s8 %v8043
        %v8045 = vlaneseq
        %v8046 = vshrl.u32 %v8045, 7
        %v8047 = vsub.s32 %v8044, %v8046
        %v8048 = vrot.slane %v8034, %v8047
        %v8049 = vcombine.high %v8041, %v8041
        %v8050 = vcombine.high %v8048, %v8048
        %v8051 = vcombine.high %v7623, %v7623
        %v8053 = vunpack.c.l.s4 1983009808
        %v8054 = vunpack.c.0.s8 %v8053
        %v8055 = vlaneseq
        %v8056 = vshrl.u32 %v8055, 7
        %v8057 = vsub.s32 %v8054, %v8056
        %v8058 = vrot.slane %v7623, %v8057
        %v8060 = vunpack.c.l.s4 1983009808
        %v8061 = vunpack.c.0.s8 %v8060
        %v8062 = vlaneseq
        %v8063 = vshrl.u32 %v8062, 7
        %v8064 = vsub.s32 %v8061, %v8063
        %v8065 = vrot.slane %v8051, %v8064
        %v8066 = vcombine.high %v8058, %v8058
        %v8067 = vcombine.high %v8065, %v8065
        %v8068 = vcombine.high %v7628, %v7628
        %v8070 = vunpack.c.l.s4 1983009808
        %v8071 = vunpack.c.0.s8 %v8070
        %v8072 = vlaneseq
        %v8073 = vshrl.u32 %v8072, 7
        %v8074 = vsub.s32 %v8071, %v8073
        %v8075 = vrot.slane %v7628, %v8074
        %v8077 = vunpack.c.l.s4 1983009808
        %v8078 = vunpack.c.0.s8 %v8077
        %v8079 = vlaneseq
        %v8080 = vshrl.u32 %v8079, 7
        %v8081 = vsub.s32 %v8078, %v8080
        %v8082 = vrot.slane %v8068, %v8081
        %v8083 = vcombine.high %v8075, %v8075
        %v8084 = vcombine.high %v8082, %v8082
        %v8085 = vcombine.high %v7631, %v7631
        %v8087 = vunpack.c.l.s4 1983009808
        %v8088 = vunpack.c.0.s8 %v8087
        %v8089 = vlaneseq
        %v8090 = vshrl.u32 %v8089, 7
        %v8091 = vsub.s32 %v8088, %v8090
        %v8092 = vrot.slane %v7631, %v8091
        %v8094 = vunpack.c.l.s4 1983009808
        %v8095 = vunpack.c.0.s8 %v8094
        %v8096 = vlaneseq
        %v8097 = vshrl.u32 %v8096, 7
        %v8098 = vsub.s32 %v8095, %v8097
        %v8099 = vrot.slane %v8085, %v8098
        %v8100 = vcombine.high %v8092, %v8092
        %v8101 = vcombine.high %v8099, %v8099
        %v8102 = vcombine.high %v7636, %v7636
        %v8104 = vunpack.c.l.s4 1983009808
        %v8105 = vunpack.c.0.s8 %v8104
        %v8106 = vlaneseq
        %v8107 = vshrl.u32 %v8106, 7
        %v8108 = vsub.s32 %v8105, %v8107
        %v8109 = vrot.slane %v7636, %v8108
        %v8111 = vunpack.c.l.s4 1983009808
        %v8112 = vunpack.c.0.s8 %v8111
        %v8113 = vlaneseq
        %v8114 = vshrl.u32 %v8113, 7
        %v8115 = vsub.s32 %v8112, %v8114
        %v8116 = vrot.slane %v8102, %v8115
        %v8117 = vcombine.high %v8109, %v8109
        %v8118 = vcombine.high %v8116, %v8116
        %v8119 = vcombine.high %v7639, %v7639
        %v8121 = vunpack.c.l.s4 1983009808
        %v8122 = vunpack.c.0.s8 %v8121
        %v8123 = vlaneseq
        %v8124 = vshrl.u32 %v8123, 7
        %v8125 = vsub.s32 %v8122, %v8124
        %v8126 = vrot.slane %v7639, %v8125
        %v8128 = vunpack.c.l.s4 1983009808
        %v8129 = vunpack.c.0.s8 %v8128
        %v8130 = vlaneseq
        %v8131 = vshrl.u32 %v8130, 7
        %v8132 = vsub.s32 %v8129, %v8131
        %v8133 = vrot.slane %v8119, %v8132
        %v8134 = vcombine.high %v8126, %v8126
        %v8135 = vcombine.high %v8133, %v8133
        %v8136 = vcombine.high %v7644, %v7644
        %v8138 = vunpack.c.l.s4 1983009808
        %v8139 = vunpack.c.0.s8 %v8138
        %v8140 = vlaneseq
        %v8141 = vshrl.u32 %v8140, 7
        %v8142 = vsub.s32 %v8139, %v8141
        %v8143 = vrot.slane %v7644, %v8142
        %v8145 = vunpack.c.l.s4 1983009808
        %v8146 = vunpack.c.0.s8 %v8145
        %v8147 = vlaneseq
        %v8148 = vshrl.u32 %v8147, 7
        %v8149 = vsub.s32 %v8146, %v8148
        %v8150 = vrot.slane %v8136, %v8149
        %v8151 = vcombine.high %v8143, %v8143
        %v8152 = vcombine.high %v8150, %v8150
        %v8153 = vcombine.high %v7647, %v7647
        %v8155 = vunpack.c.l.s4 1983009808
        %v8156 = vunpack.c.0.s8 %v8155
        %v8157 = vlaneseq
        %v8158 = vshrl.u32 %v8157, 7
        %v8159 = vsub.s32 %v8156, %v8158
        %v8160 = vrot.slane %v7647, %v8159
        %v8162 = vunpack.c.l.s4 1983009808
        %v8163 = vunpack.c.0.s8 %v8162
        %v8164 = vlaneseq
        %v8165 = vshrl.u32 %v8164, 7
        %v8166 = vsub.s32 %v8163, %v8165
        %v8167 = vrot.slane %v8153, %v8166
        %v8168 = vcombine.high %v8160, %v8160
        %v8169 = vcombine.high %v8167, %v8167
        %v8170 = vcombine.high %v7652, %v7652
        %v8172 = vunpack.c.l.s4 1983009808
        %v8173 = vunpack.c.0.s8 %v8172
        %v8174 = vlaneseq
        %v8175 = vshrl.u32 %v8174, 7
        %v8176 = vsub.s32 %v8173, %v8175
        %v8177 = vrot.slane %v7652, %v8176
        %v8179 = vunpack.c.l.s4 1983009808
        %v8180 = vunpack.c.0.s8 %v8179
        %v8181 = vlaneseq
        %v8182 = vshrl.u32 %v8181, 7
        %v8183 = vsub.s32 %v8180, %v8182
        %v8184 = vrot.slane %v8170, %v8183
        %v8185 = vcombine.high %v8177, %v8177
        %v8186 = vcombine.high %v8184, %v8184
        %v8187 = vcombine.high %v7655, %v7655
        %v8189 = vunpack.c.l.s4 1983009808
        %v8190 = vunpack.c.0.s8 %v8189
        %v8191 = vlaneseq
        %v8192 = vshrl.u32 %v8191, 7
        %v8193 = vsub.s32 %v8190, %v8192
        %v8194 = vrot.slane %v7655, %v8193
        %v8196 = vunpack.c.l.s4 1983009808
        %v8197 = vunpack.c.0.s8 %v8196
        %v8198 = vlaneseq
        %v8199 = vshrl.u32 %v8198, 7
        %v8200 = vsub.s32 %v8197, %v8199
        %v8201 = vrot.slane %v8187, %v8200
        %v8202 = vcombine.high %v8194, %v8194
        %v8203 = vcombine.high %v8201, %v8201
        %v8204 = vcombine.high %v7660, %v7660
        %v8206 = vunpack.c.l.s4 1983009808
        %v8207 = vunpack.c.0.s8 %v8206
        %v8208 = vlaneseq
        %v8209 = vshrl.u32 %v8208, 7
        %v8210 = vsub.s32 %v8207, %v8209
        %v8211 = vrot.slane %v7660, %v8210
        %v8213 = vunpack.c.l.s4 1983009808
        %v8214 = vunpack.c.0.s8 %v8213
        %v8215 = vlaneseq
        %v8216 = vshrl.u32 %v8215, 7
        %v8217 = vsub.s32 %v8214, %v8216
        %v8218 = vrot.slane %v8204, %v8217
        %v8219 = vcombine.high %v8211, %v8211
        %v8220 = vcombine.high %v8218, %v8218
        %v8221 = vcombine.high %v7663, %v7663
        %v8223 = vunpack.c.l.s4 1983009808
        %v8224 = vunpack.c.0.s8 %v8223
        %v8225 = vlaneseq
        %v8226 = vshrl.u32 %v8225, 7
        %v8227 = vsub.s32 %v8224, %v8226
        %v8228 = vrot.slane %v7663, %v8227
        %v8230 = vunpack.c.l.s4 1983009808
        %v8231 = vunpack.c.0.s8 %v8230
        %v8232 = vlaneseq
        %v8233 = vshrl.u32 %v8232, 7
        %v8234 = vsub.s32 %v8231, %v8233
        %v8235 = vrot.slane %v8221, %v8234
        %v8236 = vcombine.high %v8228, %v8228
        %v8237 = vcombine.high %v8235, %v8235
        %v8238 = vcombine.high %v7668, %v7668
        %v8240 = vunpack.c.l.s4 1983009808
        %v8241 = vunpack.c.0.s8 %v8240
        %v8242 = vlaneseq
        %v8243 = vshrl.u32 %v8242, 7
        %v8244 = vsub.s32 %v8241, %v8243
        %v8245 = vrot.slane %v7668, %v8244
        %v8247 = vunpack.c.l.s4 1983009808
        %v8248 = vunpack.c.0.s8 %v8247
        %v8249 = vlaneseq
        %v8250 = vshrl.u32 %v8249, 7
        %v8251 = vsub.s32 %v8248, %v8250
        %v8252 = vrot.slane %v8238, %v8251
        %v8253 = vcombine.high %v8245, %v8245
        %v8254 = vcombine.high %v8252, %v8252
        %v8255 = vcombine.high %v7671, %v7671
        %v8257 = vunpack.c.l.s4 1983009808
        %v8258 = vunpack.c.0.s8 %v8257
        %v8259 = vlaneseq
        %v8260 = vshrl.u32 %v8259, 7
        %v8261 = vsub.s32 %v8258, %v8260
        %v8262 = vrot.slane %v7671, %v8261
        %v8264 = vunpack.c.l.s4 1983009808
        %v8265 = vunpack.c.0.s8 %v8264
        %v8266 = vlaneseq
        %v8267 = vshrl.u32 %v8266, 7
        %v8268 = vsub.s32 %v8265, %v8267
        %v8269 = vrot.slane %v8255, %v8268
        %v8270 = vcombine.high %v8262, %v8262
        %v8271 = vcombine.high %v8269, %v8269
        %v8272 = vcombine.high %v7676, %v7676
        %v8274 = vunpack.c.l.s4 1983009808
        %v8275 = vunpack.c.0.s8 %v8274
        %v8276 = vlaneseq
        %v8277 = vshrl.u32 %v8276, 7
        %v8278 = vsub.s32 %v8275, %v8277
        %v8279 = vrot.slane %v7676, %v8278
        %v8281 = vunpack.c.l.s4 1983009808
        %v8282 = vunpack.c.0.s8 %v8281
        %v8283 = vlaneseq
        %v8284 = vshrl.u32 %v8283, 7
        %v8285 = vsub.s32 %v8282, %v8284
        %v8286 = vrot.slane %v8272, %v8285
        %v8287 = vcombine.high %v8279, %v8279
        %v8288 = vcombine.high %v8286, %v8286
        %v8289 = vcombine.high %v7679, %v7679
        %v8291 = vunpack.c.l.s4 1983009808
        %v8292 = vunpack.c.0.s8 %v8291
        %v8293 = vlaneseq
        %v8294 = vshrl.u32 %v8293, 7
        %v8295 = vsub.s32 %v8292, %v8294
        %v8296 = vrot.slane %v7679, %v8295
        %v8298 = vunpack.c.l.s4 1983009808
        %v8299 = vunpack.c.0.s8 %v8298
        %v8300 = vlaneseq
        %v8301 = vshrl.u32 %v8300, 7
        %v8302 = vsub.s32 %v8299, %v8301
        %v8303 = vrot.slane %v8289, %v8302
        %v8304 = vcombine.high %v8296, %v8296
        %v8305 = vcombine.high %v8303, %v8303
        %v8306 = vcombine.high %v7684, %v7684
        %v8308 = vunpack.c.l.s4 1983009808
        %v8309 = vunpack.c.0.s8 %v8308
        %v8310 = vlaneseq
        %v8311 = vshrl.u32 %v8310, 7
        %v8312 = vsub.s32 %v8309, %v8311
        %v8313 = vrot.slane %v7684, %v8312
        %v8315 = vunpack.c.l.s4 1983009808
        %v8316 = vunpack.c.0.s8 %v8315
        %v8317 = vlaneseq
        %v8318 = vshrl.u32 %v8317, 7
        %v8319 = vsub.s32 %v8316, %v8318
        %v8320 = vrot.slane %v8306, %v8319
        %v8321 = vcombine.high %v8313, %v8313
        %v8322 = vcombine.high %v8320, %v8320
        %v8323 = vcombine.high %v7687, %v7687
        %v8325 = vunpack.c.l.s4 1983009808
        %v8326 = vunpack.c.0.s8 %v8325
        %v8327 = vlaneseq
        %v8328 = vshrl.u32 %v8327, 7
        %v8329 = vsub.s32 %v8326, %v8328
        %v8330 = vrot.slane %v7687, %v8329
        %v8332 = vunpack.c.l.s4 1983009808
        %v8333 = vunpack.c.0.s8 %v8332
        %v8334 = vlaneseq
        %v8335 = vshrl.u32 %v8334, 7
        %v8336 = vsub.s32 %v8333, %v8335
        %v8337 = vrot.slane %v8323, %v8336
        %v8338 = vcombine.high %v8330, %v8330
        %v8339 = vcombine.high %v8337, %v8337
        %v8340 = vcombine.high %v7692, %v7692
        %v8342 = vunpack.c.l.s4 1983009808
        %v8343 = vunpack.c.0.s8 %v8342
        %v8344 = vlaneseq
        %v8345 = vshrl.u32 %v8344, 7
        %v8346 = vsub.s32 %v8343, %v8345
        %v8347 = vrot.slane %v7692, %v8346
        %v8349 = vunpack.c.l.s4 1983009808
        %v8350 = vunpack.c.0.s8 %v8349
        %v8351 = vlaneseq
        %v8352 = vshrl.u32 %v8351, 7
        %v8353 = vsub.s32 %v8350, %v8352
        %v8354 = vrot.slane %v8340, %v8353
        %v8355 = vcombine.high %v8347, %v8347
        %v8356 = vcombine.high %v8354, %v8354
        %v8357 = vcombine.high %v7695, %v7695
        %v8359 = vunpack.c.l.s4 1983009808
        %v8360 = vunpack.c.0.s8 %v8359
        %v8361 = vlaneseq
        %v8362 = vshrl.u32 %v8361, 7
        %v8363 = vsub.s32 %v8360, %v8362
        %v8364 = vrot.slane %v7695, %v8363
        %v8366 = vunpack.c.l.s4 1983009808
        %v8367 = vunpack.c.0.s8 %v8366
        %v8368 = vlaneseq
        %v8369 = vshrl.u32 %v8368, 7
        %v8370 = vsub.s32 %v8367, %v8369
        %v8371 = vrot.slane %v8357, %v8370
        %v8372 = vcombine.high %v8364, %v8364
        %v8373 = vcombine.high %v8371, %v8371
        %v8374 = vcombine.high %v7700, %v7700
        %v8376 = vunpack.c.l.s4 1983009808
        %v8377 = vunpack.c.0.s8 %v8376
        %v8378 = vlaneseq
        %v8379 = vshrl.u32 %v8378, 7
        %v8380 = vsub.s32 %v8377, %v8379
        %v8381 = vrot.slane %v7700, %v8380
        %v8383 = vunpack.c.l.s4 1983009808
        %v8384 = vunpack.c.0.s8 %v8383
        %v8385 = vlaneseq
        %v8386 = vshrl.u32 %v8385, 7
        %v8387 = vsub.s32 %v8384, %v8386
        %v8388 = vrot.slane %v8374, %v8387
        %v8389 = vcombine.high %v8381, %v8381
        %v8390 = vcombine.high %v8388, %v8388
        %v8391 = vcombine.high %v7703, %v7703
        %v8393 = vunpack.c.l.s4 1983009808
        %v8394 = vunpack.c.0.s8 %v8393
        %v8395 = vlaneseq
        %v8396 = vshrl.u32 %v8395, 7
        %v8397 = vsub.s32 %v8394, %v8396
        %v8398 = vrot.slane %v7703, %v8397
        %v8400 = vunpack.c.l.s4 1983009808
        %v8401 = vunpack.c.0.s8 %v8400
        %v8402 = vlaneseq
        %v8403 = vshrl.u32 %v8402, 7
        %v8404 = vsub.s32 %v8401, %v8403
        %v8405 = vrot.slane %v8391, %v8404
        %v8406 = vcombine.high %v8398, %v8398
        %v8407 = vcombine.high %v8405, %v8405
        %v8408 = vcombine.high %v7708, %v7708
        %v8410 = vunpack.c.l.s4 1983009808
        %v8411 = vunpack.c.0.s8 %v8410
        %v8412 = vlaneseq
        %v8413 = vshrl.u32 %v8412, 7
        %v8414 = vsub.s32 %v8411, %v8413
        %v8415 = vrot.slane %v7708, %v8414
        %v8417 = vunpack.c.l.s4 1983009808
        %v8418 = vunpack.c.0.s8 %v8417
        %v8419 = vlaneseq
        %v8420 = vshrl.u32 %v8419, 7
        %v8421 = vsub.s32 %v8418, %v8420
        %v8422 = vrot.slane %v8408, %v8421
        %v8423 = vcombine.high %v8415, %v8415
        %v8424 = vcombine.high %v8422, %v8422
        %v8425 = vcombine.high %v7711, %v7711
        %v8427 = vunpack.c.l.s4 1983009808
        %v8428 = vunpack.c.0.s8 %v8427
        %v8429 = vlaneseq
        %v8430 = vshrl.u32 %v8429, 7
        %v8431 = vsub.s32 %v8428, %v8430
        %v8432 = vrot.slane %v7711, %v8431
        %v8434 = vunpack.c.l.s4 1983009808
        %v8435 = vunpack.c.0.s8 %v8434
        %v8436 = vlaneseq
        %v8437 = vshrl.u32 %v8436, 7
        %v8438 = vsub.s32 %v8435, %v8437
        %v8439 = vrot.slane %v8425, %v8438
        %v8440 = vcombine.high %v8432, %v8432
        %v8441 = vcombine.high %v8439, %v8439
        %v8443 = vunpack.c.l.s4 1983009808
        %v8444 = vunpack.c.0.s8 %v8443
        %v8445 = vlaneseq
        %v8446 = vshrl.u32 %v8445, 7
        %v8447 = vsub.s32 %v8444, %v8446
        %v8448 = vrot.slane %v7716, %v8447
        %v8449 = vcombine.high %v8448, %v8448
        %v8612 = vld [vmem:[%s3] sm:$0x1]
        %v8614 = vlaneseq
        %v8615 = vshrl.u32 %v8614, 7
        %v8616 = vsub.s32 0, %v8615
        %v8617 = vrot.slane %v8612, %v8616
        %v8618 = vcombine.high %v8617, %v8617
        %v8620 = vunpack.c.l.s4 1983009808
        %v8621 = vunpack.c.0.s8 %v8620
        %v8622 = vlaneseq
        %v8623 = vshrl.u32 %v8622, 7
        %v8624 = vsub.s32 %v8621, %v8623
        %v8625 = vrot.slane %v8617, %v8624
        %v8627 = vunpack.c.l.s4 1983009808
        %v8628 = vunpack.c.0.s8 %v8627
        %v8629 = vlaneseq
        %v8630 = vshrl.u32 %v8629, 7
        %v8631 = vsub.s32 %v8628, %v8630
        %v8632 = vrot.slane %v8618, %v8631
        %v8633 = vcombine.high %v8625, %v8625
        %v8634 = vcombine.high %v8632, %v8632
        %v8639 = vadd.f32 %v7769, %v8625
        %v8640 = vadd.f32 %v7777, %v8633
        %v8641 = vadd.f32 %v7776, %v8632
        %v8642 = vadd.f32 %v7778, %v8634
        %v8643 = vadd.f32 %v7786, %v8625
        %v8644 = vadd.f32 %v7794, %v8633
        %v8645 = vadd.f32 %v7793, %v8632
        %v8646 = vadd.f32 %v7795, %v8634
        %v8647 = vadd.f32 %v7803, %v8625
        %v8648 = vadd.f32 %v7811, %v8625
        %v8649 = vadd.f32 %v7810, %v8633
        %v8650 = vadd.f32 %v7812, %v8632
        %v8651 = vadd.f32 %v7820, %v8634
        %v8652 = vadd.f32 %v7828, %v8625
        %v8653 = vadd.f32 %v7827, %v8633
        %v8654 = vadd.f32 %v7829, %v8632
        %v8655 = vadd.f32 %v7837, %v8634
        %v8656 = vadd.f32 %v7845, %v8625
        %v8657 = vadd.f32 %v7844, %v8625
        %v8658 = vadd.f32 %v7846, %v8633
        %v8659 = vadd.f32 %v7854, %v8632
        %v8660 = vadd.f32 %v7862, %v8634
        %v8661 = vadd.f32 %v7861, %v8625
        %v8662 = vadd.f32 %v7863, %v8633
        %v8663 = vadd.f32 %v7871, %v8632
        %v8664 = vadd.f32 %v7879, %v8634
        %v8665 = vadd.f32 %v7878, %v8625
        %v8666 = vadd.f32 %v7880, %v8625
        %v8667 = vadd.f32 %v7888, %v8633
        %v8668 = vadd.f32 %v7896, %v8632
        %v8669 = vadd.f32 %v7895, %v8634
        %v8670 = vadd.f32 %v7897, %v8625
        %v8671 = vadd.f32 %v7905, %v8633
        %v8672 = vadd.f32 %v7913, %v8632
        %v8673 = vadd.f32 %v7912, %v8634
        %v8674 = vadd.f32 %v7914, %v8625
        %v8675 = vadd.f32 %v7922, %v8625
        %v8676 = vadd.f32 %v7930, %v8633
        %v8677 = vadd.f32 %v7929, %v8632
        %v8678 = vadd.f32 %v7931, %v8634
        %v8679 = vadd.f32 %v7939, %v8625
        %v8680 = vadd.f32 %v7947, %v8633
        %v8681 = vadd.f32 %v7946, %v8632
        %v8682 = vadd.f32 %v7948, %v8634
        %v8683 = vadd.f32 %v7956, %v8625
        %v8684 = vadd.f32 %v7964, %v8625
        %v8685 = vadd.f32 %v7963, %v8633
        %v8686 = vadd.f32 %v7965, %v8632
        %v8687 = vadd.f32 %v7973, %v8634
        %v8688 = vadd.f32 %v7981, %v8625
        %v8689 = vadd.f32 %v7980, %v8633
        %v8690 = vadd.f32 %v7982, %v8632
        %v8691 = vadd.f32 %v7990, %v8634
        %v8692 = vadd.f32 %v7998, %v8625
        %v8693 = vadd.f32 %v7997, %v8625
        %v8694 = vadd.f32 %v7999, %v8633
        %v8695 = vadd.f32 %v8007, %v8632
        %v8696 = vadd.f32 %v8015, %v8634
        %v8697 = vadd.f32 %v8014, %v8625
        %v8698 = vadd.f32 %v8016, %v8633
        %v8699 = vadd.f32 %v8024, %v8632
        %v8700 = vadd.f32 %v8032, %v8634
        %v8701 = vadd.f32 %v8031, %v8625
        %v8702 = vadd.f32 %v8033, %v8625
        %v8703 = vadd.f32 %v8041, %v8633
        %v8704 = vadd.f32 %v8049, %v8632
        %v8705 = vadd.f32 %v8048, %v8634
        %v8706 = vadd.f32 %v8050, %v8625
        %v8707 = vadd.f32 %v8058, %v8633
        %v8708 = vadd.f32 %v8066, %v8632
        %v8709 = vadd.f32 %v8065, %v8634
        %v8710 = vadd.f32 %v8067, %v8625
        %v8711 = vadd.f32 %v8075, %v8625
        %v8712 = vadd.f32 %v8083, %v8633
        %v8713 = vadd.f32 %v8082, %v8632
        %v8714 = vadd.f32 %v8084, %v8634
        %v8715 = vadd.f32 %v8092, %v8625
        %v8716 = vadd.f32 %v8100, %v8633
        %v8717 = vadd.f32 %v8099, %v8632
        %v8718 = vadd.f32 %v8101, %v8634
        %v8719 = vadd.f32 %v8109, %v8625
        %v8720 = vadd.f32 %v8117, %v8625
        %v8721 = vadd.f32 %v8116, %v8633
        %v8722 = vadd.f32 %v8118, %v8632
        %v8723 = vadd.f32 %v8126, %v8634
        %v8724 = vadd.f32 %v8134, %v8625
        %v8725 = vadd.f32 %v8133, %v8633
        %v8726 = vadd.f32 %v8135, %v8632
        %v8727 = vadd.f32 %v8143, %v8634
        %v8728 = vadd.f32 %v8151, %v8625
        %v8729 = vadd.f32 %v8150, %v8625
        %v8730 = vadd.f32 %v8152, %v8633
        %v8731 = vadd.f32 %v8160, %v8632
        %v8732 = vadd.f32 %v8168, %v8634
        %v8733 = vadd.f32 %v8167, %v8625
        %v8734 = vadd.f32 %v8169, %v8633
        %v8735 = vadd.f32 %v8177, %v8632
        %v8736 = vadd.f32 %v8185, %v8634
        %v8737 = vadd.f32 %v8184, %v8625
        %v8738 = vadd.f32 %v8186, %v8625
        %v8739 = vadd.f32 %v8194, %v8633
        %v8740 = vadd.f32 %v8202, %v8632
        %v8741 = vadd.f32 %v8201, %v8634
        %v8742 = vadd.f32 %v8203, %v8625
        %v8743 = vadd.f32 %v8211, %v8633
        %v8744 = vadd.f32 %v8219, %v8632
        %v8745 = vadd.f32 %v8218, %v8634
        %v8746 = vadd.f32 %v8220, %v8625
        %v8747 = vadd.f32 %v8228, %v8625
        %v8748 = vadd.f32 %v8236, %v8633
        %v8749 = vadd.f32 %v8235, %v8632
        %v8750 = vadd.f32 %v8237, %v8634
        %v8751 = vadd.f32 %v8245, %v8625
        %v8752 = vadd.f32 %v8253, %v8633
        %v8753 = vadd.f32 %v8252, %v8632
        %v8754 = vadd.f32 %v8254, %v8634
        %v8755 = vadd.f32 %v8262, %v8625
        %v8756 = vadd.f32 %v8270, %v8625
        %v8757 = vadd.f32 %v8269, %v8633
        %v8758 = vadd.f32 %v8271, %v8632
        %v8759 = vadd.f32 %v8279, %v8634
        %v8760 = vadd.f32 %v8287, %v8625
        %v8761 = vadd.f32 %v8286, %v8633
        %v8762 = vadd.f32 %v8288, %v8632
        %v8763 = vadd.f32 %v8296, %v8634
        %v8764 = vadd.f32 %v8304, %v8625
        %v8765 = vadd.f32 %v8303, %v8625
        %v8766 = vadd.f32 %v8305, %v8633
        %v8767 = vadd.f32 %v8313, %v8632
        %v8768 = vadd.f32 %v8321, %v8634
        %v8769 = vadd.f32 %v8320, %v8625
        %v8770 = vadd.f32 %v8322, %v8633
        %v8771 = vadd.f32 %v8330, %v8632
        %v8772 = vadd.f32 %v8338, %v8634
        %v8773 = vadd.f32 %v8337, %v8625
        %v8774 = vadd.f32 %v8339, %v8625
        %v8775 = vadd.f32 %v8347, %v8633
        %v8776 = vadd.f32 %v8355, %v8632
        %v8777 = vadd.f32 %v8354, %v8634
        %v8778 = vadd.f32 %v8356, %v8625
        %v8779 = vadd.f32 %v8364, %v8633
        %v8780 = vadd.f32 %v8372, %v8632
        %v8781 = vadd.f32 %v8371, %v8634
        %v8782 = vadd.f32 %v8373, %v8625
        %v8783 = vadd.f32 %v8381, %v8625
        %v8784 = vadd.f32 %v8389, %v8633
        %v8785 = vadd.f32 %v8388, %v8632
        %v8786 = vadd.f32 %v8390, %v8634
        %v8787 = vadd.f32 %v8398, %v8625
        %v8788 = vadd.f32 %v8406, %v8633
        %v8789 = vadd.f32 %v8405, %v8632
        %v8790 = vadd.f32 %v8407, %v8634
        %v8791 = vadd.f32 %v8415, %v8625
        %v8792 = vadd.f32 %v8423, %v8625
        %v8793 = vadd.f32 %v8422, %v8633
        %v8794 = vadd.f32 %v8424, %v8632
        %v8795 = vadd.f32 %v8432, %v8634
        %v8796 = vadd.f32 %v8440, %v8625
        %v8797 = vadd.f32 %v8439, %v8633
        %v8798 = vadd.f32 %v8441, %v8632
        %v8799 = vadd.f32 %v8448, %v8634
        %v8800 = vadd.f32 %v8449, %v8625
        %vm8801 = vcmp.ge.f32.partialorder %v8639, 0.0
        %vm8802 = vcmp.ge.f32.partialorder %v8640, 0.0
        %vm8803 = vcmp.ge.f32.partialorder %v8641, 0.0
        %vm8804 = vcmp.ge.f32.partialorder %v8642, 0.0
        %vm8805 = vcmp.ge.f32.partialorder %v8643, 0.0
        %vm8806 = vcmp.ge.f32.partialorder %v8644, 0.0
        %vm8807 = vcmp.ge.f32.partialorder %v8645, 0.0
        %vm8808 = vcmp.ge.f32.partialorder %v8646, 0.0
        %vm8809 = vcmp.ge.f32.partialorder %v8647, 0.0
        %vm8810 = vcmp.ge.f32.partialorder %v8648, 0.0
        %vm8811 = vcmp.ge.f32.partialorder %v8649, 0.0
        %vm8812 = vcmp.ge.f32.partialorder %v8650, 0.0
        %vm8813 = vcmp.ge.f32.partialorder %v8651, 0.0
        %vm8814 = vcmp.ge.f32.partialorder %v8652, 0.0
        %vm8815 = vcmp.ge.f32.partialorder %v8653, 0.0
        %vm8816 = vcmp.ge.f32.partialorder %v8654, 0.0
        %vm8817 = vcmp.ge.f32.partialorder %v8655, 0.0
        %vm8818 = vcmp.ge.f32.partialorder %v8656, 0.0
        %vm8819 = vcmp.ge.f32.partialorder %v8657, 0.0
        %vm8820 = vcmp.ge.f32.partialorder %v8658, 0.0
        %vm8821 = vcmp.ge.f32.partialorder %v8659, 0.0
        %vm8822 = vcmp.ge.f32.partialorder %v8660, 0.0
        %vm8823 = vcmp.ge.f32.partialorder %v8661, 0.0
        %vm8824 = vcmp.ge.f32.partialorder %v8662, 0.0
        %vm8825 = vcmp.ge.f32.partialorder %v8663, 0.0
        %vm8826 = vcmp.ge.f32.partialorder %v8664, 0.0
        %vm8827 = vcmp.ge.f32.partialorder %v8665, 0.0
        %vm8828 = vcmp.ge.f32.partialorder %v8666, 0.0
        %vm8829 = vcmp.ge.f32.partialorder %v8667, 0.0
        %vm8830 = vcmp.ge.f32.partialorder %v8668, 0.0
        %vm8831 = vcmp.ge.f32.partialorder %v8669, 0.0
        %vm8832 = vcmp.ge.f32.partialorder %v8670, 0.0
        %vm8833 = vcmp.ge.f32.partialorder %v8671, 0.0
        %vm8834 = vcmp.ge.f32.partialorder %v8672, 0.0
        %vm8835 = vcmp.ge.f32.partialorder %v8673, 0.0
        %vm8836 = vcmp.ge.f32.partialorder %v8674, 0.0
        %vm8837 = vcmp.ge.f32.partialorder %v8675, 0.0
        %vm8838 = vcmp.ge.f32.partialorder %v8676, 0.0
        %vm8839 = vcmp.ge.f32.partialorder %v8677, 0.0
        %vm8840 = vcmp.ge.f32.partialorder %v8678, 0.0
        %vm8841 = vcmp.ge.f32.partialorder %v8679, 0.0
        %vm8842 = vcmp.ge.f32.partialorder %v8680, 0.0
        %vm8843 = vcmp.ge.f32.partialorder %v8681, 0.0
        %vm8844 = vcmp.ge.f32.partialorder %v8682, 0.0
        %vm8845 = vcmp.ge.f32.partialorder %v8683, 0.0
        %vm8846 = vcmp.ge.f32.partialorder %v8684, 0.0
        %vm8847 = vcmp.ge.f32.partialorder %v8685, 0.0
        %vm8848 = vcmp.ge.f32.partialorder %v8686, 0.0
        %vm8849 = vcmp.ge.f32.partialorder %v8687, 0.0
        %vm8850 = vcmp.ge.f32.partialorder %v8688, 0.0
        %vm8851 = vcmp.ge.f32.partialorder %v8689, 0.0
        %vm8852 = vcmp.ge.f32.partialorder %v8690, 0.0
        %vm8853 = vcmp.ge.f32.partialorder %v8691, 0.0
        %vm8854 = vcmp.ge.f32.partialorder %v8692, 0.0
        %vm8855 = vcmp.ge.f32.partialorder %v8693, 0.0
        %vm8856 = vcmp.ge.f32.partialorder %v8694, 0.0
        %vm8857 = vcmp.ge.f32.partialorder %v8695, 0.0
        %vm8858 = vcmp.ge.f32.partialorder %v8696, 0.0
        %vm8859 = vcmp.ge.f32.partialorder %v8697, 0.0
        %vm8860 = vcmp.ge.f32.partialorder %v8698, 0.0
        %vm8861 = vcmp.ge.f32.partialorder %v8699, 0.0
        %vm8862 = vcmp.ge.f32.partialorder %v8700, 0.0
        %vm8863 = vcmp.ge.f32.partialorder %v8701, 0.0
        %vm8864 = vcmp.ge.f32.partialorder %v8702, 0.0
        %vm8865 = vcmp.ge.f32.partialorder %v8703, 0.0
        %vm8866 = vcmp.ge.f32.partialorder %v8704, 0.0
        %vm8867 = vcmp.ge.f32.partialorder %v8705, 0.0
        %vm8868 = vcmp.ge.f32.partialorder %v8706, 0.0
        %vm8869 = vcmp.ge.f32.partialorder %v8707, 0.0
        %vm8870 = vcmp.ge.f32.partialorder %v8708, 0.0
        %vm8871 = vcmp.ge.f32.partialorder %v8709, 0.0
        %vm8872 = vcmp.ge.f32.partialorder %v8710, 0.0
        %vm8873 = vcmp.ge.f32.partialorder %v8711, 0.0
        %vm8874 = vcmp.ge.f32.partialorder %v8712, 0.0
        %vm8875 = vcmp.ge.f32.partialorder %v8713, 0.0
        %vm8876 = vcmp.ge.f32.partialorder %v8714, 0.0
        %vm8877 = vcmp.ge.f32.partialorder %v8715, 0.0
        %vm8878 = vcmp.ge.f32.partialorder %v8716, 0.0
        %vm8879 = vcmp.ge.f32.partialorder %v8717, 0.0
        %vm8880 = vcmp.ge.f32.partialorder %v8718, 0.0
        %vm8881 = vcmp.ge.f32.partialorder %v8719, 0.0
        %vm8882 = vcmp.ge.f32.partialorder %v8720, 0.0
        %vm8883 = vcmp.ge.f32.partialorder %v8721, 0.0
        %vm8884 = vcmp.ge.f32.partialorder %v8722, 0.0
        %vm8885 = vcmp.ge.f32.partialorder %v8723, 0.0
        %vm8886 = vcmp.ge.f32.partialorder %v8724, 0.0
        %vm8887 = vcmp.ge.f32.partialorder %v8725, 0.0
        %vm8888 = vcmp.ge.f32.partialorder %v8726, 0.0
        %vm8889 = vcmp.ge.f32.partialorder %v8727, 0.0
        %vm8890 = vcmp.ge.f32.partialorder %v8728, 0.0
        %vm8891 = vcmp.ge.f32.partialorder %v8729, 0.0
        %vm8892 = vcmp.ge.f32.partialorder %v8730, 0.0
        %vm8893 = vcmp.ge.f32.partialorder %v8731, 0.0
        %vm8894 = vcmp.ge.f32.partialorder %v8732, 0.0
        %vm8895 = vcmp.ge.f32.partialorder %v8733, 0.0
        %vm8896 = vcmp.ge.f32.partialorder %v8734, 0.0
        %vm8897 = vcmp.ge.f32.partialorder %v8735, 0.0
        %vm8898 = vcmp.ge.f32.partialorder %v8736, 0.0
        %vm8899 = vcmp.ge.f32.partialorder %v8737, 0.0
        %vm8900 = vcmp.ge.f32.partialorder %v8738, 0.0
        %vm8901 = vcmp.ge.f32.partialorder %v8739, 0.0
        %vm8902 = vcmp.ge.f32.partialorder %v8740, 0.0
        %vm8903 = vcmp.ge.f32.partialorder %v8741, 0.0
        %vm8904 = vcmp.ge.f32.partialorder %v8742, 0.0
        %vm8905 = vcmp.ge.f32.partialorder %v8743, 0.0
        %vm8906 = vcmp.ge.f32.partialorder %v8744, 0.0
        %vm8907 = vcmp.ge.f32.partialorder %v8745, 0.0
        %vm8908 = vcmp.ge.f32.partialorder %v8746, 0.0
        %vm8909 = vcmp.ge.f32.partialorder %v8747, 0.0
        %vm8910 = vcmp.ge.f32.partialorder %v8748, 0.0
        %vm8911 = vcmp.ge.f32.partialorder %v8749, 0.0
        %vm8912 = vcmp.ge.f32.partialorder %v8750, 0.0
        %vm8913 = vcmp.ge.f32.partialorder %v8751, 0.0
        %vm8914 = vcmp.ge.f32.partialorder %v8752, 0.0
        %vm8915 = vcmp.ge.f32.partialorder %v8753, 0.0
        %vm8916 = vcmp.ge.f32.partialorder %v8754, 0.0
        %vm8917 = vcmp.ge.f32.partialorder %v8755, 0.0
        %vm8918 = vcmp.ge.f32.partialorder %v8756, 0.0
        %vm8919 = vcmp.ge.f32.partialorder %v8757, 0.0
        %vm8920 = vcmp.ge.f32.partialorder %v8758, 0.0
        %vm8921 = vcmp.ge.f32.partialorder %v8759, 0.0
        %vm8922 = vcmp.ge.f32.partialorder %v8760, 0.0
        %vm8923 = vcmp.ge.f32.partialorder %v8761, 0.0
        %vm8924 = vcmp.ge.f32.partialorder %v8762, 0.0
        %vm8925 = vcmp.ge.f32.partialorder %v8763, 0.0
        %vm8926 = vcmp.ge.f32.partialorder %v8764, 0.0
        %vm8927 = vcmp.ge.f32.partialorder %v8765, 0.0
        %vm8928 = vcmp.ge.f32.partialorder %v8766, 0.0
        %vm8929 = vcmp.ge.f32.partialorder %v8767, 0.0
        %vm8930 = vcmp.ge.f32.partialorder %v8768, 0.0
        %vm8931 = vcmp.ge.f32.partialorder %v8769, 0.0
        %vm8932 = vcmp.ge.f32.partialorder %v8770, 0.0
        %vm8933 = vcmp.ge.f32.partialorder %v8771, 0.0
        %vm8934 = vcmp.ge.f32.partialorder %v8772, 0.0
        %vm8935 = vcmp.ge.f32.partialorder %v8773, 0.0
        %vm8936 = vcmp.ge.f32.partialorder %v8774, 0.0
        %vm8937 = vcmp.ge.f32.partialorder %v8775, 0.0
        %vm8938 = vcmp.ge.f32.partialorder %v8776, 0.0
        %vm8939 = vcmp.ge.f32.partialorder %v8777, 0.0
        %vm8940 = vcmp.ge.f32.partialorder %v8778, 0.0
        %vm8941 = vcmp.ge.f32.partialorder %v8779, 0.0
        %vm8942 = vcmp.ge.f32.partialorder %v8780, 0.0
        %vm8943 = vcmp.ge.f32.partialorder %v8781, 0.0
        %vm8944 = vcmp.ge.f32.partialorder %v8782, 0.0
        %vm8945 = vcmp.ge.f32.partialorder %v8783, 0.0
        %vm8946 = vcmp.ge.f32.partialorder %v8784, 0.0
        %vm8947 = vcmp.ge.f32.partialorder %v8785, 0.0
        %vm8948 = vcmp.ge.f32.partialorder %v8786, 0.0
        %vm8949 = vcmp.ge.f32.partialorder %v8787, 0.0
        %vm8950 = vcmp.ge.f32.partialorder %v8788, 0.0
        %vm8951 = vcmp.ge.f32.partialorder %v8789, 0.0
        %vm8952 = vcmp.ge.f32.partialorder %v8790, 0.0
        %vm8953 = vcmp.ge.f32.partialorder %v8791, 0.0
        %vm8954 = vcmp.ge.f32.partialorder %v8792, 0.0
        %vm8955 = vcmp.ge.f32.partialorder %v8793, 0.0
        %vm8956 = vcmp.ge.f32.partialorder %v8794, 0.0
        %vm8957 = vcmp.ge.f32.partialorder %v8795, 0.0
        %vm8958 = vcmp.ge.f32.partialorder %v8796, 0.0
        %vm8959 = vcmp.ge.f32.partialorder %v8797, 0.0
        %vm8960 = vcmp.ge.f32.partialorder %v8798, 0.0
        %vm8961 = vcmp.ge.f32.partialorder %v8799, 0.0
        %vm8962 = vcmp.ge.f32.partialorder %v8800, 0.0
        %v8963 = vmul.f32 %v8639, 0.01
        %v8964 = vmul.f32 %v8640, 0.01
        %v8965 = vmul.f32 %v8641, 0.01
        %v8966 = vmul.f32 %v8642, 0.01
        %v8967 = vmul.f32 %v8643, 0.01
        %v8968 = vmul.f32 %v8644, 0.01
        %v8969 = vmul.f32 %v8645, 0.01
        %v8970 = vmul.f32 %v8646, 0.01
        %v8971 = vmul.f32 %v8647, 0.01
        %v8972 = vmul.f32 %v8648, 0.01
        %v8973 = vmul.f32 %v8649, 0.01
        %v8974 = vmul.f32 %v8650, 0.01
        %v8975 = vmul.f32 %v8651, 0.01
        %v8976 = vmul.f32 %v8652, 0.01
        %v8977 = vmul.f32 %v8653, 0.01
        %v8978 = vmul.f32 %v8654, 0.01
        %v8979 = vmul.f32 %v8655, 0.01
        %v8980 = vmul.f32 %v8656, 0.01
        %v8981 = vmul.f32 %v8657, 0.01
        %v8982 = vmul.f32 %v8658, 0.01
        %v8983 = vmul.f32 %v8659, 0.01
        %v8984 = vmul.f32 %v8660, 0.01
        %v8985 = vmul.f32 %v8661, 0.01
        %v8986 = vmul.f32 %v8662, 0.01
        %v8987 = vmul.f32 %v8663, 0.01
        %v8988 = vmul.f32 %v8664, 0.01
        %v8989 = vmul.f32 %v8665, 0.01
        %v8990 = vmul.f32 %v8666, 0.01
        %v8991 = vmul.f32 %v8667, 0.01
        %v8992 = vmul.f32 %v8668, 0.01
        %v8993 = vmul.f32 %v8669, 0.01
        %v8994 = vmul.f32 %v8670, 0.01
        %v8995 = vmul.f32 %v8671, 0.01
        %v8996 = vmul.f32 %v8672, 0.01
        %v8997 = vmul.f32 %v8673, 0.01
        %v8998 = vmul.f32 %v8674, 0.01
        %v8999 = vmul.f32 %v8675, 0.01
        %v9000 = vmul.f32 %v8676, 0.01
        %v9001 = vmul.f32 %v8677, 0.01
        %v9002 = vmul.f32 %v8678, 0.01
        %v9003 = vmul.f32 %v8679, 0.01
        %v9004 = vmul.f32 %v8680, 0.01
        %v9005 = vmul.f32 %v8681, 0.01
        %v9006 = vmul.f32 %v8682, 0.01
        %v9007 = vmul.f32 %v8683, 0.01
        %v9008 = vmul.f32 %v8684, 0.01
        %v9009 = vmul.f32 %v8685, 0.01
        %v9010 = vmul.f32 %v8686, 0.01
        %v9011 = vmul.f32 %v8687, 0.01
        %v9012 = vmul.f32 %v8688, 0.01
        %v9013 = vmul.f32 %v8689, 0.01
        %v9014 = vmul.f32 %v8690, 0.01
        %v9015 = vmul.f32 %v8691, 0.01
        %v9016 = vmul.f32 %v8692, 0.01
        %v9017 = vmul.f32 %v8693, 0.01
        %v9018 = vmul.f32 %v8694, 0.01
        %v9019 = vmul.f32 %v8695, 0.01
        %v9020 = vmul.f32 %v8696, 0.01
        %v9021 = vmul.f32 %v8697, 0.01
        %v9022 = vmul.f32 %v8698, 0.01
        %v9023 = vmul.f32 %v8699, 0.01
        %v9024 = vmul.f32 %v8700, 0.01
        %v9025 = vmul.f32 %v8701, 0.01
        %v9026 = vmul.f32 %v8702, 0.01
        %v9027 = vmul.f32 %v8703, 0.01
        %v9028 = vmul.f32 %v8704, 0.01
        %v9029 = vmul.f32 %v8705, 0.01
        %v9030 = vmul.f32 %v8706, 0.01
        %v9031 = vmul.f32 %v8707, 0.01
        %v9032 = vmul.f32 %v8708, 0.01
        %v9033 = vmul.f32 %v8709, 0.01
        %v9034 = vmul.f32 %v8710, 0.01
        %v9035 = vmul.f32 %v8711, 0.01
        %v9036 = vmul.f32 %v8712, 0.01
        %v9037 = vmul.f32 %v8713, 0.01
        %v9038 = vmul.f32 %v8714, 0.01
        %v9039 = vmul.f32 %v8715, 0.01
        %v9040 = vmul.f32 %v8716, 0.01
        %v9041 = vmul.f32 %v8717, 0.01
        %v9042 = vmul.f32 %v8718, 0.01
        %v9043 = vmul.f32 %v8719, 0.01
        %v9044 = vmul.f32 %v8720, 0.01
        %v9045 = vmul.f32 %v8721, 0.01
        %v9046 = vmul.f32 %v8722, 0.01
        %v9047 = vmul.f32 %v8723, 0.01
        %v9048 = vmul.f32 %v8724, 0.01
        %v9049 = vmul.f32 %v8725, 0.01
        %v9050 = vmul.f32 %v8726, 0.01
        %v9051 = vmul.f32 %v8727, 0.01
        %v9052 = vmul.f32 %v8728, 0.01
        %v9053 = vmul.f32 %v8729, 0.01
        %v9054 = vmul.f32 %v8730, 0.01
        %v9055 = vmul.f32 %v8731, 0.01
        %v9056 = vmul.f32 %v8732, 0.01
        %v9057 = vmul.f32 %v8733, 0.01
        %v9058 = vmul.f32 %v8734, 0.01
        %v9059 = vmul.f32 %v8735, 0.01
        %v9060 = vmul.f32 %v8736, 0.01
        %v9061 = vmul.f32 %v8737, 0.01
        %v9062 = vmul.f32 %v8738, 0.01
        %v9063 = vmul.f32 %v8739, 0.01
        %v9064 = vmul.f32 %v8740, 0.01
        %v9065 = vmul.f32 %v8741, 0.01
        %v9066 = vmul.f32 %v8742, 0.01
        %v9067 = vmul.f32 %v8743, 0.01
        %v9068 = vmul.f32 %v8744, 0.01
        %v9069 = vmul.f32 %v8745, 0.01
        %v9070 = vmul.f32 %v8746, 0.01
        %v9071 = vmul.f32 %v8747, 0.01
        %v9072 = vmul.f32 %v8748, 0.01
        %v9073 = vmul.f32 %v8749, 0.01
        %v9074 = vmul.f32 %v8750, 0.01
        %v9075 = vmul.f32 %v8751, 0.01
        %v9076 = vmul.f32 %v8752, 0.01
        %v9077 = vmul.f32 %v8753, 0.01
        %v9078 = vmul.f32 %v8754, 0.01
        %v9079 = vmul.f32 %v8755, 0.01
        %v9080 = vmul.f32 %v8756, 0.01
        %v9081 = vmul.f32 %v8757, 0.01
        %v9082 = vmul.f32 %v8758, 0.01
        %v9083 = vmul.f32 %v8759, 0.01
        %v9084 = vmul.f32 %v8760, 0.01
        %v9085 = vmul.f32 %v8761, 0.01
        %v9086 = vmul.f32 %v8762, 0.01
        %v9087 = vmul.f32 %v8763, 0.01
        %v9088 = vmul.f32 %v8764, 0.01
        %v9089 = vmul.f32 %v8765, 0.01
        %v9090 = vmul.f32 %v8766, 0.01
        %v9091 = vmul.f32 %v8767, 0.01
        %v9092 = vmul.f32 %v8768, 0.01
        %v9093 = vmul.f32 %v8769, 0.01
        %v9094 = vmul.f32 %v8770, 0.01
        %v9095 = vmul.f32 %v8771, 0.01
        %v9096 = vmul.f32 %v8772, 0.01
        %v9097 = vmul.f32 %v8773, 0.01
        %v9098 = vmul.f32 %v8774, 0.01
        %v9099 = vmul.f32 %v8775, 0.01
        %v9100 = vmul.f32 %v8776, 0.01
        %v9101 = vmul.f32 %v8777, 0.01
        %v9102 = vmul.f32 %v8778, 0.01
        %v9103 = vmul.f32 %v8779, 0.01
        %v9104 = vmul.f32 %v8780, 0.01
        %v9105 = vmul.f32 %v8781, 0.01
        %v9106 = vmul.f32 %v8782, 0.01
        %v9107 = vmul.f32 %v8783, 0.01
        %v9108 = vmul.f32 %v8784, 0.01
        %v9109 = vmul.f32 %v8785, 0.01
        %v9110 = vmul.f32 %v8786, 0.01
        %v9111 = vmul.f32 %v8787, 0.01
        %v9112 = vmul.f32 %v8788, 0.01
        %v9113 = vmul.f32 %v8789, 0.01
        %v9114 = vmul.f32 %v8790, 0.01
        %v9115 = vmul.f32 %v8791, 0.01
        %v9116 = vmul.f32 %v8792, 0.01
        %v9117 = vmul.f32 %v8793, 0.01
        %v9118 = vmul.f32 %v8794, 0.01
        %v9119 = vmul.f32 %v8795, 0.01
        %v9120 = vmul.f32 %v8796, 0.01
        %v9121 = vmul.f32 %v8797, 0.01
        %v9122 = vmul.f32 %v8798, 0.01
        %v9123 = vmul.f32 %v8799, 0.01
        %v9124 = vmul.f32 %v8800, 0.01
        %v9125 = vsel %vm8801, %v8639, %v8963
        %v9126 = vsel %vm8802, %v8640, %v8964
        %v9127 = vsel %vm8803, %v8641, %v8965
        %v9128 = vsel %vm8804, %v8642, %v8966
        %v9129 = vsel %vm8805, %v8643, %v8967
        %v9130 = vsel %vm8806, %v8644, %v8968
        %v9131 = vsel %vm8807, %v8645, %v8969
        %v9132 = vsel %vm8808, %v8646, %v8970
        %v9133 = vsel %vm8809, %v8647, %v8971
        %v9134 = vsel %vm8810, %v8648, %v8972
        %v9135 = vsel %vm8811, %v8649, %v8973
        %v9136 = vsel %vm8812, %v8650, %v8974
        %v9137 = vsel %vm8813, %v8651, %v8975
        %v9138 = vsel %vm8814, %v8652, %v8976
        %v9139 = vsel %vm8815, %v8653, %v8977
        %v9140 = vsel %vm8816, %v8654, %v8978
        %v9141 = vsel %vm8817, %v8655, %v8979
        %v9142 = vsel %vm8818, %v8656, %v8980
        %v9143 = vsel %vm8819, %v8657, %v8981
        %v9144 = vsel %vm8820, %v8658, %v8982
        %v9145 = vsel %vm8821, %v8659, %v8983
        %v9146 = vsel %vm8822, %v8660, %v8984
        %v9147 = vsel %vm8823, %v8661, %v8985
        %v9148 = vsel %vm8824, %v8662, %v8986
        %v9149 = vsel %vm8825, %v8663, %v8987
        %v9150 = vsel %vm8826, %v8664, %v8988
        %v9151 = vsel %vm8827, %v8665, %v8989
        %v9152 = vsel %vm8828, %v8666, %v8990
        %v9153 = vsel %vm8829, %v8667, %v8991
        %v9154 = vsel %vm8830, %v8668, %v8992
        %v9155 = vsel %vm8831, %v8669, %v8993
        %v9156 = vsel %vm8832, %v8670, %v8994
        %v9157 = vsel %vm8833, %v8671, %v8995
        %v9158 = vsel %vm8834, %v8672, %v8996
        %v9159 = vsel %vm8835, %v8673, %v8997
        %v9160 = vsel %vm8836, %v8674, %v8998
        %v9161 = vsel %vm8837, %v8675, %v8999
        %v9162 = vsel %vm8838, %v8676, %v9000
        %v9163 = vsel %vm8839, %v8677, %v9001
        %v9164 = vsel %vm8840, %v8678, %v9002
        %v9165 = vsel %vm8841, %v8679, %v9003
        %v9166 = vsel %vm8842, %v8680, %v9004
        %v9167 = vsel %vm8843, %v8681, %v9005
        %v9168 = vsel %vm8844, %v8682, %v9006
        %v9169 = vsel %vm8845, %v8683, %v9007
        %v9170 = vsel %vm8846, %v8684, %v9008
        %v9171 = vsel %vm8847, %v8685, %v9009
        %v9172 = vsel %vm8848, %v8686, %v9010
        %v9173 = vsel %vm8849, %v8687, %v9011
        %v9174 = vsel %vm8850, %v8688, %v9012
        %v9175 = vsel %vm8851, %v8689, %v9013
        %v9176 = vsel %vm8852, %v8690, %v9014
        %v9177 = vsel %vm8853, %v8691, %v9015
        %v9178 = vsel %vm8854, %v8692, %v9016
        %v9179 = vsel %vm8855, %v8693, %v9017
        %v9180 = vsel %vm8856, %v8694, %v9018
        %v9181 = vsel %vm8857, %v8695, %v9019
        %v9182 = vsel %vm8858, %v8696, %v9020
        %v9183 = vsel %vm8859, %v8697, %v9021
        %v9184 = vsel %vm8860, %v8698, %v9022
        %v9185 = vsel %vm8861, %v8699, %v9023
        %v9186 = vsel %vm8862, %v8700, %v9024
        %v9187 = vsel %vm8863, %v8701, %v9025
        %v9188 = vsel %vm8864, %v8702, %v9026
        %v9189 = vsel %vm8865, %v8703, %v9027
        %v9190 = vsel %vm8866, %v8704, %v9028
        %v9191 = vsel %vm8867, %v8705, %v9029
        %v9192 = vsel %vm8868, %v8706, %v9030
        %v9193 = vsel %vm8869, %v8707, %v9031
        %v9194 = vsel %vm8870, %v8708, %v9032
        %v9195 = vsel %vm8871, %v8709, %v9033
        %v9196 = vsel %vm8872, %v8710, %v9034
        %v9197 = vsel %vm8873, %v8711, %v9035
        %v9198 = vsel %vm8874, %v8712, %v9036
        %v9199 = vsel %vm8875, %v8713, %v9037
        %v9200 = vsel %vm8876, %v8714, %v9038
        %v9201 = vsel %vm8877, %v8715, %v9039
        %v9202 = vsel %vm8878, %v8716, %v9040
        %v9203 = vsel %vm8879, %v8717, %v9041
        %v9204 = vsel %vm8880, %v8718, %v9042
        %v9205 = vsel %vm8881, %v8719, %v9043
        %v9206 = vsel %vm8882, %v8720, %v9044
        %v9207 = vsel %vm8883, %v8721, %v9045
        %v9208 = vsel %vm8884, %v8722, %v9046
        %v9209 = vsel %vm8885, %v8723, %v9047
        %v9210 = vsel %vm8886, %v8724, %v9048
        %v9211 = vsel %vm8887, %v8725, %v9049
        %v9212 = vsel %vm8888, %v8726, %v9050
        %v9213 = vsel %vm8889, %v8727, %v9051
        %v9214 = vsel %vm8890, %v8728, %v9052
        %v9215 = vsel %vm8891, %v8729, %v9053
        %v9216 = vsel %vm8892, %v8730, %v9054
        %v9217 = vsel %vm8893, %v8731, %v9055
        %v9218 = vsel %vm8894, %v8732, %v9056
        %v9219 = vsel %vm8895, %v8733, %v9057
        %v9220 = vsel %vm8896, %v8734, %v9058
        %v9221 = vsel %vm8897, %v8735, %v9059
        %v9222 = vsel %vm8898, %v8736, %v9060
        %v9223 = vsel %vm8899, %v8737, %v9061
        %v9224 = vsel %vm8900, %v8738, %v9062
        %v9225 = vsel %vm8901, %v8739, %v9063
        %v9226 = vsel %vm8902, %v8740, %v9064
        %v9227 = vsel %vm8903, %v8741, %v9065
        %v9228 = vsel %vm8904, %v8742, %v9066
        %v9229 = vsel %vm8905, %v8743, %v9067
        %v9230 = vsel %vm8906, %v8744, %v9068
        %v9231 = vsel %vm8907, %v8745, %v9069
        %v9232 = vsel %vm8908, %v8746, %v9070
        %v9233 = vsel %vm8909, %v8747, %v9071
        %v9234 = vsel %vm8910, %v8748, %v9072
        %v9235 = vsel %vm8911, %v8749, %v9073
        %v9236 = vsel %vm8912, %v8750, %v9074
        %v9237 = vsel %vm8913, %v8751, %v9075
        %v9238 = vsel %vm8914, %v8752, %v9076
        %v9239 = vsel %vm8915, %v8753, %v9077
        %v9240 = vsel %vm8916, %v8754, %v9078
        %v9241 = vsel %vm8917, %v8755, %v9079
        %v9242 = vsel %vm8918, %v8756, %v9080
        %v9243 = vsel %vm8919, %v8757, %v9081
        %v9244 = vsel %vm8920, %v8758, %v9082
        %v9245 = vsel %vm8921, %v8759, %v9083
        %v9246 = vsel %vm8922, %v8760, %v9084
        %v9247 = vsel %vm8923, %v8761, %v9085
        %v9248 = vsel %vm8924, %v8762, %v9086
        %v9249 = vsel %vm8925, %v8763, %v9087
        %v9250 = vsel %vm8926, %v8764, %v9088
        %v9251 = vsel %vm8927, %v8765, %v9089
        %v9252 = vsel %vm8928, %v8766, %v9090
        %v9253 = vsel %vm8929, %v8767, %v9091
        %v9254 = vsel %vm8930, %v8768, %v9092
        %v9255 = vsel %vm8931, %v8769, %v9093
        %v9256 = vsel %vm8932, %v8770, %v9094
        %v9257 = vsel %vm8933, %v8771, %v9095
        %v9258 = vsel %vm8934, %v8772, %v9096
        %v9259 = vsel %vm8935, %v8773, %v9097
        %v9260 = vsel %vm8936, %v8774, %v9098
        %v9261 = vsel %vm8937, %v8775, %v9099
        %v9262 = vsel %vm8938, %v8776, %v9100
        %v9263 = vsel %vm8939, %v8777, %v9101
        %v9264 = vsel %vm8940, %v8778, %v9102
        %v9265 = vsel %vm8941, %v8779, %v9103
        %v9266 = vsel %vm8942, %v8780, %v9104
        %v9267 = vsel %vm8943, %v8781, %v9105
        %v9268 = vsel %vm8944, %v8782, %v9106
        %v9269 = vsel %vm8945, %v8783, %v9107
        %v9270 = vsel %vm8946, %v8784, %v9108
        %v9271 = vsel %vm8947, %v8785, %v9109
        %v9272 = vsel %vm8948, %v8786, %v9110
        %v9273 = vsel %vm8949, %v8787, %v9111
        %v9274 = vsel %vm8950, %v8788, %v9112
        %v9275 = vsel %vm8951, %v8789, %v9113
        %v9276 = vsel %vm8952, %v8790, %v9114
        %v9277 = vsel %vm8953, %v8791, %v9115
        %v9278 = vsel %vm8954, %v8792, %v9116
        %v9279 = vsel %vm8955, %v8793, %v9117
        %v9280 = vsel %vm8956, %v8794, %v9118
        %v9281 = vsel %vm8957, %v8795, %v9119
        %v9282 = vsel %vm8958, %v8796, %v9120
        %v9283 = vsel %vm8959, %v8797, %v9121
        %v9284 = vsel %vm8960, %v8798, %v9122
        %v9285 = vsel %vm8961, %v8799, %v9123
        %v9286 = vsel %vm8962, %v8800, %v9124
        %s9287 = smul.u32 %s25, 16
        %s9288 = ssub.s32 %s9287, 1
        %v9289 = vstv %s9288
        %v9290 = vadd.s32 %v9289, 1
        %v9291 = vadd.s32 %v9289, 2
        %v9292 = vadd.s32 %v9289, 3
        %v9293 = vadd.s32 %v9289, 4
        %v9294 = vadd.s32 %v9289, 5
        %v9295 = vadd.s32 %v9289, 6
        %v9296 = vadd.s32 %v9289, 7
        %v9297 = vadd.s32 %v9289, 8
        %v9298 = vadd.s32 %v9289, 9
        %v9299 = vadd.s32 %v9289, 10
        %v9300 = vadd.s32 %v9289, 11
        %v9301 = vadd.s32 %v9289, 12
        %v9302 = vadd.s32 %v9289, 13
        %v9303 = vadd.s32 %v9289, 14
        %v9304 = vadd.s32 %v9289, 15
        %v9305 = vadd.s32 %v9289, 16
        %v9306 = vadd.s32 %v9289, 17
        %v9307 = vlaneseq
        %v9308 = vshrl.u32 %v9307, 7
        %v9309 = vadd.s32 %v9308, 8
        %v9310 = vadd.s32 %v9308, 16
        %v9311 = vsub.s32 %v9308, 1
        %v9312 = vsub.s32 %v9309, 1
        %v9313 = vsub.s32 %v9310, 1
        %vm9314 = vcmp.ge.s32.totalorder %v9289, 0
        %vm9315 = vcmp.ge.s32.totalorder %v9290, 0
        %vm9316 = vcmp.ge.s32.totalorder %v9291, 0
        %vm9317 = vcmp.ge.s32.totalorder %v9292, 0
        %vm9318 = vcmp.ge.s32.totalorder %v9293, 0
        %vm9319 = vcmp.ge.s32.totalorder %v9294, 0
        %vm9320 = vcmp.ge.s32.totalorder %v9295, 0
        %vm9321 = vcmp.ge.s32.totalorder %v9296, 0
        %vm9322 = vcmp.ge.s32.totalorder %v9297, 0
        %vm9323 = vcmp.ge.s32.totalorder %v9298, 0
        %vm9324 = vcmp.ge.s32.totalorder %v9299, 0
        %vm9325 = vcmp.ge.s32.totalorder %v9300, 0
        %vm9326 = vcmp.ge.s32.totalorder %v9301, 0
        %vm9327 = vcmp.ge.s32.totalorder %v9302, 0
        %vm9328 = vcmp.ge.s32.totalorder %v9303, 0
        %vm9329 = vcmp.ge.s32.totalorder %v9304, 0
        %vm9330 = vcmp.ge.s32.totalorder %v9305, 0
        %vm9331 = vcmp.ge.s32.totalorder %v9306, 0
        %vm9332 = vcmp.lt.s32.totalorder %v9289, 16
        %vm9333 = vcmp.lt.s32.totalorder %v9290, 16
        %vm9334 = vcmp.lt.s32.totalorder %v9291, 16
        %vm9335 = vcmp.lt.s32.totalorder %v9292, 16
        %vm9336 = vcmp.lt.s32.totalorder %v9293, 16
        %vm9337 = vcmp.lt.s32.totalorder %v9294, 16
        %vm9338 = vcmp.lt.s32.totalorder %v9295, 16
        %vm9339 = vcmp.lt.s32.totalorder %v9296, 16
        %vm9340 = vcmp.lt.s32.totalorder %v9297, 16
        %vm9341 = vcmp.lt.s32.totalorder %v9298, 16
        %vm9342 = vcmp.lt.s32.totalorder %v9299, 16
        %vm9343 = vcmp.lt.s32.totalorder %v9300, 16
        %vm9344 = vcmp.lt.s32.totalorder %v9301, 16
        %vm9345 = vcmp.lt.s32.totalorder %v9302, 16
        %vm9346 = vcmp.lt.s32.totalorder %v9303, 16
        %vm9347 = vcmp.lt.s32.totalorder %v9304, 16
        %vm9348 = vcmp.lt.s32.totalorder %v9305, 16
        %vm9349 = vcmp.lt.s32.totalorder %v9306, 16
        %vm9350 = vmand %vm9314, %vm9332
        %vm9351 = vmand %vm9315, %vm9333
        %vm9352 = vmand %vm9316, %vm9334
        %vm9353 = vmand %vm9317, %vm9335
        %vm9354 = vmand %vm9318, %vm9336
        %vm9355 = vmand %vm9319, %vm9337
        %vm9356 = vmand %vm9320, %vm9338
        %vm9357 = vmand %vm9321, %vm9339
        %vm9358 = vmand %vm9322, %vm9340
        %vm9359 = vmand %vm9323, %vm9341
        %vm9360 = vmand %vm9324, %vm9342
        %vm9361 = vmand %vm9325, %vm9343
        %vm9362 = vmand %vm9326, %vm9344
        %vm9363 = vmand %vm9327, %vm9345
        %vm9364 = vmand %vm9328, %vm9346
        %vm9365 = vmand %vm9329, %vm9347
        %vm9366 = vmand %vm9330, %vm9348
        %vm9367 = vmand %vm9331, %vm9349
        %vm9368 = vcmp.ge.s32.totalorder %v9311, 0
        %vm9369 = vcmp.ge.s32.totalorder %v9312, 0
        %vm9370 = vcmp.ge.s32.totalorder %v9313, 0
        %vm9371 = vmand %vm9350, %vm9368
        %vm9372 = vmand %vm9350, %vm9369
        %vm9373 = vmand %vm9350, %vm9370
        %vm9374 = vmand %vm9351, %vm9368
        %vm9375 = vmand %vm9351, %vm9369
        %vm9376 = vmand %vm9351, %vm9370
        %vm9377 = vmand %vm9352, %vm9368
        %vm9378 = vmand %vm9352, %vm9369
        %vm9379 = vmand %vm9352, %vm9370
        %vm9380 = vmand %vm9353, %vm9368
        %vm9381 = vmand %vm9353, %vm9369
        %vm9382 = vmand %vm9353, %vm9370
        %vm9383 = vmand %vm9354, %vm9368
        %vm9384 = vmand %vm9354, %vm9369
        %vm9385 = vmand %vm9354, %vm9370
        %vm9386 = vmand %vm9355, %vm9368
        %vm9387 = vmand %vm9355, %vm9369
        %vm9388 = vmand %vm9355, %vm9370
        %vm9389 = vmand %vm9356, %vm9368
        %vm9390 = vmand %vm9356, %vm9369
        %vm9391 = vmand %vm9356, %vm9370
        %vm9392 = vmand %vm9357, %vm9368
        %vm9393 = vmand %vm9357, %vm9369
        %vm9394 = vmand %vm9357, %vm9370
        %vm9395 = vmand %vm9358, %vm9368
        %vm9396 = vmand %vm9358, %vm9369
        %vm9397 = vmand %vm9358, %vm9370
        %vm9398 = vmand %vm9359, %vm9368
        %vm9399 = vmand %vm9359, %vm9369
        %vm9400 = vmand %vm9359, %vm9370
        %vm9401 = vmand %vm9360, %vm9368
        %vm9402 = vmand %vm9360, %vm9369
        %vm9403 = vmand %vm9360, %vm9370
        %vm9404 = vmand %vm9361, %vm9368
        %vm9405 = vmand %vm9361, %vm9369
        %vm9406 = vmand %vm9361, %vm9370
        %vm9407 = vmand %vm9362, %vm9368
        %vm9408 = vmand %vm9362, %vm9369
        %vm9409 = vmand %vm9362, %vm9370
        %vm9410 = vmand %vm9363, %vm9368
        %vm9411 = vmand %vm9363, %vm9369
        %vm9412 = vmand %vm9363, %vm9370
        %vm9413 = vmand %vm9364, %vm9368
        %vm9414 = vmand %vm9364, %vm9369
        %vm9415 = vmand %vm9364, %vm9370
        %vm9416 = vmand %vm9365, %vm9368
        %vm9417 = vmand %vm9365, %vm9369
        %vm9418 = vmand %vm9365, %vm9370
        %vm9419 = vmand %vm9366, %vm9368
        %vm9420 = vmand %vm9366, %vm9369
        %vm9421 = vmand %vm9366, %vm9370
        %vm9422 = vmand %vm9367, %vm9368
        %vm9423 = vmand %vm9367, %vm9369
        %vm9424 = vmand %vm9367, %vm9370
        %vm9425 = vcmp.lt.s32.totalorder %v9311, 16
        %vm9426 = vcmp.lt.s32.totalorder %v9312, 16
        %vm9427 = vcmp.lt.s32.totalorder %v9313, 16
        %vm9428 = vmand %vm9371, %vm9425
        %vm9429 = vmand %vm9372, %vm9426
        %vm9430 = vmand %vm9373, %vm9427
        %vm9431 = vmand %vm9374, %vm9425
        %vm9432 = vmand %vm9375, %vm9426
        %vm9433 = vmand %vm9376, %vm9427
        %vm9434 = vmand %vm9377, %vm9425
        %vm9435 = vmand %vm9378, %vm9426
        %vm9436 = vmand %vm9379, %vm9427
        %vm9437 = vmand %vm9380, %vm9425
        %vm9438 = vmand %vm9381, %vm9426
        %vm9439 = vmand %vm9382, %vm9427
        %vm9440 = vmand %vm9383, %vm9425
        %vm9441 = vmand %vm9384, %vm9426
        %vm9442 = vmand %vm9385, %vm9427
        %vm9443 = vmand %vm9386, %vm9425
        %vm9444 = vmand %vm9387, %vm9426
        %vm9445 = vmand %vm9388, %vm9427
        %vm9446 = vmand %vm9389, %vm9425
        %vm9447 = vmand %vm9390, %vm9426
        %vm9448 = vmand %vm9391, %vm9427
        %vm9449 = vmand %vm9392, %vm9425
        %vm9450 = vmand %vm9393, %vm9426
        %vm9451 = vmand %vm9394, %vm9427
        %vm9452 = vmand %vm9395, %vm9425
        %vm9453 = vmand %vm9396, %vm9426
        %vm9454 = vmand %vm9397, %vm9427
        %vm9455 = vmand %vm9398, %vm9425
        %vm9456 = vmand %vm9399, %vm9426
        %vm9457 = vmand %vm9400, %vm9427
        %vm9458 = vmand %vm9401, %vm9425
        %vm9459 = vmand %vm9402, %vm9426
        %vm9460 = vmand %vm9403, %vm9427
        %vm9461 = vmand %vm9404, %vm9425
        %vm9462 = vmand %vm9405, %vm9426
        %vm9463 = vmand %vm9406, %vm9427
        %vm9464 = vmand %vm9407, %vm9425
        %vm9465 = vmand %vm9408, %vm9426
        %vm9466 = vmand %vm9409, %vm9427
        %vm9467 = vmand %vm9410, %vm9425
        %vm9468 = vmand %vm9411, %vm9426
        %vm9469 = vmand %vm9412, %vm9427
        %vm9470 = vmand %vm9413, %vm9425
        %vm9471 = vmand %vm9414, %vm9426
        %vm9472 = vmand %vm9415, %vm9427
        %vm9473 = vmand %vm9416, %vm9425
        %vm9474 = vmand %vm9417, %vm9426
        %vm9475 = vmand %vm9418, %vm9427
        %vm9476 = vmand %vm9419, %vm9425
        %vm9477 = vmand %vm9420, %vm9426
        %vm9478 = vmand %vm9421, %vm9427
        %vm9479 = vmand %vm9422, %vm9425
        %vm9480 = vmand %vm9423, %vm9426
        %vm9481 = vmand %vm9424, %vm9427
        %v9482 = vsel %vm9428, 1, 0
        %v9483 = vsel %vm9429, 1, 0
        %v9484 = vsel %vm9430, 1, 0
        %v9485 = vsel %vm9431, 1, 0
        %v9486 = vsel %vm9432, 1, 0
        %v9487 = vsel %vm9433, 1, 0
        %v9488 = vsel %vm9434, 1, 0
        %v9489 = vsel %vm9435, 1, 0
        %v9490 = vsel %vm9436, 1, 0
        %v9491 = vsel %vm9437, 1, 0
        %v9492 = vsel %vm9438, 1, 0
        %v9493 = vsel %vm9439, 1, 0
        %v9494 = vsel %vm9440, 1, 0
        %v9495 = vsel %vm9441, 1, 0
        %v9496 = vsel %vm9442, 1, 0
        %v9497 = vsel %vm9443, 1, 0
        %v9498 = vsel %vm9444, 1, 0
        %v9499 = vsel %vm9445, 1, 0
        %v9500 = vsel %vm9446, 1, 0
        %v9501 = vsel %vm9447, 1, 0
        %v9502 = vsel %vm9448, 1, 0
        %v9503 = vsel %vm9449, 1, 0
        %v9504 = vsel %vm9450, 1, 0
        %v9505 = vsel %vm9451, 1, 0
        %v9506 = vsel %vm9452, 1, 0
        %v9507 = vsel %vm9453, 1, 0
        %v9508 = vsel %vm9454, 1, 0
        %v9509 = vsel %vm9455, 1, 0
        %v9510 = vsel %vm9456, 1, 0
        %v9511 = vsel %vm9457, 1, 0
        %v9512 = vsel %vm9458, 1, 0
        %v9513 = vsel %vm9459, 1, 0
        %v9514 = vsel %vm9460, 1, 0
        %v9515 = vsel %vm9461, 1, 0
        %v9516 = vsel %vm9462, 1, 0
        %v9517 = vsel %vm9463, 1, 0
        %v9518 = vsel %vm9464, 1, 0
        %v9519 = vsel %vm9465, 1, 0
        %v9520 = vsel %vm9466, 1, 0
        %v9521 = vsel %vm9467, 1, 0
        %v9522 = vsel %vm9468, 1, 0
        %v9523 = vsel %vm9469, 1, 0
        %v9524 = vsel %vm9470, 1, 0
        %v9525 = vsel %vm9471, 1, 0
        %v9526 = vsel %vm9472, 1, 0
        %v9527 = vsel %vm9473, 1, 0
        %v9528 = vsel %vm9474, 1, 0
        %v9529 = vsel %vm9475, 1, 0
        %v9530 = vsel %vm9476, 1, 0
        %v9531 = vsel %vm9477, 1, 0
        %v9532 = vsel %vm9478, 1, 0
        %v9533 = vsel %vm9479, 1, 0
        %v9534 = vsel %vm9480, 1, 0
        %v9535 = vsel %vm9481, 1, 0
        %vm9536 = vcmp.eq.s32.totalorder %v9482, 1
        %vm9537 = vcmp.eq.s32.totalorder %v9483, 1
        %vm9538 = vcmp.eq.s32.totalorder %v9484, 1
        %vm9539 = vcmp.eq.s32.totalorder %v9485, 1
        %vm9540 = vcmp.eq.s32.totalorder %v9486, 1
        %vm9541 = vcmp.eq.s32.totalorder %v9487, 1
        %vm9542 = vcmp.eq.s32.totalorder %v9488, 1
        %vm9543 = vcmp.eq.s32.totalorder %v9489, 1
        %vm9544 = vcmp.eq.s32.totalorder %v9490, 1
        %vm9545 = vcmp.eq.s32.totalorder %v9491, 1
        %vm9546 = vcmp.eq.s32.totalorder %v9492, 1
        %vm9547 = vcmp.eq.s32.totalorder %v9493, 1
        %vm9548 = vcmp.eq.s32.totalorder %v9494, 1
        %vm9549 = vcmp.eq.s32.totalorder %v9495, 1
        %vm9550 = vcmp.eq.s32.totalorder %v9496, 1
        %vm9551 = vcmp.eq.s32.totalorder %v9497, 1
        %vm9552 = vcmp.eq.s32.totalorder %v9498, 1
        %vm9553 = vcmp.eq.s32.totalorder %v9499, 1
        %vm9554 = vcmp.eq.s32.totalorder %v9500, 1
        %vm9555 = vcmp.eq.s32.totalorder %v9501, 1
        %vm9556 = vcmp.eq.s32.totalorder %v9502, 1
        %vm9557 = vcmp.eq.s32.totalorder %v9503, 1
        %vm9558 = vcmp.eq.s32.totalorder %v9504, 1
        %vm9559 = vcmp.eq.s32.totalorder %v9505, 1
        %vm9560 = vcmp.eq.s32.totalorder %v9506, 1
        %vm9561 = vcmp.eq.s32.totalorder %v9507, 1
        %vm9562 = vcmp.eq.s32.totalorder %v9508, 1
        %vm9563 = vcmp.eq.s32.totalorder %v9509, 1
        %vm9564 = vcmp.eq.s32.totalorder %v9510, 1
        %vm9565 = vcmp.eq.s32.totalorder %v9511, 1
        %vm9566 = vcmp.eq.s32.totalorder %v9512, 1
        %vm9567 = vcmp.eq.s32.totalorder %v9513, 1
        %vm9568 = vcmp.eq.s32.totalorder %v9514, 1
        %vm9569 = vcmp.eq.s32.totalorder %v9515, 1
        %vm9570 = vcmp.eq.s32.totalorder %v9516, 1
        %vm9571 = vcmp.eq.s32.totalorder %v9517, 1
        %vm9572 = vcmp.eq.s32.totalorder %v9518, 1
        %vm9573 = vcmp.eq.s32.totalorder %v9519, 1
        %vm9574 = vcmp.eq.s32.totalorder %v9520, 1
        %vm9575 = vcmp.eq.s32.totalorder %v9521, 1
        %vm9576 = vcmp.eq.s32.totalorder %v9522, 1
        %vm9577 = vcmp.eq.s32.totalorder %v9523, 1
        %vm9578 = vcmp.eq.s32.totalorder %v9524, 1
        %vm9579 = vcmp.eq.s32.totalorder %v9525, 1
        %vm9580 = vcmp.eq.s32.totalorder %v9526, 1
        %vm9581 = vcmp.eq.s32.totalorder %v9527, 1
        %vm9582 = vcmp.eq.s32.totalorder %v9528, 1
        %vm9583 = vcmp.eq.s32.totalorder %v9529, 1
        %vm9584 = vcmp.eq.s32.totalorder %v9530, 1
        %vm9585 = vcmp.eq.s32.totalorder %v9531, 1
        %vm9586 = vcmp.eq.s32.totalorder %v9532, 1
        %vm9587 = vcmp.eq.s32.totalorder %v9533, 1
        %vm9588 = vcmp.eq.s32.totalorder %v9534, 1
        %vm9589 = vcmp.eq.s32.totalorder %v9535, 1
        %v9752 = vcombine.low %v9125, %v9126
        %v9753 = vcombine.low %v9127, %v9128
        %v9755 = vunpack.c.l.s4 1983009808
        %v9756 = vunpack.c.0.s8 %v9755
        %v9757 = vlaneseq
        %v9758 = vshrl.u32 %v9757, 7
        %v9759 = vsub.s32 %v9756, %v9758
        %v9760 = vrot.slane %v9752, %v9759
        %v9762 = vunpack.c.l.s4 1983009808
        %v9763 = vunpack.c.0.s8 %v9762
        %v9764 = vlaneseq
        %v9765 = vshrl.u32 %v9764, 7
        %v9766 = vsub.s32 %v9763, %v9765
        %v9767 = vrot.slane %v9753, %v9766
        %v9768 = vcombine.low %v9760, %v9767
        %v9769 = vcombine.low %v9129, %v9130
        %v9770 = vcombine.low %v9131, %v9132
        %v9772 = vunpack.c.l.s4 1983009808
        %v9773 = vunpack.c.0.s8 %v9772
        %v9774 = vlaneseq
        %v9775 = vshrl.u32 %v9774, 7
        %v9776 = vsub.s32 %v9773, %v9775
        %v9777 = vrot.slane %v9769, %v9776
        %v9779 = vunpack.c.l.s4 1983009808
        %v9780 = vunpack.c.0.s8 %v9779
        %v9781 = vlaneseq
        %v9782 = vshrl.u32 %v9781, 7
        %v9783 = vsub.s32 %v9780, %v9782
        %v9784 = vrot.slane %v9770, %v9783
        %v9785 = vcombine.low %v9777, %v9784
        %v9787 = vunpack.c.l.s4 1983009808
        %v9788 = vunpack.c.0.s8 %v9787
        %v9789 = vlaneseq
        %v9790 = vshrl.u32 %v9789, 7
        %v9791 = vsub.s32 %v9788, %v9790
        %v9792 = vrot.slane %v9133, %v9791
        %v9793 = vcombine.low %v9134, %v9135
        %v9794 = vcombine.low %v9136, %v9137
        %v9796 = vunpack.c.l.s4 1983009808
        %v9797 = vunpack.c.0.s8 %v9796
        %v9798 = vlaneseq
        %v9799 = vshrl.u32 %v9798, 7
        %v9800 = vsub.s32 %v9797, %v9799
        %v9801 = vrot.slane %v9793, %v9800
        %v9803 = vunpack.c.l.s4 1983009808
        %v9804 = vunpack.c.0.s8 %v9803
        %v9805 = vlaneseq
        %v9806 = vshrl.u32 %v9805, 7
        %v9807 = vsub.s32 %v9804, %v9806
        %v9808 = vrot.slane %v9794, %v9807
        %v9809 = vcombine.low %v9801, %v9808
        %v9810 = vcombine.low %v9138, %v9139
        %v9811 = vcombine.low %v9140, %v9141
        %v9813 = vunpack.c.l.s4 1983009808
        %v9814 = vunpack.c.0.s8 %v9813
        %v9815 = vlaneseq
        %v9816 = vshrl.u32 %v9815, 7
        %v9817 = vsub.s32 %v9814, %v9816
        %v9818 = vrot.slane %v9810, %v9817
        %v9820 = vunpack.c.l.s4 1983009808
        %v9821 = vunpack.c.0.s8 %v9820
        %v9822 = vlaneseq
        %v9823 = vshrl.u32 %v9822, 7
        %v9824 = vsub.s32 %v9821, %v9823
        %v9825 = vrot.slane %v9811, %v9824
        %v9826 = vcombine.low %v9818, %v9825
        %v9828 = vunpack.c.l.s4 1983009808
        %v9829 = vunpack.c.0.s8 %v9828
        %v9830 = vlaneseq
        %v9831 = vshrl.u32 %v9830, 7
        %v9832 = vsub.s32 %v9829, %v9831
        %v9833 = vrot.slane %v9142, %v9832
        %v9834 = vcombine.low %v9143, %v9144
        %v9835 = vcombine.low %v9145, %v9146
        %v9837 = vunpack.c.l.s4 1983009808
        %v9838 = vunpack.c.0.s8 %v9837
        %v9839 = vlaneseq
        %v9840 = vshrl.u32 %v9839, 7
        %v9841 = vsub.s32 %v9838, %v9840
        %v9842 = vrot.slane %v9834, %v9841
        %v9844 = vunpack.c.l.s4 1983009808
        %v9845 = vunpack.c.0.s8 %v9844
        %v9846 = vlaneseq
        %v9847 = vshrl.u32 %v9846, 7
        %v9848 = vsub.s32 %v9845, %v9847
        %v9849 = vrot.slane %v9835, %v9848
        %v9850 = vcombine.low %v9842, %v9849
        %v9851 = vcombine.low %v9147, %v9148
        %v9852 = vcombine.low %v9149, %v9150
        %v9854 = vunpack.c.l.s4 1983009808
        %v9855 = vunpack.c.0.s8 %v9854
        %v9856 = vlaneseq
        %v9857 = vshrl.u32 %v9856, 7
        %v9858 = vsub.s32 %v9855, %v9857
        %v9859 = vrot.slane %v9851, %v9858
        %v9861 = vunpack.c.l.s4 1983009808
        %v9862 = vunpack.c.0.s8 %v9861
        %v9863 = vlaneseq
        %v9864 = vshrl.u32 %v9863, 7
        %v9865 = vsub.s32 %v9862, %v9864
        %v9866 = vrot.slane %v9852, %v9865
        %v9867 = vcombine.low %v9859, %v9866
        %v9869 = vunpack.c.l.s4 1983009808
        %v9870 = vunpack.c.0.s8 %v9869
        %v9871 = vlaneseq
        %v9872 = vshrl.u32 %v9871, 7
        %v9873 = vsub.s32 %v9870, %v9872
        %v9874 = vrot.slane %v9151, %v9873
        %v9875 = vcombine.low %v9152, %v9153
        %v9876 = vcombine.low %v9154, %v9155
        %v9878 = vunpack.c.l.s4 1983009808
        %v9879 = vunpack.c.0.s8 %v9878
        %v9880 = vlaneseq
        %v9881 = vshrl.u32 %v9880, 7
        %v9882 = vsub.s32 %v9879, %v9881
        %v9883 = vrot.slane %v9875, %v9882
        %v9885 = vunpack.c.l.s4 1983009808
        %v9886 = vunpack.c.0.s8 %v9885
        %v9887 = vlaneseq
        %v9888 = vshrl.u32 %v9887, 7
        %v9889 = vsub.s32 %v9886, %v9888
        %v9890 = vrot.slane %v9876, %v9889
        %v9891 = vcombine.low %v9883, %v9890
        %v9892 = vcombine.low %v9156, %v9157
        %v9893 = vcombine.low %v9158, %v9159
        %v9895 = vunpack.c.l.s4 1983009808
        %v9896 = vunpack.c.0.s8 %v9895
        %v9897 = vlaneseq
        %v9898 = vshrl.u32 %v9897, 7
        %v9899 = vsub.s32 %v9896, %v9898
        %v9900 = vrot.slane %v9892, %v9899
        %v9902 = vunpack.c.l.s4 1983009808
        %v9903 = vunpack.c.0.s8 %v9902
        %v9904 = vlaneseq
        %v9905 = vshrl.u32 %v9904, 7
        %v9906 = vsub.s32 %v9903, %v9905
        %v9907 = vrot.slane %v9893, %v9906
        %v9908 = vcombine.low %v9900, %v9907
        %v9910 = vunpack.c.l.s4 1983009808
        %v9911 = vunpack.c.0.s8 %v9910
        %v9912 = vlaneseq
        %v9913 = vshrl.u32 %v9912, 7
        %v9914 = vsub.s32 %v9911, %v9913
        %v9915 = vrot.slane %v9160, %v9914
        %v9916 = vcombine.low %v9161, %v9162
        %v9917 = vcombine.low %v9163, %v9164
        %v9919 = vunpack.c.l.s4 1983009808
        %v9920 = vunpack.c.0.s8 %v9919
        %v9921 = vlaneseq
        %v9922 = vshrl.u32 %v9921, 7
        %v9923 = vsub.s32 %v9920, %v9922
        %v9924 = vrot.slane %v9916, %v9923
        %v9926 = vunpack.c.l.s4 1983009808
        %v9927 = vunpack.c.0.s8 %v9926
        %v9928 = vlaneseq
        %v9929 = vshrl.u32 %v9928, 7
        %v9930 = vsub.s32 %v9927, %v9929
        %v9931 = vrot.slane %v9917, %v9930
        %v9932 = vcombine.low %v9924, %v9931
        %v9933 = vcombine.low %v9165, %v9166
        %v9934 = vcombine.low %v9167, %v9168
        %v9936 = vunpack.c.l.s4 1983009808
        %v9937 = vunpack.c.0.s8 %v9936
        %v9938 = vlaneseq
        %v9939 = vshrl.u32 %v9938, 7
        %v9940 = vsub.s32 %v9937, %v9939
        %v9941 = vrot.slane %v9933, %v9940
        %v9943 = vunpack.c.l.s4 1983009808
        %v9944 = vunpack.c.0.s8 %v9943
        %v9945 = vlaneseq
        %v9946 = vshrl.u32 %v9945, 7
        %v9947 = vsub.s32 %v9944, %v9946
        %v9948 = vrot.slane %v9934, %v9947
        %v9949 = vcombine.low %v9941, %v9948
        %v9951 = vunpack.c.l.s4 1983009808
        %v9952 = vunpack.c.0.s8 %v9951
        %v9953 = vlaneseq
        %v9954 = vshrl.u32 %v9953, 7
        %v9955 = vsub.s32 %v9952, %v9954
        %v9956 = vrot.slane %v9169, %v9955
        %v9957 = vcombine.low %v9170, %v9171
        %v9958 = vcombine.low %v9172, %v9173
        %v9960 = vunpack.c.l.s4 1983009808
        %v9961 = vunpack.c.0.s8 %v9960
        %v9962 = vlaneseq
        %v9963 = vshrl.u32 %v9962, 7
        %v9964 = vsub.s32 %v9961, %v9963
        %v9965 = vrot.slane %v9957, %v9964
        %v9967 = vunpack.c.l.s4 1983009808
        %v9968 = vunpack.c.0.s8 %v9967
        %v9969 = vlaneseq
        %v9970 = vshrl.u32 %v9969, 7
        %v9971 = vsub.s32 %v9968, %v9970
        %v9972 = vrot.slane %v9958, %v9971
        %v9973 = vcombine.low %v9965, %v9972
        %v9974 = vcombine.low %v9174, %v9175
        %v9975 = vcombine.low %v9176, %v9177
        %v9977 = vunpack.c.l.s4 1983009808
        %v9978 = vunpack.c.0.s8 %v9977
        %v9979 = vlaneseq
        %v9980 = vshrl.u32 %v9979, 7
        %v9981 = vsub.s32 %v9978, %v9980
        %v9982 = vrot.slane %v9974, %v9981
        %v9984 = vunpack.c.l.s4 1983009808
        %v9985 = vunpack.c.0.s8 %v9984
        %v9986 = vlaneseq
        %v9987 = vshrl.u32 %v9986, 7
        %v9988 = vsub.s32 %v9985, %v9987
        %v9989 = vrot.slane %v9975, %v9988
        %v9990 = vcombine.low %v9982, %v9989
        %v9992 = vunpack.c.l.s4 1983009808
        %v9993 = vunpack.c.0.s8 %v9992
        %v9994 = vlaneseq
        %v9995 = vshrl.u32 %v9994, 7
        %v9996 = vsub.s32 %v9993, %v9995
        %v9997 = vrot.slane %v9178, %v9996
        %v9998 = vcombine.low %v9179, %v9180
        %v9999 = vcombine.low %v9181, %v9182
        %v10001 = vunpack.c.l.s4 1983009808
        %v10002 = vunpack.c.0.s8 %v10001
        %v10003 = vlaneseq
        %v10004 = vshrl.u32 %v10003, 7
        %v10005 = vsub.s32 %v10002, %v10004
        %v10006 = vrot.slane %v9998, %v10005
        %v10008 = vunpack.c.l.s4 1983009808
        %v10009 = vunpack.c.0.s8 %v10008
        %v10010 = vlaneseq
        %v10011 = vshrl.u32 %v10010, 7
        %v10012 = vsub.s32 %v10009, %v10011
        %v10013 = vrot.slane %v9999, %v10012
        %v10014 = vcombine.low %v10006, %v10013
        %v10015 = vcombine.low %v9183, %v9184
        %v10016 = vcombine.low %v9185, %v9186
        %v10018 = vunpack.c.l.s4 1983009808
        %v10019 = vunpack.c.0.s8 %v10018
        %v10020 = vlaneseq
        %v10021 = vshrl.u32 %v10020, 7
        %v10022 = vsub.s32 %v10019, %v10021
        %v10023 = vrot.slane %v10015, %v10022
        %v10025 = vunpack.c.l.s4 1983009808
        %v10026 = vunpack.c.0.s8 %v10025
        %v10027 = vlaneseq
        %v10028 = vshrl.u32 %v10027, 7
        %v10029 = vsub.s32 %v10026, %v10028
        %v10030 = vrot.slane %v10016, %v10029
        %v10031 = vcombine.low %v10023, %v10030
        %v10033 = vunpack.c.l.s4 1983009808
        %v10034 = vunpack.c.0.s8 %v10033
        %v10035 = vlaneseq
        %v10036 = vshrl.u32 %v10035, 7
        %v10037 = vsub.s32 %v10034, %v10036
        %v10038 = vrot.slane %v9187, %v10037
        %v10039 = vcombine.low %v9188, %v9189
        %v10040 = vcombine.low %v9190, %v9191
        %v10042 = vunpack.c.l.s4 1983009808
        %v10043 = vunpack.c.0.s8 %v10042
        %v10044 = vlaneseq
        %v10045 = vshrl.u32 %v10044, 7
        %v10046 = vsub.s32 %v10043, %v10045
        %v10047 = vrot.slane %v10039, %v10046
        %v10049 = vunpack.c.l.s4 1983009808
        %v10050 = vunpack.c.0.s8 %v10049
        %v10051 = vlaneseq
        %v10052 = vshrl.u32 %v10051, 7
        %v10053 = vsub.s32 %v10050, %v10052
        %v10054 = vrot.slane %v10040, %v10053
        %v10055 = vcombine.low %v10047, %v10054
        %v10056 = vcombine.low %v9192, %v9193
        %v10057 = vcombine.low %v9194, %v9195
        %v10059 = vunpack.c.l.s4 1983009808
        %v10060 = vunpack.c.0.s8 %v10059
        %v10061 = vlaneseq
        %v10062 = vshrl.u32 %v10061, 7
        %v10063 = vsub.s32 %v10060, %v10062
        %v10064 = vrot.slane %v10056, %v10063
        %v10066 = vunpack.c.l.s4 1983009808
        %v10067 = vunpack.c.0.s8 %v10066
        %v10068 = vlaneseq
        %v10069 = vshrl.u32 %v10068, 7
        %v10070 = vsub.s32 %v10067, %v10069
        %v10071 = vrot.slane %v10057, %v10070
        %v10072 = vcombine.low %v10064, %v10071
        %v10074 = vunpack.c.l.s4 1983009808
        %v10075 = vunpack.c.0.s8 %v10074
        %v10076 = vlaneseq
        %v10077 = vshrl.u32 %v10076, 7
        %v10078 = vsub.s32 %v10075, %v10077
        %v10079 = vrot.slane %v9196, %v10078
        %v10080 = vcombine.low %v9197, %v9198
        %v10081 = vcombine.low %v9199, %v9200
        %v10083 = vunpack.c.l.s4 1983009808
        %v10084 = vunpack.c.0.s8 %v10083
        %v10085 = vlaneseq
        %v10086 = vshrl.u32 %v10085, 7
        %v10087 = vsub.s32 %v10084, %v10086
        %v10088 = vrot.slane %v10080, %v10087
        %v10090 = vunpack.c.l.s4 1983009808
        %v10091 = vunpack.c.0.s8 %v10090
        %v10092 = vlaneseq
        %v10093 = vshrl.u32 %v10092, 7
        %v10094 = vsub.s32 %v10091, %v10093
        %v10095 = vrot.slane %v10081, %v10094
        %v10096 = vcombine.low %v10088, %v10095
        %v10097 = vcombine.low %v9201, %v9202
        %v10098 = vcombine.low %v9203, %v9204
        %v10100 = vunpack.c.l.s4 1983009808
        %v10101 = vunpack.c.0.s8 %v10100
        %v10102 = vlaneseq
        %v10103 = vshrl.u32 %v10102, 7
        %v10104 = vsub.s32 %v10101, %v10103
        %v10105 = vrot.slane %v10097, %v10104
        %v10107 = vunpack.c.l.s4 1983009808
        %v10108 = vunpack.c.0.s8 %v10107
        %v10109 = vlaneseq
        %v10110 = vshrl.u32 %v10109, 7
        %v10111 = vsub.s32 %v10108, %v10110
        %v10112 = vrot.slane %v10098, %v10111
        %v10113 = vcombine.low %v10105, %v10112
        %v10115 = vunpack.c.l.s4 1983009808
        %v10116 = vunpack.c.0.s8 %v10115
        %v10117 = vlaneseq
        %v10118 = vshrl.u32 %v10117, 7
        %v10119 = vsub.s32 %v10116, %v10118
        %v10120 = vrot.slane %v9205, %v10119
        %v10121 = vcombine.low %v9206, %v9207
        %v10122 = vcombine.low %v9208, %v9209
        %v10124 = vunpack.c.l.s4 1983009808
        %v10125 = vunpack.c.0.s8 %v10124
        %v10126 = vlaneseq
        %v10127 = vshrl.u32 %v10126, 7
        %v10128 = vsub.s32 %v10125, %v10127
        %v10129 = vrot.slane %v10121, %v10128
        %v10131 = vunpack.c.l.s4 1983009808
        %v10132 = vunpack.c.0.s8 %v10131
        %v10133 = vlaneseq
        %v10134 = vshrl.u32 %v10133, 7
        %v10135 = vsub.s32 %v10132, %v10134
        %v10136 = vrot.slane %v10122, %v10135
        %v10137 = vcombine.low %v10129, %v10136
        %v10138 = vcombine.low %v9210, %v9211
        %v10139 = vcombine.low %v9212, %v9213
        %v10141 = vunpack.c.l.s4 1983009808
        %v10142 = vunpack.c.0.s8 %v10141
        %v10143 = vlaneseq
        %v10144 = vshrl.u32 %v10143, 7
        %v10145 = vsub.s32 %v10142, %v10144
        %v10146 = vrot.slane %v10138, %v10145
        %v10148 = vunpack.c.l.s4 1983009808
        %v10149 = vunpack.c.0.s8 %v10148
        %v10150 = vlaneseq
        %v10151 = vshrl.u32 %v10150, 7
        %v10152 = vsub.s32 %v10149, %v10151
        %v10153 = vrot.slane %v10139, %v10152
        %v10154 = vcombine.low %v10146, %v10153
        %v10156 = vunpack.c.l.s4 1983009808
        %v10157 = vunpack.c.0.s8 %v10156
        %v10158 = vlaneseq
        %v10159 = vshrl.u32 %v10158, 7
        %v10160 = vsub.s32 %v10157, %v10159
        %v10161 = vrot.slane %v9214, %v10160
        %v10162 = vcombine.low %v9215, %v9216
        %v10163 = vcombine.low %v9217, %v9218
        %v10165 = vunpack.c.l.s4 1983009808
        %v10166 = vunpack.c.0.s8 %v10165
        %v10167 = vlaneseq
        %v10168 = vshrl.u32 %v10167, 7
        %v10169 = vsub.s32 %v10166, %v10168
        %v10170 = vrot.slane %v10162, %v10169
        %v10172 = vunpack.c.l.s4 1983009808
        %v10173 = vunpack.c.0.s8 %v10172
        %v10174 = vlaneseq
        %v10175 = vshrl.u32 %v10174, 7
        %v10176 = vsub.s32 %v10173, %v10175
        %v10177 = vrot.slane %v10163, %v10176
        %v10178 = vcombine.low %v10170, %v10177
        %v10179 = vcombine.low %v9219, %v9220
        %v10180 = vcombine.low %v9221, %v9222
        %v10182 = vunpack.c.l.s4 1983009808
        %v10183 = vunpack.c.0.s8 %v10182
        %v10184 = vlaneseq
        %v10185 = vshrl.u32 %v10184, 7
        %v10186 = vsub.s32 %v10183, %v10185
        %v10187 = vrot.slane %v10179, %v10186
        %v10189 = vunpack.c.l.s4 1983009808
        %v10190 = vunpack.c.0.s8 %v10189
        %v10191 = vlaneseq
        %v10192 = vshrl.u32 %v10191, 7
        %v10193 = vsub.s32 %v10190, %v10192
        %v10194 = vrot.slane %v10180, %v10193
        %v10195 = vcombine.low %v10187, %v10194
        %v10197 = vunpack.c.l.s4 1983009808
        %v10198 = vunpack.c.0.s8 %v10197
        %v10199 = vlaneseq
        %v10200 = vshrl.u32 %v10199, 7
        %v10201 = vsub.s32 %v10198, %v10200
        %v10202 = vrot.slane %v9223, %v10201
        %v10203 = vcombine.low %v9224, %v9225
        %v10204 = vcombine.low %v9226, %v9227
        %v10206 = vunpack.c.l.s4 1983009808
        %v10207 = vunpack.c.0.s8 %v10206
        %v10208 = vlaneseq
        %v10209 = vshrl.u32 %v10208, 7
        %v10210 = vsub.s32 %v10207, %v10209
        %v10211 = vrot.slane %v10203, %v10210
        %v10213 = vunpack.c.l.s4 1983009808
        %v10214 = vunpack.c.0.s8 %v10213
        %v10215 = vlaneseq
        %v10216 = vshrl.u32 %v10215, 7
        %v10217 = vsub.s32 %v10214, %v10216
        %v10218 = vrot.slane %v10204, %v10217
        %v10219 = vcombine.low %v10211, %v10218
        %v10220 = vcombine.low %v9228, %v9229
        %v10221 = vcombine.low %v9230, %v9231
        %v10223 = vunpack.c.l.s4 1983009808
        %v10224 = vunpack.c.0.s8 %v10223
        %v10225 = vlaneseq
        %v10226 = vshrl.u32 %v10225, 7
        %v10227 = vsub.s32 %v10224, %v10226
        %v10228 = vrot.slane %v10220, %v10227
        %v10230 = vunpack.c.l.s4 1983009808
        %v10231 = vunpack.c.0.s8 %v10230
        %v10232 = vlaneseq
        %v10233 = vshrl.u32 %v10232, 7
        %v10234 = vsub.s32 %v10231, %v10233
        %v10235 = vrot.slane %v10221, %v10234
        %v10236 = vcombine.low %v10228, %v10235
        %v10238 = vunpack.c.l.s4 1983009808
        %v10239 = vunpack.c.0.s8 %v10238
        %v10240 = vlaneseq
        %v10241 = vshrl.u32 %v10240, 7
        %v10242 = vsub.s32 %v10239, %v10241
        %v10243 = vrot.slane %v9232, %v10242
        %v10244 = vcombine.low %v9233, %v9234
        %v10245 = vcombine.low %v9235, %v9236
        %v10247 = vunpack.c.l.s4 1983009808
        %v10248 = vunpack.c.0.s8 %v10247
        %v10249 = vlaneseq
        %v10250 = vshrl.u32 %v10249, 7
        %v10251 = vsub.s32 %v10248, %v10250
        %v10252 = vrot.slane %v10244, %v10251
        %v10254 = vunpack.c.l.s4 1983009808
        %v10255 = vunpack.c.0.s8 %v10254
        %v10256 = vlaneseq
        %v10257 = vshrl.u32 %v10256, 7
        %v10258 = vsub.s32 %v10255, %v10257
        %v10259 = vrot.slane %v10245, %v10258
        %v10260 = vcombine.low %v10252, %v10259
        %v10261 = vcombine.low %v9237, %v9238
        %v10262 = vcombine.low %v9239, %v9240
        %v10264 = vunpack.c.l.s4 1983009808
        %v10265 = vunpack.c.0.s8 %v10264
        %v10266 = vlaneseq
        %v10267 = vshrl.u32 %v10266, 7
        %v10268 = vsub.s32 %v10265, %v10267
        %v10269 = vrot.slane %v10261, %v10268
        %v10271 = vunpack.c.l.s4 1983009808
        %v10272 = vunpack.c.0.s8 %v10271
        %v10273 = vlaneseq
        %v10274 = vshrl.u32 %v10273, 7
        %v10275 = vsub.s32 %v10272, %v10274
        %v10276 = vrot.slane %v10262, %v10275
        %v10277 = vcombine.low %v10269, %v10276
        %v10279 = vunpack.c.l.s4 1983009808
        %v10280 = vunpack.c.0.s8 %v10279
        %v10281 = vlaneseq
        %v10282 = vshrl.u32 %v10281, 7
        %v10283 = vsub.s32 %v10280, %v10282
        %v10284 = vrot.slane %v9241, %v10283
        %v10285 = vcombine.low %v9242, %v9243
        %v10286 = vcombine.low %v9244, %v9245
        %v10288 = vunpack.c.l.s4 1983009808
        %v10289 = vunpack.c.0.s8 %v10288
        %v10290 = vlaneseq
        %v10291 = vshrl.u32 %v10290, 7
        %v10292 = vsub.s32 %v10289, %v10291
        %v10293 = vrot.slane %v10285, %v10292
        %v10295 = vunpack.c.l.s4 1983009808
        %v10296 = vunpack.c.0.s8 %v10295
        %v10297 = vlaneseq
        %v10298 = vshrl.u32 %v10297, 7
        %v10299 = vsub.s32 %v10296, %v10298
        %v10300 = vrot.slane %v10286, %v10299
        %v10301 = vcombine.low %v10293, %v10300
        %v10302 = vcombine.low %v9246, %v9247
        %v10303 = vcombine.low %v9248, %v9249
        %v10305 = vunpack.c.l.s4 1983009808
        %v10306 = vunpack.c.0.s8 %v10305
        %v10307 = vlaneseq
        %v10308 = vshrl.u32 %v10307, 7
        %v10309 = vsub.s32 %v10306, %v10308
        %v10310 = vrot.slane %v10302, %v10309
        %v10312 = vunpack.c.l.s4 1983009808
        %v10313 = vunpack.c.0.s8 %v10312
        %v10314 = vlaneseq
        %v10315 = vshrl.u32 %v10314, 7
        %v10316 = vsub.s32 %v10313, %v10315
        %v10317 = vrot.slane %v10303, %v10316
        %v10318 = vcombine.low %v10310, %v10317
        %v10320 = vunpack.c.l.s4 1983009808
        %v10321 = vunpack.c.0.s8 %v10320
        %v10322 = vlaneseq
        %v10323 = vshrl.u32 %v10322, 7
        %v10324 = vsub.s32 %v10321, %v10323
        %v10325 = vrot.slane %v9250, %v10324
        %v10326 = vcombine.low %v9251, %v9252
        %v10327 = vcombine.low %v9253, %v9254
        %v10329 = vunpack.c.l.s4 1983009808
        %v10330 = vunpack.c.0.s8 %v10329
        %v10331 = vlaneseq
        %v10332 = vshrl.u32 %v10331, 7
        %v10333 = vsub.s32 %v10330, %v10332
        %v10334 = vrot.slane %v10326, %v10333
        %v10336 = vunpack.c.l.s4 1983009808
        %v10337 = vunpack.c.0.s8 %v10336
        %v10338 = vlaneseq
        %v10339 = vshrl.u32 %v10338, 7
        %v10340 = vsub.s32 %v10337, %v10339
        %v10341 = vrot.slane %v10327, %v10340
        %v10342 = vcombine.low %v10334, %v10341
        %v10343 = vcombine.low %v9255, %v9256
        %v10344 = vcombine.low %v9257, %v9258
        %v10346 = vunpack.c.l.s4 1983009808
        %v10347 = vunpack.c.0.s8 %v10346
        %v10348 = vlaneseq
        %v10349 = vshrl.u32 %v10348, 7
        %v10350 = vsub.s32 %v10347, %v10349
        %v10351 = vrot.slane %v10343, %v10350
        %v10353 = vunpack.c.l.s4 1983009808
        %v10354 = vunpack.c.0.s8 %v10353
        %v10355 = vlaneseq
        %v10356 = vshrl.u32 %v10355, 7
        %v10357 = vsub.s32 %v10354, %v10356
        %v10358 = vrot.slane %v10344, %v10357
        %v10359 = vcombine.low %v10351, %v10358
        %v10361 = vunpack.c.l.s4 1983009808
        %v10362 = vunpack.c.0.s8 %v10361
        %v10363 = vlaneseq
        %v10364 = vshrl.u32 %v10363, 7
        %v10365 = vsub.s32 %v10362, %v10364
        %v10366 = vrot.slane %v9259, %v10365
        %v10367 = vcombine.low %v9260, %v9261
        %v10368 = vcombine.low %v9262, %v9263
        %v10370 = vunpack.c.l.s4 1983009808
        %v10371 = vunpack.c.0.s8 %v10370
        %v10372 = vlaneseq
        %v10373 = vshrl.u32 %v10372, 7
        %v10374 = vsub.s32 %v10371, %v10373
        %v10375 = vrot.slane %v10367, %v10374
        %v10377 = vunpack.c.l.s4 1983009808
        %v10378 = vunpack.c.0.s8 %v10377
        %v10379 = vlaneseq
        %v10380 = vshrl.u32 %v10379, 7
        %v10381 = vsub.s32 %v10378, %v10380
        %v10382 = vrot.slane %v10368, %v10381
        %v10383 = vcombine.low %v10375, %v10382
        %v10384 = vcombine.low %v9264, %v9265
        %v10385 = vcombine.low %v9266, %v9267
        %v10387 = vunpack.c.l.s4 1983009808
        %v10388 = vunpack.c.0.s8 %v10387
        %v10389 = vlaneseq
        %v10390 = vshrl.u32 %v10389, 7
        %v10391 = vsub.s32 %v10388, %v10390
        %v10392 = vrot.slane %v10384, %v10391
        %v10394 = vunpack.c.l.s4 1983009808
        %v10395 = vunpack.c.0.s8 %v10394
        %v10396 = vlaneseq
        %v10397 = vshrl.u32 %v10396, 7
        %v10398 = vsub.s32 %v10395, %v10397
        %v10399 = vrot.slane %v10385, %v10398
        %v10400 = vcombine.low %v10392, %v10399
        %v10402 = vunpack.c.l.s4 1983009808
        %v10403 = vunpack.c.0.s8 %v10402
        %v10404 = vlaneseq
        %v10405 = vshrl.u32 %v10404, 7
        %v10406 = vsub.s32 %v10403, %v10405
        %v10407 = vrot.slane %v9268, %v10406
        %v10408 = vcombine.low %v9269, %v9270
        %v10409 = vcombine.low %v9271, %v9272
        %v10411 = vunpack.c.l.s4 1983009808
        %v10412 = vunpack.c.0.s8 %v10411
        %v10413 = vlaneseq
        %v10414 = vshrl.u32 %v10413, 7
        %v10415 = vsub.s32 %v10412, %v10414
        %v10416 = vrot.slane %v10408, %v10415
        %v10418 = vunpack.c.l.s4 1983009808
        %v10419 = vunpack.c.0.s8 %v10418
        %v10420 = vlaneseq
        %v10421 = vshrl.u32 %v10420, 7
        %v10422 = vsub.s32 %v10419, %v10421
        %v10423 = vrot.slane %v10409, %v10422
        %v10424 = vcombine.low %v10416, %v10423
        %v10425 = vcombine.low %v9273, %v9274
        %v10426 = vcombine.low %v9275, %v9276
        %v10428 = vunpack.c.l.s4 1983009808
        %v10429 = vunpack.c.0.s8 %v10428
        %v10430 = vlaneseq
        %v10431 = vshrl.u32 %v10430, 7
        %v10432 = vsub.s32 %v10429, %v10431
        %v10433 = vrot.slane %v10425, %v10432
        %v10435 = vunpack.c.l.s4 1983009808
        %v10436 = vunpack.c.0.s8 %v10435
        %v10437 = vlaneseq
        %v10438 = vshrl.u32 %v10437, 7
        %v10439 = vsub.s32 %v10436, %v10438
        %v10440 = vrot.slane %v10426, %v10439
        %v10441 = vcombine.low %v10433, %v10440
        %v10443 = vunpack.c.l.s4 1983009808
        %v10444 = vunpack.c.0.s8 %v10443
        %v10445 = vlaneseq
        %v10446 = vshrl.u32 %v10445, 7
        %v10447 = vsub.s32 %v10444, %v10446
        %v10448 = vrot.slane %v9277, %v10447
        %v10449 = vcombine.low %v9278, %v9279
        %v10450 = vcombine.low %v9280, %v9281
        %v10452 = vunpack.c.l.s4 1983009808
        %v10453 = vunpack.c.0.s8 %v10452
        %v10454 = vlaneseq
        %v10455 = vshrl.u32 %v10454, 7
        %v10456 = vsub.s32 %v10453, %v10455
        %v10457 = vrot.slane %v10449, %v10456
        %v10459 = vunpack.c.l.s4 1983009808
        %v10460 = vunpack.c.0.s8 %v10459
        %v10461 = vlaneseq
        %v10462 = vshrl.u32 %v10461, 7
        %v10463 = vsub.s32 %v10460, %v10462
        %v10464 = vrot.slane %v10450, %v10463
        %v10465 = vcombine.low %v10457, %v10464
        %v10466 = vcombine.low %v9282, %v9283
        %v10467 = vcombine.low %v9284, %v9285
        %v10469 = vunpack.c.l.s4 1983009808
        %v10470 = vunpack.c.0.s8 %v10469
        %v10471 = vlaneseq
        %v10472 = vshrl.u32 %v10471, 7
        %v10473 = vsub.s32 %v10470, %v10472
        %v10474 = vrot.slane %v10466, %v10473
        %v10476 = vunpack.c.l.s4 1983009808
        %v10477 = vunpack.c.0.s8 %v10476
        %v10478 = vlaneseq
        %v10479 = vshrl.u32 %v10478, 7
        %v10480 = vsub.s32 %v10477, %v10479
        %v10481 = vrot.slane %v10467, %v10480
        %v10482 = vcombine.low %v10474, %v10481
        %v10484 = vunpack.c.l.s4 1983009808
        %v10485 = vunpack.c.0.s8 %v10484
        %v10486 = vlaneseq
        %v10487 = vshrl.u32 %v10486, 7
        %v10488 = vsub.s32 %v10485, %v10487
        %v10489 = vrot.slane %v9286, %v10488
        %v10544 = vsel %vm9536, %v9768, 0.0
        %v10545 = vsel %vm9537, %v9785, 0.0
        %v10546 = vsel %vm9538, %v9792, 0.0
        %v10547 = vsel %vm9539, %v9809, 0.0
        %v10548 = vsel %vm9540, %v9826, 0.0
        %v10549 = vsel %vm9541, %v9833, 0.0
        %v10550 = vsel %vm9542, %v9850, 0.0
        %v10551 = vsel %vm9543, %v9867, 0.0
        %v10552 = vsel %vm9544, %v9874, 0.0
        %v10553 = vsel %vm9545, %v9891, 0.0
        %v10554 = vsel %vm9546, %v9908, 0.0
        %v10555 = vsel %vm9547, %v9915, 0.0
        %v10556 = vsel %vm9548, %v9932, 0.0
        %v10557 = vsel %vm9549, %v9949, 0.0
        %v10558 = vsel %vm9550, %v9956, 0.0
        %v10559 = vsel %vm9551, %v9973, 0.0
        %v10560 = vsel %vm9552, %v9990, 0.0
        %v10561 = vsel %vm9553, %v9997, 0.0
        %v10562 = vsel %vm9554, %v10014, 0.0
        %v10563 = vsel %vm9555, %v10031, 0.0
        %v10564 = vsel %vm9556, %v10038, 0.0
        %v10565 = vsel %vm9557, %v10055, 0.0
        %v10566 = vsel %vm9558, %v10072, 0.0
        %v10567 = vsel %vm9559, %v10079, 0.0
        %v10568 = vsel %vm9560, %v10096, 0.0
        %v10569 = vsel %vm9561, %v10113, 0.0
        %v10570 = vsel %vm9562, %v10120, 0.0
        %v10571 = vsel %vm9563, %v10137, 0.0
        %v10572 = vsel %vm9564, %v10154, 0.0
        %v10573 = vsel %vm9565, %v10161, 0.0
        %v10574 = vsel %vm9566, %v10178, 0.0
        %v10575 = vsel %vm9567, %v10195, 0.0
        %v10576 = vsel %vm9568, %v10202, 0.0
        %v10577 = vsel %vm9569, %v10219, 0.0
        %v10578 = vsel %vm9570, %v10236, 0.0
        %v10579 = vsel %vm9571, %v10243, 0.0
        %v10580 = vsel %vm9572, %v10260, 0.0
        %v10581 = vsel %vm9573, %v10277, 0.0
        %v10582 = vsel %vm9574, %v10284, 0.0
        %v10583 = vsel %vm9575, %v10301, 0.0
        %v10584 = vsel %vm9576, %v10318, 0.0
        %v10585 = vsel %vm9577, %v10325, 0.0
        %v10586 = vsel %vm9578, %v10342, 0.0
        %v10587 = vsel %vm9579, %v10359, 0.0
        %v10588 = vsel %vm9580, %v10366, 0.0
        %v10589 = vsel %vm9581, %v10383, 0.0
        %v10590 = vsel %vm9582, %v10400, 0.0
        %v10591 = vsel %vm9583, %v10407, 0.0
        %v10592 = vsel %vm9584, %v10424, 0.0
        %v10593 = vsel %vm9585, %v10441, 0.0
        %v10594 = vsel %vm9586, %v10448, 0.0
        %v10595 = vsel %vm9587, %v10465, 0.0
        %v10596 = vsel %vm9588, %v10482, 0.0
        %v10597 = vsel %vm9589, %v10489, 0.0
        %v10598 = vpack.c.bf16 %v10545, %v10544
        %v10599 = vpack.c.bf16 %v10546, %v10546
        %v10600 = vpack.c.bf16 %v10548, %v10547
        %v10601 = vpack.c.bf16 %v10549, %v10549
        %v10602 = vpack.c.bf16 %v10551, %v10550
        %v10603 = vpack.c.bf16 %v10552, %v10552
        %v10604 = vpack.c.bf16 %v10554, %v10553
        %v10605 = vpack.c.bf16 %v10555, %v10555
        %v10606 = vpack.c.bf16 %v10557, %v10556
        %v10607 = vpack.c.bf16 %v10558, %v10558
        %v10608 = vpack.c.bf16 %v10560, %v10559
        %v10609 = vpack.c.bf16 %v10561, %v10561
        %v10610 = vpack.c.bf16 %v10563, %v10562
        %v10611 = vpack.c.bf16 %v10564, %v10564
        %v10612 = vpack.c.bf16 %v10566, %v10565
        %v10613 = vpack.c.bf16 %v10567, %v10567
        %v10614 = vpack.c.bf16 %v10569, %v10568
        %v10615 = vpack.c.bf16 %v10570, %v10570
        %v10616 = vpack.c.bf16 %v10572, %v10571
        %v10617 = vpack.c.bf16 %v10573, %v10573
        %v10618 = vpack.c.bf16 %v10575, %v10574
        %v10619 = vpack.c.bf16 %v10576, %v10576
        %v10620 = vpack.c.bf16 %v10578, %v10577
        %v10621 = vpack.c.bf16 %v10579, %v10579
        %v10622 = vpack.c.bf16 %v10581, %v10580
        %v10623 = vpack.c.bf16 %v10582, %v10582
        %v10624 = vpack.c.bf16 %v10584, %v10583
        %v10625 = vpack.c.bf16 %v10585, %v10585
        %v10626 = vpack.c.bf16 %v10587, %v10586
        %v10627 = vpack.c.bf16 %v10588, %v10588
        %v10628 = vpack.c.bf16 %v10590, %v10589
        %v10629 = vpack.c.bf16 %v10591, %v10591
        %v10630 = vpack.c.bf16 %v10593, %v10592
        %v10631 = vpack.c.bf16 %v10594, %v10594
        %v10632 = vpack.c.bf16 %v10596, %v10595
        %v10633 = vpack.c.bf16 %v10597, %v10597
        %v10635 = vshrl.u32 %v10598, 16
        %v10637 = vshll.u32 %v10598, 16
        %v10639 = vrot.slane %v10637, 1
        %v10640 = vor.u32 %v10635, %v10639
        %v10642 = vshll.u32 %v10599, 16
        %v10644 = vrot.slane %v10642, 1
        %v10645 = vsel %vm463, %v10640, %v10644
        %v10647 = vshrl.u32 %v10600, 16
        %v10649 = vshll.u32 %v10600, 16
        %v10651 = vrot.slane %v10649, 1
        %v10652 = vor.u32 %v10647, %v10651
        %v10654 = vshll.u32 %v10601, 16
        %v10656 = vrot.slane %v10654, 1
        %v10657 = vsel %vm463, %v10652, %v10656
        %v10659 = vshrl.u32 %v10602, 16
        %v10661 = vshll.u32 %v10602, 16
        %v10663 = vrot.slane %v10661, 1
        %v10664 = vor.u32 %v10659, %v10663
        %v10666 = vshll.u32 %v10603, 16
        %v10668 = vrot.slane %v10666, 1
        %v10669 = vsel %vm463, %v10664, %v10668
        %v10671 = vshrl.u32 %v10604, 16
        %v10673 = vshll.u32 %v10604, 16
        %v10675 = vrot.slane %v10673, 1
        %v10676 = vor.u32 %v10671, %v10675
        %v10678 = vshll.u32 %v10605, 16
        %v10680 = vrot.slane %v10678, 1
        %v10681 = vsel %vm463, %v10676, %v10680
        %v10683 = vshrl.u32 %v10606, 16
        %v10685 = vshll.u32 %v10606, 16
        %v10687 = vrot.slane %v10685, 1
        %v10688 = vor.u32 %v10683, %v10687
        %v10690 = vshll.u32 %v10607, 16
        %v10692 = vrot.slane %v10690, 1
        %v10693 = vsel %vm463, %v10688, %v10692
        %v10695 = vshrl.u32 %v10608, 16
        %v10697 = vshll.u32 %v10608, 16
        %v10699 = vrot.slane %v10697, 1
        %v10700 = vor.u32 %v10695, %v10699
        %v10702 = vshll.u32 %v10609, 16
        %v10704 = vrot.slane %v10702, 1
        %v10705 = vsel %vm463, %v10700, %v10704
        %v10707 = vshrl.u32 %v10610, 16
        %v10709 = vshll.u32 %v10610, 16
        %v10711 = vrot.slane %v10709, 1
        %v10712 = vor.u32 %v10707, %v10711
        %v10714 = vshll.u32 %v10611, 16
        %v10716 = vrot.slane %v10714, 1
        %v10717 = vsel %vm463, %v10712, %v10716
        %v10719 = vshrl.u32 %v10612, 16
        %v10721 = vshll.u32 %v10612, 16
        %v10723 = vrot.slane %v10721, 1
        %v10724 = vor.u32 %v10719, %v10723
        %v10726 = vshll.u32 %v10613, 16
        %v10728 = vrot.slane %v10726, 1
        %v10729 = vsel %vm463, %v10724, %v10728
        %v10731 = vshrl.u32 %v10614, 16
        %v10733 = vshll.u32 %v10614, 16
        %v10735 = vrot.slane %v10733, 1
        %v10736 = vor.u32 %v10731, %v10735
        %v10738 = vshll.u32 %v10615, 16
        %v10740 = vrot.slane %v10738, 1
        %v10741 = vsel %vm463, %v10736, %v10740
        %v10743 = vshrl.u32 %v10616, 16
        %v10745 = vshll.u32 %v10616, 16
        %v10747 = vrot.slane %v10745, 1
        %v10748 = vor.u32 %v10743, %v10747
        %v10750 = vshll.u32 %v10617, 16
        %v10752 = vrot.slane %v10750, 1
        %v10753 = vsel %vm463, %v10748, %v10752
        %v10755 = vshrl.u32 %v10618, 16
        %v10757 = vshll.u32 %v10618, 16
        %v10759 = vrot.slane %v10757, 1
        %v10760 = vor.u32 %v10755, %v10759
        %v10762 = vshll.u32 %v10619, 16
        %v10764 = vrot.slane %v10762, 1
        %v10765 = vsel %vm463, %v10760, %v10764
        %v10767 = vshrl.u32 %v10620, 16
        %v10769 = vshll.u32 %v10620, 16
        %v10771 = vrot.slane %v10769, 1
        %v10772 = vor.u32 %v10767, %v10771
        %v10774 = vshll.u32 %v10621, 16
        %v10776 = vrot.slane %v10774, 1
        %v10777 = vsel %vm463, %v10772, %v10776
        %v10779 = vshrl.u32 %v10622, 16
        %v10781 = vshll.u32 %v10622, 16
        %v10783 = vrot.slane %v10781, 1
        %v10784 = vor.u32 %v10779, %v10783
        %v10786 = vshll.u32 %v10623, 16
        %v10788 = vrot.slane %v10786, 1
        %v10789 = vsel %vm463, %v10784, %v10788
        %v10791 = vshrl.u32 %v10624, 16
        %v10793 = vshll.u32 %v10624, 16
        %v10795 = vrot.slane %v10793, 1
        %v10796 = vor.u32 %v10791, %v10795
        %v10798 = vshll.u32 %v10625, 16
        %v10800 = vrot.slane %v10798, 1
        %v10801 = vsel %vm463, %v10796, %v10800
        %v10803 = vshrl.u32 %v10626, 16
        %v10805 = vshll.u32 %v10626, 16
        %v10807 = vrot.slane %v10805, 1
        %v10808 = vor.u32 %v10803, %v10807
        %v10810 = vshll.u32 %v10627, 16
        %v10812 = vrot.slane %v10810, 1
        %v10813 = vsel %vm463, %v10808, %v10812
        %v10815 = vshrl.u32 %v10628, 16
        %v10817 = vshll.u32 %v10628, 16
        %v10819 = vrot.slane %v10817, 1
        %v10820 = vor.u32 %v10815, %v10819
        %v10822 = vshll.u32 %v10629, 16
        %v10824 = vrot.slane %v10822, 1
        %v10825 = vsel %vm463, %v10820, %v10824
        %10826 = vrot.lane.b32.xlu0 %v10645, 64
        %v10827 = vpop.permute.xlu0 %10826
        %10828 = vrot.lane.b32.xlu0 %v10657, 64
        %v10829 = vpop.permute.xlu0 %10828
        %10830 = vrot.lane.b32.xlu0 %v10669, 64
        %v10831 = vpop.permute.xlu0 %10830
        %10832 = vrot.lane.b32.xlu0 %v10681, 64
        %v10833 = vpop.permute.xlu0 %10832
        %10834 = vrot.lane.b32.xlu0 %v10693, 64
        %v10835 = vpop.permute.xlu0 %10834
        %10836 = vrot.lane.b32.xlu0 %v10705, 64
        %v10837 = vpop.permute.xlu0 %10836
        %10838 = vrot.lane.b32.xlu0 %v10717, 64
        %v10839 = vpop.permute.xlu0 %10838
        %10840 = vrot.lane.b32.xlu0 %v10729, 64
        %v10841 = vpop.permute.xlu0 %10840
        %10842 = vrot.lane.b32.xlu0 %v10741, 64
        %v10843 = vpop.permute.xlu0 %10842
        %10844 = vrot.lane.b32.xlu0 %v10753, 64
        %v10845 = vpop.permute.xlu0 %10844
        %10846 = vrot.lane.b32.xlu0 %v10765, 64
        %v10847 = vpop.permute.xlu0 %10846
        %10848 = vrot.lane.b32.xlu0 %v10777, 64
        %v10849 = vpop.permute.xlu0 %10848
        %10850 = vrot.lane.b32.xlu0 %v10789, 64
        %v10851 = vpop.permute.xlu0 %10850
        %10852 = vrot.lane.b32.xlu0 %v10801, 64
        %v10853 = vpop.permute.xlu0 %10852
        %10854 = vrot.lane.b32.xlu0 %v10813, 64
        %v10855 = vpop.permute.xlu0 %10854
        %10856 = vrot.lane.b32.xlu0 %v10825, 64
        %v10857 = vpop.permute.xlu0 %10856
        %v10890 = vrot.slane %v10598, 1
        %v10891 = vrot.slane %v10599, 1
        %v10892 = vsel %vm842, %v10890, %v10891
        %v10893 = vrot.slane %v10600, 1
        %v10894 = vrot.slane %v10601, 1
        %v10895 = vsel %vm842, %v10893, %v10894
        %v10896 = vrot.slane %v10602, 1
        %v10897 = vrot.slane %v10603, 1
        %v10898 = vsel %vm842, %v10896, %v10897
        %v10899 = vrot.slane %v10604, 1
        %v10900 = vrot.slane %v10605, 1
        %v10901 = vsel %vm842, %v10899, %v10900
        %v10902 = vrot.slane %v10606, 1
        %v10903 = vrot.slane %v10607, 1
        %v10904 = vsel %vm842, %v10902, %v10903
        %v10905 = vrot.slane %v10608, 1
        %v10906 = vrot.slane %v10609, 1
        %v10907 = vsel %vm842, %v10905, %v10906
        %v10908 = vrot.slane %v10610, 1
        %v10909 = vrot.slane %v10611, 1
        %v10910 = vsel %vm842, %v10908, %v10909
        %v10911 = vrot.slane %v10612, 1
        %v10912 = vrot.slane %v10613, 1
        %v10913 = vsel %vm842, %v10911, %v10912
        %v10914 = vrot.slane %v10614, 1
        %v10915 = vrot.slane %v10615, 1
        %v10916 = vsel %vm842, %v10914, %v10915
        %v10917 = vrot.slane %v10616, 1
        %v10918 = vrot.slane %v10617, 1
        %v10919 = vsel %vm842, %v10917, %v10918
        %v10920 = vrot.slane %v10618, 1
        %v10921 = vrot.slane %v10619, 1
        %v10922 = vsel %vm842, %v10920, %v10921
        %v10923 = vrot.slane %v10620, 1
        %v10924 = vrot.slane %v10621, 1
        %v10925 = vsel %vm842, %v10923, %v10924
        %v10926 = vrot.slane %v10622, 1
        %v10927 = vrot.slane %v10623, 1
        %v10928 = vsel %vm842, %v10926, %v10927
        %v10929 = vrot.slane %v10624, 1
        %v10930 = vrot.slane %v10625, 1
        %v10931 = vsel %vm842, %v10929, %v10930
        %v10932 = vrot.slane %v10626, 1
        %v10933 = vrot.slane %v10627, 1
        %v10934 = vsel %vm842, %v10932, %v10933
        %v10935 = vrot.slane %v10628, 1
        %v10936 = vrot.slane %v10629, 1
        %v10937 = vsel %vm842, %v10935, %v10936
        %10939 = vrot.lane.b32.xlu0 %v10600, 64
        %v10940 = vpop.permute.xlu0 %10939
        %10941 = vrot.lane.b32.xlu0 %v10602, 64
        %v10942 = vpop.permute.xlu0 %10941
        %10943 = vrot.lane.b32.xlu0 %v10604, 64
        %v10944 = vpop.permute.xlu0 %10943
        %10945 = vrot.lane.b32.xlu0 %v10606, 64
        %v10946 = vpop.permute.xlu0 %10945
        %10947 = vrot.lane.b32.xlu0 %v10608, 64
        %v10948 = vpop.permute.xlu0 %10947
        %10949 = vrot.lane.b32.xlu0 %v10610, 64
        %v10950 = vpop.permute.xlu0 %10949
        %10951 = vrot.lane.b32.xlu0 %v10612, 64
        %v10952 = vpop.permute.xlu0 %10951
        %10953 = vrot.lane.b32.xlu0 %v10614, 64
        %v10954 = vpop.permute.xlu0 %10953
        %10955 = vrot.lane.b32.xlu0 %v10616, 64
        %v10956 = vpop.permute.xlu0 %10955
        %10957 = vrot.lane.b32.xlu0 %v10618, 64
        %v10958 = vpop.permute.xlu0 %10957
        %10959 = vrot.lane.b32.xlu0 %v10620, 64
        %v10960 = vpop.permute.xlu0 %10959
        %10961 = vrot.lane.b32.xlu0 %v10622, 64
        %v10962 = vpop.permute.xlu0 %10961
        %10963 = vrot.lane.b32.xlu0 %v10624, 64
        %v10964 = vpop.permute.xlu0 %10963
        %10965 = vrot.lane.b32.xlu0 %v10626, 64
        %v10966 = vpop.permute.xlu0 %10965
        %10967 = vrot.lane.b32.xlu0 %v10628, 64
        %v10968 = vpop.permute.xlu0 %10967
        %10969 = vrot.lane.b32.xlu0 %v10630, 64
        %v10970 = vpop.permute.xlu0 %10969
        %v10972 = vshrl.u32 %v10630, 16
        %v10974 = vshll.u32 %v10630, 16
        %v10976 = vrot.slane %v10974, 1
        %v10977 = vor.u32 %v10972, %v10976
        %v10979 = vshll.u32 %v10631, 16
        %v10981 = vrot.slane %v10979, 1
        %v10982 = vsel %vm463, %v10977, %v10981
        %v10984 = vrot.slane %v10630, 1
        %v10985 = vrot.slane %v10631, 1
        %v10986 = vsel %vm842, %v10984, %v10985
        %10987 = vrot.lane.b32.xlu0 %v10895, 64
        %v10988 = vpop.permute.xlu0 %10987
        %10989 = vrot.lane.b32.xlu0 %v10898, 64
        %v10990 = vpop.permute.xlu0 %10989
        %10991 = vrot.lane.b32.xlu0 %v10901, 64
        %v10992 = vpop.permute.xlu0 %10991
        %10993 = vrot.lane.b32.xlu0 %v10904, 64
        %v10994 = vpop.permute.xlu0 %10993
        %10995 = vrot.lane.b32.xlu0 %v10907, 64
        %v10996 = vpop.permute.xlu0 %10995
        %10997 = vrot.lane.b32.xlu0 %v10910, 64
        %v10998 = vpop.permute.xlu0 %10997
        %10999 = vrot.lane.b32.xlu0 %v10913, 64
        %v11000 = vpop.permute.xlu0 %10999
        %11001 = vrot.lane.b32.xlu0 %v10916, 64
        %v11002 = vpop.permute.xlu0 %11001
        %11003 = vrot.lane.b32.xlu0 %v10919, 64
        %v11004 = vpop.permute.xlu0 %11003
        %11005 = vrot.lane.b32.xlu0 %v10922, 64
        %v11006 = vpop.permute.xlu0 %11005
        %11007 = vrot.lane.b32.xlu0 %v10925, 64
        %v11008 = vpop.permute.xlu0 %11007
        %11009 = vrot.lane.b32.xlu0 %v10928, 64
        %v11010 = vpop.permute.xlu0 %11009
        %11011 = vrot.lane.b32.xlu0 %v10931, 64
        %v11012 = vpop.permute.xlu0 %11011
        %11013 = vrot.lane.b32.xlu0 %v10934, 64
        %v11014 = vpop.permute.xlu0 %11013
        %11015 = vrot.lane.b32.xlu0 %v10937, 64
        %v11016 = vpop.permute.xlu0 %11015
        %11017 = vrot.lane.b32.xlu0 %v10986, 64
        %v11018 = vpop.permute.xlu0 %11017
        %v11020 = vshrl.u32 %v10632, 16
        %v11022 = vshll.u32 %v10632, 16
        %v11024 = vrot.slane %v11022, 1
        %v11025 = vor.u32 %v11020, %v11024
        %v11027 = vshll.u32 %v10633, 16
        %v11029 = vrot.slane %v11027, 1
        %v11030 = vsel %vm463, %v11025, %v11029
        %11031 = vrot.lane.b32.xlu0 %v10982, 64
        %v11032 = vpop.permute.xlu0 %11031
        %11033 = vrot.lane.b32.xlu0 %v11030, 64
        %v11034 = vpop.permute.xlu0 %11033
        %v11037 = vrot.slane %v10632, 1
        %v11038 = vrot.slane %v10633, 1
        %v11039 = vsel %vm842, %v11037, %v11038
        %v11041 = vsel %vm1089, %v10598, %v10827
        %v11044 = vsel %vm1089, %v10600, %v10829
        %v11047 = vsel %vm1089, %v10602, %v10831
        %v11050 = vsel %vm1089, %v10604, %v10833
        %v11053 = vsel %vm1089, %v10606, %v10835
        %v11056 = vsel %vm1089, %v10608, %v10837
        %v11059 = vsel %vm1089, %v10610, %v10839
        %v11062 = vsel %vm1089, %v10612, %v10841
        %v11065 = vsel %vm1089, %v10614, %v10843
        %v11068 = vsel %vm1089, %v10616, %v10845
        %v11071 = vsel %vm1089, %v10618, %v10847
        %v11074 = vsel %vm1089, %v10620, %v10849
        %v11077 = vsel %vm1089, %v10622, %v10851
        %v11080 = vsel %vm1089, %v10624, %v10853
        %v11083 = vsel %vm1089, %v10626, %v10855
        %v11086 = vsel %vm1089, %v10628, %v10857
        %v11090 = vsel %vm1089, %v10892, %v10940
        %v11094 = vsel %vm1089, %v10895, %v10942
        %v11098 = vsel %vm1089, %v10898, %v10944
        %v11102 = vsel %vm1089, %v10901, %v10946
        %v11106 = vsel %vm1089, %v10904, %v10948
        %v11110 = vsel %vm1089, %v10907, %v10950
        %v11114 = vsel %vm1089, %v10910, %v10952
        %v11118 = vsel %vm1089, %v10913, %v10954
        %v11122 = vsel %vm1089, %v10916, %v10956
        %v11126 = vsel %vm1089, %v10919, %v10958
        %v11130 = vsel %vm1089, %v10922, %v10960
        %v11134 = vsel %vm1089, %v10925, %v10962
        %v11138 = vsel %vm1089, %v10928, %v10964
        %v11142 = vsel %vm1089, %v10931, %v10966
        %v11146 = vsel %vm1089, %v10934, %v10968
        %v11150 = vsel %vm1089, %v10937, %v10970
        %v11154 = vsel %vm1089, %v10657, %v10988
        %v11158 = vsel %vm1089, %v10669, %v10990
        %v11162 = vsel %vm1089, %v10681, %v10992
        %v11166 = vsel %vm1089, %v10693, %v10994
        %v11170 = vsel %vm1089, %v10705, %v10996
        %v11174 = vsel %vm1089, %v10717, %v10998
        %v11178 = vsel %vm1089, %v10729, %v11000
        %v11182 = vsel %vm1089, %v10741, %v11002
        %v11186 = vsel %vm1089, %v10753, %v11004
        %v11190 = vsel %vm1089, %v10765, %v11006
        %v11194 = vsel %vm1089, %v10777, %v11008
        %v11198 = vsel %vm1089, %v10789, %v11010
        %v11202 = vsel %vm1089, %v10801, %v11012
        %v11206 = vsel %vm1089, %v10813, %v11014
        %v11210 = vsel %vm1089, %v10825, %v11016
        %v11214 = vsel %vm1089, %v10982, %v11018
        %v11217 = vsel %vm1089, %v10630, %v11032
        %v11220 = vsel %vm1089, %v10632, %v11034
        %v11222 = vld [vmem:[%s4] sm:$0xf]
        %v11223 = vld [vmem:[%s4 + $0x4] sm:$0xf]
        %v11224 = vld [vmem:[%s4 + $0x8] sm:$0xf]
        %v11225 = vld [vmem:[%s4 + $0xc] sm:$0xf]
        %v11226 = vld [vmem:[%s4 + $0x10] sm:$0xf]
        %v11227 = vld [vmem:[%s4 + $0x14] sm:$0xf]
        %v11228 = vld [vmem:[%s4 + $0x18] sm:$0xf]
        %v11229 = vld [vmem:[%s4 + $0x1c] sm:$0xf]
        %v11230 = vld [vmem:[%s4 + $0x20] sm:$0xf]
        %v11231 = vld [vmem:[%s4 + $0x24] sm:$0xf]
        %v11232 = vld [vmem:[%s4 + $0x28] sm:$0xf]
        %v11233 = vld [vmem:[%s4 + $0x2c] sm:$0xf]
        %v11234 = vld [vmem:[%s4 + $0x30] sm:$0xf]
        %v11235 = vld [vmem:[%s4 + $0x34] sm:$0xf]
        %v11236 = vld [vmem:[%s4 + $0x38] sm:$0xf]
        %v11237 = vld [vmem:[%s4 + $0x3c] sm:$0xf]
        %v11238 = vld [vmem:[%s4 + $0x40] sm:$0xf]
        %v11239 = vld [vmem:[%s4 + $0x44] sm:$0xf]
        %v11240 = vld [vmem:[%s4 + $0x48] sm:$0xf]
        %v11241 = vld [vmem:[%s4 + $0x4c] sm:$0xf]
        %v11242 = vld [vmem:[%s4 + $0x50] sm:$0xf]
        %v11243 = vld [vmem:[%s4 + $0x54] sm:$0xf]
        %v11244 = vld [vmem:[%s4 + $0x58] sm:$0xf]
        %v11245 = vld [vmem:[%s4 + $0x5c] sm:$0xf]
        %v11246 = vld [vmem:[%s4 + $0x60] sm:$0xf]
        %v11247 = vld [vmem:[%s4 + $0x64] sm:$0xf]
        %v11248 = vld [vmem:[%s4 + $0x68] sm:$0xf]
        %v11249 = vld [vmem:[%s4 + $0x6c] sm:$0xf]
        %v11250 = vld [vmem:[%s4 + $0x70] sm:$0xf]
        %v11251 = vld [vmem:[%s4 + $0x74] sm:$0xf]
        %v11252 = vld [vmem:[%s4 + $0x78] sm:$0xf]
        %v11253 = vld [vmem:[%s4 + $0x7c] sm:$0xf]
        %v11254 = vld [vmem:[%s4 + $0x80] sm:$0xf]
        %v11255 = vld [vmem:[%s4 + $0x84] sm:$0xf]
        %v11256 = vld [vmem:[%s4 + $0x88] sm:$0xf]
        %v11257 = vld [vmem:[%s4 + $0x8c] sm:$0xf]
        %v11258 = vld [vmem:[%s4 + $0x90] sm:$0xf]
        %v11259 = vld [vmem:[%s4 + $0x94] sm:$0xf]
        %v11260 = vld [vmem:[%s4 + $0x98] sm:$0xf]
        %v11261 = vld [vmem:[%s4 + $0x9c] sm:$0xf]
        %v11262 = vld [vmem:[%s4 + $0xa0] sm:$0xf]
        %v11263 = vld [vmem:[%s4 + $0xa4] sm:$0xf]
        %v11264 = vld [vmem:[%s4 + $0xa8] sm:$0xf]
        %v11265 = vld [vmem:[%s4 + $0xac] sm:$0xf]
        %v11266 = vld [vmem:[%s4 + $0xb0] sm:$0xf]
        %v11267 = vld [vmem:[%s4 + $0xb4] sm:$0xf]
        %v11268 = vld [vmem:[%s4 + $0xb8] sm:$0xf]
        %v11269 = vld [vmem:[%s4 + $0xbc] sm:$0xf]
        %v11270 = vld [vmem:[%s4 + $0xc0] sm:$0xf]
        %v11271 = vld [vmem:[%s4 + $0xc4] sm:$0xf]
        %v11272 = vld [vmem:[%s4 + $0xc8] sm:$0xf]
        %v11273 = vld [vmem:[%s4 + $0xcc] sm:$0xf]
        %v11274 = vld [vmem:[%s4 + $0xd0] sm:$0xf]
        %v11275 = vld [vmem:[%s4 + $0xd4] sm:$0xf]
        %v11276 = vld [vmem:[%s4 + $0xd8] sm:$0xf]
        %v11277 = vld [vmem:[%s4 + $0xdc] sm:$0xf]
        %v11278 = vld [vmem:[%s4 + $0xe0] sm:$0xf]
        %v11279 = vld [vmem:[%s4 + $0xe4] sm:$0xf]
        %v11280 = vld [vmem:[%s4 + $0xe8] sm:$0xf]
        %v11281 = vld [vmem:[%s4 + $0xec] sm:$0xf]
        %v11282 = vld [vmem:[%s4 + $0xf0] sm:$0xf]
        %v11283 = vld [vmem:[%s4 + $0xf4] sm:$0xf]
        %v11284 = vld [vmem:[%s4 + $0xf8] sm:$0xf]
        %v11285 = vld [vmem:[%s4 + $0xfc] sm:$0xf]
        %v11286 = vld [vmem:[%s4 + $0x100] sm:$0xf]
        %v11287 = vld [vmem:[%s4 + $0x104] sm:$0xf]
        %v11288 = vld [vmem:[%s4 + $0x108] sm:$0xf]
        %v11289 = vld [vmem:[%s4 + $0x10c] sm:$0xf]
        %v11290 = vld [vmem:[%s4 + $0x110] sm:$0xf]
        %v11291 = vld [vmem:[%s4 + $0x114] sm:$0xf]
        %v11292 = vld [vmem:[%s4 + $0x118] sm:$0xf]
        %v11293 = vld [vmem:[%s4 + $0x11c] sm:$0xf]
        %v11366 = vunpack.c.l.b16 %v11222
        %v11367 = vunpack.c.l.b16 %v11223
        %v11368 = vunpack.c.l.b16 %v11224
        %v11369 = vunpack.c.l.b16 %v11225
        %v11370 = vunpack.c.l.b16 %v11226
        %v11371 = vunpack.c.l.b16 %v11227
        %v11372 = vunpack.c.l.b16 %v11228
        %v11373 = vunpack.c.l.b16 %v11229
        %v11374 = vunpack.c.l.b16 %v11230
        %v11375 = vunpack.c.l.b16 %v11231
        %v11376 = vunpack.c.l.b16 %v11232
        %v11377 = vunpack.c.l.b16 %v11233
        %v11378 = vunpack.c.l.b16 %v11234
        %v11379 = vunpack.c.l.b16 %v11235
        %v11380 = vunpack.c.l.b16 %v11236
        %v11381 = vunpack.c.l.b16 %v11237
        %v11382 = vunpack.c.l.b16 %v11238
        %v11383 = vunpack.c.l.b16 %v11239
        %v11384 = vunpack.c.l.b16 %v11240
        %v11385 = vunpack.c.l.b16 %v11241
        %v11386 = vunpack.c.l.b16 %v11242
        %v11387 = vunpack.c.l.b16 %v11243
        %v11388 = vunpack.c.l.b16 %v11244
        %v11389 = vunpack.c.l.b16 %v11245
        %v11390 = vunpack.c.l.b16 %v11246
        %v11391 = vunpack.c.l.b16 %v11247
        %v11392 = vunpack.c.l.b16 %v11248
        %v11393 = vunpack.c.l.b16 %v11249
        %v11394 = vunpack.c.l.b16 %v11250
        %v11395 = vunpack.c.l.b16 %v11251
        %v11396 = vunpack.c.l.b16 %v11252
        %v11397 = vunpack.c.l.b16 %v11253
        %v11398 = vunpack.c.l.b16 %v11254
        %v11399 = vunpack.c.l.b16 %v11255
        %v11400 = vunpack.c.l.b16 %v11256
        %v11401 = vunpack.c.l.b16 %v11257
        %v11402 = vunpack.c.l.b16 %v11258
        %v11403 = vunpack.c.l.b16 %v11259
        %v11404 = vunpack.c.l.b16 %v11260
        %v11405 = vunpack.c.l.b16 %v11261
        %v11406 = vunpack.c.l.b16 %v11262
        %v11407 = vunpack.c.l.b16 %v11263
        %v11408 = vunpack.c.l.b16 %v11264
        %v11409 = vunpack.c.l.b16 %v11265
        %v11410 = vunpack.c.l.b16 %v11266
        %v11411 = vunpack.c.l.b16 %v11267
        %v11412 = vunpack.c.l.b16 %v11268
        %v11413 = vunpack.c.l.b16 %v11269
        %v11414 = vunpack.c.l.b16 %v11270
        %v11415 = vunpack.c.l.b16 %v11271
        %v11416 = vunpack.c.l.b16 %v11272
        %v11417 = vunpack.c.l.b16 %v11273
        %v11418 = vunpack.c.l.b16 %v11274
        %v11419 = vunpack.c.l.b16 %v11275
        %v11420 = vunpack.c.l.b16 %v11276
        %v11421 = vunpack.c.l.b16 %v11277
        %v11422 = vunpack.c.l.b16 %v11278
        %v11423 = vunpack.c.l.b16 %v11279
        %v11424 = vunpack.c.l.b16 %v11280
        %v11425 = vunpack.c.l.b16 %v11281
        %v11426 = vunpack.c.l.b16 %v11282
        %v11427 = vunpack.c.l.b16 %v11283
        %v11428 = vunpack.c.l.b16 %v11284
        %v11429 = vunpack.c.l.b16 %v11285
        %v11430 = vunpack.c.l.b16 %v11286
        %v11431 = vunpack.c.l.b16 %v11287
        %v11432 = vunpack.c.l.b16 %v11288
        %v11433 = vunpack.c.l.b16 %v11289
        %v11434 = vunpack.c.l.b16 %v11290
        %v11435 = vunpack.c.l.b16 %v11291
        %v11436 = vunpack.c.l.b16 %v11292
        %v11437 = vunpack.c.l.b16 %v11293
        %v11438 = vpack.c.b16 %v11367, %v11366
        %v11439 = vpack.c.b16 %v11369, %v11368
        %v11440 = vpack.c.b16 %v11371, %v11370
        %v11441 = vpack.c.b16 %v11373, %v11372
        %v11442 = vpack.c.b16 %v11375, %v11374
        %v11443 = vpack.c.b16 %v11377, %v11376
        %v11444 = vpack.c.b16 %v11379, %v11378
        %v11445 = vpack.c.b16 %v11381, %v11380
        %v11446 = vpack.c.b16 %v11383, %v11382
        %v11447 = vpack.c.b16 %v11385, %v11384
        %v11448 = vpack.c.b16 %v11387, %v11386
        %v11449 = vpack.c.b16 %v11389, %v11388
        %v11450 = vpack.c.b16 %v11391, %v11390
        %v11451 = vpack.c.b16 %v11393, %v11392
        %v11452 = vpack.c.b16 %v11395, %v11394
        %v11453 = vpack.c.b16 %v11397, %v11396
        %v11454 = vpack.c.b16 %v11399, %v11398
        %v11455 = vpack.c.b16 %v11401, %v11400
        %v11456 = vpack.c.b16 %v11403, %v11402
        %v11457 = vpack.c.b16 %v11405, %v11404
        %v11458 = vpack.c.b16 %v11407, %v11406
        %v11459 = vpack.c.b16 %v11409, %v11408
        %v11460 = vpack.c.b16 %v11411, %v11410
        %v11461 = vpack.c.b16 %v11413, %v11412
        %v11462 = vpack.c.b16 %v11415, %v11414
        %v11463 = vpack.c.b16 %v11417, %v11416
        %v11464 = vpack.c.b16 %v11419, %v11418
        %v11465 = vpack.c.b16 %v11421, %v11420
        %v11466 = vpack.c.b16 %v11423, %v11422
        %v11467 = vpack.c.b16 %v11425, %v11424
        %v11468 = vpack.c.b16 %v11427, %v11426
        %v11469 = vpack.c.b16 %v11429, %v11428
        %v11470 = vpack.c.b16 %v11431, %v11430
        %v11471 = vpack.c.b16 %v11433, %v11432
        %v11472 = vpack.c.b16 %v11435, %v11434
        %v11473 = vpack.c.b16 %v11437, %v11436
        %v11510 = vsel %vm1089, %v10898, 0
        %v11512 = vsel %vm1089, %v10901, 0
        %v11514 = vsel %vm1089, %v10904, 0
        %v11516 = vsel %vm1089, %v10907, 0
        %v11518 = vsel %vm1089, %v10910, 0
        %v11520 = vsel %vm1089, %v10913, 0
        %v11522 = vsel %vm1089, %v10916, 0
        %v11524 = vsel %vm1089, %v10919, 0
        %v11526 = vsel %vm1089, %v10922, 0
        %v11528 = vsel %vm1089, %v10925, 0
        %v11530 = vsel %vm1089, %v10928, 0
        %v11532 = vsel %vm1089, %v10931, 0
        %v11534 = vsel %vm1089, %v10934, 0
        %v11536 = vsel %vm1089, %v10937, 0
        %v11539 = vsel %vm1089, %v10986, 0
        %v11542 = vsel %vm1089, %v11039, 0
        %11544 = vmatprep.subr.bf16.mxu0 0
        %11545 = vmatpush1.bf16.msra.mxu0 %v11445
        %11546 = vmatprep.subr.bf16.mxu0 0
        %11547 = vmatpush1.bf16.msra.mxu0 %v11444
        %11548 = vmatprep.subr.bf16.mxu0 0
        %11549 = vmatpush1.bf16.msra.mxu0 %v11443
        %11550 = vmatprep.subr.bf16.mxu0 0
        %11551 = vmatpush1.bf16.msra.mxu0 %v11442
        %11552 = vmatprep.subr.bf16.mxu0 0
        %11553 = vmatpush1.bf16.msra.mxu0 %v11441
        %11554 = vmatprep.subr.bf16.mxu0 0
        %11555 = vmatpush1.bf16.msra.mxu0 %v11440
        %11556 = vmatprep.subr.bf16.mxu0 0
        %11557 = vmatpush1.bf16.msra.mxu0 %v11439
        %11558 = vmatprep.subr.bf16.mxu0 0
        %11559 = vmatpush1.bf16.msra.mxu0 %v11438
        %11560 = vmatprep.subr.bf16.mxu0 0
        %11561 = vmatpush2.bf16.msra.mxu0 %v11453
        %11562 = vmatprep.subr.bf16.mxu0 0
        %11563 = vmatpush2.bf16.msra.mxu0 %v11452
        %11564 = vmatprep.subr.bf16.mxu0 0
        %11565 = vmatpush2.bf16.msra.mxu0 %v11451
        %11566 = vmatprep.subr.bf16.mxu0 0
        %11567 = vmatpush2.bf16.msra.mxu0 %v11450
        %11568 = vmatprep.subr.bf16.mxu0 0
        %11569 = vmatpush2.bf16.msra.mxu0 %v11449
        %11570 = vmatprep.subr.bf16.mxu0 0
        %11571 = vmatpush2.bf16.msra.mxu0 %v11448
        %11572 = vmatprep.subr.bf16.mxu0 0
        %11573 = vmatpush2.bf16.msra.mxu0 %v11447
        %11574 = vmatprep.subr.bf16.mxu0 0
        %11575 = vmatpush2.bf16.msra.mxu0 %v11446
        %11576 = vmatprep.mubr.bf16.mxu0 %v11090
        %11577 = vmatmul.mubr.bf16.gmra.mxu0 %v11041
        %v11578 = vpop.f32.mrf.mxu0
        %v11579 = vadd.f32 0.0, %v11578
        %v11580 = vpop.f32.mrf.mxu0
        %v11581 = vpop.f32.mrf.mxu0
        %v11582 = vadd.f32 0.0, %v11581
        %v11583 = vpop.f32.mrf.mxu0
        %11584 = vmatprep.mubr.bf16.mxu0 %v11094
        %11585 = vmatmul.mubr.bf16.gmra.mxu0 %v11044
        %v11586 = vpop.f32.mrf.mxu0
        %v11587 = vadd.f32 0.0, %v11586
        %v11588 = vpop.f32.mrf.mxu0
        %v11589 = vpop.f32.mrf.mxu0
        %v11590 = vadd.f32 0.0, %v11589
        %v11591 = vpop.f32.mrf.mxu0
        %11592 = vmatprep.mubr.bf16.mxu0 %v11098
        %11593 = vmatmul.mubr.bf16.gmra.mxu0 %v11047
        %v11594 = vpop.f32.mrf.mxu0
        %v11595 = vadd.f32 0.0, %v11594
        %v11596 = vpop.f32.mrf.mxu0
        %v11597 = vpop.f32.mrf.mxu0
        %v11598 = vadd.f32 0.0, %v11597
        %v11599 = vpop.f32.mrf.mxu0
        %11600 = vmatprep.mubr.bf16.mxu0 %v11102
        %11601 = vmatmul.mubr.bf16.gmra.mxu0 %v11050
        %v11602 = vpop.f32.mrf.mxu0
        %v11603 = vadd.f32 0.0, %v11602
        %v11604 = vpop.f32.mrf.mxu0
        %v11605 = vpop.f32.mrf.mxu0
        %v11606 = vadd.f32 0.0, %v11605
        %v11607 = vpop.f32.mrf.mxu0
        %11608 = vmatprep.mubr.bf16.mxu0 %v11106
        %11609 = vmatmul.mubr.bf16.gmra.mxu0 %v11053
        %v11610 = vpop.f32.mrf.mxu0
        %v11611 = vadd.f32 0.0, %v11610
        %v11612 = vpop.f32.mrf.mxu0
        %v11613 = vpop.f32.mrf.mxu0
        %v11614 = vadd.f32 0.0, %v11613
        %v11615 = vpop.f32.mrf.mxu0
        %11616 = vmatprep.mubr.bf16.mxu0 %v11110
        %11617 = vmatmul.mubr.bf16.gmra.mxu0 %v11056
        %v11618 = vpop.f32.mrf.mxu0
        %v11619 = vadd.f32 0.0, %v11618
        %v11620 = vpop.f32.mrf.mxu0
        %v11621 = vpop.f32.mrf.mxu0
        %v11622 = vadd.f32 0.0, %v11621
        %v11623 = vpop.f32.mrf.mxu0
        %11624 = vmatprep.mubr.bf16.mxu0 %v11114
        %11625 = vmatmul.mubr.bf16.gmra.mxu0 %v11059
        %v11626 = vpop.f32.mrf.mxu0
        %v11627 = vadd.f32 0.0, %v11626
        %v11628 = vpop.f32.mrf.mxu0
        %v11629 = vpop.f32.mrf.mxu0
        %v11630 = vadd.f32 0.0, %v11629
        %v11631 = vpop.f32.mrf.mxu0
        %11632 = vmatprep.mubr.bf16.mxu0 %v11118
        %11633 = vmatmul.mubr.bf16.gmra.mxu0 %v11062
        %v11634 = vpop.f32.mrf.mxu0
        %v11635 = vadd.f32 0.0, %v11634
        %v11636 = vpop.f32.mrf.mxu0
        %v11637 = vpop.f32.mrf.mxu0
        %v11638 = vadd.f32 0.0, %v11637
        %v11639 = vpop.f32.mrf.mxu0
        %11640 = vmatprep.mubr.bf16.mxu0 %v11122
        %11641 = vmatmul.mubr.bf16.gmra.mxu0 %v11065
        %v11642 = vpop.f32.mrf.mxu0
        %v11643 = vadd.f32 0.0, %v11642
        %v11644 = vpop.f32.mrf.mxu0
        %v11645 = vpop.f32.mrf.mxu0
        %v11646 = vadd.f32 0.0, %v11645
        %v11647 = vpop.f32.mrf.mxu0
        %11648 = vmatprep.mubr.bf16.mxu0 %v11126
        %11649 = vmatmul.mubr.bf16.gmra.mxu0 %v11068
        %v11650 = vpop.f32.mrf.mxu0
        %v11651 = vadd.f32 0.0, %v11650
        %v11652 = vpop.f32.mrf.mxu0
        %v11653 = vpop.f32.mrf.mxu0
        %v11654 = vadd.f32 0.0, %v11653
        %v11655 = vpop.f32.mrf.mxu0
        %11656 = vmatprep.mubr.bf16.mxu0 %v11130
        %11657 = vmatmul.mubr.bf16.gmra.mxu0 %v11071
        %v11658 = vpop.f32.mrf.mxu0
        %v11659 = vadd.f32 0.0, %v11658
        %v11660 = vpop.f32.mrf.mxu0
        %v11661 = vpop.f32.mrf.mxu0
        %v11662 = vadd.f32 0.0, %v11661
        %v11663 = vpop.f32.mrf.mxu0
        %11664 = vmatprep.mubr.bf16.mxu0 %v11134
        %11665 = vmatmul.mubr.bf16.gmra.mxu0 %v11074
        %v11666 = vpop.f32.mrf.mxu0
        %v11667 = vadd.f32 0.0, %v11666
        %v11668 = vpop.f32.mrf.mxu0
        %v11669 = vpop.f32.mrf.mxu0
        %v11670 = vadd.f32 0.0, %v11669
        %v11671 = vpop.f32.mrf.mxu0
        %11672 = vmatprep.mubr.bf16.mxu0 %v11138
        %11673 = vmatmul.mubr.bf16.gmra.mxu0 %v11077
        %v11674 = vpop.f32.mrf.mxu0
        %v11675 = vadd.f32 0.0, %v11674
        %v11676 = vpop.f32.mrf.mxu0
        %v11677 = vpop.f32.mrf.mxu0
        %v11678 = vadd.f32 0.0, %v11677
        %v11679 = vpop.f32.mrf.mxu0
        %11680 = vmatprep.mubr.bf16.mxu0 %v11142
        %11681 = vmatmul.mubr.bf16.gmra.mxu0 %v11080
        %v11682 = vpop.f32.mrf.mxu0
        %v11683 = vadd.f32 0.0, %v11682
        %v11684 = vpop.f32.mrf.mxu0
        %v11685 = vpop.f32.mrf.mxu0
        %v11686 = vadd.f32 0.0, %v11685
        %v11687 = vpop.f32.mrf.mxu0
        %11688 = vmatprep.mubr.bf16.mxu0 %v11146
        %11689 = vmatmul.mubr.bf16.gmra.mxu0 %v11083
        %v11690 = vpop.f32.mrf.mxu0
        %v11691 = vadd.f32 0.0, %v11690
        %v11692 = vpop.f32.mrf.mxu0
        %v11693 = vpop.f32.mrf.mxu0
        %v11694 = vadd.f32 0.0, %v11693
        %v11695 = vpop.f32.mrf.mxu0
        %11696 = vmatprep.mubr.bf16.mxu0 %v11150
        %11697 = vmatmul.mubr.bf16.gmra.mxu0 %v11086
        %v11698 = vpop.f32.mrf.mxu0
        %v11699 = vadd.f32 0.0, %v11698
        %v11700 = vpop.f32.mrf.mxu0
        %v11701 = vpop.f32.mrf.mxu0
        %v11702 = vadd.f32 0.0, %v11701
        %v11703 = vpop.f32.mrf.mxu0
        %11704 = vdwg.mxu0
        %11705 = vmatprep.subr.bf16.mxu0 0
        %11706 = vmatpush1.bf16.msra.mxu0 %v11461
        %11707 = vmatprep.subr.bf16.mxu0 0
        %11708 = vmatpush1.bf16.msra.mxu0 %v11460
        %11709 = vmatprep.subr.bf16.mxu0 0
        %11710 = vmatpush1.bf16.msra.mxu0 %v11459
        %11711 = vmatprep.subr.bf16.mxu0 0
        %11712 = vmatpush1.bf16.msra.mxu0 %v11458
        %11713 = vmatprep.subr.bf16.mxu0 0
        %11714 = vmatpush1.bf16.msra.mxu0 %v11457
        %11715 = vmatprep.subr.bf16.mxu0 0
        %11716 = vmatpush1.bf16.msra.mxu0 %v11456
        %11717 = vmatprep.subr.bf16.mxu0 0
        %11718 = vmatpush1.bf16.msra.mxu0 %v11455
        %11719 = vmatprep.subr.bf16.mxu0 0
        %11720 = vmatpush1.bf16.msra.mxu0 %v11454
        %11721 = vmatprep.subr.bf16.mxu0 0
        %11722 = vmatpush2.bf16.msra.mxu0 %v11469
        %11723 = vmatprep.subr.bf16.mxu0 0
        %11724 = vmatpush2.bf16.msra.mxu0 %v11468
        %11725 = vmatprep.subr.bf16.mxu0 0
        %11726 = vmatpush2.bf16.msra.mxu0 %v11467
        %11727 = vmatprep.subr.bf16.mxu0 0
        %11728 = vmatpush2.bf16.msra.mxu0 %v11466
        %11729 = vmatprep.subr.bf16.mxu0 0
        %11730 = vmatpush2.bf16.msra.mxu0 %v11465
        %11731 = vmatprep.subr.bf16.mxu0 0
        %11732 = vmatpush2.bf16.msra.mxu0 %v11464
        %11733 = vmatprep.subr.bf16.mxu0 0
        %11734 = vmatpush2.bf16.msra.mxu0 %v11463
        %11735 = vmatprep.subr.bf16.mxu0 0
        %11736 = vmatpush2.bf16.msra.mxu0 %v11462
        %11737 = vmatprep.mubr.bf16.mxu0 %v11047
        %11738 = vmatmul.mubr.bf16.gmra.mxu0 %v11154
        %v11739 = vpop.f32.mrf.mxu0
        %v11740 = vadd.f32 %v11579, %v11739
        %v11741 = vpop.f32.mrf.mxu0
        %v11742 = vpop.f32.mrf.mxu0
        %v11743 = vadd.f32 %v11582, %v11742
        %v11744 = vpop.f32.mrf.mxu0
        %11745 = vmatprep.mubr.bf16.mxu0 %v11050
        %11746 = vmatmul.mubr.bf16.gmra.mxu0 %v11158
        %v11747 = vpop.f32.mrf.mxu0
        %v11748 = vadd.f32 %v11587, %v11747
        %v11749 = vpop.f32.mrf.mxu0
        %v11750 = vpop.f32.mrf.mxu0
        %v11751 = vadd.f32 %v11590, %v11750
        %v11752 = vpop.f32.mrf.mxu0
        %11753 = vmatprep.mubr.bf16.mxu0 %v11053
        %11754 = vmatmul.mubr.bf16.gmra.mxu0 %v11162
        %v11755 = vpop.f32.mrf.mxu0
        %v11756 = vadd.f32 %v11595, %v11755
        %v11757 = vpop.f32.mrf.mxu0
        %v11758 = vpop.f32.mrf.mxu0
        %v11759 = vadd.f32 %v11598, %v11758
        %v11760 = vpop.f32.mrf.mxu0
        %11761 = vmatprep.mubr.bf16.mxu0 %v11056
        %11762 = vmatmul.mubr.bf16.gmra.mxu0 %v11166
        %v11763 = vpop.f32.mrf.mxu0
        %v11764 = vadd.f32 %v11603, %v11763
        %v11765 = vpop.f32.mrf.mxu0
        %v11766 = vpop.f32.mrf.mxu0
        %v11767 = vadd.f32 %v11606, %v11766
        %v11768 = vpop.f32.mrf.mxu0
        %11769 = vmatprep.mubr.bf16.mxu0 %v11059
        %11770 = vmatmul.mubr.bf16.gmra.mxu0 %v11170
        %v11771 = vpop.f32.mrf.mxu0
        %v11772 = vadd.f32 %v11611, %v11771
        %v11773 = vpop.f32.mrf.mxu0
        %v11774 = vpop.f32.mrf.mxu0
        %v11775 = vadd.f32 %v11614, %v11774
        %v11776 = vpop.f32.mrf.mxu0
        %11777 = vmatprep.mubr.bf16.mxu0 %v11062
        %11778 = vmatmul.mubr.bf16.gmra.mxu0 %v11174
        %v11779 = vpop.f32.mrf.mxu0
        %v11780 = vadd.f32 %v11619, %v11779
        %v11781 = vpop.f32.mrf.mxu0
        %v11782 = vpop.f32.mrf.mxu0
        %v11783 = vadd.f32 %v11622, %v11782
        %v11784 = vpop.f32.mrf.mxu0
        %11785 = vmatprep.mubr.bf16.mxu0 %v11065
        %11786 = vmatmul.mubr.bf16.gmra.mxu0 %v11178
        %v11787 = vpop.f32.mrf.mxu0
        %v11788 = vadd.f32 %v11627, %v11787
        %v11789 = vpop.f32.mrf.mxu0
        %v11790 = vpop.f32.mrf.mxu0
        %v11791 = vadd.f32 %v11630, %v11790
        %v11792 = vpop.f32.mrf.mxu0
        %11793 = vmatprep.mubr.bf16.mxu0 %v11068
        %11794 = vmatmul.mubr.bf16.gmra.mxu0 %v11182
        %v11795 = vpop.f32.mrf.mxu0
        %v11796 = vadd.f32 %v11635, %v11795
        %v11797 = vpop.f32.mrf.mxu0
        %v11798 = vpop.f32.mrf.mxu0
        %v11799 = vadd.f32 %v11638, %v11798
        %v11800 = vpop.f32.mrf.mxu0
        %11801 = vmatprep.mubr.bf16.mxu0 %v11071
        %11802 = vmatmul.mubr.bf16.gmra.mxu0 %v11186
        %v11803 = vpop.f32.mrf.mxu0
        %v11804 = vadd.f32 %v11643, %v11803
        %v11805 = vpop.f32.mrf.mxu0
        %v11806 = vpop.f32.mrf.mxu0
        %v11807 = vadd.f32 %v11646, %v11806
        %v11808 = vpop.f32.mrf.mxu0
        %11809 = vmatprep.mubr.bf16.mxu0 %v11074
        %11810 = vmatmul.mubr.bf16.gmra.mxu0 %v11190
        %v11811 = vpop.f32.mrf.mxu0
        %v11812 = vadd.f32 %v11651, %v11811
        %v11813 = vpop.f32.mrf.mxu0
        %v11814 = vpop.f32.mrf.mxu0
        %v11815 = vadd.f32 %v11654, %v11814
        %v11816 = vpop.f32.mrf.mxu0
        %11817 = vmatprep.mubr.bf16.mxu0 %v11077
        %11818 = vmatmul.mubr.bf16.gmra.mxu0 %v11194
        %v11819 = vpop.f32.mrf.mxu0
        %v11820 = vadd.f32 %v11659, %v11819
        %v11821 = vpop.f32.mrf.mxu0
        %v11822 = vpop.f32.mrf.mxu0
        %v11823 = vadd.f32 %v11662, %v11822
        %v11824 = vpop.f32.mrf.mxu0
        %11825 = vmatprep.mubr.bf16.mxu0 %v11080
        %11826 = vmatmul.mubr.bf16.gmra.mxu0 %v11198
        %v11827 = vpop.f32.mrf.mxu0
        %v11828 = vadd.f32 %v11667, %v11827
        %v11829 = vpop.f32.mrf.mxu0
        %v11830 = vpop.f32.mrf.mxu0
        %v11831 = vadd.f32 %v11670, %v11830
        %v11832 = vpop.f32.mrf.mxu0
        %11833 = vmatprep.mubr.bf16.mxu0 %v11083
        %11834 = vmatmul.mubr.bf16.gmra.mxu0 %v11202
        %v11835 = vpop.f32.mrf.mxu0
        %v11836 = vadd.f32 %v11675, %v11835
        %v11837 = vpop.f32.mrf.mxu0
        %v11838 = vpop.f32.mrf.mxu0
        %v11839 = vadd.f32 %v11678, %v11838
        %v11840 = vpop.f32.mrf.mxu0
        %11841 = vmatprep.mubr.bf16.mxu0 %v11086
        %11842 = vmatmul.mubr.bf16.gmra.mxu0 %v11206
        %v11843 = vpop.f32.mrf.mxu0
        %v11844 = vadd.f32 %v11683, %v11843
        %v11845 = vpop.f32.mrf.mxu0
        %v11846 = vpop.f32.mrf.mxu0
        %v11847 = vadd.f32 %v11686, %v11846
        %v11848 = vpop.f32.mrf.mxu0
        %11849 = vmatprep.mubr.bf16.mxu0 %v11217
        %11850 = vmatmul.mubr.bf16.gmra.mxu0 %v11210
        %v11851 = vpop.f32.mrf.mxu0
        %v11852 = vadd.f32 %v11691, %v11851
        %v11853 = vpop.f32.mrf.mxu0
        %v11854 = vpop.f32.mrf.mxu0
        %v11855 = vadd.f32 %v11694, %v11854
        %v11856 = vpop.f32.mrf.mxu0
        %11857 = vmatprep.mubr.bf16.mxu0 %v11220
        %11858 = vmatmul.mubr.bf16.gmra.mxu0 %v11214
        %v11859 = vpop.f32.mrf.mxu0
        %v11860 = vadd.f32 %v11699, %v11859
        %v11861 = vpop.f32.mrf.mxu0
        %v11862 = vpop.f32.mrf.mxu0
        %v11863 = vadd.f32 %v11702, %v11862
        %v11864 = vpop.f32.mrf.mxu0
        %11865 = vdwg.mxu0
        %11866 = vmatprep.subr.bf16.mxu0 0
        %11867 = vmatpush1.bf16.msra.mxu0 0
        %11868 = vmatprep.subr.bf16.mxu0 0
        %11869 = vmatpush1.bf16.msra.mxu0 0
        %11870 = vmatprep.subr.bf16.mxu0 0
        %11871 = vmatpush1.bf16.msra.mxu0 0
        %11872 = vmatprep.subr.bf16.mxu0 0
        %11873 = vmatpush1.bf16.msra.mxu0 0
        %11874 = vmatprep.subr.bf16.mxu0 0
        %11875 = vmatpush1.bf16.msra.mxu0 %v11473
        %11876 = vmatprep.subr.bf16.mxu0 0
        %11877 = vmatpush1.bf16.msra.mxu0 %v11472
        %11878 = vmatprep.subr.bf16.mxu0 0
        %11879 = vmatpush1.bf16.msra.mxu0 %v11471
        %11880 = vmatprep.subr.bf16.mxu0 0
        %11881 = vmatpush1.bf16.msra.mxu0 %v11470
        %11882 = vmatprep.subr.bf16.mxu0 0
        %11883 = vmatpush2.bf16.msra.mxu0 0
        %11884 = vmatprep.subr.bf16.mxu0 0
        %11885 = vmatpush2.bf16.msra.mxu0 0
        %11886 = vmatprep.subr.bf16.mxu0 0
        %11887 = vmatpush2.bf16.msra.mxu0 0
        %11888 = vmatprep.subr.bf16.mxu0 0
        %11889 = vmatpush2.bf16.msra.mxu0 0
        %11890 = vmatprep.subr.bf16.mxu0 0
        %11891 = vmatpush2.bf16.msra.mxu0 0
        %11892 = vmatprep.subr.bf16.mxu0 0
        %11893 = vmatpush2.bf16.msra.mxu0 0
        %11894 = vmatprep.subr.bf16.mxu0 0
        %11895 = vmatpush2.bf16.msra.mxu0 0
        %11896 = vmatprep.subr.bf16.mxu0 0
        %11897 = vmatpush2.bf16.msra.mxu0 0
        %11898 = vmatprep.mubr.bf16.mxu0 0
        %11899 = vmatmul.mubr.bf16.gmra.mxu0 %v11510
        %v11900 = vpop.f32.mrf.mxu0
        %v11901 = vadd.f32 %v11740, %v11900
        %v11902 = vpop.f32.mrf.mxu0
        %v11903 = vpop.f32.mrf.mxu0
        %v11904 = vadd.f32 %v11743, %v11903
        %v11905 = vpop.f32.mrf.mxu0
        %11906 = vmatprep.mubr.bf16.mxu0 0
        %11907 = vmatmul.mubr.bf16.gmra.mxu0 %v11512
        %v11908 = vpop.f32.mrf.mxu0
        %v11909 = vadd.f32 %v11748, %v11908
        %v11910 = vpop.f32.mrf.mxu0
        %v11911 = vpop.f32.mrf.mxu0
        %v11912 = vadd.f32 %v11751, %v11911
        %v11913 = vpop.f32.mrf.mxu0
        %11914 = vmatprep.mubr.bf16.mxu0 0
        %11915 = vmatmul.mubr.bf16.gmra.mxu0 %v11514
        %v11916 = vpop.f32.mrf.mxu0
        %v11917 = vadd.f32 %v11756, %v11916
        %v11918 = vpop.f32.mrf.mxu0
        %v11919 = vpop.f32.mrf.mxu0
        %v11920 = vadd.f32 %v11759, %v11919
        %v11921 = vpop.f32.mrf.mxu0
        %11922 = vmatprep.mubr.bf16.mxu0 0
        %11923 = vmatmul.mubr.bf16.gmra.mxu0 %v11516
        %v11924 = vpop.f32.mrf.mxu0
        %v11925 = vadd.f32 %v11764, %v11924
        %v11926 = vpop.f32.mrf.mxu0
        %v11927 = vpop.f32.mrf.mxu0
        %v11928 = vadd.f32 %v11767, %v11927
        %v11929 = vpop.f32.mrf.mxu0
        %11930 = vmatprep.mubr.bf16.mxu0 0
        %11931 = vmatmul.mubr.bf16.gmra.mxu0 %v11518
        %v11932 = vpop.f32.mrf.mxu0
        %v11933 = vadd.f32 %v11772, %v11932
        %v11934 = vpop.f32.mrf.mxu0
        %v11935 = vpop.f32.mrf.mxu0
        %v11936 = vadd.f32 %v11775, %v11935
        %v11937 = vpop.f32.mrf.mxu0
        %11938 = vmatprep.mubr.bf16.mxu0 0
        %11939 = vmatmul.mubr.bf16.gmra.mxu0 %v11520
        %v11940 = vpop.f32.mrf.mxu0
        %v11941 = vadd.f32 %v11780, %v11940
        %v11942 = vpop.f32.mrf.mxu0
        %v11943 = vpop.f32.mrf.mxu0
        %v11944 = vadd.f32 %v11783, %v11943
        %v11945 = vpop.f32.mrf.mxu0
        %11946 = vmatprep.mubr.bf16.mxu0 0
        %11947 = vmatmul.mubr.bf16.gmra.mxu0 %v11522
        %v11948 = vpop.f32.mrf.mxu0
        %v11949 = vadd.f32 %v11788, %v11948
        %v11950 = vpop.f32.mrf.mxu0
        %v11951 = vpop.f32.mrf.mxu0
        %v11952 = vadd.f32 %v11791, %v11951
        %v11953 = vpop.f32.mrf.mxu0
        %11954 = vmatprep.mubr.bf16.mxu0 0
        %11955 = vmatmul.mubr.bf16.gmra.mxu0 %v11524
        %v11956 = vpop.f32.mrf.mxu0
        %v11957 = vadd.f32 %v11796, %v11956
        %v11958 = vpop.f32.mrf.mxu0
        %v11959 = vpop.f32.mrf.mxu0
        %v11960 = vadd.f32 %v11799, %v11959
        %v11961 = vpop.f32.mrf.mxu0
        %11962 = vmatprep.mubr.bf16.mxu0 0
        %11963 = vmatmul.mubr.bf16.gmra.mxu0 %v11526
        %v11964 = vpop.f32.mrf.mxu0
        %v11965 = vadd.f32 %v11804, %v11964
        %v11966 = vpop.f32.mrf.mxu0
        %v11967 = vpop.f32.mrf.mxu0
        %v11968 = vadd.f32 %v11807, %v11967
        %v11969 = vpop.f32.mrf.mxu0
        %11970 = vmatprep.mubr.bf16.mxu0 0
        %11971 = vmatmul.mubr.bf16.gmra.mxu0 %v11528
        %v11972 = vpop.f32.mrf.mxu0
        %v11973 = vadd.f32 %v11812, %v11972
        %v11974 = vpop.f32.mrf.mxu0
        %v11975 = vpop.f32.mrf.mxu0
        %v11976 = vadd.f32 %v11815, %v11975
        %v11977 = vpop.f32.mrf.mxu0
        %11978 = vmatprep.mubr.bf16.mxu0 0
        %11979 = vmatmul.mubr.bf16.gmra.mxu0 %v11530
        %v11980 = vpop.f32.mrf.mxu0
        %v11981 = vadd.f32 %v11820, %v11980
        %v11982 = vpop.f32.mrf.mxu0
        %v11983 = vpop.f32.mrf.mxu0
        %v11984 = vadd.f32 %v11823, %v11983
        %v11985 = vpop.f32.mrf.mxu0
        %11986 = vmatprep.mubr.bf16.mxu0 0
        %11987 = vmatmul.mubr.bf16.gmra.mxu0 %v11532
        %v11988 = vpop.f32.mrf.mxu0
        %v11989 = vadd.f32 %v11828, %v11988
        %v11990 = vpop.f32.mrf.mxu0
        %v11991 = vpop.f32.mrf.mxu0
        %v11992 = vadd.f32 %v11831, %v11991
        %v11993 = vpop.f32.mrf.mxu0
        %11994 = vmatprep.mubr.bf16.mxu0 0
        %11995 = vmatmul.mubr.bf16.gmra.mxu0 %v11534
        %v11996 = vpop.f32.mrf.mxu0
        %v11997 = vadd.f32 %v11836, %v11996
        %v11998 = vpop.f32.mrf.mxu0
        %v11999 = vpop.f32.mrf.mxu0
        %v12000 = vadd.f32 %v11839, %v11999
        %v12001 = vpop.f32.mrf.mxu0
        %12002 = vmatprep.mubr.bf16.mxu0 0
        %12003 = vmatmul.mubr.bf16.gmra.mxu0 %v11536
        %v12004 = vpop.f32.mrf.mxu0
        %v12005 = vadd.f32 %v11844, %v12004
        %v12006 = vpop.f32.mrf.mxu0
        %v12007 = vpop.f32.mrf.mxu0
        %v12008 = vadd.f32 %v11847, %v12007
        %v12009 = vpop.f32.mrf.mxu0
        %12010 = vmatprep.mubr.bf16.mxu0 0
        %12011 = vmatmul.mubr.bf16.gmra.mxu0 %v11539
        %v12012 = vpop.f32.mrf.mxu0
        %v12013 = vadd.f32 %v11852, %v12012
        %v12014 = vpop.f32.mrf.mxu0
        %v12015 = vpop.f32.mrf.mxu0
        %v12016 = vadd.f32 %v11855, %v12015
        %v12017 = vpop.f32.mrf.mxu0
        %12018 = vmatprep.mubr.bf16.mxu0 0
        %12019 = vmatmul.mubr.bf16.gmra.mxu0 %v11542
        %v12020 = vpop.f32.mrf.mxu0
        %v12021 = vadd.f32 %v11860, %v12020
        %v12022 = vpop.f32.mrf.mxu0
        %v12023 = vpop.f32.mrf.mxu0
        %v12024 = vadd.f32 %v11863, %v12023
        %v12025 = vpop.f32.mrf.mxu0
        %12026 = vdwg.mxu0
        %v12027 = vld [vmem:[%s5] sm:$0x1]
        %v12029 = vlaneseq
        %v12030 = vshrl.u32 %v12029, 7
        %v12031 = vsub.s32 0, %v12030
        %v12032 = vrot.slane %v12027, %v12031
        %v12034 = vadd.f32 %v11901, %v12032
        %v12035 = vadd.f32 %v11904, %v12032
        %v12036 = vadd.f32 %v11909, %v12032
        %v12037 = vadd.f32 %v11912, %v12032
        %v12038 = vadd.f32 %v11917, %v12032
        %v12039 = vadd.f32 %v11920, %v12032
        %v12040 = vadd.f32 %v11925, %v12032
        %v12041 = vadd.f32 %v11928, %v12032
        %v12042 = vadd.f32 %v11933, %v12032
        %v12043 = vadd.f32 %v11936, %v12032
        %v12044 = vadd.f32 %v11941, %v12032
        %v12045 = vadd.f32 %v11944, %v12032
        %v12046 = vadd.f32 %v11949, %v12032
        %v12047 = vadd.f32 %v11952, %v12032
        %v12048 = vadd.f32 %v11957, %v12032
        %v12049 = vadd.f32 %v11960, %v12032
        %v12050 = vadd.f32 %v11965, %v12032
        %v12051 = vadd.f32 %v11968, %v12032
        %v12052 = vadd.f32 %v11973, %v12032
        %v12053 = vadd.f32 %v11976, %v12032
        %v12054 = vadd.f32 %v11981, %v12032
        %v12055 = vadd.f32 %v11984, %v12032
        %v12056 = vadd.f32 %v11989, %v12032
        %v12057 = vadd.f32 %v11992, %v12032
        %v12058 = vadd.f32 %v11997, %v12032
        %v12059 = vadd.f32 %v12000, %v12032
        %v12060 = vadd.f32 %v12005, %v12032
        %v12061 = vadd.f32 %v12008, %v12032
        %v12062 = vadd.f32 %v12013, %v12032
        %v12063 = vadd.f32 %v12016, %v12032
        %v12064 = vadd.f32 %v12021, %v12032
        %v12065 = vadd.f32 %v12024, %v12032
        %vm12098 = vcmask 1041408
        %v12099 = vrot.slane %v12034, 6
        %v12100 = vrot.slane %v12035, 6
        %v12101 = vsel %vm12098, %v12099, %v12100
        %v12102 = vrot.slane %v12036, 6
        %v12103 = vrot.slane %v12037, 6
        %v12104 = vsel %vm12098, %v12102, %v12103
        %v12105 = vrot.slane %v12038, 6
        %v12106 = vrot.slane %v12039, 6
        %v12107 = vsel %vm12098, %v12105, %v12106
        %v12108 = vrot.slane %v12040, 6
        %v12109 = vrot.slane %v12041, 6
        %v12110 = vsel %vm12098, %v12108, %v12109
        %v12111 = vrot.slane %v12042, 6
        %v12112 = vrot.slane %v12043, 6
        %v12113 = vsel %vm12098, %v12111, %v12112
        %v12114 = vrot.slane %v12044, 6
        %v12115 = vrot.slane %v12045, 6
        %v12116 = vsel %vm12098, %v12114, %v12115
        %v12117 = vrot.slane %v12046, 6
        %v12118 = vrot.slane %v12047, 6
        %v12119 = vsel %vm12098, %v12117, %v12118
        %v12120 = vrot.slane %v12048, 6
        %v12121 = vrot.slane %v12049, 6
        %v12122 = vsel %vm12098, %v12120, %v12121
        %v12123 = vrot.slane %v12050, 6
        %v12124 = vrot.slane %v12051, 6
        %v12125 = vsel %vm12098, %v12123, %v12124
        %v12126 = vrot.slane %v12052, 6
        %v12127 = vrot.slane %v12053, 6
        %v12128 = vsel %vm12098, %v12126, %v12127
        %v12129 = vrot.slane %v12054, 6
        %v12130 = vrot.slane %v12055, 6
        %v12131 = vsel %vm12098, %v12129, %v12130
        %v12132 = vrot.slane %v12056, 6
        %v12133 = vrot.slane %v12057, 6
        %v12134 = vsel %vm12098, %v12132, %v12133
        %v12135 = vrot.slane %v12058, 6
        %v12136 = vrot.slane %v12059, 6
        %v12137 = vsel %vm12098, %v12135, %v12136
        %v12138 = vrot.slane %v12060, 6
        %v12139 = vrot.slane %v12061, 6
        %v12140 = vsel %vm12098, %v12138, %v12139
        %v12141 = vrot.slane %v12062, 6
        %v12142 = vrot.slane %v12063, 6
        %v12143 = vsel %vm12098, %v12141, %v12142
        %v12144 = vrot.slane %v12064, 6
        %v12145 = vrot.slane %v12065, 6
        %v12146 = vsel %vm12098, %v12144, %v12145
        %v12195 = vadd.f32 %v369, %v12099
        %v12196 = vadd.f32 %v370, %v12101
        %v12197 = vadd.f32 %v371, %v12100
        %v12198 = vadd.f32 %v372, %v12102
        %v12199 = vadd.f32 %v373, %v12104
        %v12200 = vadd.f32 %v374, %v12103
        %v12201 = vadd.f32 %v375, %v12105
        %v12202 = vadd.f32 %v376, %v12107
        %v12203 = vadd.f32 %v377, %v12106
        %v12204 = vadd.f32 %v378, %v12108
        %v12205 = vadd.f32 %v379, %v12110
        %v12206 = vadd.f32 %v380, %v12109
        %v12207 = vadd.f32 %v381, %v12111
        %v12208 = vadd.f32 %v382, %v12113
        %v12209 = vadd.f32 %v383, %v12112
        %v12210 = vadd.f32 %v384, %v12114
        %v12211 = vadd.f32 %v385, %v12116
        %v12212 = vadd.f32 %v386, %v12115
        %v12213 = vadd.f32 %v387, %v12117
        %v12214 = vadd.f32 %v388, %v12119
        %v12215 = vadd.f32 %v389, %v12118
        %v12216 = vadd.f32 %v390, %v12120
        %v12217 = vadd.f32 %v391, %v12122
        %v12218 = vadd.f32 %v392, %v12121
        %v12219 = vadd.f32 %v393, %v12123
        %v12220 = vadd.f32 %v394, %v12125
        %v12221 = vadd.f32 %v395, %v12124
        %v12222 = vadd.f32 %v396, %v12126
        %v12223 = vadd.f32 %v397, %v12128
        %v12224 = vadd.f32 %v398, %v12127
        %v12225 = vadd.f32 %v399, %v12129
        %v12226 = vadd.f32 %v400, %v12131
        %v12227 = vadd.f32 %v401, %v12130
        %v12228 = vadd.f32 %v402, %v12132
        %v12229 = vadd.f32 %v403, %v12134
        %v12230 = vadd.f32 %v404, %v12133
        %v12231 = vadd.f32 %v405, %v12135
        %v12232 = vadd.f32 %v406, %v12137
        %v12233 = vadd.f32 %v407, %v12136
        %v12234 = vadd.f32 %v408, %v12138
        %v12235 = vadd.f32 %v409, %v12140
        %v12236 = vadd.f32 %v410, %v12139
        %v12237 = vadd.f32 %v411, %v12141
        %v12238 = vadd.f32 %v412, %v12143
        %v12239 = vadd.f32 %v413, %v12142
        %v12240 = vadd.f32 %v414, %v12144
        %v12241 = vadd.f32 %v415, %v12146
        %v12242 = vadd.f32 %v416, %v12145
        %vm12243 = vcmask 523266
        %12244 = vst.msk [vmem:[%s324 - $0x2] sm:$0xfc] %vm12243, %v12195
        %12245 = vst.msk [vmem:[%s324 + $0x6] sm:$0xff] %vm1089, %v12196
        %vm12246 = vcmask 517120
        %12247 = vst.msk [vmem:[%s324 + $0xe] sm:$0x3] %vm12246, %v12197
        %12248 = vst.msk [vmem:[%s324 + $0xe] sm:$0xfc] %vm12243, %v12198
        %12249 = vst.msk [vmem:[%s324 + $0x16] sm:$0xff] %vm1089, %v12199
        %12250 = vst.msk [vmem:[%s324 + $0x1e] sm:$0x3] %vm12246, %v12200
        %12251 = vst.msk [vmem:[%s324 + $0x1e] sm:$0xfc] %vm12243, %v12201
        %12252 = vst.msk [vmem:[%s324 + $0x26] sm:$0xff] %vm1089, %v12202
        %12253 = vst.msk [vmem:[%s324 + $0x2e] sm:$0x3] %vm12246, %v12203
        %12254 = vst.msk [vmem:[%s324 + $0x2e] sm:$0xfc] %vm12243, %v12204
        %12255 = vst.msk [vmem:[%s324 + $0x36] sm:$0xff] %vm1089, %v12205
        %12256 = vst.msk [vmem:[%s324 + $0x3e] sm:$0x3] %vm12246, %v12206
        %12257 = vst.msk [vmem:[%s324 + $0x3e] sm:$0xfc] %vm12243, %v12207
        %12258 = vst.msk [vmem:[%s324 + $0x46] sm:$0xff] %vm1089, %v12208
        %12259 = vst.msk [vmem:[%s324 + $0x4e] sm:$0x3] %vm12246, %v12209
        %12260 = vst.msk [vmem:[%s324 + $0x4e] sm:$0xfc] %vm12243, %v12210
        %12261 = vst.msk [vmem:[%s324 + $0x56] sm:$0xff] %vm1089, %v12211
        %12262 = vst.msk [vmem:[%s324 + $0x5e] sm:$0x3] %vm12246, %v12212
        %12263 = vst.msk [vmem:[%s324 + $0x5e] sm:$0xfc] %vm12243, %v12213
        %12264 = vst.msk [vmem:[%s324 + $0x66] sm:$0xff] %vm1089, %v12214
        %12265 = vst.msk [vmem:[%s324 + $0x6e] sm:$0x3] %vm12246, %v12215
        %12266 = vst.msk [vmem:[%s324 + $0x6e] sm:$0xfc] %vm12243, %v12216
        %12267 = vst.msk [vmem:[%s324 + $0x76] sm:$0xff] %vm1089, %v12217
        %12268 = vst.msk [vmem:[%s324 + $0x7e] sm:$0x3] %vm12246, %v12218
        %12269 = vst.msk [vmem:[%s324 + $0x7e] sm:$0xfc] %vm12243, %v12219
        %12270 = vst.msk [vmem:[%s324 + $0x86] sm:$0xff] %vm1089, %v12220
        %12271 = vst.msk [vmem:[%s324 + $0x8e] sm:$0x3] %vm12246, %v12221
        %12272 = vst.msk [vmem:[%s324 + $0x8e] sm:$0xfc] %vm12243, %v12222
        %12273 = vst.msk [vmem:[%s324 + $0x96] sm:$0xff] %vm1089, %v12223
        %12274 = vst.msk [vmem:[%s324 + $0x9e] sm:$0x3] %vm12246, %v12224
        %12275 = vst.msk [vmem:[%s324 + $0x9e] sm:$0xfc] %vm12243, %v12225
        %12276 = vst.msk [vmem:[%s324 + $0xa6] sm:$0xff] %vm1089, %v12226
        %12277 = vst.msk [vmem:[%s324 + $0xae] sm:$0x3] %vm12246, %v12227
        %12278 = vst.msk [vmem:[%s324 + $0xae] sm:$0xfc] %vm12243, %v12228
        %12279 = vst.msk [vmem:[%s324 + $0xb6] sm:$0xff] %vm1089, %v12229
        %12280 = vst.msk [vmem:[%s324 + $0xbe] sm:$0x3] %vm12246, %v12230
        %12281 = vst.msk [vmem:[%s324 + $0xbe] sm:$0xfc] %vm12243, %v12231
        %12282 = vst.msk [vmem:[%s324 + $0xc6] sm:$0xff] %vm1089, %v12232
        %12283 = vst.msk [vmem:[%s324 + $0xce] sm:$0x3] %vm12246, %v12233
        %12284 = vst.msk [vmem:[%s324 + $0xce] sm:$0xfc] %vm12243, %v12234
        %12285 = vst.msk [vmem:[%s324 + $0xd6] sm:$0xff] %vm1089, %v12235
        %12286 = vst.msk [vmem:[%s324 + $0xde] sm:$0x3] %vm12246, %v12236
        %12287 = vst.msk [vmem:[%s324 + $0xde] sm:$0xfc] %vm12243, %v12237
        %12288 = vst.msk [vmem:[%s324 + $0xe6] sm:$0xff] %vm1089, %v12238
        %12289 = vst.msk [vmem:[%s324 + $0xee] sm:$0x3] %vm12246, %v12239
        %12290 = vst.msk [vmem:[%s324 + $0xee] sm:$0xfc] %vm12243, %v12240
        %12291 = vst.msk [vmem:[%s324 + $0xf6] sm:$0xff] %vm1089, %v12241
        %12292 = vst.msk [vmem:[%s324 + $0xfe] sm:$0x3] %vm12246, %v12242
        %s12293 = sand.u32 %s186, 1
        %s12294 = scalar_lea.sflag [#allocation3], %s12293
        %s12295 = sand.u32 %s186, 1
        %s12296 = smul.addr %s12295, 256
        %s12297 = scalar_lea.vmem [#allocation2], %s12296
        // Predicated region
        $region45: #{tpu_custom_call.1} parent=43 // pred_check
          %p12298 = pneg %p196
        $region46: #{tpu_custom_call.1} parent=43 // pred_check_branch
          %12300 = sbr.rel (%p12298) target = $region48
        $region47: #{tpu_custom_call.1} parent=43 // pred_region
          %s12301 = smul.u32 16, %s25
          %s12303 = ssub.s32 4096, 4096
          %12304 = vsyncadd %s12294, %s12303
          %s12305 = smul.addr %s12301, 2
          %s12306 = smul.addr %s24, 32
          %s12307 = sadd.s32 %s12305, %s12306
          %s12308 = smul.addr %s12307, 128
          %s12309 = scalar_lea.hbm %s6, %s12308
          %s12310 = sshll.u32 %s12297, 4
          %s12311 = int_to_ptr.vmem [resolvable:$true] %s12310
          %12316 = dma.vmem_to_hbm [thread:$0]  %s12311, 4096, %s12309, %s12294, 128, 128, 8
        $region48: #{tpu_custom_call.1} parent=43 // pred_fallthru
          _
      $region44: #{tpu_custom_call.1} parent=5 // pred_fallthru
        _
      %p12317 = scmp.le.s32.totalorder 2, %s15
      // Predicated region
      $region49: #{tpu_custom_call.1} parent=5 // pred_check
        %p12318 = pneg %p12317
      $region50: #{tpu_custom_call.1} parent=5 // pred_check_branch
        %12320 = sbr.rel (%p12318) target = $region52
      $region51: #{tpu_custom_call.1} parent=5 // pred_region
        %s12321 = ssub.s32 %s15, 2
        // Predicated region
        $region53: #{tpu_custom_call.1} parent=51 // pred_check
          %p12322 = pneg %p202
        $region54: #{tpu_custom_call.1} parent=51 // pred_check_branch
          %12324 = sbr.rel (%p12322) target = $region56
        $region55: #{tpu_custom_call.1} parent=51 // pred_region
          %s12325 = sand.u32 %s187, 1
          %s12326 = scalar_lea.sflag [#allocation3], %s12325
          %s12327 = sand.u32 %s187, 1
          %s12328 = smul.addr %s12327, 256
          %s12329 = scalar_lea.vmem [#allocation2], %s12328
          %12330 = dma.done %s12326, 4096
        $region56: #{tpu_custom_call.1} parent=51 // pred_fallthru
          _
      $region52: #{tpu_custom_call.1} parent=5 // pred_fallthru
        _
    $region6: #{tpu_custom_call.1} parent=1 // loop_footer
      %s19 = sadd.s32 1, %s15
    $region7: #{tpu_custom_call.1} parent=1 // loop_footer_branch
      %14 = sbr.rel target = $region3
    $region8: #{tpu_custom_call.1} parent=1 // loop_exit
      _
    %12331 = vsyncpa [#allocation3], 1
    %s12332 = scalar_lea.sflag [#allocation3], 1
    %12333 = vsyncpa %s12332, 1

</llo_original>
